<compile_context>
chip_gen: v5e
topology: v5e:2x2
jax: 0.10.0
libtpu: 0.0.40
codegen_flags: <defaults>
</compile_context>

<pallas_src>
import jax
import jax.numpy as jnp
import numpy as np
from jax.experimental import pallas as pl
from jax.experimental.pallas import tpu as pltpu


# ---------------------------------------------------------------------------
# Fused kernel: N images per grid step (rows interleaved as q*N + n).
# ---------------------------------------------------------------------------
def simple_cnn_kernel(x4_ref, w1_ref, w2_ref, wf_ref, b1_ref, b2_ref, bf_ref,
                      o_ref, he_ref, ho_ref):
    f32 = jnp.float32
    bf16 = jnp.bfloat16
    n_img = x4_ref.shape[2] // 9        # images per grid step
    m = 8 * n_img                       # matmul M for the conv row slabs

    # ------------------ conv1 (5x5, 3->32, pad=2) + ReLU + 2x2 maxpool ------
    # xq: (4, 9N, 128) bf16 = row-padded input, padded rows split by (row%4),
    # the N images interleaved along sublanes (index = (row//4)*N + n),
    # lanes = w*3 + c, zero-padded to 128 (W padding is folded into weights).
    xq = x4_ref[0]

    # kh-outer / s-inner: the 4 residue-class dots that share w1[kh] run
    # back-to-back against the latched MXU weight tile.
    # acc[s] row q*N+n = pre-pool conv1 output row (4q+s) of image n;
    # output lanes = (wo%2)*512 + (wo//2)*32 + co.
    acc = [None, None, None, None]
    for kh in range(5):
        w = w1_ref[kh]                                           # (128, 1024)
        for s in range(4):
            cls = (s + kh) % 4          # residue class of padded row 4q+s+kh
            q0 = (s + kh) // 4          # slab offset inside that class
            lhs = xq[cls, q0 * n_img:q0 * n_img + m, :]          # (8N, 128)
            p = jnp.dot(lhs, w, preferred_element_type=f32)      # (8N, 1024)
            acc[s] = p if acc[s] is None else acc[s] + p

    # 2x2 max-pool (max commutes with the shared per-channel bias + ReLU).
    pe = jnp.maximum(acc[0], acc[1])        # rows 4q   vs 4q+1 -> even pooled rows
    po = jnp.maximum(acc[2], acc[3])        # rows 4q+2 vs 4q+3 -> odd  pooled rows
    h1e = jnp.maximum(pe[:, :512], pe[:, 512:])     # even/odd wo halves (8N, 512)
    h1o = jnp.maximum(po[:, :512], po[:, 512:])     # lanes = wo2*32 + co
    h1e = jnp.maximum(h1e + b1_ref[...], 0.0)       # bias + ReLU
    h1o = jnp.maximum(h1o + b1_ref[...], 0.0)
    h1e_b = h1e.astype(bf16)
    h1o_b = h1o.astype(bf16)

    # ------------------ conv2 (3x3, 32->16, pad=1) + ReLU + 2x2 maxpool -----
    # conv2 padded row r (0..17) = h1 row r-1 (rows 0 and 17 are zero).
    #   he0[mN+n] = padded row 2m   = [zero,  h1o rows 0..7N-N-1]   (scratch)
    #   ho0[mN+n] = padded row 2m+1 = h1e                            (direct)
    #   he1[mN+n] = padded row 2m+2 = h1o                            (direct)
    #   ho1[mN+n] = padded row 2m+3 = [h1e rows N..8N-1, zero]       (scratch)
    # Only the two boundary rows need zeroing; everything else is overwritten.
    he_ref[0:n_img, :] = jnp.zeros((n_img, 512), bf16)   # padded row 0
    he_ref[n_img:, :] = h1o_b
    ho_ref[0:m, :] = h1e_b
    ho_ref[m:, :] = jnp.zeros((n_img, 512), bf16)        # padded row 17

    he0 = he_ref[0:m, :]                                 # (8N, 512) bf16
    ho1 = ho_ref[n_img:, :]                              # (8N, 512) bf16
    ho0 = h1e_b
    he1 = h1o_b

    # Dots grouped by weight tap so each latched w2[kh] serves two matmuls.
    w20 = w2_ref[0]
    acc2e = jnp.dot(he0, w20, preferred_element_type=f32)          # even rows
    acc2o = jnp.dot(ho0, w20, preferred_element_type=f32)          # odd rows
    w21 = w2_ref[1]
    acc2e = acc2e + jnp.dot(ho0, w21, preferred_element_type=f32)
    acc2o = acc2o + jnp.dot(he1, w21, preferred_element_type=f32)
    w22 = w2_ref[2]
    acc2e = acc2e + jnp.dot(he1, w22, preferred_element_type=f32)
    acc2o = acc2o + jnp.dot(ho1, w22, preferred_element_type=f32)  # (8N, 256)

    v2 = jnp.maximum(acc2e, acc2o)                 # vertical 2x1 pool  (8N, 256)
    h2 = jnp.maximum(v2[:, :128], v2[:, 128:])     # horizontal 1x2 pool (8N, 128)
    h2 = jnp.maximum(h2 + b2_ref[...], 0.0)        # bias + ReLU; lanes = wo2*16+co
    h2_b = h2.astype(bf16)                         # rows = h*N + n

    # ------------------ fc (16*8*8 -> 20, padded to 128 output lanes) -------
    # 8 weight-grouped (N,128)@(128,128) dots, tree-summed (no M=1 dots, no
    # serially-dependent 8-deep add chain).
    partial = [jnp.dot(h2_b[r * n_img:(r + 1) * n_img, :], wf_ref[r],
                       preferred_element_type=f32) for r in range(8)]
    while len(partial) > 1:
        partial = [partial[i] + partial[i + 1] for i in range(0, len(partial), 2)]
    o_ref[0] = partial[0] + bf_ref[...]            # (N, 128)


# ---------------------------------------------------------------------------
# Host-side weight repacking (PyTorch layouts -> Toeplitz "row-slab" weights).
# ---------------------------------------------------------------------------
def build_kernel_params(torch_params):
    w1_t, b1, w2_t, b2, wf_t, bf = [np.asarray(p, np.float32) for p in torch_params]

    w1 = np.transpose(w1_t, (2, 3, 1, 0))      # (5, 5, 3, 32)  [kh, kw, ci, co]
    w2 = np.transpose(w2_t, (2, 3, 1, 0))      # (3, 3, 32, 16)

    # conv1: lhs lane j = w0*3 + ci (w0 = unpadded input col), K padded to 128;
    #        out lane = (wo%2)*512 + (wo//2)*32 + co
    B1 = np.zeros((5, 128, 1024), np.float32)
    for kh in range(5):
        for wo in range(32):
            lane0 = (wo % 2) * 512 + (wo // 2) * 32
            for kw in range(5):
                w0 = wo + kw - 2
                if 0 <= w0 < 32:
                    B1[kh, w0 * 3:w0 * 3 + 3, lane0:lane0 + 32] = w1[kh, kw]

    # conv2: lhs lane j = w2u*32 + ci (w2u = pooled col of h1),
    #        out lane = (wo%2)*128 + (wo//2)*16 + co
    B2 = np.zeros((3, 512, 256), np.float32)
    for kh in range(3):
        for wo in range(16):
            lane0 = (wo % 2) * 128 + (wo // 2) * 16
            for kw in range(3):
                w2u = wo + kw - 1
                if 0 <= w2u < 16:
                    B2[kh, w2u * 32:w2u * 32 + 32, lane0:lane0 + 16] = w2[kh, kw]

    # fc: kernel-side h2 row-slab h has lanes = w*16 + c;
    #     PyTorch flattens its NCHW h2 as index c*64 + h*8 + w.
    WF = np.zeros((8, 128, 128), np.float32)
    for h in range(8):
        for w in range(8):
            for c in range(16):
                WF[h, w * 16 + c, :20] = wf_t[:, c * 64 + h * 8 + w]

    b1big = np.tile(b1, 16).reshape(1, 512)    # lane wo2*32+co -> b1[co]
    b2big = np.tile(b2, 8).reshape(1, 128)     # lane wo2*16+co -> b2[co]
    bfbig = np.zeros((1, 128), np.float32)
    bfbig[0, :20] = bf

    return (jnp.asarray(B1, jnp.bfloat16), jnp.asarray(B2, jnp.bfloat16),
            jnp.asarray(WF, jnp.bfloat16), jnp.asarray(b1big),
            jnp.asarray(b2big), jnp.asarray(bfbig))


# ---------------------------------------------------------------------------
# Forward wrapper.
# ---------------------------------------------------------------------------
def _pick_images_per_step(batch):
    # Largest N that divides the batch while keeping the grid >= 2 (so both
    # v7x TensorCores get work); falls back to 1 image per step.
    for n in (8, 4, 2):
        if batch % n == 0 and batch // n >= 2:
            return n
    return 1


def simple_cnn_forward(x_nchw, kparams):
    B1, B2, WF, b1big, b2big, bfbig = kparams
    batch = x_nchw.shape[0]
    n_img = _pick_images_per_step(batch)
    g = batch // n_img

    # NCHW -> NHWC -> flatten each row to W*C=96 lanes -> zero-pad lanes to 128
    # -> zero-pad H by 2 -> split padded rows by (row mod 4), interleaving the
    # n_img images of each grid step along sublanes (index = (row//4)*N + n).
    # Cheap XLA-side repack of a small input; kernel input is bf16.
    x = jnp.transpose(x_nchw, (0, 2, 3, 1)).reshape(batch, 32, 96)
    x = jnp.pad(x, ((0, 0), (2, 2), (0, 32)))                 # (B, 36, 128)
    x = x.reshape(g, n_img, 9, 4, 128)                        # [g, n, idx, cls, lane]
    x4 = jnp.transpose(x, (0, 3, 2, 1, 4)).reshape(g, 4, 9 * n_img, 128)
    x4 = x4.astype(jnp.bfloat16)

    out = pl.pallas_call(
        simple_cnn_kernel,
        out_shape=jax.ShapeDtypeStruct((g, n_img, 128), jnp.float32),
        grid_spec=pltpu.PrefetchScalarGridSpec(
            num_scalar_prefetch=0,
            grid=(g,),
            in_specs=[
                pl.BlockSpec((1, 4, 9 * n_img, 128), lambda i: (i, 0, 0, 0)),  # x
                pl.BlockSpec((5, 128, 1024), lambda i: (0, 0, 0)),   # conv1 weights
                pl.BlockSpec((3, 512, 256), lambda i: (0, 0, 0)),    # conv2 weights
                pl.BlockSpec((8, 128, 128), lambda i: (0, 0, 0)),    # fc weights
                pl.BlockSpec((1, 512), lambda i: (0, 0)),            # conv1 bias
                pl.BlockSpec((1, 128), lambda i: (0, 0)),            # conv2 bias
                pl.BlockSpec((1, 128), lambda i: (0, 0)),            # fc bias
            ],
            out_specs=pl.BlockSpec((1, n_img, 128), lambda i: (i, 0, 0)),
            scratch_shapes=[pltpu.VMEM((9 * n_img, 512), jnp.bfloat16),  # conv2 even padded rows
                            pltpu.VMEM((9 * n_img, 512), jnp.bfloat16)],  # conv2 odd padded rows
        ),
        compiler_params=pltpu.CompilerParams(
            dimension_semantics=("parallel",)),
    )(x4, B1, B2, WF, b1big, b2big, bfbig)

    return out.reshape(batch, 128)[:, :20]


# ---------------------------------------------------------------------------
# Reference (pure JAX, PyTorch-layout params) and deterministic init.
# ---------------------------------------------------------------------------
def init_torch_params(key):
    k1, k2, k3, k4, k5, k6 = jax.random.split(key, 6)
    s = 0.05
    w1 = s * jax.random.normal(k1, (32, 3, 5, 5), jnp.float32)   # [Cout,Cin,KH,KW]
    b1 = s * jax.random.normal(k2, (32,), jnp.float32)
    w2 = s * jax.random.normal(k3, (16, 32, 3, 3), jnp.float32)
    b2 = s * jax.random.normal(k4, (16,), jnp.float32)
    wf = s * jax.random.normal(k5, (20, 16 * 8 * 8), jnp.float32)  # [out, in] (in = C*H*W)
    bf = s * jax.random.normal(k6, (20,), jnp.float32)
    return (w1, b1, w2, b2, wf, bf)


def reference_forward(x_nchw, torch_params):
    w1_t, b1, w2_t, b2, wf_t, bf = torch_params
    x = jnp.transpose(x_nchw, (0, 2, 3, 1))
    w1 = jnp.transpose(w1_t, (2, 3, 1, 0))
    w2 = jnp.transpose(w2_t, (2, 3, 1, 0))

    def conv(h, w, b, pad):
        y = jax.lax.conv_general_dilated(
            h, w, window_strides=(1, 1), padding=[(pad, pad), (pad, pad)],
            dimension_numbers=("NHWC", "HWIO", "NHWC"))
        return y + b[None, None, None, :]

    def pool(h):
        return jax.lax.reduce_window(h, -jnp.inf, jax.lax.max,
                                     (1, 2, 2, 1), (1, 2, 2, 1), "VALID")

    h1 = pool(jax.nn.relu(conv(x, w1, b1, 2)))
    h2 = pool(jax.nn.relu(conv(h1, w2, b2, 1)))
    h2 = jnp.transpose(h2, (0, 3, 1, 2)).reshape(h2.shape[0], -1)  # NCHW flatten
    return h2 @ wf_t.T + bf[None, :]


if __name__ == "__main__":
    key = jax.random.PRNGKey(0)
    kx, kp = jax.random.split(key)
    # PyTorch-style NCHW input; fc(16*8*8) implies 32x32 spatial, 3 channels.
    # batch=8 exercises the multi-image-per-step path (4 images/step, grid=2).
    x = jax.random.normal(kx, (8, 3, 32, 32), jnp.float32)
    torch_params = init_torch_params(kp)
    kparams = build_kernel_params(torch_params)

    fwd = jax.jit(simple_cnn_forward)
    out = jax.block_until_ready(fwd(x, kparams))
    assert out.shape == (8, 20), out.shape

    ref = np.asarray(reference_forward(x, torch_params))
    got = np.asarray(out)
    if not np.allclose(got, ref, atol=5e-2, rtol=5e-2):
        raise AssertionError(
            f"mismatch: max abs diff = {np.max(np.abs(got - ref))}")
    print("KERNEL_OK")
</pallas_src>

<mosaic_0001>
module attributes {stable_mosaic.version = 11 : i64} {
  func.func @simple_cnn_kernel(%arg0: i32, %arg1: memref<1x4x36x128xbf16, #tpu.memory_space<vmem>>, %arg2: memref<5x128x1024xbf16, #tpu.memory_space<vmem>>, %arg3: memref<3x512x256xbf16, #tpu.memory_space<vmem>>, %arg4: memref<8x128x128xbf16, #tpu.memory_space<vmem>>, %arg5: memref<1x512xf32, #tpu.memory_space<vmem>>, %arg6: memref<1x128xf32, #tpu.memory_space<vmem>>, %arg7: memref<1x128xf32, #tpu.memory_space<vmem>>, %arg8: memref<1x4x128xf32, #tpu.memory_space<vmem>>, %arg9: memref<36x512xbf16, #tpu.memory_space<vmem>>, %arg10: memref<36x512xbf16, #tpu.memory_space<vmem>>) attributes {dimension_semantics = [#tpu.dimension_semantics<parallel>], iteration_bounds = array<i64: 2>, scalar_prefetch = 0 : i64, scratch_operands = 2 : i64, tpu.core_type = #tpu.core_type<tc>, window_params = [{transform_indices = @transform_0, window_bounds = array<i64: 1, 4, 36, 128>}, {pipeline_mode = #tpu.pipeline_mode<synchronous>, transform_indices = @transform_1, window_bounds = array<i64: 5, 128, 1024>}, {pipeline_mode = #tpu.pipeline_mode<synchronous>, transform_indices = @transform_2, window_bounds = array<i64: 3, 512, 256>}, {pipeline_mode = #tpu.pipeline_mode<synchronous>, transform_indices = @transform_3, window_bounds = array<i64: 8, 128, 128>}, {pipeline_mode = #tpu.pipeline_mode<synchronous>, transform_indices = @transform_4, window_bounds = array<i64: 1, 512>}, {pipeline_mode = #tpu.pipeline_mode<synchronous>, transform_indices = @transform_5, window_bounds = array<i64: 1, 128>}, {pipeline_mode = #tpu.pipeline_mode<synchronous>, transform_indices = @transform_6, window_bounds = array<i64: 1, 128>}, {transform_indices = @transform_7, window_bounds = array<i64: 1, 4, 128>}]} {
    %c0 = arith.constant 0 : index
    %c0_0 = arith.constant 0 : index
    %c0_1 = arith.constant 0 : index
    %c0_2 = arith.constant 0 : index
    %0 = vector.load %arg1[%c0, %c0_0, %c0_1, %c0_2] : memref<1x4x36x128xbf16, #tpu.memory_space<vmem>>, vector<1x4x36x128xbf16>
    %1 = vector.shape_cast %0 : vector<1x4x36x128xbf16> to vector<4x36x128xbf16>
    %c0_3 = arith.constant 0 : index
    %c0_4 = arith.constant 0 : index
    %c0_5 = arith.constant 0 : index
    %2 = vector.load %arg2[%c0_3, %c0_4, %c0_5] : memref<5x128x1024xbf16, #tpu.memory_space<vmem>>, vector<1x128x1024xbf16>
    %3 = vector.shape_cast %2 : vector<1x128x1024xbf16> to vector<128x1024xbf16>
    %4 = vector.extract_strided_slice %1 {offsets = [0, 0, 0], sizes = [1, 32, 128], strides = [1, 1, 1]} : vector<4x36x128xbf16> to vector<1x32x128xbf16>
    %5 = vector.shape_cast %4 : vector<1x32x128xbf16> to vector<32x128xbf16>
    %cst = arith.constant dense<0.000000e+00> : vector<32x1024xf32>
    %6 = tpu.matmul %5, %3, %cst {dimension_numbers = #tpu.dot_dimension_numbers<[1], [0], [0], [1], [0, 0, 1, 1], [], []>} : vector<32x128xbf16>, vector<128x1024xbf16>, vector<32x1024xf32> -> vector<32x1024xf32>
    %7 = vector.extract_strided_slice %1 {offsets = [1, 0, 0], sizes = [1, 32, 128], strides = [1, 1, 1]} : vector<4x36x128xbf16> to vector<1x32x128xbf16>
    %8 = vector.shape_cast %7 : vector<1x32x128xbf16> to vector<32x128xbf16>
    %cst_6 = arith.constant dense<0.000000e+00> : vector<32x1024xf32>
    %9 = tpu.matmul %8, %3, %cst_6 {dimension_numbers = #tpu.dot_dimension_numbers<[1], [0], [0], [1], [0, 0, 1, 1], [], []>} : vector<32x128xbf16>, vector<128x1024xbf16>, vector<32x1024xf32> -> vector<32x1024xf32>
    %10 = vector.extract_strided_slice %1 {offsets = [2, 0, 0], sizes = [1, 32, 128], strides = [1, 1, 1]} : vector<4x36x128xbf16> to vector<1x32x128xbf16>
    %11 = vector.shape_cast %10 : vector<1x32x128xbf16> to vector<32x128xbf16>
    %cst_7 = arith.constant dense<0.000000e+00> : vector<32x1024xf32>
    %12 = tpu.matmul %11, %3, %cst_7 {dimension_numbers = #tpu.dot_dimension_numbers<[1], [0], [0], [1], [0, 0, 1, 1], [], []>} : vector<32x128xbf16>, vector<128x1024xbf16>, vector<32x1024xf32> -> vector<32x1024xf32>
    %13 = vector.extract_strided_slice %1 {offsets = [3, 0, 0], sizes = [1, 32, 128], strides = [1, 1, 1]} : vector<4x36x128xbf16> to vector<1x32x128xbf16>
    %14 = vector.shape_cast %13 : vector<1x32x128xbf16> to vector<32x128xbf16>
    %cst_8 = arith.constant dense<0.000000e+00> : vector<32x1024xf32>
    %15 = tpu.matmul %14, %3, %cst_8 {dimension_numbers = #tpu.dot_dimension_numbers<[1], [0], [0], [1], [0, 0, 1, 1], [], []>} : vector<32x128xbf16>, vector<128x1024xbf16>, vector<32x1024xf32> -> vector<32x1024xf32>
    %c1 = arith.constant 1 : index
    %c0_9 = arith.constant 0 : index
    %c0_10 = arith.constant 0 : index
    %16 = vector.load %arg2[%c1, %c0_9, %c0_10] : memref<5x128x1024xbf16, #tpu.memory_space<vmem>>, vector<1x128x1024xbf16>
    %17 = vector.shape_cast %16 : vector<1x128x1024xbf16> to vector<128x1024xbf16>
    %18 = vector.extract_strided_slice %1 {offsets = [1, 0, 0], sizes = [1, 32, 128], strides = [1, 1, 1]} : vector<4x36x128xbf16> to vector<1x32x128xbf16>
    %19 = vector.shape_cast %18 : vector<1x32x128xbf16> to vector<32x128xbf16>
    %cst_11 = arith.constant dense<0.000000e+00> : vector<32x1024xf32>
    %20 = tpu.matmul %19, %17, %cst_11 {dimension_numbers = #tpu.dot_dimension_numbers<[1], [0], [0], [1], [0, 0, 1, 1], [], []>} : vector<32x128xbf16>, vector<128x1024xbf16>, vector<32x1024xf32> -> vector<32x1024xf32>
    %21 = arith.addf %6, %20 : vector<32x1024xf32>
    %22 = vector.extract_strided_slice %1 {offsets = [2, 0, 0], sizes = [1, 32, 128], strides = [1, 1, 1]} : vector<4x36x128xbf16> to vector<1x32x128xbf16>
    %23 = vector.shape_cast %22 : vector<1x32x128xbf16> to vector<32x128xbf16>
    %cst_12 = arith.constant dense<0.000000e+00> : vector<32x1024xf32>
    %24 = tpu.matmul %23, %17, %cst_12 {dimension_numbers = #tpu.dot_dimension_numbers<[1], [0], [0], [1], [0, 0, 1, 1], [], []>} : vector<32x128xbf16>, vector<128x1024xbf16>, vector<32x1024xf32> -> vector<32x1024xf32>
    %25 = arith.addf %9, %24 : vector<32x1024xf32>
    %26 = vector.extract_strided_slice %1 {offsets = [3, 0, 0], sizes = [1, 32, 128], strides = [1, 1, 1]} : vector<4x36x128xbf16> to vector<1x32x128xbf16>
    %27 = vector.shape_cast %26 : vector<1x32x128xbf16> to vector<32x128xbf16>
    %cst_13 = arith.constant dense<0.000000e+00> : vector<32x1024xf32>
    %28 = tpu.matmul %27, %17, %cst_13 {dimension_numbers = #tpu.dot_dimension_numbers<[1], [0], [0], [1], [0, 0, 1, 1], [], []>} : vector<32x128xbf16>, vector<128x1024xbf16>, vector<32x1024xf32> -> vector<32x1024xf32>
    %29 = arith.addf %12, %28 : vector<32x1024xf32>
    %30 = vector.extract_strided_slice %1 {offsets = [0, 4, 0], sizes = [1, 32, 128], strides = [1, 1, 1]} : vector<4x36x128xbf16> to vector<1x32x128xbf16>
    %31 = vector.shape_cast %30 : vector<1x32x128xbf16> to vector<32x128xbf16>
    %cst_14 = arith.constant dense<0.000000e+00> : vector<32x1024xf32>
    %32 = tpu.matmul %31, %17, %cst_14 {dimension_numbers = #tpu.dot_dimension_numbers<[1], [0], [0], [1], [0, 0, 1, 1], [], []>} : vector<32x128xbf16>, vector<128x1024xbf16>, vector<32x1024xf32> -> vector<32x1024xf32>
    %33 = arith.addf %15, %32 : vector<32x1024xf32>
    %c2 = arith.constant 2 : index
    %c0_15 = arith.constant 0 : index
    %c0_16 = arith.constant 0 : index
    %34 = vector.load %arg2[%c2, %c0_15, %c0_16] : memref<5x128x1024xbf16, #tpu.memory_space<vmem>>, vector<1x128x1024xbf16>
    %35 = vector.shape_cast %34 : vector<1x128x1024xbf16> to vector<128x1024xbf16>
    %36 = vector.extract_strided_slice %1 {offsets = [2, 0, 0], sizes = [1, 32, 128], strides = [1, 1, 1]} : vector<4x36x128xbf16> to vector<1x32x128xbf16>
    %37 = vector.shape_cast %36 : vector<1x32x128xbf16> to vector<32x128xbf16>
    %cst_17 = arith.constant dense<0.000000e+00> : vector<32x1024xf32>
    %38 = tpu.matmul %37, %35, %cst_17 {dimension_numbers = #tpu.dot_dimension_numbers<[1], [0], [0], [1], [0, 0, 1, 1], [], []>} : vector<32x128xbf16>, vector<128x1024xbf16>, vector<32x1024xf32> -> vector<32x1024xf32>
    %39 = arith.addf %21, %38 : vector<32x1024xf32>
    %40 = vector.extract_strided_slice %1 {offsets = [3, 0, 0], sizes = [1, 32, 128], strides = [1, 1, 1]} : vector<4x36x128xbf16> to vector<1x32x128xbf16>
    %41 = vector.shape_cast %40 : vector<1x32x128xbf16> to vector<32x128xbf16>
    %cst_18 = arith.constant dense<0.000000e+00> : vector<32x1024xf32>
    %42 = tpu.matmul %41, %35, %cst_18 {dimension_numbers = #tpu.dot_dimension_numbers<[1], [0], [0], [1], [0, 0, 1, 1], [], []>} : vector<32x128xbf16>, vector<128x1024xbf16>, vector<32x1024xf32> -> vector<32x1024xf32>
    %43 = arith.addf %25, %42 : vector<32x1024xf32>
    %44 = vector.extract_strided_slice %1 {offsets = [0, 4, 0], sizes = [1, 32, 128], strides = [1, 1, 1]} : vector<4x36x128xbf16> to vector<1x32x128xbf16>
    %45 = vector.shape_cast %44 : vector<1x32x128xbf16> to vector<32x128xbf16>
    %cst_19 = arith.constant dense<0.000000e+00> : vector<32x1024xf32>
    %46 = tpu.matmul %45, %35, %cst_19 {dimension_numbers = #tpu.dot_dimension_numbers<[1], [0], [0], [1], [0, 0, 1, 1], [], []>} : vector<32x128xbf16>, vector<128x1024xbf16>, vector<32x1024xf32> -> vector<32x1024xf32>
    %47 = arith.addf %29, %46 : vector<32x1024xf32>
    %48 = vector.extract_strided_slice %1 {offsets = [1, 4, 0], sizes = [1, 32, 128], strides = [1, 1, 1]} : vector<4x36x128xbf16> to vector<1x32x128xbf16>
    %49 = vector.shape_cast %48 : vector<1x32x128xbf16> to vector<32x128xbf16>
    %cst_20 = arith.constant dense<0.000000e+00> : vector<32x1024xf32>
    %50 = tpu.matmul %49, %35, %cst_20 {dimension_numbers = #tpu.dot_dimension_numbers<[1], [0], [0], [1], [0, 0, 1, 1], [], []>} : vector<32x128xbf16>, vector<128x1024xbf16>, vector<32x1024xf32> -> vector<32x1024xf32>
    %51 = arith.addf %33, %50 : vector<32x1024xf32>
    %c3 = arith.constant 3 : index
    %c0_21 = arith.constant 0 : index
    %c0_22 = arith.constant 0 : index
    %52 = vector.load %arg2[%c3, %c0_21, %c0_22] : memref<5x128x1024xbf16, #tpu.memory_space<vmem>>, vector<1x128x1024xbf16>
    %53 = vector.shape_cast %52 : vector<1x128x1024xbf16> to vector<128x1024xbf16>
    %54 = vector.extract_strided_slice %1 {offsets = [3, 0, 0], sizes = [1, 32, 128], strides = [1, 1, 1]} : vector<4x36x128xbf16> to vector<1x32x128xbf16>
    %55 = vector.shape_cast %54 : vector<1x32x128xbf16> to vector<32x128xbf16>
    %cst_23 = arith.constant dense<0.000000e+00> : vector<32x1024xf32>
    %56 = tpu.matmul %55, %53, %cst_23 {dimension_numbers = #tpu.dot_dimension_numbers<[1], [0], [0], [1], [0, 0, 1, 1], [], []>} : vector<32x128xbf16>, vector<128x1024xbf16>, vector<32x1024xf32> -> vector<32x1024xf32>
    %57 = arith.addf %39, %56 : vector<32x1024xf32>
    %58 = vector.extract_strided_slice %1 {offsets = [0, 4, 0], sizes = [1, 32, 128], strides = [1, 1, 1]} : vector<4x36x128xbf16> to vector<1x32x128xbf16>
    %59 = vector.shape_cast %58 : vector<1x32x128xbf16> to vector<32x128xbf16>
    %cst_24 = arith.constant dense<0.000000e+00> : vector<32x1024xf32>
    %60 = tpu.matmul %59, %53, %cst_24 {dimension_numbers = #tpu.dot_dimension_numbers<[1], [0], [0], [1], [0, 0, 1, 1], [], []>} : vector<32x128xbf16>, vector<128x1024xbf16>, vector<32x1024xf32> -> vector<32x1024xf32>
    %61 = arith.addf %43, %60 : vector<32x1024xf32>
    %62 = vector.extract_strided_slice %1 {offsets = [1, 4, 0], sizes = [1, 32, 128], strides = [1, 1, 1]} : vector<4x36x128xbf16> to vector<1x32x128xbf16>
    %63 = vector.shape_cast %62 : vector<1x32x128xbf16> to vector<32x128xbf16>
    %cst_25 = arith.constant dense<0.000000e+00> : vector<32x1024xf32>
    %64 = tpu.matmul %63, %53, %cst_25 {dimension_numbers = #tpu.dot_dimension_numbers<[1], [0], [0], [1], [0, 0, 1, 1], [], []>} : vector<32x128xbf16>, vector<128x1024xbf16>, vector<32x1024xf32> -> vector<32x1024xf32>
    %65 = arith.addf %47, %64 : vector<32x1024xf32>
    %66 = vector.extract_strided_slice %1 {offsets = [2, 4, 0], sizes = [1, 32, 128], strides = [1, 1, 1]} : vector<4x36x128xbf16> to vector<1x32x128xbf16>
    %67 = vector.shape_cast %66 : vector<1x32x128xbf16> to vector<32x128xbf16>
    %cst_26 = arith.constant dense<0.000000e+00> : vector<32x1024xf32>
    %68 = tpu.matmul %67, %53, %cst_26 {dimension_numbers = #tpu.dot_dimension_numbers<[1], [0], [0], [1], [0, 0, 1, 1], [], []>} : vector<32x128xbf16>, vector<128x1024xbf16>, vector<32x1024xf32> -> vector<32x1024xf32>
    %69 = arith.addf %51, %68 : vector<32x1024xf32>
    %c4 = arith.constant 4 : index
    %c0_27 = arith.constant 0 : index
    %c0_28 = arith.constant 0 : index
    %70 = vector.load %arg2[%c4, %c0_27, %c0_28] : memref<5x128x1024xbf16, #tpu.memory_space<vmem>>, vector<1x128x1024xbf16>
    %71 = vector.shape_cast %70 : vector<1x128x1024xbf16> to vector<128x1024xbf16>
    %72 = vector.extract_strided_slice %1 {offsets = [0, 4, 0], sizes = [1, 32, 128], strides = [1, 1, 1]} : vector<4x36x128xbf16> to vector<1x32x128xbf16>
    %73 = vector.shape_cast %72 : vector<1x32x128xbf16> to vector<32x128xbf16>
    %cst_29 = arith.constant dense<0.000000e+00> : vector<32x1024xf32>
    %74 = tpu.matmul %73, %71, %cst_29 {dimension_numbers = #tpu.dot_dimension_numbers<[1], [0], [0], [1], [0, 0, 1, 1], [], []>} : vector<32x128xbf16>, vector<128x1024xbf16>, vector<32x1024xf32> -> vector<32x1024xf32>
    %75 = arith.addf %57, %74 : vector<32x1024xf32>
    %76 = vector.extract_strided_slice %1 {offsets = [1, 4, 0], sizes = [1, 32, 128], strides = [1, 1, 1]} : vector<4x36x128xbf16> to vector<1x32x128xbf16>
    %77 = vector.shape_cast %76 : vector<1x32x128xbf16> to vector<32x128xbf16>
    %cst_30 = arith.constant dense<0.000000e+00> : vector<32x1024xf32>
    %78 = tpu.matmul %77, %71, %cst_30 {dimension_numbers = #tpu.dot_dimension_numbers<[1], [0], [0], [1], [0, 0, 1, 1], [], []>} : vector<32x128xbf16>, vector<128x1024xbf16>, vector<32x1024xf32> -> vector<32x1024xf32>
    %79 = arith.addf %61, %78 : vector<32x1024xf32>
    %80 = vector.extract_strided_slice %1 {offsets = [2, 4, 0], sizes = [1, 32, 128], strides = [1, 1, 1]} : vector<4x36x128xbf16> to vector<1x32x128xbf16>
    %81 = vector.shape_cast %80 : vector<1x32x128xbf16> to vector<32x128xbf16>
    %cst_31 = arith.constant dense<0.000000e+00> : vector<32x1024xf32>
    %82 = tpu.matmul %81, %71, %cst_31 {dimension_numbers = #tpu.dot_dimension_numbers<[1], [0], [0], [1], [0, 0, 1, 1], [], []>} : vector<32x128xbf16>, vector<128x1024xbf16>, vector<32x1024xf32> -> vector<32x1024xf32>
    %83 = arith.addf %65, %82 : vector<32x1024xf32>
    %84 = vector.extract_strided_slice %1 {offsets = [3, 4, 0], sizes = [1, 32, 128], strides = [1, 1, 1]} : vector<4x36x128xbf16> to vector<1x32x128xbf16>
    %85 = vector.shape_cast %84 : vector<1x32x128xbf16> to vector<32x128xbf16>
    %cst_32 = arith.constant dense<0.000000e+00> : vector<32x1024xf32>
    %86 = tpu.matmul %85, %71, %cst_32 {dimension_numbers = #tpu.dot_dimension_numbers<[1], [0], [0], [1], [0, 0, 1, 1], [], []>} : vector<32x128xbf16>, vector<128x1024xbf16>, vector<32x1024xf32> -> vector<32x1024xf32>
    %87 = arith.addf %69, %86 : vector<32x1024xf32>
    %88 = arith.maximumf %75, %79 : vector<32x1024xf32>
    %89 = arith.maximumf %83, %87 : vector<32x1024xf32>
    %90 = vector.extract_strided_slice %88 {offsets = [0, 0], sizes = [32, 512], strides = [1, 1]} : vector<32x1024xf32> to vector<32x512xf32>
    %91 = vector.extract_strided_slice %88 {offsets = [0, 512], sizes = [32, 512], strides = [1, 1]} : vector<32x1024xf32> to vector<32x512xf32>
    %92 = arith.maximumf %90, %91 : vector<32x512xf32>
    %93 = vector.extract_strided_slice %89 {offsets = [0, 0], sizes = [32, 512], strides = [1, 1]} : vector<32x1024xf32> to vector<32x512xf32>
    %94 = vector.extract_strided_slice %89 {offsets = [0, 512], sizes = [32, 512], strides = [1, 1]} : vector<32x1024xf32> to vector<32x512xf32>
    %95 = arith.maximumf %93, %94 : vector<32x512xf32>
    %c0_33 = arith.constant 0 : index
    %c0_34 = arith.constant 0 : index
    %96 = vector.load %arg5[%c0_33, %c0_34] : memref<1x512xf32, #tpu.memory_space<vmem>>, vector<1x512xf32>
    %97 = vector.broadcast %96 : vector<1x512xf32> to vector<32x512xf32>
    %98 = arith.addf %92, %97 : vector<32x512xf32>
    %cst_35 = arith.constant 0.000000e+00 : f32
    %99 = vector.broadcast %cst_35 : f32 to vector<32x512xf32>
    %100 = arith.maximumf %98, %99 : vector<32x512xf32>
    %c0_36 = arith.constant 0 : index
    %c0_37 = arith.constant 0 : index
    %101 = vector.load %arg5[%c0_36, %c0_37] : memref<1x512xf32, #tpu.memory_space<vmem>>, vector<1x512xf32>
    %102 = vector.broadcast %101 : vector<1x512xf32> to vector<32x512xf32>
    %103 = arith.addf %95, %102 : vector<32x512xf32>
    %cst_38 = arith.constant 0.000000e+00 : f32
    %104 = vector.broadcast %cst_38 : f32 to vector<32x512xf32>
    %105 = arith.maximumf %103, %104 : vector<32x512xf32>
    %106 = arith.truncf %100 : vector<32x512xf32> to vector<32x512xbf16>
    %107 = arith.truncf %105 : vector<32x512xf32> to vector<32x512xbf16>
    %cst_39 = arith.constant 0.000000e+00 : bf16
    %108 = vector.broadcast %cst_39 : bf16 to vector<4x512xbf16>
    %c0_40 = arith.constant 0 : index
    %c0_41 = arith.constant 0 : index
    %109 = vector.load %arg9[%c0_40, %c0_41] : memref<36x512xbf16, #tpu.memory_space<vmem>>, vector<4x512xbf16>
    tpu.vector_store %arg9[%c0_40, %c0_41], %108 {strides = array<i32>} : memref<36x512xbf16, #tpu.memory_space<vmem>>, vector<4x512xbf16>,
    %c4_42 = arith.constant 4 : index
    %c0_43 = arith.constant 0 : index
    %110 = vector.load %arg9[%c4_42, %c0_43] : memref<36x512xbf16, #tpu.memory_space<vmem>>, vector<32x512xbf16>
    tpu.vector_store %arg9[%c4_42, %c0_43], %107 {strides = array<i32>} : memref<36x512xbf16, #tpu.memory_space<vmem>>, vector<32x512xbf16>,
    %c0_44 = arith.constant 0 : index
    %c0_45 = arith.constant 0 : index
    %111 = vector.load %arg10[%c0_44, %c0_45] : memref<36x512xbf16, #tpu.memory_space<vmem>>, vector<32x512xbf16>
    tpu.vector_store %arg10[%c0_44, %c0_45], %106 {strides = array<i32>} : memref<36x512xbf16, #tpu.memory_space<vmem>>, vector<32x512xbf16>,
    %cst_46 = arith.constant 0.000000e+00 : bf16
    %112 = vector.broadcast %cst_46 : bf16 to vector<4x512xbf16>
    %c32 = arith.constant 32 : index
    %c0_47 = arith.constant 0 : index
    %113 = vector.load %arg10[%c32, %c0_47] : memref<36x512xbf16, #tpu.memory_space<vmem>>, vector<4x512xbf16>
    tpu.vector_store %arg10[%c32, %c0_47], %112 {strides = array<i32>} : memref<36x512xbf16, #tpu.memory_space<vmem>>, vector<4x512xbf16>,
    %c0_48 = arith.constant 0 : index
    %c0_49 = arith.constant 0 : index
    %114 = vector.load %arg9[%c0_48, %c0_49] : memref<36x512xbf16, #tpu.memory_space<vmem>>, vector<32x512xbf16>
    %c4_50 = arith.constant 4 : index
    %c0_51 = arith.constant 0 : index
    %115 = vector.load %arg10[%c4_50, %c0_51] : memref<36x512xbf16, #tpu.memory_space<vmem>>, vector<32x512xbf16>
    %c0_52 = arith.constant 0 : index
    %c0_53 = arith.constant 0 : index
    %c0_54 = arith.constant 0 : index
    %116 = vector.load %arg3[%c0_52, %c0_53, %c0_54] : memref<3x512x256xbf16, #tpu.memory_space<vmem>>, vector<1x512x256xbf16>
    %117 = vector.shape_cast %116 : vector<1x512x256xbf16> to vector<512x256xbf16>
    %cst_55 = arith.constant dense<0.000000e+00> : vector<32x256xf32>
    %118 = tpu.matmul %114, %117, %cst_55 {dimension_numbers = #tpu.dot_dimension_numbers<[1], [0], [0], [1], [0, 0, 1, 1], [], []>} : vector<32x512xbf16>, vector<512x256xbf16>, vector<32x256xf32> -> vector<32x256xf32>
    %cst_56 = arith.constant dense<0.000000e+00> : vector<32x256xf32>
    %119 = tpu.matmul %106, %117, %cst_56 {dimension_numbers = #tpu.dot_dimension_numbers<[1], [0], [0], [1], [0, 0, 1, 1], [], []>} : vector<32x512xbf16>, vector<512x256xbf16>, vector<32x256xf32> -> vector<32x256xf32>
    %c1_57 = arith.constant 1 : index
    %c0_58 = arith.constant 0 : index
    %c0_59 = arith.constant 0 : index
    %120 = vector.load %arg3[%c1_57, %c0_58, %c0_59] : memref<3x512x256xbf16, #tpu.memory_space<vmem>>, vector<1x512x256xbf16>
    %121 = vector.shape_cast %120 : vector<1x512x256xbf16> to vector<512x256xbf16>
    %cst_60 = arith.constant dense<0.000000e+00> : vector<32x256xf32>
    %122 = tpu.matmul %106, %121, %cst_60 {dimension_numbers = #tpu.dot_dimension_numbers<[1], [0], [0], [1], [0, 0, 1, 1], [], []>} : vector<32x512xbf16>, vector<512x256xbf16>, vector<32x256xf32> -> vector<32x256xf32>
    %123 = arith.addf %118, %122 : vector<32x256xf32>
    %cst_61 = arith.constant dense<0.000000e+00> : vector<32x256xf32>
    %124 = tpu.matmul %107, %121, %cst_61 {dimension_numbers = #tpu.dot_dimension_numbers<[1], [0], [0], [1], [0, 0, 1, 1], [], []>} : vector<32x512xbf16>, vector<512x256xbf16>, vector<32x256xf32> -> vector<32x256xf32>
    %125 = arith.addf %119, %124 : vector<32x256xf32>
    %c2_62 = arith.constant 2 : index
    %c0_63 = arith.constant 0 : index
    %c0_64 = arith.constant 0 : index
    %126 = vector.load %arg3[%c2_62, %c0_63, %c0_64] : memref<3x512x256xbf16, #tpu.memory_space<vmem>>, vector<1x512x256xbf16>
    %127 = vector.shape_cast %126 : vector<1x512x256xbf16> to vector<512x256xbf16>
    %cst_65 = arith.constant dense<0.000000e+00> : vector<32x256xf32>
    %128 = tpu.matmul %107, %127, %cst_65 {dimension_numbers = #tpu.dot_dimension_numbers<[1], [0], [0], [1], [0, 0, 1, 1], [], []>} : vector<32x512xbf16>, vector<512x256xbf16>, vector<32x256xf32> -> vector<32x256xf32>
    %129 = arith.addf %123, %128 : vector<32x256xf32>
    %cst_66 = arith.constant dense<0.000000e+00> : vector<32x256xf32>
    %130 = tpu.matmul %115, %127, %cst_66 {dimension_numbers = #tpu.dot_dimension_numbers<[1], [0], [0], [1], [0, 0, 1, 1], [], []>} : vector<32x512xbf16>, vector<512x256xbf16>, vector<32x256xf32> -> vector<32x256xf32>
    %131 = arith.addf %125, %130 : vector<32x256xf32>
    %132 = arith.maximumf %129, %131 : vector<32x256xf32>
    %133 = vector.extract_strided_slice %132 {offsets = [0, 0], sizes = [32, 128], strides = [1, 1]} : vector<32x256xf32> to vector<32x128xf32>
    %134 = vector.extract_strided_slice %132 {offsets = [0, 128], sizes = [32, 128], strides = [1, 1]} : vector<32x256xf32> to vector<32x128xf32>
    %135 = arith.maximumf %133, %134 : vector<32x128xf32>
    %c0_67 = arith.constant 0 : index
    %c0_68 = arith.constant 0 : index
    %136 = vector.load %arg6[%c0_67, %c0_68] : memref<1x128xf32, #tpu.memory_space<vmem>>, vector<1x128xf32>
    %137 = vector.broadcast %136 : vector<1x128xf32> to vector<32x128xf32>
    %138 = arith.addf %135, %137 : vector<32x128xf32>
    %cst_69 = arith.constant 0.000000e+00 : f32
    %139 = vector.broadcast %cst_69 : f32 to vector<32x128xf32>
    %140 = arith.maximumf %138, %139 : vector<32x128xf32>
    %141 = arith.truncf %140 : vector<32x128xf32> to vector<32x128xbf16>
    %142 = vector.extract_strided_slice %141 {offsets = [0, 0], sizes = [4, 128], strides = [1, 1]} : vector<32x128xbf16> to vector<4x128xbf16>
    %c0_70 = arith.constant 0 : index
    %c0_71 = arith.constant 0 : index
    %c0_72 = arith.constant 0 : index
    %143 = vector.load %arg4[%c0_70, %c0_71, %c0_72] : memref<8x128x128xbf16, #tpu.memory_space<vmem>>, vector<1x128x128xbf16>
    %144 = vector.shape_cast %143 : vector<1x128x128xbf16> to vector<128x128xbf16>
    %cst_73 = arith.constant dense<0.000000e+00> : vector<4x128xf32>
    %145 = tpu.matmul %142, %144, %cst_73 {dimension_numbers = #tpu.dot_dimension_numbers<[1], [0], [0], [1], [0, 0, 1, 1], [], []>} : vector<4x128xbf16>, vector<128x128xbf16>, vector<4x128xf32> -> vector<4x128xf32>
    %146 = vector.extract_strided_slice %141 {offsets = [4, 0], sizes = [4, 128], strides = [1, 1]} : vector<32x128xbf16> to vector<4x128xbf16>
    %c1_74 = arith.constant 1 : index
    %c0_75 = arith.constant 0 : index
    %c0_76 = arith.constant 0 : index
    %147 = vector.load %arg4[%c1_74, %c0_75, %c0_76] : memref<8x128x128xbf16, #tpu.memory_space<vmem>>, vector<1x128x128xbf16>
    %148 = vector.shape_cast %147 : vector<1x128x128xbf16> to vector<128x128xbf16>
    %cst_77 = arith.constant dense<0.000000e+00> : vector<4x128xf32>
    %149 = tpu.matmul %146, %148, %cst_77 {dimension_numbers = #tpu.dot_dimension_numbers<[1], [0], [0], [1], [0, 0, 1, 1], [], []>} : vector<4x128xbf16>, vector<128x128xbf16>, vector<4x128xf32> -> vector<4x128xf32>
    %150 = vector.extract_strided_slice %141 {offsets = [8, 0], sizes = [4, 128], strides = [1, 1]} : vector<32x128xbf16> to vector<4x128xbf16>
    %c2_78 = arith.constant 2 : index
    %c0_79 = arith.constant 0 : index
    %c0_80 = arith.constant 0 : index
    %151 = vector.load %arg4[%c2_78, %c0_79, %c0_80] : memref<8x128x128xbf16, #tpu.memory_space<vmem>>, vector<1x128x128xbf16>
    %152 = vector.shape_cast %151 : vector<1x128x128xbf16> to vector<128x128xbf16>
    %cst_81 = arith.constant dense<0.000000e+00> : vector<4x128xf32>
    %153 = tpu.matmul %150, %152, %cst_81 {dimension_numbers = #tpu.dot_dimension_numbers<[1], [0], [0], [1], [0, 0, 1, 1], [], []>} : vector<4x128xbf16>, vector<128x128xbf16>, vector<4x128xf32> -> vector<4x128xf32>
    %154 = vector.extract_strided_slice %141 {offsets = [12, 0], sizes = [4, 128], strides = [1, 1]} : vector<32x128xbf16> to vector<4x128xbf16>
    %c3_82 = arith.constant 3 : index
    %c0_83 = arith.constant 0 : index
    %c0_84 = arith.constant 0 : index
    %155 = vector.load %arg4[%c3_82, %c0_83, %c0_84] : memref<8x128x128xbf16, #tpu.memory_space<vmem>>, vector<1x128x128xbf16>
    %156 = vector.shape_cast %155 : vector<1x128x128xbf16> to vector<128x128xbf16>
    %cst_85 = arith.constant dense<0.000000e+00> : vector<4x128xf32>
    %157 = tpu.matmul %154, %156, %cst_85 {dimension_numbers = #tpu.dot_dimension_numbers<[1], [0], [0], [1], [0, 0, 1, 1], [], []>} : vector<4x128xbf16>, vector<128x128xbf16>, vector<4x128xf32> -> vector<4x128xf32>
    %158 = vector.extract_strided_slice %141 {offsets = [16, 0], sizes = [4, 128], strides = [1, 1]} : vector<32x128xbf16> to vector<4x128xbf16>
    %c4_86 = arith.constant 4 : index
    %c0_87 = arith.constant 0 : index
    %c0_88 = arith.constant 0 : index
    %159 = vector.load %arg4[%c4_86, %c0_87, %c0_88] : memref<8x128x128xbf16, #tpu.memory_space<vmem>>, vector<1x128x128xbf16>
    %160 = vector.shape_cast %159 : vector<1x128x128xbf16> to vector<128x128xbf16>
    %cst_89 = arith.constant dense<0.000000e+00> : vector<4x128xf32>
    %161 = tpu.matmul %158, %160, %cst_89 {dimension_numbers = #tpu.dot_dimension_numbers<[1], [0], [0], [1], [0, 0, 1, 1], [], []>} : vector<4x128xbf16>, vector<128x128xbf16>, vector<4x128xf32> -> vector<4x128xf32>
    %162 = vector.extract_strided_slice %141 {offsets = [20, 0], sizes = [4, 128], strides = [1, 1]} : vector<32x128xbf16> to vector<4x128xbf16>
    %c5 = arith.constant 5 : index
    %c0_90 = arith.constant 0 : index
    %c0_91 = arith.constant 0 : index
    %163 = vector.load %arg4[%c5, %c0_90, %c0_91] : memref<8x128x128xbf16, #tpu.memory_space<vmem>>, vector<1x128x128xbf16>
    %164 = vector.shape_cast %163 : vector<1x128x128xbf16> to vector<128x128xbf16>
    %cst_92 = arith.constant dense<0.000000e+00> : vector<4x128xf32>
    %165 = tpu.matmul %162, %164, %cst_92 {dimension_numbers = #tpu.dot_dimension_numbers<[1], [0], [0], [1], [0, 0, 1, 1], [], []>} : vector<4x128xbf16>, vector<128x128xbf16>, vector<4x128xf32> -> vector<4x128xf32>
    %166 = vector.extract_strided_slice %141 {offsets = [24, 0], sizes = [4, 128], strides = [1, 1]} : vector<32x128xbf16> to vector<4x128xbf16>
    %c6 = arith.constant 6 : index
    %c0_93 = arith.constant 0 : index
    %c0_94 = arith.constant 0 : index
    %167 = vector.load %arg4[%c6, %c0_93, %c0_94] : memref<8x128x128xbf16, #tpu.memory_space<vmem>>, vector<1x128x128xbf16>
    %168 = vector.shape_cast %167 : vector<1x128x128xbf16> to vector<128x128xbf16>
    %cst_95 = arith.constant dense<0.000000e+00> : vector<4x128xf32>
    %169 = tpu.matmul %166, %168, %cst_95 {dimension_numbers = #tpu.dot_dimension_numbers<[1], [0], [0], [1], [0, 0, 1, 1], [], []>} : vector<4x128xbf16>, vector<128x128xbf16>, vector<4x128xf32> -> vector<4x128xf32>
    %170 = vector.extract_strided_slice %141 {offsets = [28, 0], sizes = [4, 128], strides = [1, 1]} : vector<32x128xbf16> to vector<4x128xbf16>
    %c7 = arith.constant 7 : index
    %c0_96 = arith.constant 0 : index
    %c0_97 = arith.constant 0 : index
    %171 = vector.load %arg4[%c7, %c0_96, %c0_97] : memref<8x128x128xbf16, #tpu.memory_space<vmem>>, vector<1x128x128xbf16>
    %172 = vector.shape_cast %171 : vector<1x128x128xbf16> to vector<128x128xbf16>
    %cst_98 = arith.constant dense<0.000000e+00> : vector<4x128xf32>
    %173 = tpu.matmul %170, %172, %cst_98 {dimension_numbers = #tpu.dot_dimension_numbers<[1], [0], [0], [1], [0, 0, 1, 1], [], []>} : vector<4x128xbf16>, vector<128x128xbf16>, vector<4x128xf32> -> vector<4x128xf32>
    %174 = arith.addf %145, %149 : vector<4x128xf32>
    %175 = arith.addf %153, %157 : vector<4x128xf32>
    %176 = arith.addf %161, %165 : vector<4x128xf32>
    %177 = arith.addf %169, %173 : vector<4x128xf32>
    %178 = arith.addf %174, %175 : vector<4x128xf32>
    %179 = arith.addf %176, %177 : vector<4x128xf32>
    %180 = arith.addf %178, %179 : vector<4x128xf32>
    %c0_99 = arith.constant 0 : index
    %c0_100 = arith.constant 0 : index
    %181 = vector.load %arg7[%c0_99, %c0_100] : memref<1x128xf32, #tpu.memory_space<vmem>>, vector<1x128xf32>
    %182 = vector.broadcast %181 : vector<1x128xf32> to vector<4x128xf32>
    %183 = arith.addf %180, %182 : vector<4x128xf32>
    %c0_101 = arith.constant 0 : index
    %c0_102 = arith.constant 0 : index
    %c0_103 = arith.constant 0 : index
    %184 = vector.load %arg8[%c0_101, %c0_102, %c0_103] : memref<1x4x128xf32, #tpu.memory_space<vmem>>, vector<1x4x128xf32>
    %185 = vector.shape_cast %184 : vector<1x4x128xf32> to vector<4x128xf32>
    %186 = vector.shape_cast %183 : vector<4x128xf32> to vector<1x4x128xf32>
    tpu.vector_store %arg8[%c0_101, %c0_102, %c0_103], %186 {strides = array<i32>} : memref<1x4x128xf32, #tpu.memory_space<vmem>>, vector<1x4x128xf32>,
    return
  }
  func.func @transform_0(%arg0: i32) -> (i32, i32, i32, i32) {
    %c0_i32 = arith.constant 0 : i32
    %c0_i32_0 = arith.constant 0 : i32
    %c0_i32_1 = arith.constant 0 : i32
    %c0_i32_2 = arith.constant 0 : i32
    return %arg0, %c0_i32, %c0_i32_0, %c0_i32_1 : i32, i32, i32, i32
  }
  func.func @transform_1(%arg0: i32) -> (i32, i32, i32) {
    %c0_i32 = arith.constant 0 : i32
    %c0_i32_0 = arith.constant 0 : i32
    %c0_i32_1 = arith.constant 0 : i32
    %c0_i32_2 = arith.constant 0 : i32
    return %c0_i32, %c0_i32_0, %c0_i32_1 : i32, i32, i32
  }
  func.func @transform_2(%arg0: i32) -> (i32, i32, i32) {
    %c0_i32 = arith.constant 0 : i32
    %c0_i32_0 = arith.constant 0 : i32
    %c0_i32_1 = arith.constant 0 : i32
    %c0_i32_2 = arith.constant 0 : i32
    return %c0_i32, %c0_i32_0, %c0_i32_1 : i32, i32, i32
  }
  func.func @transform_3(%arg0: i32) -> (i32, i32, i32) {
    %c0_i32 = arith.constant 0 : i32
    %c0_i32_0 = arith.constant 0 : i32
    %c0_i32_1 = arith.constant 0 : i32
    %c0_i32_2 = arith.constant 0 : i32
    return %c0_i32, %c0_i32_0, %c0_i32_1 : i32, i32, i32
  }
  func.func @transform_4(%arg0: i32) -> (i32, i32) {
    %c0_i32 = arith.constant 0 : i32
    %c0_i32_0 = arith.constant 0 : i32
    %c0_i32_1 = arith.constant 0 : i32
    return %c0_i32, %c0_i32_0 : i32, i32
  }
  func.func @transform_5(%arg0: i32) -> (i32, i32) {
    %c0_i32 = arith.constant 0 : i32
    %c0_i32_0 = arith.constant 0 : i32
    %c0_i32_1 = arith.constant 0 : i32
    return %c0_i32, %c0_i32_0 : i32, i32
  }
  func.func @transform_6(%arg0: i32) -> (i32, i32) {
    %c0_i32 = arith.constant 0 : i32
    %c0_i32_0 = arith.constant 0 : i32
    %c0_i32_1 = arith.constant 0 : i32
    return %c0_i32, %c0_i32_0 : i32, i32
  }
  func.func @transform_7(%arg0: i32) -> (i32, i32, i32) {
    %c0_i32 = arith.constant 0 : i32
    %c0_i32_0 = arith.constant 0 : i32
    %c0_i32_1 = arith.constant 0 : i32
    return %arg0, %c0_i32, %c0_i32_0 : i32, i32, i32
  }
}

</mosaic_0001>

<llo_original>
// kernel: simple_cnn_forward.1
$region0: #{simple_cnn_forward.1}
  #allocation0 [shape = 'u32[]', space=smem, size = 0x4, offset = 0x4, fixed_abs, tag = 'smem constant byte address 0x4 - core index']
  #allocation1 [shape = 'u32[72,128]{1,0:T(1,128)}', space=vmem, size = 0x9000, scoped, tag = 'internal scratch']
  #allocation2 [shape = 'bf16[36,512]{1,0:T(8,128)(2,1)}', space=vmem, size = 0xa000, scoped, tag = 'scratch operand']
  #allocation3 [shape = 'bf16[36,512]{1,0:T(8,128)(2,1)}', space=vmem, size = 0xa000, scoped, tag = 'scratch operand']
  %s0 = inlined_call_operand.vmem [shape: bf16[2,4,36,128], index: 0, kind: input, shape index: {}]
  %s1 = inlined_call_operand.vmem [shape: bf16[5,128,1024], index: 1, kind: input, shape index: {}]
  %s2 = inlined_call_operand.hbm [shape: bf16[3,512,256], index: 2, kind: input, shape index: {}]
  %s3 = inlined_call_operand.vmem [shape: bf16[8,128,128], index: 3, kind: input, shape index: {}]
  %s4 = inlined_call_operand.vmem [shape: f32[1,512], index: 4, kind: input, shape index: {}]
  %s5 = inlined_call_operand.vmem [shape: f32[1,128], index: 5, kind: input, shape index: {}]
  %s6 = inlined_call_operand.vmem [shape: f32[1,128], index: 6, kind: input, shape index: {}]
  %s7 = inlined_call_operand.hbm [shape: f32[2,4,128], index: 7, kind: output, shape index: {}]
  %s8 = sld [smem:[#allocation0]]
  $region65: #{simple_cnn_forward.1} parent=0
    _
  %s10 = ssub.s32 1, %s8
  %s11 = scalar_select 0, %s10, %s8
  $region1: #{simple_cnn_forward.1} parent=0
    #allocation4 [shape = 'u8[786432]{0}', space=vmem, size = 0xc0000, scoped, tag = 'input window, operand 2, single buffered']
    #allocation5 [shape = 's32[2]{0}', space=sflag, size = 0x8, scoped, tag = 'scoped memory for simple_cnn_forward.1']
    #allocation6 [shape = 's32[2]{0}', space=sflag, size = 0x8, scoped, tag = 'scoped memory for simple_cnn_forward.1']
    #allocation7 [shape = 'u8[4096]{0}', space=vmem, size = 0x1000, scoped, tag = 'output window, operand 0']
    %12 = vsyncpa [#allocation5], 0
    %13 = vsyncpa [#allocation6], 0
    %s14 = scalar_lea.sflag [#allocation6], 1
    %15 = vsyncpa %s14, 0
    loop: start=0, step=1, limit=4
    $region2: #{simple_cnn_forward.1} parent=1 // loop_pre_header
      _
    $region3: #{simple_cnn_forward.1} parent=1 // loop_header
      %s17 = sphi 0, %s21
      %p18 = scmp.ge.s32.totalorder %s17, 4
      %s27 = sphi 0, %s29
      %s30 = sphi 0, %s27
      %s31 = sphi 0, %s30
      %s47 = sphi 0, %s31
      %s51 = sphi 0, %s51
      %s53 = sphi 0, %s51
      %s54 = sphi 0, %s53
      %s68 = sphi 0, %s54
      %s72 = sphi 0, %s72
      %s74 = sphi 0, %s72
      %s75 = sphi 0, %s74
      %s89 = sphi 0, %s75
      %s93 = sphi 0, %s93
      %s95 = sphi 0, %s93
      %s96 = sphi 0, %s95
      %s110 = sphi 0, %s96
      %s114 = sphi 0, %s114
      %s116 = sphi 0, %s114
      %s117 = sphi 0, %s116
      %s131 = sphi 0, %s117
      %s135 = sphi 0, %s135
      %s137 = sphi 0, %s135
      %s138 = sphi 0, %s137
      %s152 = sphi 0, %s138
      %s156 = sphi 0, %s156
      %s158 = sphi 0, %s156
      %s159 = sphi 0, %s158
      %s173 = sphi 0, %s159
      %s179 = sphi 0, %s181
      %s182 = sphi 0, %s179
      %s183 = sphi 0, %s182
      %s199 = sphi 0, %s183
    $region4: #{simple_cnn_forward.1} parent=1 // loop_header_branch
      %20 = sbr.rel (%p18) target = $region8
    $region5: #{simple_cnn_forward.1} parent=1 // loop_body
      %s22 = ssub.s32 %s17, 1
      %s23 = ssub.s32 %s17, 2
      %s24 = sadd.s32 %s17, 1
      %s25 = ssub.s32 %s17, %s24
      %p26 = scmp.eq.s32.totalorder %s25, 0
      %s28 = sadd.s32 %s27, 1
      %s29 = scalar_select %p26, %s27, %s28
      %p32 = pneg %p26
      %p33 = scmp.eq.s32.totalorder %s17, 1
      %p34 = por %p32, %p33
      %p35 = scmp.ne.s32.totalorder %s27, %s30
      %p36 = scmp.eq.s32.totalorder %s17, 0
      %p37 = por %p35, %p36
      %p38 = scmp.ne.s32.totalorder %s27, %s30
      %p39 = scmp.eq.s32.totalorder %s22, 1
      %p40 = por %p38, %p39
      %p41 = scmp.ne.s32.totalorder %s30, %s31
      %p42 = scmp.eq.s32.totalorder %s22, 0
      %p43 = por %p41, %p42
      %p44 = scmp.ne.s32.totalorder %s30, %s31
      %p45 = scmp.eq.s32.totalorder %s23, 1
      %p46 = por %p44, %p45
      %p48 = scmp.ne.s32.totalorder %s31, %s47
      %p49 = scmp.eq.s32.totalorder %s23, 0
      %p50 = por %p48, %p49
      %s52 = sadd.s32 %s51, 1
      %p55 = scmp.eq.s32.totalorder %s17, 1
      %p56 = scmp.ne.s32.totalorder %s51, %s53
      %p57 = scmp.eq.s32.totalorder %s17, 0
      %p58 = por %p56, %p57
      %p59 = scmp.ne.s32.totalorder %s51, %s53
      %p60 = scmp.eq.s32.totalorder %s22, 1
      %p61 = por %p59, %p60
      %p62 = scmp.ne.s32.totalorder %s53, %s54
      %p63 = scmp.eq.s32.totalorder %s22, 0
      %p64 = por %p62, %p63
      %p65 = scmp.ne.s32.totalorder %s53, %s54
      %p66 = scmp.eq.s32.totalorder %s23, 1
      %p67 = por %p65, %p66
      %p69 = scmp.ne.s32.totalorder %s54, %s68
      %p70 = scmp.eq.s32.totalorder %s23, 0
      %p71 = por %p69, %p70
      %s73 = sadd.s32 %s72, 1
      %p76 = scmp.eq.s32.totalorder %s17, 1
      %p77 = scmp.ne.s32.totalorder %s72, %s74
      %p78 = scmp.eq.s32.totalorder %s17, 0
      %p79 = por %p77, %p78
      %p80 = scmp.ne.s32.totalorder %s72, %s74
      %p81 = scmp.eq.s32.totalorder %s22, 1
      %p82 = por %p80, %p81
      %p83 = scmp.ne.s32.totalorder %s74, %s75
      %p84 = scmp.eq.s32.totalorder %s22, 0
      %p85 = por %p83, %p84
      %p86 = scmp.ne.s32.totalorder %s74, %s75
      %p87 = scmp.eq.s32.totalorder %s23, 1
      %p88 = por %p86, %p87
      %p90 = scmp.ne.s32.totalorder %s75, %s89
      %p91 = scmp.eq.s32.totalorder %s23, 0
      %p92 = por %p90, %p91
      %s94 = sadd.s32 %s93, 1
      %p97 = scmp.eq.s32.totalorder %s17, 1
      %p98 = scmp.ne.s32.totalorder %s93, %s95
      %p99 = scmp.eq.s32.totalorder %s17, 0
      %p100 = por %p98, %p99
      %p101 = scmp.ne.s32.totalorder %s93, %s95
      %p102 = scmp.eq.s32.totalorder %s22, 1
      %p103 = por %p101, %p102
      %p104 = scmp.ne.s32.totalorder %s95, %s96
      %p105 = scmp.eq.s32.totalorder %s22, 0
      %p106 = por %p104, %p105
      %p107 = scmp.ne.s32.totalorder %s95, %s96
      %p108 = scmp.eq.s32.totalorder %s23, 1
      %p109 = por %p107, %p108
      %p111 = scmp.ne.s32.totalorder %s96, %s110
      %p112 = scmp.eq.s32.totalorder %s23, 0
      %p113 = por %p111, %p112
      %s115 = sadd.s32 %s114, 1
      %p118 = scmp.eq.s32.totalorder %s17, 1
      %p119 = scmp.ne.s32.totalorder %s114, %s116
      %p120 = scmp.eq.s32.totalorder %s17, 0
      %p121 = por %p119, %p120
      %p122 = scmp.ne.s32.totalorder %s114, %s116
      %p123 = scmp.eq.s32.totalorder %s22, 1
      %p124 = por %p122, %p123
      %p125 = scmp.ne.s32.totalorder %s116, %s117
      %p126 = scmp.eq.s32.totalorder %s22, 0
      %p127 = por %p125, %p126
      %p128 = scmp.ne.s32.totalorder %s116, %s117
      %p129 = scmp.eq.s32.totalorder %s23, 1
      %p130 = por %p128, %p129
      %p132 = scmp.ne.s32.totalorder %s117, %s131
      %p133 = scmp.eq.s32.totalorder %s23, 0
      %p134 = por %p132, %p133
      %s136 = sadd.s32 %s135, 1
      %p139 = scmp.eq.s32.totalorder %s17, 1
      %p140 = scmp.ne.s32.totalorder %s135, %s137
      %p141 = scmp.eq.s32.totalorder %s17, 0
      %p142 = por %p140, %p141
      %p143 = scmp.ne.s32.totalorder %s135, %s137
      %p144 = scmp.eq.s32.totalorder %s22, 1
      %p145 = por %p143, %p144
      %p146 = scmp.ne.s32.totalorder %s137, %s138
      %p147 = scmp.eq.s32.totalorder %s22, 0
      %p148 = por %p146, %p147
      %p149 = scmp.ne.s32.totalorder %s137, %s138
      %p150 = scmp.eq.s32.totalorder %s23, 1
      %p151 = por %p149, %p150
      %p153 = scmp.ne.s32.totalorder %s138, %s152
      %p154 = scmp.eq.s32.totalorder %s23, 0
      %p155 = por %p153, %p154
      %s157 = sadd.s32 %s156, 1
      %p160 = scmp.eq.s32.totalorder %s17, 1
      %p161 = scmp.ne.s32.totalorder %s156, %s158
      %p162 = scmp.eq.s32.totalorder %s17, 0
      %p163 = por %p161, %p162
      %p164 = scmp.ne.s32.totalorder %s156, %s158
      %p165 = scmp.eq.s32.totalorder %s22, 1
      %p166 = por %p164, %p165
      %p167 = scmp.ne.s32.totalorder %s158, %s159
      %p168 = scmp.eq.s32.totalorder %s22, 0
      %p169 = por %p167, %p168
      %p170 = scmp.ne.s32.totalorder %s158, %s159
      %p171 = scmp.eq.s32.totalorder %s23, 1
      %p172 = por %p170, %p171
      %p174 = scmp.ne.s32.totalorder %s159, %s173
      %p175 = scmp.eq.s32.totalorder %s23, 0
      %p176 = por %p174, %p175
      %s177 = ssub.s32 %s17, %s24
      %p178 = scmp.eq.s32.totalorder %s177, 0
      %s180 = sadd.s32 %s179, 1
      %s181 = scalar_select %p178, %s179, %s180
      %p184 = pneg %p178
      %p185 = scmp.eq.s32.totalorder %s17, 1
      %p186 = por %p184, %p185
      %p187 = scmp.ne.s32.totalorder %s179, %s182
      %p188 = scmp.eq.s32.totalorder %s17, 0
      %p189 = por %p187, %p188
      %p190 = scmp.ne.s32.totalorder %s179, %s182
      %p191 = scmp.eq.s32.totalorder %s22, 1
      %p192 = por %p190, %p191
      %p193 = scmp.ne.s32.totalorder %s182, %s183
      %p194 = scmp.eq.s32.totalorder %s22, 0
      %p195 = por %p193, %p194
      %p196 = scmp.ne.s32.totalorder %s182, %s183
      %p197 = scmp.eq.s32.totalorder %s23, 1
      %p198 = por %p196, %p197
      %p200 = scmp.ne.s32.totalorder %s183, %s199
      %p201 = scmp.eq.s32.totalorder %s23, 0
      %p202 = por %p200, %p201
      %p203 = scmp.le.s32.totalorder 1, %s17
      %p204 = scmp.lt.s32.totalorder %s17, 3
      %p205 = pnand %p203, %p204
      %p206 = pneg %p205
      // Predicated region
      $region9: #{simple_cnn_forward.1} parent=5 // pred_check
        _
      $region10: #{simple_cnn_forward.1} parent=5 // pred_check_branch
        %208 = sbr.rel (%p205) target = $region12
      $region11: #{simple_cnn_forward.1} parent=5 // pred_region
        %s209 = ssub.s32 %s17, 1
        // Predicated region
        $region13: #{simple_cnn_forward.1} parent=11 // pred_check
          %p210 = pneg %p64
        $region14: #{simple_cnn_forward.1} parent=11 // pred_check_branch
          %212 = sbr.rel (%p210) target = $region16
        $region15: #{simple_cnn_forward.1} parent=11 // pred_region
          _
        $region16: #{simple_cnn_forward.1} parent=11 // pred_fallthru
          _
        // Predicated region
        $region17: #{simple_cnn_forward.1} parent=11 // pred_check
          %p213 = pneg %p85
        $region18: #{simple_cnn_forward.1} parent=11 // pred_check_branch
          %215 = sbr.rel (%p213) target = $region20
        $region19: #{simple_cnn_forward.1} parent=11 // pred_region
          %217 = vsyncadd [#allocation5], 0
          %s218 = sshll.u32 %s2, 4
          %s219 = int_to_ptr.hbm [resolvable:$true] %s218
          %s220 = sshll.u32 [#allocation4], 4
          %s221 = int_to_ptr.vmem [resolvable:$true] %s220
          %226 = dma.hbm_to_vmem [thread:$0]  %s219, 24576, %s221, [#allocation5], 128, 128, 8
        $region20: #{simple_cnn_forward.1} parent=11 // pred_fallthru
          _
        // Predicated region
        $region21: #{simple_cnn_forward.1} parent=11 // pred_check
          %p227 = pneg %p106
        $region22: #{simple_cnn_forward.1} parent=11 // pred_check_branch
          %229 = sbr.rel (%p227) target = $region24
        $region23: #{simple_cnn_forward.1} parent=11 // pred_region
          _
        $region24: #{simple_cnn_forward.1} parent=11 // pred_fallthru
          _
        // Predicated region
        $region25: #{simple_cnn_forward.1} parent=11 // pred_check
          %p230 = pneg %p127
        $region26: #{simple_cnn_forward.1} parent=11 // pred_check_branch
          %232 = sbr.rel (%p230) target = $region28
        $region27: #{simple_cnn_forward.1} parent=11 // pred_region
          _
        $region28: #{simple_cnn_forward.1} parent=11 // pred_fallthru
          _
        // Predicated region
        $region29: #{simple_cnn_forward.1} parent=11 // pred_check
          %p233 = pneg %p148
        $region30: #{simple_cnn_forward.1} parent=11 // pred_check_branch
          %235 = sbr.rel (%p233) target = $region32
        $region31: #{simple_cnn_forward.1} parent=11 // pred_region
          _
        $region32: #{simple_cnn_forward.1} parent=11 // pred_fallthru
          _
        // Predicated region
        $region33: #{simple_cnn_forward.1} parent=11 // pred_check
          %p236 = pneg %p169
        $region34: #{simple_cnn_forward.1} parent=11 // pred_check_branch
          %238 = sbr.rel (%p236) target = $region36
        $region35: #{simple_cnn_forward.1} parent=11 // pred_region
          _
        $region36: #{simple_cnn_forward.1} parent=11 // pred_fallthru
          _
      $region12: #{simple_cnn_forward.1} parent=5 // pred_fallthru
        _
      %p239 = scmp.lt.s32.totalorder %s17, 2
      // Predicated region
      $region37: #{simple_cnn_forward.1} parent=5 // pred_check
        %p240 = pneg %p239
      $region38: #{simple_cnn_forward.1} parent=5 // pred_check_branch
        %242 = sbr.rel (%p240) target = $region40
      $region39: #{simple_cnn_forward.1} parent=5 // pred_region
        // Predicated region
        $region41: #{simple_cnn_forward.1} parent=39 // pred_check
          %p243 = pneg %p37
        $region42: #{simple_cnn_forward.1} parent=39 // pred_check_branch
          %245 = sbr.rel (%p243) target = $region44
        $region43: #{simple_cnn_forward.1} parent=39 // pred_region
          %p246 = scmp.lt.s32.totalorder %s17, 1
          %s247 = scalar_select %p246, %s17, 1
          %s248 = smul.addr %s247, 20
          %s249 = smul.addr %s248, 4
          %s250 = scalar_lea.vmem %s0, %s249
        $region44: #{simple_cnn_forward.1} parent=39 // pred_fallthru
          _
      $region40: #{simple_cnn_forward.1} parent=5 // pred_fallthru
        _
      %p251 = scmp.le.s32.totalorder 1, %s17
      %p252 = scmp.lt.s32.totalorder %s17, 3
      %p253 = pnand %p251, %p252
      %p254 = pneg %p253
      // Predicated region
      $region45: #{simple_cnn_forward.1} parent=5 // pred_check
        _
      $region46: #{simple_cnn_forward.1} parent=5 // pred_check_branch
        %256 = sbr.rel (%p253) target = $region48
      $region47: #{simple_cnn_forward.1} parent=5 // pred_region
        %s257 = ssub.s32 %s17, 1
        // Predicated region
        $region49: #{simple_cnn_forward.1} parent=47 // pred_check
          %p258 = pneg %p85
        $region50: #{simple_cnn_forward.1} parent=47 // pred_check_branch
          %260 = sbr.rel (%p258) target = $region52
        $region51: #{simple_cnn_forward.1} parent=47 // pred_region
          %262 = dma.done [#allocation5], 24576
        $region52: #{simple_cnn_forward.1} parent=47 // pred_fallthru
          _
        %p263 = scmp.lt.s32.totalorder %s22, 1
        %s264 = scalar_select %p263, %s22, 1
        %s265 = smul.addr %s264, 20
        %s266 = smul.addr %s265, 4
        %s267 = scalar_lea.vmem %s0, %s266
        %p268 = pneg %p43
        %p269 = pneg %p40
        %p270 = pneg %p64
        %p271 = pneg %p61
        %p272 = pneg %p85
        %p273 = pneg %p82
        %p274 = pneg %p106
        %p275 = pneg %p103
        %p276 = pneg %p127
        %p277 = pneg %p124
        %p278 = pneg %p148
        %p279 = pneg %p145
        %p280 = pneg %p169
        %p281 = pneg %p166
        %p282 = pneg %p195
        %p283 = pneg %p192
        %s284 = sand.u32 %s182, 1
        %s285 = scalar_lea.sflag [#allocation6], %s284
        %s286 = sand.u32 %s182, 1
        %s287 = smul.addr %s286, 4
        %s288 = scalar_lea.vmem [#allocation7], %s287
        %p289 = scmp.lt.s32.totalorder %s22, 1
        %s290 = scalar_select %p289, %s22, 1
        %s291 = smul.addr %s290, 20
        %s292 = smul.addr %s291, 4
        %s293 = scalar_lea.vmem %s0, %s292
        %v295 = vld [vmem:[%s293] sm:$0xf]
        %v296 = vld [vmem:[%s293 + $0x4] sm:$0xf]
        %v297 = vld [vmem:[%s293 + $0x8] sm:$0xf]
        %v298 = vld [vmem:[%s293 + $0xc] sm:$0xf]
        %v299 = vld [vmem:[%s293 + $0x10] sm:$0x3]
        %v300 = vld [vmem:[%s293 + $0x14] sm:$0xf]
        %v301 = vld [vmem:[%s293 + $0x18] sm:$0xf]
        %v302 = vld [vmem:[%s293 + $0x1c] sm:$0xf]
        %v303 = vld [vmem:[%s293 + $0x20] sm:$0xf]
        %v304 = vld [vmem:[%s293 + $0x24] sm:$0x3]
        %v305 = vld [vmem:[%s293 + $0x28] sm:$0xf]
        %v306 = vld [vmem:[%s293 + $0x2c] sm:$0xf]
        %v307 = vld [vmem:[%s293 + $0x30] sm:$0xf]
        %v308 = vld [vmem:[%s293 + $0x34] sm:$0xf]
        %v309 = vld [vmem:[%s293 + $0x38] sm:$0x3]
        %v310 = vld [vmem:[%s293 + $0x3c] sm:$0xf]
        %v311 = vld [vmem:[%s293 + $0x40] sm:$0xf]
        %v312 = vld [vmem:[%s293 + $0x44] sm:$0xf]
        %v313 = vld [vmem:[%s293 + $0x48] sm:$0xf]
        %v314 = vld [vmem:[%s293 + $0x4c] sm:$0x3]
        %v315 = vld [vmem:[%s1] sm:$0xff]
        %v316 = vld [vmem:[%s1 + $0x8] sm:$0xff]
        %v317 = vld [vmem:[%s1 + $0x10] sm:$0xff]
        %v318 = vld [vmem:[%s1 + $0x18] sm:$0xff]
        %v319 = vld [vmem:[%s1 + $0x20] sm:$0xff]
        %v320 = vld [vmem:[%s1 + $0x28] sm:$0xff]
        %v321 = vld [vmem:[%s1 + $0x30] sm:$0xff]
        %v322 = vld [vmem:[%s1 + $0x38] sm:$0xff]
        %v323 = vld [vmem:[%s1 + $0x40] sm:$0xff]
        %v324 = vld [vmem:[%s1 + $0x48] sm:$0xff]
        %v325 = vld [vmem:[%s1 + $0x50] sm:$0xff]
        %v326 = vld [vmem:[%s1 + $0x58] sm:$0xff]
        %v327 = vld [vmem:[%s1 + $0x60] sm:$0xff]
        %v328 = vld [vmem:[%s1 + $0x68] sm:$0xff]
        %v329 = vld [vmem:[%s1 + $0x70] sm:$0xff]
        %v330 = vld [vmem:[%s1 + $0x78] sm:$0xff]
        %v331 = vld [vmem:[%s1 + $0x80] sm:$0xff]
        %v332 = vld [vmem:[%s1 + $0x88] sm:$0xff]
        %v333 = vld [vmem:[%s1 + $0x90] sm:$0xff]
        %v334 = vld [vmem:[%s1 + $0x98] sm:$0xff]
        %v335 = vld [vmem:[%s1 + $0xa0] sm:$0xff]
        %v336 = vld [vmem:[%s1 + $0xa8] sm:$0xff]
        %v337 = vld [vmem:[%s1 + $0xb0] sm:$0xff]
        %v338 = vld [vmem:[%s1 + $0xb8] sm:$0xff]
        %v339 = vld [vmem:[%s1 + $0xc0] sm:$0xff]
        %v340 = vld [vmem:[%s1 + $0xc8] sm:$0xff]
        %v341 = vld [vmem:[%s1 + $0xd0] sm:$0xff]
        %v342 = vld [vmem:[%s1 + $0xd8] sm:$0xff]
        %v343 = vld [vmem:[%s1 + $0xe0] sm:$0xff]
        %v344 = vld [vmem:[%s1 + $0xe8] sm:$0xff]
        %v345 = vld [vmem:[%s1 + $0xf0] sm:$0xff]
        %v346 = vld [vmem:[%s1 + $0xf8] sm:$0xff]
        %v347 = vld [vmem:[%s1 + $0x100] sm:$0xff]
        %v348 = vld [vmem:[%s1 + $0x108] sm:$0xff]
        %v349 = vld [vmem:[%s1 + $0x110] sm:$0xff]
        %v350 = vld [vmem:[%s1 + $0x118] sm:$0xff]
        %v351 = vld [vmem:[%s1 + $0x120] sm:$0xff]
        %v352 = vld [vmem:[%s1 + $0x128] sm:$0xff]
        %v353 = vld [vmem:[%s1 + $0x130] sm:$0xff]
        %v354 = vld [vmem:[%s1 + $0x138] sm:$0xff]
        %v355 = vld [vmem:[%s1 + $0x140] sm:$0xff]
        %v356 = vld [vmem:[%s1 + $0x148] sm:$0xff]
        %v357 = vld [vmem:[%s1 + $0x150] sm:$0xff]
        %v358 = vld [vmem:[%s1 + $0x158] sm:$0xff]
        %v359 = vld [vmem:[%s1 + $0x160] sm:$0xff]
        %v360 = vld [vmem:[%s1 + $0x168] sm:$0xff]
        %v361 = vld [vmem:[%s1 + $0x170] sm:$0xff]
        %v362 = vld [vmem:[%s1 + $0x178] sm:$0xff]
        %v363 = vld [vmem:[%s1 + $0x180] sm:$0xff]
        %v364 = vld [vmem:[%s1 + $0x188] sm:$0xff]
        %v365 = vld [vmem:[%s1 + $0x190] sm:$0xff]
        %v366 = vld [vmem:[%s1 + $0x198] sm:$0xff]
        %v367 = vld [vmem:[%s1 + $0x1a0] sm:$0xff]
        %v368 = vld [vmem:[%s1 + $0x1a8] sm:$0xff]
        %v369 = vld [vmem:[%s1 + $0x1b0] sm:$0xff]
        %v370 = vld [vmem:[%s1 + $0x1b8] sm:$0xff]
        %v371 = vld [vmem:[%s1 + $0x1c0] sm:$0xff]
        %v372 = vld [vmem:[%s1 + $0x1c8] sm:$0xff]
        %v373 = vld [vmem:[%s1 + $0x1d0] sm:$0xff]
        %v374 = vld [vmem:[%s1 + $0x1d8] sm:$0xff]
        %v375 = vld [vmem:[%s1 + $0x1e0] sm:$0xff]
        %v376 = vld [vmem:[%s1 + $0x1e8] sm:$0xff]
        %v377 = vld [vmem:[%s1 + $0x1f0] sm:$0xff]
        %v378 = vld [vmem:[%s1 + $0x1f8] sm:$0xff]
        %s379 = scalar_lea.vmem %s1, 512
        %v380 = vld [vmem:[%s379] sm:$0xff]
        %v381 = vld [vmem:[%s379 + $0x8] sm:$0xff]
        %v382 = vld [vmem:[%s379 + $0x10] sm:$0xff]
        %v383 = vld [vmem:[%s379 + $0x18] sm:$0xff]
        %v384 = vld [vmem:[%s379 + $0x20] sm:$0xff]
        %v385 = vld [vmem:[%s379 + $0x28] sm:$0xff]
        %v386 = vld [vmem:[%s379 + $0x30] sm:$0xff]
        %v387 = vld [vmem:[%s379 + $0x38] sm:$0xff]
        %v388 = vld [vmem:[%s379 + $0x40] sm:$0xff]
        %v389 = vld [vmem:[%s379 + $0x48] sm:$0xff]
        %v390 = vld [vmem:[%s379 + $0x50] sm:$0xff]
        %v391 = vld [vmem:[%s379 + $0x58] sm:$0xff]
        %v392 = vld [vmem:[%s379 + $0x60] sm:$0xff]
        %v393 = vld [vmem:[%s379 + $0x68] sm:$0xff]
        %v394 = vld [vmem:[%s379 + $0x70] sm:$0xff]
        %v395 = vld [vmem:[%s379 + $0x78] sm:$0xff]
        %v396 = vld [vmem:[%s379 + $0x80] sm:$0xff]
        %v397 = vld [vmem:[%s379 + $0x88] sm:$0xff]
        %v398 = vld [vmem:[%s379 + $0x90] sm:$0xff]
        %v399 = vld [vmem:[%s379 + $0x98] sm:$0xff]
        %v400 = vld [vmem:[%s379 + $0xa0] sm:$0xff]
        %v401 = vld [vmem:[%s379 + $0xa8] sm:$0xff]
        %v402 = vld [vmem:[%s379 + $0xb0] sm:$0xff]
        %v403 = vld [vmem:[%s379 + $0xb8] sm:$0xff]
        %v404 = vld [vmem:[%s379 + $0xc0] sm:$0xff]
        %v405 = vld [vmem:[%s379 + $0xc8] sm:$0xff]
        %v406 = vld [vmem:[%s379 + $0xd0] sm:$0xff]
        %v407 = vld [vmem:[%s379 + $0xd8] sm:$0xff]
        %v408 = vld [vmem:[%s379 + $0xe0] sm:$0xff]
        %v409 = vld [vmem:[%s379 + $0xe8] sm:$0xff]
        %v410 = vld [vmem:[%s379 + $0xf0] sm:$0xff]
        %v411 = vld [vmem:[%s379 + $0xf8] sm:$0xff]
        %v412 = vld [vmem:[%s379 + $0x100] sm:$0xff]
        %v413 = vld [vmem:[%s379 + $0x108] sm:$0xff]
        %v414 = vld [vmem:[%s379 + $0x110] sm:$0xff]
        %v415 = vld [vmem:[%s379 + $0x118] sm:$0xff]
        %v416 = vld [vmem:[%s379 + $0x120] sm:$0xff]
        %v417 = vld [vmem:[%s379 + $0x128] sm:$0xff]
        %v418 = vld [vmem:[%s379 + $0x130] sm:$0xff]
        %v419 = vld [vmem:[%s379 + $0x138] sm:$0xff]
        %v420 = vld [vmem:[%s379 + $0x140] sm:$0xff]
        %v421 = vld [vmem:[%s379 + $0x148] sm:$0xff]
        %v422 = vld [vmem:[%s379 + $0x150] sm:$0xff]
        %v423 = vld [vmem:[%s379 + $0x158] sm:$0xff]
        %v424 = vld [vmem:[%s379 + $0x160] sm:$0xff]
        %v425 = vld [vmem:[%s379 + $0x168] sm:$0xff]
        %v426 = vld [vmem:[%s379 + $0x170] sm:$0xff]
        %v427 = vld [vmem:[%s379 + $0x178] sm:$0xff]
        %v428 = vld [vmem:[%s379 + $0x180] sm:$0xff]
        %v429 = vld [vmem:[%s379 + $0x188] sm:$0xff]
        %v430 = vld [vmem:[%s379 + $0x190] sm:$0xff]
        %v431 = vld [vmem:[%s379 + $0x198] sm:$0xff]
        %v432 = vld [vmem:[%s379 + $0x1a0] sm:$0xff]
        %v433 = vld [vmem:[%s379 + $0x1a8] sm:$0xff]
        %v434 = vld [vmem:[%s379 + $0x1b0] sm:$0xff]
        %v435 = vld [vmem:[%s379 + $0x1b8] sm:$0xff]
        %v436 = vld [vmem:[%s379 + $0x1c0] sm:$0xff]
        %v437 = vld [vmem:[%s379 + $0x1c8] sm:$0xff]
        %v438 = vld [vmem:[%s379 + $0x1d0] sm:$0xff]
        %v439 = vld [vmem:[%s379 + $0x1d8] sm:$0xff]
        %v440 = vld [vmem:[%s379 + $0x1e0] sm:$0xff]
        %v441 = vld [vmem:[%s379 + $0x1e8] sm:$0xff]
        %v442 = vld [vmem:[%s379 + $0x1f0] sm:$0xff]
        %v443 = vld [vmem:[%s379 + $0x1f8] sm:$0xff]
        %v448 = vunpack.c.l.b16 %v300
        %v449 = vunpack.c.l.b16 %v301
        %v450 = vunpack.c.l.b16 %v302
        %v451 = vunpack.c.l.b16 %v303
        %v452 = vpack.c.b16 %v449, %v448
        %v453 = vpack.c.b16 %v451, %v450
        %v520 = vunpack.c.l.b16 %v380
        %v521 = vunpack.c.h.b16 %v380
        %v522 = vunpack.c.l.b16 %v381
        %v523 = vunpack.c.h.b16 %v381
        %v524 = vunpack.c.l.b16 %v382
        %v525 = vunpack.c.h.b16 %v382
        %v526 = vunpack.c.l.b16 %v383
        %v527 = vunpack.c.h.b16 %v383
        %v528 = vunpack.c.l.b16 %v384
        %v529 = vunpack.c.h.b16 %v384
        %v530 = vunpack.c.l.b16 %v385
        %v531 = vunpack.c.h.b16 %v385
        %v532 = vunpack.c.l.b16 %v386
        %v533 = vunpack.c.h.b16 %v386
        %v534 = vunpack.c.l.b16 %v387
        %v535 = vunpack.c.h.b16 %v387
        %v536 = vunpack.c.l.b16 %v388
        %v537 = vunpack.c.h.b16 %v388
        %v538 = vunpack.c.l.b16 %v389
        %v539 = vunpack.c.h.b16 %v389
        %v540 = vunpack.c.l.b16 %v390
        %v541 = vunpack.c.h.b16 %v390
        %v542 = vunpack.c.l.b16 %v391
        %v543 = vunpack.c.h.b16 %v391
        %v544 = vunpack.c.l.b16 %v392
        %v545 = vunpack.c.h.b16 %v392
        %v546 = vunpack.c.l.b16 %v393
        %v547 = vunpack.c.h.b16 %v393
        %v548 = vunpack.c.l.b16 %v394
        %v549 = vunpack.c.h.b16 %v394
        %v550 = vunpack.c.l.b16 %v395
        %v551 = vunpack.c.h.b16 %v395
        %v552 = vunpack.c.l.b16 %v396
        %v553 = vunpack.c.h.b16 %v396
        %v554 = vunpack.c.l.b16 %v397
        %v555 = vunpack.c.h.b16 %v397
        %v556 = vunpack.c.l.b16 %v398
        %v557 = vunpack.c.h.b16 %v398
        %v558 = vunpack.c.l.b16 %v399
        %v559 = vunpack.c.h.b16 %v399
        %v560 = vunpack.c.l.b16 %v400
        %v561 = vunpack.c.h.b16 %v400
        %v562 = vunpack.c.l.b16 %v401
        %v563 = vunpack.c.h.b16 %v401
        %v564 = vunpack.c.l.b16 %v402
        %v565 = vunpack.c.h.b16 %v402
        %v566 = vunpack.c.l.b16 %v403
        %v567 = vunpack.c.h.b16 %v403
        %v568 = vunpack.c.l.b16 %v404
        %v569 = vunpack.c.h.b16 %v404
        %v570 = vunpack.c.l.b16 %v405
        %v571 = vunpack.c.h.b16 %v405
        %v572 = vunpack.c.l.b16 %v406
        %v573 = vunpack.c.h.b16 %v406
        %v574 = vunpack.c.l.b16 %v407
        %v575 = vunpack.c.h.b16 %v407
        %v576 = vunpack.c.l.b16 %v408
        %v577 = vunpack.c.h.b16 %v408
        %v578 = vunpack.c.l.b16 %v409
        %v579 = vunpack.c.h.b16 %v409
        %v580 = vunpack.c.l.b16 %v410
        %v581 = vunpack.c.h.b16 %v410
        %v582 = vunpack.c.l.b16 %v411
        %v583 = vunpack.c.h.b16 %v411
        %v584 = vunpack.c.l.b16 %v412
        %v585 = vunpack.c.h.b16 %v412
        %v586 = vunpack.c.l.b16 %v413
        %v587 = vunpack.c.h.b16 %v413
        %v588 = vunpack.c.l.b16 %v414
        %v589 = vunpack.c.h.b16 %v414
        %v590 = vunpack.c.l.b16 %v415
        %v591 = vunpack.c.h.b16 %v415
        %v592 = vunpack.c.l.b16 %v416
        %v593 = vunpack.c.h.b16 %v416
        %v594 = vunpack.c.l.b16 %v417
        %v595 = vunpack.c.h.b16 %v417
        %v596 = vunpack.c.l.b16 %v418
        %v597 = vunpack.c.h.b16 %v418
        %v598 = vunpack.c.l.b16 %v419
        %v599 = vunpack.c.h.b16 %v419
        %v600 = vunpack.c.l.b16 %v420
        %v601 = vunpack.c.h.b16 %v420
        %v602 = vunpack.c.l.b16 %v421
        %v603 = vunpack.c.h.b16 %v421
        %v604 = vunpack.c.l.b16 %v422
        %v605 = vunpack.c.h.b16 %v422
        %v606 = vunpack.c.l.b16 %v423
        %v607 = vunpack.c.h.b16 %v423
        %v608 = vunpack.c.l.b16 %v424
        %v609 = vunpack.c.h.b16 %v424
        %v610 = vunpack.c.l.b16 %v425
        %v611 = vunpack.c.h.b16 %v425
        %v612 = vunpack.c.l.b16 %v426
        %v613 = vunpack.c.h.b16 %v426
        %v614 = vunpack.c.l.b16 %v427
        %v615 = vunpack.c.h.b16 %v427
        %v616 = vunpack.c.l.b16 %v428
        %v617 = vunpack.c.h.b16 %v428
        %v618 = vunpack.c.l.b16 %v429
        %v619 = vunpack.c.h.b16 %v429
        %v620 = vunpack.c.l.b16 %v430
        %v621 = vunpack.c.h.b16 %v430
        %v622 = vunpack.c.l.b16 %v431
        %v623 = vunpack.c.h.b16 %v431
        %v624 = vunpack.c.l.b16 %v432
        %v625 = vunpack.c.h.b16 %v432
        %v626 = vunpack.c.l.b16 %v433
        %v627 = vunpack.c.h.b16 %v433
        %v628 = vunpack.c.l.b16 %v434
        %v629 = vunpack.c.h.b16 %v434
        %v630 = vunpack.c.l.b16 %v435
        %v631 = vunpack.c.h.b16 %v435
        %v632 = vunpack.c.l.b16 %v436
        %v633 = vunpack.c.h.b16 %v436
        %v634 = vunpack.c.l.b16 %v437
        %v635 = vunpack.c.h.b16 %v437
        %v636 = vunpack.c.l.b16 %v438
        %v637 = vunpack.c.h.b16 %v438
        %v638 = vunpack.c.l.b16 %v439
        %v639 = vunpack.c.h.b16 %v439
        %v640 = vunpack.c.l.b16 %v440
        %v641 = vunpack.c.h.b16 %v440
        %v642 = vunpack.c.l.b16 %v441
        %v643 = vunpack.c.h.b16 %v441
        %v644 = vunpack.c.l.b16 %v442
        %v645 = vunpack.c.h.b16 %v442
        %v646 = vunpack.c.l.b16 %v443
        %v647 = vunpack.c.h.b16 %v443
        %v648 = vpack.c.b16 %v528, %v520
        %v649 = vpack.c.b16 %v529, %v521
        %v650 = vpack.c.b16 %v530, %v522
        %v651 = vpack.c.b16 %v531, %v523
        %v652 = vpack.c.b16 %v532, %v524
        %v653 = vpack.c.b16 %v533, %v525
        %v654 = vpack.c.b16 %v534, %v526
        %v655 = vpack.c.b16 %v535, %v527
        %v656 = vpack.c.b16 %v544, %v536
        %v657 = vpack.c.b16 %v545, %v537
        %v658 = vpack.c.b16 %v546, %v538
        %v659 = vpack.c.b16 %v547, %v539
        %v660 = vpack.c.b16 %v548, %v540
        %v661 = vpack.c.b16 %v549, %v541
        %v662 = vpack.c.b16 %v550, %v542
        %v663 = vpack.c.b16 %v551, %v543
        %v664 = vpack.c.b16 %v560, %v552
        %v665 = vpack.c.b16 %v561, %v553
        %v666 = vpack.c.b16 %v562, %v554
        %v667 = vpack.c.b16 %v563, %v555
        %v668 = vpack.c.b16 %v564, %v556
        %v669 = vpack.c.b16 %v565, %v557
        %v670 = vpack.c.b16 %v566, %v558
        %v671 = vpack.c.b16 %v567, %v559
        %v672 = vpack.c.b16 %v576, %v568
        %v673 = vpack.c.b16 %v577, %v569
        %v674 = vpack.c.b16 %v578, %v570
        %v675 = vpack.c.b16 %v579, %v571
        %v676 = vpack.c.b16 %v580, %v572
        %v677 = vpack.c.b16 %v581, %v573
        %v678 = vpack.c.b16 %v582, %v574
        %v679 = vpack.c.b16 %v583, %v575
        %v680 = vpack.c.b16 %v592, %v584
        %v681 = vpack.c.b16 %v593, %v585
        %v682 = vpack.c.b16 %v594, %v586
        %v683 = vpack.c.b16 %v595, %v587
        %v684 = vpack.c.b16 %v596, %v588
        %v685 = vpack.c.b16 %v597, %v589
        %v686 = vpack.c.b16 %v598, %v590
        %v687 = vpack.c.b16 %v599, %v591
        %v688 = vpack.c.b16 %v608, %v600
        %v689 = vpack.c.b16 %v609, %v601
        %v690 = vpack.c.b16 %v610, %v602
        %v691 = vpack.c.b16 %v611, %v603
        %v692 = vpack.c.b16 %v612, %v604
        %v693 = vpack.c.b16 %v613, %v605
        %v694 = vpack.c.b16 %v614, %v606
        %v695 = vpack.c.b16 %v615, %v607
        %v696 = vpack.c.b16 %v624, %v616
        %v697 = vpack.c.b16 %v625, %v617
        %v698 = vpack.c.b16 %v626, %v618
        %v699 = vpack.c.b16 %v627, %v619
        %v700 = vpack.c.b16 %v628, %v620
        %v701 = vpack.c.b16 %v629, %v621
        %v702 = vpack.c.b16 %v630, %v622
        %v703 = vpack.c.b16 %v631, %v623
        %v704 = vpack.c.b16 %v640, %v632
        %v705 = vpack.c.b16 %v641, %v633
        %v706 = vpack.c.b16 %v642, %v634
        %v707 = vpack.c.b16 %v643, %v635
        %v708 = vpack.c.b16 %v644, %v636
        %v709 = vpack.c.b16 %v645, %v637
        %v710 = vpack.c.b16 %v646, %v638
        %v711 = vpack.c.b16 %v647, %v639
        %776 = vmatpush.bf16.msra.mxu0 %v704
        %777 = vmatpush.bf16.msra.mxu0 %v696
        %778 = vmatpush.bf16.msra.mxu0 %v688
        %779 = vmatpush.bf16.msra.mxu0 %v680
        %780 = vmatpush.bf16.msra.mxu0 %v672
        %781 = vmatpush.bf16.msra.mxu0 %v664
        %782 = vmatpush.bf16.msra.mxu0 %v656
        %783 = vmatpush.bf16.msra.mxu0 %v648
        %784 = vmatmul.bf16.gmra.mxu0 %v452
        %v785 = vpop.f32.mrf.mxu0
        %v786 = vadd.f32 0.0, %v785
        %v787 = vpop.f32.mrf.mxu0
        %v788 = vadd.f32 0.0, %v787
        %789 = vmatmul.bf16.gmra.mxu0 %v453
        %v790 = vpop.f32.mrf.mxu0
        %v791 = vadd.f32 0.0, %v790
        %v792 = vpop.f32.mrf.mxu0
        %v793 = vadd.f32 0.0, %v792
        %794 = vdwg.mxu0
        %795 = vmatpush.bf16.msra.mxu0 %v705
        %796 = vmatpush.bf16.msra.mxu0 %v697
        %797 = vmatpush.bf16.msra.mxu0 %v689
        %798 = vmatpush.bf16.msra.mxu0 %v681
        %799 = vmatpush.bf16.msra.mxu0 %v673
        %800 = vmatpush.bf16.msra.mxu0 %v665
        %801 = vmatpush.bf16.msra.mxu0 %v657
        %802 = vmatpush.bf16.msra.mxu0 %v649
        %803 = vmatmul.bf16.gmra.mxu0 %v452
        %v804 = vpop.f32.mrf.mxu0
        %v805 = vadd.f32 0.0, %v804
        %v806 = vpop.f32.mrf.mxu0
        %v807 = vadd.f32 0.0, %v806
        %808 = vmatmul.bf16.gmra.mxu0 %v453
        %v809 = vpop.f32.mrf.mxu0
        %v810 = vadd.f32 0.0, %v809
        %v811 = vpop.f32.mrf.mxu0
        %v812 = vadd.f32 0.0, %v811
        %813 = vdwg.mxu0
        %814 = vmatpush.bf16.msra.mxu0 %v706
        %815 = vmatpush.bf16.msra.mxu0 %v698
        %816 = vmatpush.bf16.msra.mxu0 %v690
        %817 = vmatpush.bf16.msra.mxu0 %v682
        %818 = vmatpush.bf16.msra.mxu0 %v674
        %819 = vmatpush.bf16.msra.mxu0 %v666
        %820 = vmatpush.bf16.msra.mxu0 %v658
        %821 = vmatpush.bf16.msra.mxu0 %v650
        %822 = vmatmul.bf16.gmra.mxu0 %v452
        %v823 = vpop.f32.mrf.mxu0
        %v824 = vadd.f32 0.0, %v823
        %v825 = vpop.f32.mrf.mxu0
        %v826 = vadd.f32 0.0, %v825
        %827 = vmatmul.bf16.gmra.mxu0 %v453
        %v828 = vpop.f32.mrf.mxu0
        %v829 = vadd.f32 0.0, %v828
        %v830 = vpop.f32.mrf.mxu0
        %v831 = vadd.f32 0.0, %v830
        %832 = vdwg.mxu0
        %833 = vmatpush.bf16.msra.mxu0 %v707
        %834 = vmatpush.bf16.msra.mxu0 %v699
        %835 = vmatpush.bf16.msra.mxu0 %v691
        %836 = vmatpush.bf16.msra.mxu0 %v683
        %837 = vmatpush.bf16.msra.mxu0 %v675
        %838 = vmatpush.bf16.msra.mxu0 %v667
        %839 = vmatpush.bf16.msra.mxu0 %v659
        %840 = vmatpush.bf16.msra.mxu0 %v651
        %841 = vmatmul.bf16.gmra.mxu0 %v452
        %v842 = vpop.f32.mrf.mxu0
        %v843 = vadd.f32 0.0, %v842
        %v844 = vpop.f32.mrf.mxu0
        %v845 = vadd.f32 0.0, %v844
        %846 = vmatmul.bf16.gmra.mxu0 %v453
        %v847 = vpop.f32.mrf.mxu0
        %v848 = vadd.f32 0.0, %v847
        %v849 = vpop.f32.mrf.mxu0
        %v850 = vadd.f32 0.0, %v849
        %851 = vdwg.mxu0
        %852 = vmatpush.bf16.msra.mxu0 %v708
        %853 = vmatpush.bf16.msra.mxu0 %v700
        %854 = vmatpush.bf16.msra.mxu0 %v692
        %855 = vmatpush.bf16.msra.mxu0 %v684
        %856 = vmatpush.bf16.msra.mxu0 %v676
        %857 = vmatpush.bf16.msra.mxu0 %v668
        %858 = vmatpush.bf16.msra.mxu0 %v660
        %859 = vmatpush.bf16.msra.mxu0 %v652
        %860 = vmatmul.bf16.gmra.mxu0 %v452
        %v861 = vpop.f32.mrf.mxu0
        %v862 = vadd.f32 0.0, %v861
        %v863 = vpop.f32.mrf.mxu0
        %v864 = vadd.f32 0.0, %v863
        %865 = vmatmul.bf16.gmra.mxu0 %v453
        %v866 = vpop.f32.mrf.mxu0
        %v867 = vadd.f32 0.0, %v866
        %v868 = vpop.f32.mrf.mxu0
        %v869 = vadd.f32 0.0, %v868
        %870 = vdwg.mxu0
        %871 = vmatpush.bf16.msra.mxu0 %v709
        %872 = vmatpush.bf16.msra.mxu0 %v701
        %873 = vmatpush.bf16.msra.mxu0 %v693
        %874 = vmatpush.bf16.msra.mxu0 %v685
        %875 = vmatpush.bf16.msra.mxu0 %v677
        %876 = vmatpush.bf16.msra.mxu0 %v669
        %877 = vmatpush.bf16.msra.mxu0 %v661
        %878 = vmatpush.bf16.msra.mxu0 %v653
        %879 = vmatmul.bf16.gmra.mxu0 %v452
        %v880 = vpop.f32.mrf.mxu0
        %v881 = vadd.f32 0.0, %v880
        %v882 = vpop.f32.mrf.mxu0
        %v883 = vadd.f32 0.0, %v882
        %884 = vmatmul.bf16.gmra.mxu0 %v453
        %v885 = vpop.f32.mrf.mxu0
        %v886 = vadd.f32 0.0, %v885
        %v887 = vpop.f32.mrf.mxu0
        %v888 = vadd.f32 0.0, %v887
        %889 = vdwg.mxu0
        %890 = vmatpush.bf16.msra.mxu0 %v710
        %891 = vmatpush.bf16.msra.mxu0 %v702
        %892 = vmatpush.bf16.msra.mxu0 %v694
        %893 = vmatpush.bf16.msra.mxu0 %v686
        %894 = vmatpush.bf16.msra.mxu0 %v678
        %895 = vmatpush.bf16.msra.mxu0 %v670
        %896 = vmatpush.bf16.msra.mxu0 %v662
        %897 = vmatpush.bf16.msra.mxu0 %v654
        %898 = vmatmul.bf16.gmra.mxu0 %v452
        %v899 = vpop.f32.mrf.mxu0
        %v900 = vadd.f32 0.0, %v899
        %v901 = vpop.f32.mrf.mxu0
        %v902 = vadd.f32 0.0, %v901
        %903 = vmatmul.bf16.gmra.mxu0 %v453
        %v904 = vpop.f32.mrf.mxu0
        %v905 = vadd.f32 0.0, %v904
        %v906 = vpop.f32.mrf.mxu0
        %v907 = vadd.f32 0.0, %v906
        %908 = vdwg.mxu0
        %909 = vmatpush.bf16.msra.mxu0 %v711
        %910 = vmatpush.bf16.msra.mxu0 %v703
        %911 = vmatpush.bf16.msra.mxu0 %v695
        %912 = vmatpush.bf16.msra.mxu0 %v687
        %913 = vmatpush.bf16.msra.mxu0 %v679
        %914 = vmatpush.bf16.msra.mxu0 %v671
        %915 = vmatpush.bf16.msra.mxu0 %v663
        %916 = vmatpush.bf16.msra.mxu0 %v655
        %917 = vmatmul.bf16.gmra.mxu0 %v452
        %v918 = vpop.f32.mrf.mxu0
        %v919 = vadd.f32 0.0, %v918
        %v920 = vpop.f32.mrf.mxu0
        %v921 = vadd.f32 0.0, %v920
        %922 = vmatmul.bf16.gmra.mxu0 %v453
        %v923 = vpop.f32.mrf.mxu0
        %v924 = vadd.f32 0.0, %v923
        %v925 = vpop.f32.mrf.mxu0
        %v926 = vadd.f32 0.0, %v925
        %927 = vdwg.mxu0
        %v932 = vunpack.c.l.b16 %v295
        %v933 = vunpack.c.l.b16 %v296
        %v934 = vunpack.c.l.b16 %v297
        %v935 = vunpack.c.l.b16 %v298
        %v936 = vpack.c.b16 %v933, %v932
        %v937 = vpack.c.b16 %v935, %v934
        %v1004 = vunpack.c.l.b16 %v315
        %v1005 = vunpack.c.h.b16 %v315
        %v1006 = vunpack.c.l.b16 %v316
        %v1007 = vunpack.c.h.b16 %v316
        %v1008 = vunpack.c.l.b16 %v317
        %v1009 = vunpack.c.h.b16 %v317
        %v1010 = vunpack.c.l.b16 %v318
        %v1011 = vunpack.c.h.b16 %v318
        %v1012 = vunpack.c.l.b16 %v319
        %v1013 = vunpack.c.h.b16 %v319
        %v1014 = vunpack.c.l.b16 %v320
        %v1015 = vunpack.c.h.b16 %v320
        %v1016 = vunpack.c.l.b16 %v321
        %v1017 = vunpack.c.h.b16 %v321
        %v1018 = vunpack.c.l.b16 %v322
        %v1019 = vunpack.c.h.b16 %v322
        %v1020 = vunpack.c.l.b16 %v323
        %v1021 = vunpack.c.h.b16 %v323
        %v1022 = vunpack.c.l.b16 %v324
        %v1023 = vunpack.c.h.b16 %v324
        %v1024 = vunpack.c.l.b16 %v325
        %v1025 = vunpack.c.h.b16 %v325
        %v1026 = vunpack.c.l.b16 %v326
        %v1027 = vunpack.c.h.b16 %v326
        %v1028 = vunpack.c.l.b16 %v327
        %v1029 = vunpack.c.h.b16 %v327
        %v1030 = vunpack.c.l.b16 %v328
        %v1031 = vunpack.c.h.b16 %v328
        %v1032 = vunpack.c.l.b16 %v329
        %v1033 = vunpack.c.h.b16 %v329
        %v1034 = vunpack.c.l.b16 %v330
        %v1035 = vunpack.c.h.b16 %v330
        %v1036 = vunpack.c.l.b16 %v331
        %v1037 = vunpack.c.h.b16 %v331
        %v1038 = vunpack.c.l.b16 %v332
        %v1039 = vunpack.c.h.b16 %v332
        %v1040 = vunpack.c.l.b16 %v333
        %v1041 = vunpack.c.h.b16 %v333
        %v1042 = vunpack.c.l.b16 %v334
        %v1043 = vunpack.c.h.b16 %v334
        %v1044 = vunpack.c.l.b16 %v335
        %v1045 = vunpack.c.h.b16 %v335
        %v1046 = vunpack.c.l.b16 %v336
        %v1047 = vunpack.c.h.b16 %v336
        %v1048 = vunpack.c.l.b16 %v337
        %v1049 = vunpack.c.h.b16 %v337
        %v1050 = vunpack.c.l.b16 %v338
        %v1051 = vunpack.c.h.b16 %v338
        %v1052 = vunpack.c.l.b16 %v339
        %v1053 = vunpack.c.h.b16 %v339
        %v1054 = vunpack.c.l.b16 %v340
        %v1055 = vunpack.c.h.b16 %v340
        %v1056 = vunpack.c.l.b16 %v341
        %v1057 = vunpack.c.h.b16 %v341
        %v1058 = vunpack.c.l.b16 %v342
        %v1059 = vunpack.c.h.b16 %v342
        %v1060 = vunpack.c.l.b16 %v343
        %v1061 = vunpack.c.h.b16 %v343
        %v1062 = vunpack.c.l.b16 %v344
        %v1063 = vunpack.c.h.b16 %v344
        %v1064 = vunpack.c.l.b16 %v345
        %v1065 = vunpack.c.h.b16 %v345
        %v1066 = vunpack.c.l.b16 %v346
        %v1067 = vunpack.c.h.b16 %v346
        %v1068 = vunpack.c.l.b16 %v347
        %v1069 = vunpack.c.h.b16 %v347
        %v1070 = vunpack.c.l.b16 %v348
        %v1071 = vunpack.c.h.b16 %v348
        %v1072 = vunpack.c.l.b16 %v349
        %v1073 = vunpack.c.h.b16 %v349
        %v1074 = vunpack.c.l.b16 %v350
        %v1075 = vunpack.c.h.b16 %v350
        %v1076 = vunpack.c.l.b16 %v351
        %v1077 = vunpack.c.h.b16 %v351
        %v1078 = vunpack.c.l.b16 %v352
        %v1079 = vunpack.c.h.b16 %v352
        %v1080 = vunpack.c.l.b16 %v353
        %v1081 = vunpack.c.h.b16 %v353
        %v1082 = vunpack.c.l.b16 %v354
        %v1083 = vunpack.c.h.b16 %v354
        %v1084 = vunpack.c.l.b16 %v355
        %v1085 = vunpack.c.h.b16 %v355
        %v1086 = vunpack.c.l.b16 %v356
        %v1087 = vunpack.c.h.b16 %v356
        %v1088 = vunpack.c.l.b16 %v357
        %v1089 = vunpack.c.h.b16 %v357
        %v1090 = vunpack.c.l.b16 %v358
        %v1091 = vunpack.c.h.b16 %v358
        %v1092 = vunpack.c.l.b16 %v359
        %v1093 = vunpack.c.h.b16 %v359
        %v1094 = vunpack.c.l.b16 %v360
        %v1095 = vunpack.c.h.b16 %v360
        %v1096 = vunpack.c.l.b16 %v361
        %v1097 = vunpack.c.h.b16 %v361
        %v1098 = vunpack.c.l.b16 %v362
        %v1099 = vunpack.c.h.b16 %v362
        %v1100 = vunpack.c.l.b16 %v363
        %v1101 = vunpack.c.h.b16 %v363
        %v1102 = vunpack.c.l.b16 %v364
        %v1103 = vunpack.c.h.b16 %v364
        %v1104 = vunpack.c.l.b16 %v365
        %v1105 = vunpack.c.h.b16 %v365
        %v1106 = vunpack.c.l.b16 %v366
        %v1107 = vunpack.c.h.b16 %v366
        %v1108 = vunpack.c.l.b16 %v367
        %v1109 = vunpack.c.h.b16 %v367
        %v1110 = vunpack.c.l.b16 %v368
        %v1111 = vunpack.c.h.b16 %v368
        %v1112 = vunpack.c.l.b16 %v369
        %v1113 = vunpack.c.h.b16 %v369
        %v1114 = vunpack.c.l.b16 %v370
        %v1115 = vunpack.c.h.b16 %v370
        %v1116 = vunpack.c.l.b16 %v371
        %v1117 = vunpack.c.h.b16 %v371
        %v1118 = vunpack.c.l.b16 %v372
        %v1119 = vunpack.c.h.b16 %v372
        %v1120 = vunpack.c.l.b16 %v373
        %v1121 = vunpack.c.h.b16 %v373
        %v1122 = vunpack.c.l.b16 %v374
        %v1123 = vunpack.c.h.b16 %v374
        %v1124 = vunpack.c.l.b16 %v375
        %v1125 = vunpack.c.h.b16 %v375
        %v1126 = vunpack.c.l.b16 %v376
        %v1127 = vunpack.c.h.b16 %v376
        %v1128 = vunpack.c.l.b16 %v377
        %v1129 = vunpack.c.h.b16 %v377
        %v1130 = vunpack.c.l.b16 %v378
        %v1131 = vunpack.c.h.b16 %v378
        %v1132 = vpack.c.b16 %v1012, %v1004
        %v1133 = vpack.c.b16 %v1013, %v1005
        %v1134 = vpack.c.b16 %v1014, %v1006
        %v1135 = vpack.c.b16 %v1015, %v1007
        %v1136 = vpack.c.b16 %v1016, %v1008
        %v1137 = vpack.c.b16 %v1017, %v1009
        %v1138 = vpack.c.b16 %v1018, %v1010
        %v1139 = vpack.c.b16 %v1019, %v1011
        %v1140 = vpack.c.b16 %v1028, %v1020
        %v1141 = vpack.c.b16 %v1029, %v1021
        %v1142 = vpack.c.b16 %v1030, %v1022
        %v1143 = vpack.c.b16 %v1031, %v1023
        %v1144 = vpack.c.b16 %v1032, %v1024
        %v1145 = vpack.c.b16 %v1033, %v1025
        %v1146 = vpack.c.b16 %v1034, %v1026
        %v1147 = vpack.c.b16 %v1035, %v1027
        %v1148 = vpack.c.b16 %v1044, %v1036
        %v1149 = vpack.c.b16 %v1045, %v1037
        %v1150 = vpack.c.b16 %v1046, %v1038
        %v1151 = vpack.c.b16 %v1047, %v1039
        %v1152 = vpack.c.b16 %v1048, %v1040
        %v1153 = vpack.c.b16 %v1049, %v1041
        %v1154 = vpack.c.b16 %v1050, %v1042
        %v1155 = vpack.c.b16 %v1051, %v1043
        %v1156 = vpack.c.b16 %v1060, %v1052
        %v1157 = vpack.c.b16 %v1061, %v1053
        %v1158 = vpack.c.b16 %v1062, %v1054
        %v1159 = vpack.c.b16 %v1063, %v1055
        %v1160 = vpack.c.b16 %v1064, %v1056
        %v1161 = vpack.c.b16 %v1065, %v1057
        %v1162 = vpack.c.b16 %v1066, %v1058
        %v1163 = vpack.c.b16 %v1067, %v1059
        %v1164 = vpack.c.b16 %v1076, %v1068
        %v1165 = vpack.c.b16 %v1077, %v1069
        %v1166 = vpack.c.b16 %v1078, %v1070
        %v1167 = vpack.c.b16 %v1079, %v1071
        %v1168 = vpack.c.b16 %v1080, %v1072
        %v1169 = vpack.c.b16 %v1081, %v1073
        %v1170 = vpack.c.b16 %v1082, %v1074
        %v1171 = vpack.c.b16 %v1083, %v1075
        %v1172 = vpack.c.b16 %v1092, %v1084
        %v1173 = vpack.c.b16 %v1093, %v1085
        %v1174 = vpack.c.b16 %v1094, %v1086
        %v1175 = vpack.c.b16 %v1095, %v1087
        %v1176 = vpack.c.b16 %v1096, %v1088
        %v1177 = vpack.c.b16 %v1097, %v1089
        %v1178 = vpack.c.b16 %v1098, %v1090
        %v1179 = vpack.c.b16 %v1099, %v1091
        %v1180 = vpack.c.b16 %v1108, %v1100
        %v1181 = vpack.c.b16 %v1109, %v1101
        %v1182 = vpack.c.b16 %v1110, %v1102
        %v1183 = vpack.c.b16 %v1111, %v1103
        %v1184 = vpack.c.b16 %v1112, %v1104
        %v1185 = vpack.c.b16 %v1113, %v1105
        %v1186 = vpack.c.b16 %v1114, %v1106
        %v1187 = vpack.c.b16 %v1115, %v1107
        %v1188 = vpack.c.b16 %v1124, %v1116
        %v1189 = vpack.c.b16 %v1125, %v1117
        %v1190 = vpack.c.b16 %v1126, %v1118
        %v1191 = vpack.c.b16 %v1127, %v1119
        %v1192 = vpack.c.b16 %v1128, %v1120
        %v1193 = vpack.c.b16 %v1129, %v1121
        %v1194 = vpack.c.b16 %v1130, %v1122
        %v1195 = vpack.c.b16 %v1131, %v1123
        %1260 = vmatpush.bf16.msra.mxu0 %v1188
        %1261 = vmatpush.bf16.msra.mxu0 %v1180
        %1262 = vmatpush.bf16.msra.mxu0 %v1172
        %1263 = vmatpush.bf16.msra.mxu0 %v1164
        %1264 = vmatpush.bf16.msra.mxu0 %v1156
        %1265 = vmatpush.bf16.msra.mxu0 %v1148
        %1266 = vmatpush.bf16.msra.mxu0 %v1140
        %1267 = vmatpush.bf16.msra.mxu0 %v1132
        %1268 = vmatmul.bf16.gmra.mxu0 %v936
        %v1269 = vpop.f32.mrf.mxu0
        %v1270 = vadd.f32 %v786, %v1269
        %v1271 = vpop.f32.mrf.mxu0
        %v1272 = vadd.f32 %v788, %v1271
        %1273 = vmatmul.bf16.gmra.mxu0 %v937
        %v1274 = vpop.f32.mrf.mxu0
        %v1275 = vadd.f32 %v791, %v1274
        %v1276 = vpop.f32.mrf.mxu0
        %v1277 = vadd.f32 %v793, %v1276
        %1278 = vdwg.mxu0
        %1279 = vmatpush.bf16.msra.mxu0 %v1189
        %1280 = vmatpush.bf16.msra.mxu0 %v1181
        %1281 = vmatpush.bf16.msra.mxu0 %v1173
        %1282 = vmatpush.bf16.msra.mxu0 %v1165
        %1283 = vmatpush.bf16.msra.mxu0 %v1157
        %1284 = vmatpush.bf16.msra.mxu0 %v1149
        %1285 = vmatpush.bf16.msra.mxu0 %v1141
        %1286 = vmatpush.bf16.msra.mxu0 %v1133
        %1287 = vmatmul.bf16.gmra.mxu0 %v936
        %v1288 = vpop.f32.mrf.mxu0
        %v1289 = vadd.f32 %v805, %v1288
        %v1290 = vpop.f32.mrf.mxu0
        %v1291 = vadd.f32 %v807, %v1290
        %1292 = vmatmul.bf16.gmra.mxu0 %v937
        %v1293 = vpop.f32.mrf.mxu0
        %v1294 = vadd.f32 %v810, %v1293
        %v1295 = vpop.f32.mrf.mxu0
        %v1296 = vadd.f32 %v812, %v1295
        %1297 = vdwg.mxu0
        %1298 = vmatpush.bf16.msra.mxu0 %v1190
        %1299 = vmatpush.bf16.msra.mxu0 %v1182
        %1300 = vmatpush.bf16.msra.mxu0 %v1174
        %1301 = vmatpush.bf16.msra.mxu0 %v1166
        %1302 = vmatpush.bf16.msra.mxu0 %v1158
        %1303 = vmatpush.bf16.msra.mxu0 %v1150
        %1304 = vmatpush.bf16.msra.mxu0 %v1142
        %1305 = vmatpush.bf16.msra.mxu0 %v1134
        %1306 = vmatmul.bf16.gmra.mxu0 %v936
        %v1307 = vpop.f32.mrf.mxu0
        %v1308 = vadd.f32 %v824, %v1307
        %v1309 = vpop.f32.mrf.mxu0
        %v1310 = vadd.f32 %v826, %v1309
        %1311 = vmatmul.bf16.gmra.mxu0 %v937
        %v1312 = vpop.f32.mrf.mxu0
        %v1313 = vadd.f32 %v829, %v1312
        %v1314 = vpop.f32.mrf.mxu0
        %v1315 = vadd.f32 %v831, %v1314
        %1316 = vdwg.mxu0
        %1317 = vmatpush.bf16.msra.mxu0 %v1191
        %1318 = vmatpush.bf16.msra.mxu0 %v1183
        %1319 = vmatpush.bf16.msra.mxu0 %v1175
        %1320 = vmatpush.bf16.msra.mxu0 %v1167
        %1321 = vmatpush.bf16.msra.mxu0 %v1159
        %1322 = vmatpush.bf16.msra.mxu0 %v1151
        %1323 = vmatpush.bf16.msra.mxu0 %v1143
        %1324 = vmatpush.bf16.msra.mxu0 %v1135
        %1325 = vmatmul.bf16.gmra.mxu0 %v936
        %v1326 = vpop.f32.mrf.mxu0
        %v1327 = vadd.f32 %v843, %v1326
        %v1328 = vpop.f32.mrf.mxu0
        %v1329 = vadd.f32 %v845, %v1328
        %1330 = vmatmul.bf16.gmra.mxu0 %v937
        %v1331 = vpop.f32.mrf.mxu0
        %v1332 = vadd.f32 %v848, %v1331
        %v1333 = vpop.f32.mrf.mxu0
        %v1334 = vadd.f32 %v850, %v1333
        %1335 = vdwg.mxu0
        %1336 = vmatpush.bf16.msra.mxu0 %v1192
        %1337 = vmatpush.bf16.msra.mxu0 %v1184
        %1338 = vmatpush.bf16.msra.mxu0 %v1176
        %1339 = vmatpush.bf16.msra.mxu0 %v1168
        %1340 = vmatpush.bf16.msra.mxu0 %v1160
        %1341 = vmatpush.bf16.msra.mxu0 %v1152
        %1342 = vmatpush.bf16.msra.mxu0 %v1144
        %1343 = vmatpush.bf16.msra.mxu0 %v1136
        %1344 = vmatmul.bf16.gmra.mxu0 %v936
        %v1345 = vpop.f32.mrf.mxu0
        %v1346 = vadd.f32 %v862, %v1345
        %v1347 = vpop.f32.mrf.mxu0
        %v1348 = vadd.f32 %v864, %v1347
        %1349 = vmatmul.bf16.gmra.mxu0 %v937
        %v1350 = vpop.f32.mrf.mxu0
        %v1351 = vadd.f32 %v867, %v1350
        %v1352 = vpop.f32.mrf.mxu0
        %v1353 = vadd.f32 %v869, %v1352
        %1354 = vdwg.mxu0
        %1355 = vmatpush.bf16.msra.mxu0 %v1193
        %1356 = vmatpush.bf16.msra.mxu0 %v1185
        %1357 = vmatpush.bf16.msra.mxu0 %v1177
        %1358 = vmatpush.bf16.msra.mxu0 %v1169
        %1359 = vmatpush.bf16.msra.mxu0 %v1161
        %1360 = vmatpush.bf16.msra.mxu0 %v1153
        %1361 = vmatpush.bf16.msra.mxu0 %v1145
        %1362 = vmatpush.bf16.msra.mxu0 %v1137
        %1363 = vmatmul.bf16.gmra.mxu0 %v936
        %v1364 = vpop.f32.mrf.mxu0
        %v1365 = vadd.f32 %v881, %v1364
        %v1366 = vpop.f32.mrf.mxu0
        %v1367 = vadd.f32 %v883, %v1366
        %1368 = vmatmul.bf16.gmra.mxu0 %v937
        %v1369 = vpop.f32.mrf.mxu0
        %v1370 = vadd.f32 %v886, %v1369
        %v1371 = vpop.f32.mrf.mxu0
        %v1372 = vadd.f32 %v888, %v1371
        %1373 = vdwg.mxu0
        %1374 = vmatpush.bf16.msra.mxu0 %v1194
        %1375 = vmatpush.bf16.msra.mxu0 %v1186
        %1376 = vmatpush.bf16.msra.mxu0 %v1178
        %1377 = vmatpush.bf16.msra.mxu0 %v1170
        %1378 = vmatpush.bf16.msra.mxu0 %v1162
        %1379 = vmatpush.bf16.msra.mxu0 %v1154
        %1380 = vmatpush.bf16.msra.mxu0 %v1146
        %1381 = vmatpush.bf16.msra.mxu0 %v1138
        %1382 = vmatmul.bf16.gmra.mxu0 %v936
        %v1383 = vpop.f32.mrf.mxu0
        %v1384 = vadd.f32 %v900, %v1383
        %v1385 = vpop.f32.mrf.mxu0
        %v1386 = vadd.f32 %v902, %v1385
        %1387 = vmatmul.bf16.gmra.mxu0 %v937
        %v1388 = vpop.f32.mrf.mxu0
        %v1389 = vadd.f32 %v905, %v1388
        %v1390 = vpop.f32.mrf.mxu0
        %v1391 = vadd.f32 %v907, %v1390
        %1392 = vdwg.mxu0
        %1393 = vmatpush.bf16.msra.mxu0 %v1195
        %1394 = vmatpush.bf16.msra.mxu0 %v1187
        %1395 = vmatpush.bf16.msra.mxu0 %v1179
        %1396 = vmatpush.bf16.msra.mxu0 %v1171
        %1397 = vmatpush.bf16.msra.mxu0 %v1163
        %1398 = vmatpush.bf16.msra.mxu0 %v1155
        %1399 = vmatpush.bf16.msra.mxu0 %v1147
        %1400 = vmatpush.bf16.msra.mxu0 %v1139
        %1401 = vmatmul.bf16.gmra.mxu0 %v936
        %v1402 = vpop.f32.mrf.mxu0
        %v1403 = vadd.f32 %v919, %v1402
        %v1404 = vpop.f32.mrf.mxu0
        %v1405 = vadd.f32 %v921, %v1404
        %1406 = vmatmul.bf16.gmra.mxu0 %v937
        %v1407 = vpop.f32.mrf.mxu0
        %v1408 = vadd.f32 %v924, %v1407
        %v1409 = vpop.f32.mrf.mxu0
        %v1410 = vadd.f32 %v926, %v1409
        %1411 = vdwg.mxu0
        %v1416 = vunpack.c.l.b16 %v305
        %v1417 = vunpack.c.l.b16 %v306
        %v1418 = vunpack.c.l.b16 %v307
        %v1419 = vunpack.c.l.b16 %v308
        %v1420 = vpack.c.b16 %v1417, %v1416
        %v1421 = vpack.c.b16 %v1419, %v1418
        %1424 = vmatpush.bf16.msra.mxu0 %v704
        %1425 = vmatpush.bf16.msra.mxu0 %v696
        %1426 = vmatpush.bf16.msra.mxu0 %v688
        %1427 = vmatpush.bf16.msra.mxu0 %v680
        %1428 = vmatpush.bf16.msra.mxu0 %v672
        %1429 = vmatpush.bf16.msra.mxu0 %v664
        %1430 = vmatpush.bf16.msra.mxu0 %v656
        %1431 = vmatpush.bf16.msra.mxu0 %v648
        %1432 = vmatmul.bf16.gmra.mxu0 %v1420
        %v1433 = vpop.f32.mrf.mxu0
        %v1434 = vadd.f32 0.0, %v1433
        %v1435 = vpop.f32.mrf.mxu0
        %v1436 = vadd.f32 0.0, %v1435
        %1437 = vmatmul.bf16.gmra.mxu0 %v1421
        %v1438 = vpop.f32.mrf.mxu0
        %v1439 = vadd.f32 0.0, %v1438
        %v1440 = vpop.f32.mrf.mxu0
        %v1441 = vadd.f32 0.0, %v1440
        %1442 = vdwg.mxu0
        %1443 = vmatpush.bf16.msra.mxu0 %v705
        %1444 = vmatpush.bf16.msra.mxu0 %v697
        %1445 = vmatpush.bf16.msra.mxu0 %v689
        %1446 = vmatpush.bf16.msra.mxu0 %v681
        %1447 = vmatpush.bf16.msra.mxu0 %v673
        %1448 = vmatpush.bf16.msra.mxu0 %v665
        %1449 = vmatpush.bf16.msra.mxu0 %v657
        %1450 = vmatpush.bf16.msra.mxu0 %v649
        %1451 = vmatmul.bf16.gmra.mxu0 %v1420
        %v1452 = vpop.f32.mrf.mxu0
        %v1453 = vadd.f32 0.0, %v1452
        %v1454 = vpop.f32.mrf.mxu0
        %v1455 = vadd.f32 0.0, %v1454
        %1456 = vmatmul.bf16.gmra.mxu0 %v1421
        %v1457 = vpop.f32.mrf.mxu0
        %v1458 = vadd.f32 0.0, %v1457
        %v1459 = vpop.f32.mrf.mxu0
        %v1460 = vadd.f32 0.0, %v1459
        %1461 = vdwg.mxu0
        %1462 = vmatpush.bf16.msra.mxu0 %v706
        %1463 = vmatpush.bf16.msra.mxu0 %v698
        %1464 = vmatpush.bf16.msra.mxu0 %v690
        %1465 = vmatpush.bf16.msra.mxu0 %v682
        %1466 = vmatpush.bf16.msra.mxu0 %v674
        %1467 = vmatpush.bf16.msra.mxu0 %v666
        %1468 = vmatpush.bf16.msra.mxu0 %v658
        %1469 = vmatpush.bf16.msra.mxu0 %v650
        %1470 = vmatmul.bf16.gmra.mxu0 %v1420
        %v1471 = vpop.f32.mrf.mxu0
        %v1472 = vadd.f32 0.0, %v1471
        %v1473 = vpop.f32.mrf.mxu0
        %v1474 = vadd.f32 0.0, %v1473
        %1475 = vmatmul.bf16.gmra.mxu0 %v1421
        %v1476 = vpop.f32.mrf.mxu0
        %v1477 = vadd.f32 0.0, %v1476
        %v1478 = vpop.f32.mrf.mxu0
        %v1479 = vadd.f32 0.0, %v1478
        %1480 = vdwg.mxu0
        %1481 = vmatpush.bf16.msra.mxu0 %v707
        %1482 = vmatpush.bf16.msra.mxu0 %v699
        %1483 = vmatpush.bf16.msra.mxu0 %v691
        %1484 = vmatpush.bf16.msra.mxu0 %v683
        %1485 = vmatpush.bf16.msra.mxu0 %v675
        %1486 = vmatpush.bf16.msra.mxu0 %v667
        %1487 = vmatpush.bf16.msra.mxu0 %v659
        %1488 = vmatpush.bf16.msra.mxu0 %v651
        %1489 = vmatmul.bf16.gmra.mxu0 %v1420
        %v1490 = vpop.f32.mrf.mxu0
        %v1491 = vadd.f32 0.0, %v1490
        %v1492 = vpop.f32.mrf.mxu0
        %v1493 = vadd.f32 0.0, %v1492
        %1494 = vmatmul.bf16.gmra.mxu0 %v1421
        %v1495 = vpop.f32.mrf.mxu0
        %v1496 = vadd.f32 0.0, %v1495
        %v1497 = vpop.f32.mrf.mxu0
        %v1498 = vadd.f32 0.0, %v1497
        %1499 = vdwg.mxu0
        %1500 = vmatpush.bf16.msra.mxu0 %v708
        %1501 = vmatpush.bf16.msra.mxu0 %v700
        %1502 = vmatpush.bf16.msra.mxu0 %v692
        %1503 = vmatpush.bf16.msra.mxu0 %v684
        %1504 = vmatpush.bf16.msra.mxu0 %v676
        %1505 = vmatpush.bf16.msra.mxu0 %v668
        %1506 = vmatpush.bf16.msra.mxu0 %v660
        %1507 = vmatpush.bf16.msra.mxu0 %v652
        %1508 = vmatmul.bf16.gmra.mxu0 %v1420
        %v1509 = vpop.f32.mrf.mxu0
        %v1510 = vadd.f32 0.0, %v1509
        %v1511 = vpop.f32.mrf.mxu0
        %v1512 = vadd.f32 0.0, %v1511
        %1513 = vmatmul.bf16.gmra.mxu0 %v1421
        %v1514 = vpop.f32.mrf.mxu0
        %v1515 = vadd.f32 0.0, %v1514
        %v1516 = vpop.f32.mrf.mxu0
        %v1517 = vadd.f32 0.0, %v1516
        %1518 = vdwg.mxu0
        %1519 = vmatpush.bf16.msra.mxu0 %v709
        %1520 = vmatpush.bf16.msra.mxu0 %v701
        %1521 = vmatpush.bf16.msra.mxu0 %v693
        %1522 = vmatpush.bf16.msra.mxu0 %v685
        %1523 = vmatpush.bf16.msra.mxu0 %v677
        %1524 = vmatpush.bf16.msra.mxu0 %v669
        %1525 = vmatpush.bf16.msra.mxu0 %v661
        %1526 = vmatpush.bf16.msra.mxu0 %v653
        %1527 = vmatmul.bf16.gmra.mxu0 %v1420
        %v1528 = vpop.f32.mrf.mxu0
        %v1529 = vadd.f32 0.0, %v1528
        %v1530 = vpop.f32.mrf.mxu0
        %v1531 = vadd.f32 0.0, %v1530
        %1532 = vmatmul.bf16.gmra.mxu0 %v1421
        %v1533 = vpop.f32.mrf.mxu0
        %v1534 = vadd.f32 0.0, %v1533
        %v1535 = vpop.f32.mrf.mxu0
        %v1536 = vadd.f32 0.0, %v1535
        %1537 = vdwg.mxu0
        %1538 = vmatpush.bf16.msra.mxu0 %v710
        %1539 = vmatpush.bf16.msra.mxu0 %v702
        %1540 = vmatpush.bf16.msra.mxu0 %v694
        %1541 = vmatpush.bf16.msra.mxu0 %v686
        %1542 = vmatpush.bf16.msra.mxu0 %v678
        %1543 = vmatpush.bf16.msra.mxu0 %v670
        %1544 = vmatpush.bf16.msra.mxu0 %v662
        %1545 = vmatpush.bf16.msra.mxu0 %v654
        %1546 = vmatmul.bf16.gmra.mxu0 %v1420
        %v1547 = vpop.f32.mrf.mxu0
        %v1548 = vadd.f32 0.0, %v1547
        %v1549 = vpop.f32.mrf.mxu0
        %v1550 = vadd.f32 0.0, %v1549
        %1551 = vmatmul.bf16.gmra.mxu0 %v1421
        %v1552 = vpop.f32.mrf.mxu0
        %v1553 = vadd.f32 0.0, %v1552
        %v1554 = vpop.f32.mrf.mxu0
        %v1555 = vadd.f32 0.0, %v1554
        %1556 = vdwg.mxu0
        %1557 = vmatpush.bf16.msra.mxu0 %v711
        %1558 = vmatpush.bf16.msra.mxu0 %v703
        %1559 = vmatpush.bf16.msra.mxu0 %v695
        %1560 = vmatpush.bf16.msra.mxu0 %v687
        %1561 = vmatpush.bf16.msra.mxu0 %v679
        %1562 = vmatpush.bf16.msra.mxu0 %v671
        %1563 = vmatpush.bf16.msra.mxu0 %v663
        %1564 = vmatpush.bf16.msra.mxu0 %v655
        %1565 = vmatmul.bf16.gmra.mxu0 %v1420
        %v1566 = vpop.f32.mrf.mxu0
        %v1567 = vadd.f32 0.0, %v1566
        %v1568 = vpop.f32.mrf.mxu0
        %v1569 = vadd.f32 0.0, %v1568
        %1570 = vmatmul.bf16.gmra.mxu0 %v1421
        %v1571 = vpop.f32.mrf.mxu0
        %v1572 = vadd.f32 0.0, %v1571
        %v1573 = vpop.f32.mrf.mxu0
        %v1574 = vadd.f32 0.0, %v1573
        %1575 = vdwg.mxu0
        %1576 = vmatpush.bf16.msra.mxu0 %v1188
        %1577 = vmatpush.bf16.msra.mxu0 %v1180
        %1578 = vmatpush.bf16.msra.mxu0 %v1172
        %1579 = vmatpush.bf16.msra.mxu0 %v1164
        %1580 = vmatpush.bf16.msra.mxu0 %v1156
        %1581 = vmatpush.bf16.msra.mxu0 %v1148
        %1582 = vmatpush.bf16.msra.mxu0 %v1140
        %1583 = vmatpush.bf16.msra.mxu0 %v1132
        %1584 = vmatmul.bf16.gmra.mxu0 %v452
        %v1585 = vpop.f32.mrf.mxu0
        %v1586 = vadd.f32 %v1434, %v1585
        %v1587 = vpop.f32.mrf.mxu0
        %v1588 = vadd.f32 %v1436, %v1587
        %1589 = vmatmul.bf16.gmra.mxu0 %v453
        %v1590 = vpop.f32.mrf.mxu0
        %v1591 = vadd.f32 %v1439, %v1590
        %v1592 = vpop.f32.mrf.mxu0
        %v1593 = vadd.f32 %v1441, %v1592
        %1594 = vdwg.mxu0
        %1595 = vmatpush.bf16.msra.mxu0 %v1189
        %1596 = vmatpush.bf16.msra.mxu0 %v1181
        %1597 = vmatpush.bf16.msra.mxu0 %v1173
        %1598 = vmatpush.bf16.msra.mxu0 %v1165
        %1599 = vmatpush.bf16.msra.mxu0 %v1157
        %1600 = vmatpush.bf16.msra.mxu0 %v1149
        %1601 = vmatpush.bf16.msra.mxu0 %v1141
        %1602 = vmatpush.bf16.msra.mxu0 %v1133
        %1603 = vmatmul.bf16.gmra.mxu0 %v452
        %v1604 = vpop.f32.mrf.mxu0
        %v1605 = vadd.f32 %v1453, %v1604
        %v1606 = vpop.f32.mrf.mxu0
        %v1607 = vadd.f32 %v1455, %v1606
        %1608 = vmatmul.bf16.gmra.mxu0 %v453
        %v1609 = vpop.f32.mrf.mxu0
        %v1610 = vadd.f32 %v1458, %v1609
        %v1611 = vpop.f32.mrf.mxu0
        %v1612 = vadd.f32 %v1460, %v1611
        %1613 = vdwg.mxu0
        %1614 = vmatpush.bf16.msra.mxu0 %v1190
        %1615 = vmatpush.bf16.msra.mxu0 %v1182
        %1616 = vmatpush.bf16.msra.mxu0 %v1174
        %1617 = vmatpush.bf16.msra.mxu0 %v1166
        %1618 = vmatpush.bf16.msra.mxu0 %v1158
        %1619 = vmatpush.bf16.msra.mxu0 %v1150
        %1620 = vmatpush.bf16.msra.mxu0 %v1142
        %1621 = vmatpush.bf16.msra.mxu0 %v1134
        %1622 = vmatmul.bf16.gmra.mxu0 %v452
        %v1623 = vpop.f32.mrf.mxu0
        %v1624 = vadd.f32 %v1472, %v1623
        %v1625 = vpop.f32.mrf.mxu0
        %v1626 = vadd.f32 %v1474, %v1625
        %1627 = vmatmul.bf16.gmra.mxu0 %v453
        %v1628 = vpop.f32.mrf.mxu0
        %v1629 = vadd.f32 %v1477, %v1628
        %v1630 = vpop.f32.mrf.mxu0
        %v1631 = vadd.f32 %v1479, %v1630
        %1632 = vdwg.mxu0
        %1633 = vmatpush.bf16.msra.mxu0 %v1191
        %1634 = vmatpush.bf16.msra.mxu0 %v1183
        %1635 = vmatpush.bf16.msra.mxu0 %v1175
        %1636 = vmatpush.bf16.msra.mxu0 %v1167
        %1637 = vmatpush.bf16.msra.mxu0 %v1159
        %1638 = vmatpush.bf16.msra.mxu0 %v1151
        %1639 = vmatpush.bf16.msra.mxu0 %v1143
        %1640 = vmatpush.bf16.msra.mxu0 %v1135
        %1641 = vmatmul.bf16.gmra.mxu0 %v452
        %v1642 = vpop.f32.mrf.mxu0
        %v1643 = vadd.f32 %v1491, %v1642
        %v1644 = vpop.f32.mrf.mxu0
        %v1645 = vadd.f32 %v1493, %v1644
        %1646 = vmatmul.bf16.gmra.mxu0 %v453
        %v1647 = vpop.f32.mrf.mxu0
        %v1648 = vadd.f32 %v1496, %v1647
        %v1649 = vpop.f32.mrf.mxu0
        %v1650 = vadd.f32 %v1498, %v1649
        %1651 = vdwg.mxu0
        %1652 = vmatpush.bf16.msra.mxu0 %v1192
        %1653 = vmatpush.bf16.msra.mxu0 %v1184
        %1654 = vmatpush.bf16.msra.mxu0 %v1176
        %1655 = vmatpush.bf16.msra.mxu0 %v1168
        %1656 = vmatpush.bf16.msra.mxu0 %v1160
        %1657 = vmatpush.bf16.msra.mxu0 %v1152
        %1658 = vmatpush.bf16.msra.mxu0 %v1144
        %1659 = vmatpush.bf16.msra.mxu0 %v1136
        %1660 = vmatmul.bf16.gmra.mxu0 %v452
        %v1661 = vpop.f32.mrf.mxu0
        %v1662 = vadd.f32 %v1510, %v1661
        %v1663 = vpop.f32.mrf.mxu0
        %v1664 = vadd.f32 %v1512, %v1663
        %1665 = vmatmul.bf16.gmra.mxu0 %v453
        %v1666 = vpop.f32.mrf.mxu0
        %v1667 = vadd.f32 %v1515, %v1666
        %v1668 = vpop.f32.mrf.mxu0
        %v1669 = vadd.f32 %v1517, %v1668
        %1670 = vdwg.mxu0
        %1671 = vmatpush.bf16.msra.mxu0 %v1193
        %1672 = vmatpush.bf16.msra.mxu0 %v1185
        %1673 = vmatpush.bf16.msra.mxu0 %v1177
        %1674 = vmatpush.bf16.msra.mxu0 %v1169
        %1675 = vmatpush.bf16.msra.mxu0 %v1161
        %1676 = vmatpush.bf16.msra.mxu0 %v1153
        %1677 = vmatpush.bf16.msra.mxu0 %v1145
        %1678 = vmatpush.bf16.msra.mxu0 %v1137
        %1679 = vmatmul.bf16.gmra.mxu0 %v452
        %v1680 = vpop.f32.mrf.mxu0
        %v1681 = vadd.f32 %v1529, %v1680
        %v1682 = vpop.f32.mrf.mxu0
        %v1683 = vadd.f32 %v1531, %v1682
        %1684 = vmatmul.bf16.gmra.mxu0 %v453
        %v1685 = vpop.f32.mrf.mxu0
        %v1686 = vadd.f32 %v1534, %v1685
        %v1687 = vpop.f32.mrf.mxu0
        %v1688 = vadd.f32 %v1536, %v1687
        %1689 = vdwg.mxu0
        %1690 = vmatpush.bf16.msra.mxu0 %v1194
        %1691 = vmatpush.bf16.msra.mxu0 %v1186
        %1692 = vmatpush.bf16.msra.mxu0 %v1178
        %1693 = vmatpush.bf16.msra.mxu0 %v1170
        %1694 = vmatpush.bf16.msra.mxu0 %v1162
        %1695 = vmatpush.bf16.msra.mxu0 %v1154
        %1696 = vmatpush.bf16.msra.mxu0 %v1146
        %1697 = vmatpush.bf16.msra.mxu0 %v1138
        %1698 = vmatmul.bf16.gmra.mxu0 %v452
        %v1699 = vpop.f32.mrf.mxu0
        %v1700 = vadd.f32 %v1548, %v1699
        %v1701 = vpop.f32.mrf.mxu0
        %v1702 = vadd.f32 %v1550, %v1701
        %1703 = vmatmul.bf16.gmra.mxu0 %v453
        %v1704 = vpop.f32.mrf.mxu0
        %v1705 = vadd.f32 %v1553, %v1704
        %v1706 = vpop.f32.mrf.mxu0
        %v1707 = vadd.f32 %v1555, %v1706
        %1708 = vdwg.mxu0
        %1709 = vmatpush.bf16.msra.mxu0 %v1195
        %1710 = vmatpush.bf16.msra.mxu0 %v1187
        %1711 = vmatpush.bf16.msra.mxu0 %v1179
        %1712 = vmatpush.bf16.msra.mxu0 %v1171
        %1713 = vmatpush.bf16.msra.mxu0 %v1163
        %1714 = vmatpush.bf16.msra.mxu0 %v1155
        %1715 = vmatpush.bf16.msra.mxu0 %v1147
        %1716 = vmatpush.bf16.msra.mxu0 %v1139
        %1717 = vmatmul.bf16.gmra.mxu0 %v452
        %v1718 = vpop.f32.mrf.mxu0
        %v1719 = vadd.f32 %v1567, %v1718
        %v1720 = vpop.f32.mrf.mxu0
        %v1721 = vadd.f32 %v1569, %v1720
        %1722 = vmatmul.bf16.gmra.mxu0 %v453
        %v1723 = vpop.f32.mrf.mxu0
        %v1724 = vadd.f32 %v1572, %v1723
        %v1725 = vpop.f32.mrf.mxu0
        %v1726 = vadd.f32 %v1574, %v1725
        %1727 = vdwg.mxu0
        %v1732 = vunpack.c.l.b16 %v310
        %v1733 = vunpack.c.l.b16 %v311
        %v1734 = vunpack.c.l.b16 %v312
        %v1735 = vunpack.c.l.b16 %v313
        %v1736 = vpack.c.b16 %v1733, %v1732
        %v1737 = vpack.c.b16 %v1735, %v1734
        %1740 = vmatpush.bf16.msra.mxu0 %v704
        %1741 = vmatpush.bf16.msra.mxu0 %v696
        %1742 = vmatpush.bf16.msra.mxu0 %v688
        %1743 = vmatpush.bf16.msra.mxu0 %v680
        %1744 = vmatpush.bf16.msra.mxu0 %v672
        %1745 = vmatpush.bf16.msra.mxu0 %v664
        %1746 = vmatpush.bf16.msra.mxu0 %v656
        %1747 = vmatpush.bf16.msra.mxu0 %v648
        %1748 = vmatmul.bf16.gmra.mxu0 %v1736
        %v1749 = vpop.f32.mrf.mxu0
        %v1750 = vadd.f32 0.0, %v1749
        %v1751 = vpop.f32.mrf.mxu0
        %v1752 = vadd.f32 0.0, %v1751
        %1753 = vmatmul.bf16.gmra.mxu0 %v1737
        %v1754 = vpop.f32.mrf.mxu0
        %v1755 = vadd.f32 0.0, %v1754
        %v1756 = vpop.f32.mrf.mxu0
        %v1757 = vadd.f32 0.0, %v1756
        %1758 = vdwg.mxu0
        %1759 = vmatpush.bf16.msra.mxu0 %v705
        %1760 = vmatpush.bf16.msra.mxu0 %v697
        %1761 = vmatpush.bf16.msra.mxu0 %v689
        %1762 = vmatpush.bf16.msra.mxu0 %v681
        %1763 = vmatpush.bf16.msra.mxu0 %v673
        %1764 = vmatpush.bf16.msra.mxu0 %v665
        %1765 = vmatpush.bf16.msra.mxu0 %v657
        %1766 = vmatpush.bf16.msra.mxu0 %v649
        %1767 = vmatmul.bf16.gmra.mxu0 %v1736
        %v1768 = vpop.f32.mrf.mxu0
        %v1769 = vadd.f32 0.0, %v1768
        %v1770 = vpop.f32.mrf.mxu0
        %v1771 = vadd.f32 0.0, %v1770
        %1772 = vmatmul.bf16.gmra.mxu0 %v1737
        %v1773 = vpop.f32.mrf.mxu0
        %v1774 = vadd.f32 0.0, %v1773
        %v1775 = vpop.f32.mrf.mxu0
        %v1776 = vadd.f32 0.0, %v1775
        %1777 = vdwg.mxu0
        %1778 = vmatpush.bf16.msra.mxu0 %v706
        %1779 = vmatpush.bf16.msra.mxu0 %v698
        %1780 = vmatpush.bf16.msra.mxu0 %v690
        %1781 = vmatpush.bf16.msra.mxu0 %v682
        %1782 = vmatpush.bf16.msra.mxu0 %v674
        %1783 = vmatpush.bf16.msra.mxu0 %v666
        %1784 = vmatpush.bf16.msra.mxu0 %v658
        %1785 = vmatpush.bf16.msra.mxu0 %v650
        %1786 = vmatmul.bf16.gmra.mxu0 %v1736
        %v1787 = vpop.f32.mrf.mxu0
        %v1788 = vadd.f32 0.0, %v1787
        %v1789 = vpop.f32.mrf.mxu0
        %v1790 = vadd.f32 0.0, %v1789
        %1791 = vmatmul.bf16.gmra.mxu0 %v1737
        %v1792 = vpop.f32.mrf.mxu0
        %v1793 = vadd.f32 0.0, %v1792
        %v1794 = vpop.f32.mrf.mxu0
        %v1795 = vadd.f32 0.0, %v1794
        %1796 = vdwg.mxu0
        %1797 = vmatpush.bf16.msra.mxu0 %v707
        %1798 = vmatpush.bf16.msra.mxu0 %v699
        %1799 = vmatpush.bf16.msra.mxu0 %v691
        %1800 = vmatpush.bf16.msra.mxu0 %v683
        %1801 = vmatpush.bf16.msra.mxu0 %v675
        %1802 = vmatpush.bf16.msra.mxu0 %v667
        %1803 = vmatpush.bf16.msra.mxu0 %v659
        %1804 = vmatpush.bf16.msra.mxu0 %v651
        %1805 = vmatmul.bf16.gmra.mxu0 %v1736
        %v1806 = vpop.f32.mrf.mxu0
        %v1807 = vadd.f32 0.0, %v1806
        %v1808 = vpop.f32.mrf.mxu0
        %v1809 = vadd.f32 0.0, %v1808
        %1810 = vmatmul.bf16.gmra.mxu0 %v1737
        %v1811 = vpop.f32.mrf.mxu0
        %v1812 = vadd.f32 0.0, %v1811
        %v1813 = vpop.f32.mrf.mxu0
        %v1814 = vadd.f32 0.0, %v1813
        %1815 = vdwg.mxu0
        %1816 = vmatpush.bf16.msra.mxu0 %v708
        %1817 = vmatpush.bf16.msra.mxu0 %v700
        %1818 = vmatpush.bf16.msra.mxu0 %v692
        %1819 = vmatpush.bf16.msra.mxu0 %v684
        %1820 = vmatpush.bf16.msra.mxu0 %v676
        %1821 = vmatpush.bf16.msra.mxu0 %v668
        %1822 = vmatpush.bf16.msra.mxu0 %v660
        %1823 = vmatpush.bf16.msra.mxu0 %v652
        %1824 = vmatmul.bf16.gmra.mxu0 %v1736
        %v1825 = vpop.f32.mrf.mxu0
        %v1826 = vadd.f32 0.0, %v1825
        %v1827 = vpop.f32.mrf.mxu0
        %v1828 = vadd.f32 0.0, %v1827
        %1829 = vmatmul.bf16.gmra.mxu0 %v1737
        %v1830 = vpop.f32.mrf.mxu0
        %v1831 = vadd.f32 0.0, %v1830
        %v1832 = vpop.f32.mrf.mxu0
        %v1833 = vadd.f32 0.0, %v1832
        %1834 = vdwg.mxu0
        %1835 = vmatpush.bf16.msra.mxu0 %v709
        %1836 = vmatpush.bf16.msra.mxu0 %v701
        %1837 = vmatpush.bf16.msra.mxu0 %v693
        %1838 = vmatpush.bf16.msra.mxu0 %v685
        %1839 = vmatpush.bf16.msra.mxu0 %v677
        %1840 = vmatpush.bf16.msra.mxu0 %v669
        %1841 = vmatpush.bf16.msra.mxu0 %v661
        %1842 = vmatpush.bf16.msra.mxu0 %v653
        %1843 = vmatmul.bf16.gmra.mxu0 %v1736
        %v1844 = vpop.f32.mrf.mxu0
        %v1845 = vadd.f32 0.0, %v1844
        %v1846 = vpop.f32.mrf.mxu0
        %v1847 = vadd.f32 0.0, %v1846
        %1848 = vmatmul.bf16.gmra.mxu0 %v1737
        %v1849 = vpop.f32.mrf.mxu0
        %v1850 = vadd.f32 0.0, %v1849
        %v1851 = vpop.f32.mrf.mxu0
        %v1852 = vadd.f32 0.0, %v1851
        %1853 = vdwg.mxu0
        %1854 = vmatpush.bf16.msra.mxu0 %v710
        %1855 = vmatpush.bf16.msra.mxu0 %v702
        %1856 = vmatpush.bf16.msra.mxu0 %v694
        %1857 = vmatpush.bf16.msra.mxu0 %v686
        %1858 = vmatpush.bf16.msra.mxu0 %v678
        %1859 = vmatpush.bf16.msra.mxu0 %v670
        %1860 = vmatpush.bf16.msra.mxu0 %v662
        %1861 = vmatpush.bf16.msra.mxu0 %v654
        %1862 = vmatmul.bf16.gmra.mxu0 %v1736
        %v1863 = vpop.f32.mrf.mxu0
        %v1864 = vadd.f32 0.0, %v1863
        %v1865 = vpop.f32.mrf.mxu0
        %v1866 = vadd.f32 0.0, %v1865
        %1867 = vmatmul.bf16.gmra.mxu0 %v1737
        %v1868 = vpop.f32.mrf.mxu0
        %v1869 = vadd.f32 0.0, %v1868
        %v1870 = vpop.f32.mrf.mxu0
        %v1871 = vadd.f32 0.0, %v1870
        %1872 = vdwg.mxu0
        %1873 = vmatpush.bf16.msra.mxu0 %v711
        %1874 = vmatpush.bf16.msra.mxu0 %v703
        %1875 = vmatpush.bf16.msra.mxu0 %v695
        %1876 = vmatpush.bf16.msra.mxu0 %v687
        %1877 = vmatpush.bf16.msra.mxu0 %v679
        %1878 = vmatpush.bf16.msra.mxu0 %v671
        %1879 = vmatpush.bf16.msra.mxu0 %v663
        %1880 = vmatpush.bf16.msra.mxu0 %v655
        %1881 = vmatmul.bf16.gmra.mxu0 %v1736
        %v1882 = vpop.f32.mrf.mxu0
        %v1883 = vadd.f32 0.0, %v1882
        %v1884 = vpop.f32.mrf.mxu0
        %v1885 = vadd.f32 0.0, %v1884
        %1886 = vmatmul.bf16.gmra.mxu0 %v1737
        %v1887 = vpop.f32.mrf.mxu0
        %v1888 = vadd.f32 0.0, %v1887
        %v1889 = vpop.f32.mrf.mxu0
        %v1890 = vadd.f32 0.0, %v1889
        %1891 = vdwg.mxu0
        %1892 = vmatpush.bf16.msra.mxu0 %v1188
        %1893 = vmatpush.bf16.msra.mxu0 %v1180
        %1894 = vmatpush.bf16.msra.mxu0 %v1172
        %1895 = vmatpush.bf16.msra.mxu0 %v1164
        %1896 = vmatpush.bf16.msra.mxu0 %v1156
        %1897 = vmatpush.bf16.msra.mxu0 %v1148
        %1898 = vmatpush.bf16.msra.mxu0 %v1140
        %1899 = vmatpush.bf16.msra.mxu0 %v1132
        %1900 = vmatmul.bf16.gmra.mxu0 %v1420
        %v1901 = vpop.f32.mrf.mxu0
        %v1902 = vadd.f32 %v1750, %v1901
        %v1903 = vpop.f32.mrf.mxu0
        %v1904 = vadd.f32 %v1752, %v1903
        %1905 = vmatmul.bf16.gmra.mxu0 %v1421
        %v1906 = vpop.f32.mrf.mxu0
        %v1907 = vadd.f32 %v1755, %v1906
        %v1908 = vpop.f32.mrf.mxu0
        %v1909 = vadd.f32 %v1757, %v1908
        %1910 = vdwg.mxu0
        %1911 = vmatpush.bf16.msra.mxu0 %v1189
        %1912 = vmatpush.bf16.msra.mxu0 %v1181
        %1913 = vmatpush.bf16.msra.mxu0 %v1173
        %1914 = vmatpush.bf16.msra.mxu0 %v1165
        %1915 = vmatpush.bf16.msra.mxu0 %v1157
        %1916 = vmatpush.bf16.msra.mxu0 %v1149
        %1917 = vmatpush.bf16.msra.mxu0 %v1141
        %1918 = vmatpush.bf16.msra.mxu0 %v1133
        %1919 = vmatmul.bf16.gmra.mxu0 %v1420
        %v1920 = vpop.f32.mrf.mxu0
        %v1921 = vadd.f32 %v1769, %v1920
        %v1922 = vpop.f32.mrf.mxu0
        %v1923 = vadd.f32 %v1771, %v1922
        %1924 = vmatmul.bf16.gmra.mxu0 %v1421
        %v1925 = vpop.f32.mrf.mxu0
        %v1926 = vadd.f32 %v1774, %v1925
        %v1927 = vpop.f32.mrf.mxu0
        %v1928 = vadd.f32 %v1776, %v1927
        %1929 = vdwg.mxu0
        %1930 = vmatpush.bf16.msra.mxu0 %v1190
        %1931 = vmatpush.bf16.msra.mxu0 %v1182
        %1932 = vmatpush.bf16.msra.mxu0 %v1174
        %1933 = vmatpush.bf16.msra.mxu0 %v1166
        %1934 = vmatpush.bf16.msra.mxu0 %v1158
        %1935 = vmatpush.bf16.msra.mxu0 %v1150
        %1936 = vmatpush.bf16.msra.mxu0 %v1142
        %1937 = vmatpush.bf16.msra.mxu0 %v1134
        %1938 = vmatmul.bf16.gmra.mxu0 %v1420
        %v1939 = vpop.f32.mrf.mxu0
        %v1940 = vadd.f32 %v1788, %v1939
        %v1941 = vpop.f32.mrf.mxu0
        %v1942 = vadd.f32 %v1790, %v1941
        %1943 = vmatmul.bf16.gmra.mxu0 %v1421
        %v1944 = vpop.f32.mrf.mxu0
        %v1945 = vadd.f32 %v1793, %v1944
        %v1946 = vpop.f32.mrf.mxu0
        %v1947 = vadd.f32 %v1795, %v1946
        %1948 = vdwg.mxu0
        %1949 = vmatpush.bf16.msra.mxu0 %v1191
        %1950 = vmatpush.bf16.msra.mxu0 %v1183
        %1951 = vmatpush.bf16.msra.mxu0 %v1175
        %1952 = vmatpush.bf16.msra.mxu0 %v1167
        %1953 = vmatpush.bf16.msra.mxu0 %v1159
        %1954 = vmatpush.bf16.msra.mxu0 %v1151
        %1955 = vmatpush.bf16.msra.mxu0 %v1143
        %1956 = vmatpush.bf16.msra.mxu0 %v1135
        %1957 = vmatmul.bf16.gmra.mxu0 %v1420
        %v1958 = vpop.f32.mrf.mxu0
        %v1959 = vadd.f32 %v1807, %v1958
        %v1960 = vpop.f32.mrf.mxu0
        %v1961 = vadd.f32 %v1809, %v1960
        %1962 = vmatmul.bf16.gmra.mxu0 %v1421
        %v1963 = vpop.f32.mrf.mxu0
        %v1964 = vadd.f32 %v1812, %v1963
        %v1965 = vpop.f32.mrf.mxu0
        %v1966 = vadd.f32 %v1814, %v1965
        %1967 = vdwg.mxu0
        %1968 = vmatpush.bf16.msra.mxu0 %v1192
        %1969 = vmatpush.bf16.msra.mxu0 %v1184
        %1970 = vmatpush.bf16.msra.mxu0 %v1176
        %1971 = vmatpush.bf16.msra.mxu0 %v1168
        %1972 = vmatpush.bf16.msra.mxu0 %v1160
        %1973 = vmatpush.bf16.msra.mxu0 %v1152
        %1974 = vmatpush.bf16.msra.mxu0 %v1144
        %1975 = vmatpush.bf16.msra.mxu0 %v1136
        %1976 = vmatmul.bf16.gmra.mxu0 %v1420
        %v1977 = vpop.f32.mrf.mxu0
        %v1978 = vadd.f32 %v1826, %v1977
        %v1979 = vpop.f32.mrf.mxu0
        %v1980 = vadd.f32 %v1828, %v1979
        %1981 = vmatmul.bf16.gmra.mxu0 %v1421
        %v1982 = vpop.f32.mrf.mxu0
        %v1983 = vadd.f32 %v1831, %v1982
        %v1984 = vpop.f32.mrf.mxu0
        %v1985 = vadd.f32 %v1833, %v1984
        %1986 = vdwg.mxu0
        %1987 = vmatpush.bf16.msra.mxu0 %v1193
        %1988 = vmatpush.bf16.msra.mxu0 %v1185
        %1989 = vmatpush.bf16.msra.mxu0 %v1177
        %1990 = vmatpush.bf16.msra.mxu0 %v1169
        %1991 = vmatpush.bf16.msra.mxu0 %v1161
        %1992 = vmatpush.bf16.msra.mxu0 %v1153
        %1993 = vmatpush.bf16.msra.mxu0 %v1145
        %1994 = vmatpush.bf16.msra.mxu0 %v1137
        %1995 = vmatmul.bf16.gmra.mxu0 %v1420
        %v1996 = vpop.f32.mrf.mxu0
        %v1997 = vadd.f32 %v1845, %v1996
        %v1998 = vpop.f32.mrf.mxu0
        %v1999 = vadd.f32 %v1847, %v1998
        %2000 = vmatmul.bf16.gmra.mxu0 %v1421
        %v2001 = vpop.f32.mrf.mxu0
        %v2002 = vadd.f32 %v1850, %v2001
        %v2003 = vpop.f32.mrf.mxu0
        %v2004 = vadd.f32 %v1852, %v2003
        %2005 = vdwg.mxu0
        %2006 = vmatpush.bf16.msra.mxu0 %v1194
        %2007 = vmatpush.bf16.msra.mxu0 %v1186
        %2008 = vmatpush.bf16.msra.mxu0 %v1178
        %2009 = vmatpush.bf16.msra.mxu0 %v1170
        %2010 = vmatpush.bf16.msra.mxu0 %v1162
        %2011 = vmatpush.bf16.msra.mxu0 %v1154
        %2012 = vmatpush.bf16.msra.mxu0 %v1146
        %2013 = vmatpush.bf16.msra.mxu0 %v1138
        %2014 = vmatmul.bf16.gmra.mxu0 %v1420
        %v2015 = vpop.f32.mrf.mxu0
        %v2016 = vadd.f32 %v1864, %v2015
        %v2017 = vpop.f32.mrf.mxu0
        %v2018 = vadd.f32 %v1866, %v2017
        %2019 = vmatmul.bf16.gmra.mxu0 %v1421
        %v2020 = vpop.f32.mrf.mxu0
        %v2021 = vadd.f32 %v1869, %v2020
        %v2022 = vpop.f32.mrf.mxu0
        %v2023 = vadd.f32 %v1871, %v2022
        %2024 = vdwg.mxu0
        %2025 = vmatpush.bf16.msra.mxu0 %v1195
        %2026 = vmatpush.bf16.msra.mxu0 %v1187
        %2027 = vmatpush.bf16.msra.mxu0 %v1179
        %2028 = vmatpush.bf16.msra.mxu0 %v1171
        %2029 = vmatpush.bf16.msra.mxu0 %v1163
        %2030 = vmatpush.bf16.msra.mxu0 %v1155
        %2031 = vmatpush.bf16.msra.mxu0 %v1147
        %2032 = vmatpush.bf16.msra.mxu0 %v1139
        %2033 = vmatmul.bf16.gmra.mxu0 %v1420
        %v2034 = vpop.f32.mrf.mxu0
        %v2035 = vadd.f32 %v1883, %v2034
        %v2036 = vpop.f32.mrf.mxu0
        %v2037 = vadd.f32 %v1885, %v2036
        %2038 = vmatmul.bf16.gmra.mxu0 %v1421
        %v2039 = vpop.f32.mrf.mxu0
        %v2040 = vadd.f32 %v1888, %v2039
        %v2041 = vpop.f32.mrf.mxu0
        %v2042 = vadd.f32 %v1890, %v2041
        %2043 = vdwg.mxu0
        %v2045 = vunpack.c.l.b16 %v299
        %v2046 = vpack.c.b16 %v2045, %v2045
        %vm2047 = vcmask 1045504
        %v2048 = vrot.slane %v936, 2
        %v2049 = vrot.slane %v937, 2
        %v2050 = vsel %vm2047, %v2048, %v2049
        %v2051 = vrot.slane %v2046, 2
        %v2052 = vsel %vm2047, %v2049, %v2051
        %2055 = vmatpush.bf16.msra.mxu0 %v704
        %2056 = vmatpush.bf16.msra.mxu0 %v696
        %2057 = vmatpush.bf16.msra.mxu0 %v688
        %2058 = vmatpush.bf16.msra.mxu0 %v680
        %2059 = vmatpush.bf16.msra.mxu0 %v672
        %2060 = vmatpush.bf16.msra.mxu0 %v664
        %2061 = vmatpush.bf16.msra.mxu0 %v656
        %2062 = vmatpush.bf16.msra.mxu0 %v648
        %2063 = vmatmul.bf16.gmra.mxu0 %v2050
        %v2064 = vpop.f32.mrf.mxu0
        %v2065 = vadd.f32 0.0, %v2064
        %v2066 = vpop.f32.mrf.mxu0
        %v2067 = vadd.f32 0.0, %v2066
        %2068 = vmatmul.bf16.gmra.mxu0 %v2052
        %v2069 = vpop.f32.mrf.mxu0
        %v2070 = vadd.f32 0.0, %v2069
        %v2071 = vpop.f32.mrf.mxu0
        %v2072 = vadd.f32 0.0, %v2071
        %2073 = vdwg.mxu0
        %2074 = vmatpush.bf16.msra.mxu0 %v705
        %2075 = vmatpush.bf16.msra.mxu0 %v697
        %2076 = vmatpush.bf16.msra.mxu0 %v689
        %2077 = vmatpush.bf16.msra.mxu0 %v681
        %2078 = vmatpush.bf16.msra.mxu0 %v673
        %2079 = vmatpush.bf16.msra.mxu0 %v665
        %2080 = vmatpush.bf16.msra.mxu0 %v657
        %2081 = vmatpush.bf16.msra.mxu0 %v649
        %2082 = vmatmul.bf16.gmra.mxu0 %v2050
        %v2083 = vpop.f32.mrf.mxu0
        %v2084 = vadd.f32 0.0, %v2083
        %v2085 = vpop.f32.mrf.mxu0
        %v2086 = vadd.f32 0.0, %v2085
        %2087 = vmatmul.bf16.gmra.mxu0 %v2052
        %v2088 = vpop.f32.mrf.mxu0
        %v2089 = vadd.f32 0.0, %v2088
        %v2090 = vpop.f32.mrf.mxu0
        %v2091 = vadd.f32 0.0, %v2090
        %2092 = vdwg.mxu0
        %2093 = vmatpush.bf16.msra.mxu0 %v706
        %2094 = vmatpush.bf16.msra.mxu0 %v698
        %2095 = vmatpush.bf16.msra.mxu0 %v690
        %2096 = vmatpush.bf16.msra.mxu0 %v682
        %2097 = vmatpush.bf16.msra.mxu0 %v674
        %2098 = vmatpush.bf16.msra.mxu0 %v666
        %2099 = vmatpush.bf16.msra.mxu0 %v658
        %2100 = vmatpush.bf16.msra.mxu0 %v650
        %2101 = vmatmul.bf16.gmra.mxu0 %v2050
        %v2102 = vpop.f32.mrf.mxu0
        %v2103 = vadd.f32 0.0, %v2102
        %v2104 = vpop.f32.mrf.mxu0
        %v2105 = vadd.f32 0.0, %v2104
        %2106 = vmatmul.bf16.gmra.mxu0 %v2052
        %v2107 = vpop.f32.mrf.mxu0
        %v2108 = vadd.f32 0.0, %v2107
        %v2109 = vpop.f32.mrf.mxu0
        %v2110 = vadd.f32 0.0, %v2109
        %2111 = vdwg.mxu0
        %2112 = vmatpush.bf16.msra.mxu0 %v707
        %2113 = vmatpush.bf16.msra.mxu0 %v699
        %2114 = vmatpush.bf16.msra.mxu0 %v691
        %2115 = vmatpush.bf16.msra.mxu0 %v683
        %2116 = vmatpush.bf16.msra.mxu0 %v675
        %2117 = vmatpush.bf16.msra.mxu0 %v667
        %2118 = vmatpush.bf16.msra.mxu0 %v659
        %2119 = vmatpush.bf16.msra.mxu0 %v651
        %2120 = vmatmul.bf16.gmra.mxu0 %v2050
        %v2121 = vpop.f32.mrf.mxu0
        %v2122 = vadd.f32 0.0, %v2121
        %v2123 = vpop.f32.mrf.mxu0
        %v2124 = vadd.f32 0.0, %v2123
        %2125 = vmatmul.bf16.gmra.mxu0 %v2052
        %v2126 = vpop.f32.mrf.mxu0
        %v2127 = vadd.f32 0.0, %v2126
        %v2128 = vpop.f32.mrf.mxu0
        %v2129 = vadd.f32 0.0, %v2128
        %2130 = vdwg.mxu0
        %2131 = vmatpush.bf16.msra.mxu0 %v708
        %2132 = vmatpush.bf16.msra.mxu0 %v700
        %2133 = vmatpush.bf16.msra.mxu0 %v692
        %2134 = vmatpush.bf16.msra.mxu0 %v684
        %2135 = vmatpush.bf16.msra.mxu0 %v676
        %2136 = vmatpush.bf16.msra.mxu0 %v668
        %2137 = vmatpush.bf16.msra.mxu0 %v660
        %2138 = vmatpush.bf16.msra.mxu0 %v652
        %2139 = vmatmul.bf16.gmra.mxu0 %v2050
        %v2140 = vpop.f32.mrf.mxu0
        %v2141 = vadd.f32 0.0, %v2140
        %v2142 = vpop.f32.mrf.mxu0
        %v2143 = vadd.f32 0.0, %v2142
        %2144 = vmatmul.bf16.gmra.mxu0 %v2052
        %v2145 = vpop.f32.mrf.mxu0
        %v2146 = vadd.f32 0.0, %v2145
        %v2147 = vpop.f32.mrf.mxu0
        %v2148 = vadd.f32 0.0, %v2147
        %2149 = vdwg.mxu0
        %2150 = vmatpush.bf16.msra.mxu0 %v709
        %2151 = vmatpush.bf16.msra.mxu0 %v701
        %2152 = vmatpush.bf16.msra.mxu0 %v693
        %2153 = vmatpush.bf16.msra.mxu0 %v685
        %2154 = vmatpush.bf16.msra.mxu0 %v677
        %2155 = vmatpush.bf16.msra.mxu0 %v669
        %2156 = vmatpush.bf16.msra.mxu0 %v661
        %2157 = vmatpush.bf16.msra.mxu0 %v653
        %2158 = vmatmul.bf16.gmra.mxu0 %v2050
        %v2159 = vpop.f32.mrf.mxu0
        %v2160 = vadd.f32 0.0, %v2159
        %v2161 = vpop.f32.mrf.mxu0
        %v2162 = vadd.f32 0.0, %v2161
        %2163 = vmatmul.bf16.gmra.mxu0 %v2052
        %v2164 = vpop.f32.mrf.mxu0
        %v2165 = vadd.f32 0.0, %v2164
        %v2166 = vpop.f32.mrf.mxu0
        %v2167 = vadd.f32 0.0, %v2166
        %2168 = vdwg.mxu0
        %2169 = vmatpush.bf16.msra.mxu0 %v710
        %2170 = vmatpush.bf16.msra.mxu0 %v702
        %2171 = vmatpush.bf16.msra.mxu0 %v694
        %2172 = vmatpush.bf16.msra.mxu0 %v686
        %2173 = vmatpush.bf16.msra.mxu0 %v678
        %2174 = vmatpush.bf16.msra.mxu0 %v670
        %2175 = vmatpush.bf16.msra.mxu0 %v662
        %2176 = vmatpush.bf16.msra.mxu0 %v654
        %2177 = vmatmul.bf16.gmra.mxu0 %v2050
        %v2178 = vpop.f32.mrf.mxu0
        %v2179 = vadd.f32 0.0, %v2178
        %v2180 = vpop.f32.mrf.mxu0
        %v2181 = vadd.f32 0.0, %v2180
        %2182 = vmatmul.bf16.gmra.mxu0 %v2052
        %v2183 = vpop.f32.mrf.mxu0
        %v2184 = vadd.f32 0.0, %v2183
        %v2185 = vpop.f32.mrf.mxu0
        %v2186 = vadd.f32 0.0, %v2185
        %2187 = vdwg.mxu0
        %2188 = vmatpush.bf16.msra.mxu0 %v711
        %2189 = vmatpush.bf16.msra.mxu0 %v703
        %2190 = vmatpush.bf16.msra.mxu0 %v695
        %2191 = vmatpush.bf16.msra.mxu0 %v687
        %2192 = vmatpush.bf16.msra.mxu0 %v679
        %2193 = vmatpush.bf16.msra.mxu0 %v671
        %2194 = vmatpush.bf16.msra.mxu0 %v663
        %2195 = vmatpush.bf16.msra.mxu0 %v655
        %2196 = vmatmul.bf16.gmra.mxu0 %v2050
        %v2197 = vpop.f32.mrf.mxu0
        %v2198 = vadd.f32 0.0, %v2197
        %v2199 = vpop.f32.mrf.mxu0
        %v2200 = vadd.f32 0.0, %v2199
        %2201 = vmatmul.bf16.gmra.mxu0 %v2052
        %v2202 = vpop.f32.mrf.mxu0
        %v2203 = vadd.f32 0.0, %v2202
        %v2204 = vpop.f32.mrf.mxu0
        %v2205 = vadd.f32 0.0, %v2204
        %2206 = vdwg.mxu0
        %2207 = vmatpush.bf16.msra.mxu0 %v1188
        %2208 = vmatpush.bf16.msra.mxu0 %v1180
        %2209 = vmatpush.bf16.msra.mxu0 %v1172
        %2210 = vmatpush.bf16.msra.mxu0 %v1164
        %2211 = vmatpush.bf16.msra.mxu0 %v1156
        %2212 = vmatpush.bf16.msra.mxu0 %v1148
        %2213 = vmatpush.bf16.msra.mxu0 %v1140
        %2214 = vmatpush.bf16.msra.mxu0 %v1132
        %2215 = vmatmul.bf16.gmra.mxu0 %v1736
        %v2216 = vpop.f32.mrf.mxu0
        %v2217 = vadd.f32 %v2065, %v2216
        %v2218 = vpop.f32.mrf.mxu0
        %v2219 = vadd.f32 %v2067, %v2218
        %2220 = vmatmul.bf16.gmra.mxu0 %v1737
        %v2221 = vpop.f32.mrf.mxu0
        %v2222 = vadd.f32 %v2070, %v2221
        %v2223 = vpop.f32.mrf.mxu0
        %v2224 = vadd.f32 %v2072, %v2223
        %2225 = vdwg.mxu0
        %2226 = vmatpush.bf16.msra.mxu0 %v1189
        %2227 = vmatpush.bf16.msra.mxu0 %v1181
        %2228 = vmatpush.bf16.msra.mxu0 %v1173
        %2229 = vmatpush.bf16.msra.mxu0 %v1165
        %2230 = vmatpush.bf16.msra.mxu0 %v1157
        %2231 = vmatpush.bf16.msra.mxu0 %v1149
        %2232 = vmatpush.bf16.msra.mxu0 %v1141
        %2233 = vmatpush.bf16.msra.mxu0 %v1133
        %2234 = vmatmul.bf16.gmra.mxu0 %v1736
        %v2235 = vpop.f32.mrf.mxu0
        %v2236 = vadd.f32 %v2084, %v2235
        %v2237 = vpop.f32.mrf.mxu0
        %v2238 = vadd.f32 %v2086, %v2237
        %2239 = vmatmul.bf16.gmra.mxu0 %v1737
        %v2240 = vpop.f32.mrf.mxu0
        %v2241 = vadd.f32 %v2089, %v2240
        %v2242 = vpop.f32.mrf.mxu0
        %v2243 = vadd.f32 %v2091, %v2242
        %2244 = vdwg.mxu0
        %2245 = vmatpush.bf16.msra.mxu0 %v1190
        %2246 = vmatpush.bf16.msra.mxu0 %v1182
        %2247 = vmatpush.bf16.msra.mxu0 %v1174
        %2248 = vmatpush.bf16.msra.mxu0 %v1166
        %2249 = vmatpush.bf16.msra.mxu0 %v1158
        %2250 = vmatpush.bf16.msra.mxu0 %v1150
        %2251 = vmatpush.bf16.msra.mxu0 %v1142
        %2252 = vmatpush.bf16.msra.mxu0 %v1134
        %2253 = vmatmul.bf16.gmra.mxu0 %v1736
        %v2254 = vpop.f32.mrf.mxu0
        %v2255 = vadd.f32 %v2103, %v2254
        %v2256 = vpop.f32.mrf.mxu0
        %v2257 = vadd.f32 %v2105, %v2256
        %2258 = vmatmul.bf16.gmra.mxu0 %v1737
        %v2259 = vpop.f32.mrf.mxu0
        %v2260 = vadd.f32 %v2108, %v2259
        %v2261 = vpop.f32.mrf.mxu0
        %v2262 = vadd.f32 %v2110, %v2261
        %2263 = vdwg.mxu0
        %2264 = vmatpush.bf16.msra.mxu0 %v1191
        %2265 = vmatpush.bf16.msra.mxu0 %v1183
        %2266 = vmatpush.bf16.msra.mxu0 %v1175
        %2267 = vmatpush.bf16.msra.mxu0 %v1167
        %2268 = vmatpush.bf16.msra.mxu0 %v1159
        %2269 = vmatpush.bf16.msra.mxu0 %v1151
        %2270 = vmatpush.bf16.msra.mxu0 %v1143
        %2271 = vmatpush.bf16.msra.mxu0 %v1135
        %2272 = vmatmul.bf16.gmra.mxu0 %v1736
        %v2273 = vpop.f32.mrf.mxu0
        %v2274 = vadd.f32 %v2122, %v2273
        %v2275 = vpop.f32.mrf.mxu0
        %v2276 = vadd.f32 %v2124, %v2275
        %2277 = vmatmul.bf16.gmra.mxu0 %v1737
        %v2278 = vpop.f32.mrf.mxu0
        %v2279 = vadd.f32 %v2127, %v2278
        %v2280 = vpop.f32.mrf.mxu0
        %v2281 = vadd.f32 %v2129, %v2280
        %2282 = vdwg.mxu0
        %2283 = vmatpush.bf16.msra.mxu0 %v1192
        %2284 = vmatpush.bf16.msra.mxu0 %v1184
        %2285 = vmatpush.bf16.msra.mxu0 %v1176
        %2286 = vmatpush.bf16.msra.mxu0 %v1168
        %2287 = vmatpush.bf16.msra.mxu0 %v1160
        %2288 = vmatpush.bf16.msra.mxu0 %v1152
        %2289 = vmatpush.bf16.msra.mxu0 %v1144
        %2290 = vmatpush.bf16.msra.mxu0 %v1136
        %2291 = vmatmul.bf16.gmra.mxu0 %v1736
        %v2292 = vpop.f32.mrf.mxu0
        %v2293 = vadd.f32 %v2141, %v2292
        %v2294 = vpop.f32.mrf.mxu0
        %v2295 = vadd.f32 %v2143, %v2294
        %2296 = vmatmul.bf16.gmra.mxu0 %v1737
        %v2297 = vpop.f32.mrf.mxu0
        %v2298 = vadd.f32 %v2146, %v2297
        %v2299 = vpop.f32.mrf.mxu0
        %v2300 = vadd.f32 %v2148, %v2299
        %2301 = vdwg.mxu0
        %2302 = vmatpush.bf16.msra.mxu0 %v1193
        %2303 = vmatpush.bf16.msra.mxu0 %v1185
        %2304 = vmatpush.bf16.msra.mxu0 %v1177
        %2305 = vmatpush.bf16.msra.mxu0 %v1169
        %2306 = vmatpush.bf16.msra.mxu0 %v1161
        %2307 = vmatpush.bf16.msra.mxu0 %v1153
        %2308 = vmatpush.bf16.msra.mxu0 %v1145
        %2309 = vmatpush.bf16.msra.mxu0 %v1137
        %2310 = vmatmul.bf16.gmra.mxu0 %v1736
        %v2311 = vpop.f32.mrf.mxu0
        %v2312 = vadd.f32 %v2160, %v2311
        %v2313 = vpop.f32.mrf.mxu0
        %v2314 = vadd.f32 %v2162, %v2313
        %2315 = vmatmul.bf16.gmra.mxu0 %v1737
        %v2316 = vpop.f32.mrf.mxu0
        %v2317 = vadd.f32 %v2165, %v2316
        %v2318 = vpop.f32.mrf.mxu0
        %v2319 = vadd.f32 %v2167, %v2318
        %2320 = vdwg.mxu0
        %2321 = vmatpush.bf16.msra.mxu0 %v1194
        %2322 = vmatpush.bf16.msra.mxu0 %v1186
        %2323 = vmatpush.bf16.msra.mxu0 %v1178
        %2324 = vmatpush.bf16.msra.mxu0 %v1170
        %2325 = vmatpush.bf16.msra.mxu0 %v1162
        %2326 = vmatpush.bf16.msra.mxu0 %v1154
        %2327 = vmatpush.bf16.msra.mxu0 %v1146
        %2328 = vmatpush.bf16.msra.mxu0 %v1138
        %2329 = vmatmul.bf16.gmra.mxu0 %v1736
        %v2330 = vpop.f32.mrf.mxu0
        %v2331 = vadd.f32 %v2179, %v2330
        %v2332 = vpop.f32.mrf.mxu0
        %v2333 = vadd.f32 %v2181, %v2332
        %2334 = vmatmul.bf16.gmra.mxu0 %v1737
        %v2335 = vpop.f32.mrf.mxu0
        %v2336 = vadd.f32 %v2184, %v2335
        %v2337 = vpop.f32.mrf.mxu0
        %v2338 = vadd.f32 %v2186, %v2337
        %2339 = vdwg.mxu0
        %2340 = vmatpush.bf16.msra.mxu0 %v1195
        %2341 = vmatpush.bf16.msra.mxu0 %v1187
        %2342 = vmatpush.bf16.msra.mxu0 %v1179
        %2343 = vmatpush.bf16.msra.mxu0 %v1171
        %2344 = vmatpush.bf16.msra.mxu0 %v1163
        %2345 = vmatpush.bf16.msra.mxu0 %v1155
        %2346 = vmatpush.bf16.msra.mxu0 %v1147
        %2347 = vmatpush.bf16.msra.mxu0 %v1139
        %2348 = vmatmul.bf16.gmra.mxu0 %v1736
        %v2349 = vpop.f32.mrf.mxu0
        %v2350 = vadd.f32 %v2198, %v2349
        %v2351 = vpop.f32.mrf.mxu0
        %v2352 = vadd.f32 %v2200, %v2351
        %2353 = vmatmul.bf16.gmra.mxu0 %v1737
        %v2354 = vpop.f32.mrf.mxu0
        %v2355 = vadd.f32 %v2203, %v2354
        %v2356 = vpop.f32.mrf.mxu0
        %v2357 = vadd.f32 %v2205, %v2356
        %2358 = vdwg.mxu0
        %s2359 = scalar_lea.vmem %s1, 1024
        %v2360 = vld [vmem:[%s2359] sm:$0xff]
        %v2361 = vld [vmem:[%s2359 + $0x8] sm:$0xff]
        %v2362 = vld [vmem:[%s2359 + $0x10] sm:$0xff]
        %v2363 = vld [vmem:[%s2359 + $0x18] sm:$0xff]
        %v2364 = vld [vmem:[%s2359 + $0x20] sm:$0xff]
        %v2365 = vld [vmem:[%s2359 + $0x28] sm:$0xff]
        %v2366 = vld [vmem:[%s2359 + $0x30] sm:$0xff]
        %v2367 = vld [vmem:[%s2359 + $0x38] sm:$0xff]
        %v2368 = vld [vmem:[%s2359 + $0x40] sm:$0xff]
        %v2369 = vld [vmem:[%s2359 + $0x48] sm:$0xff]
        %v2370 = vld [vmem:[%s2359 + $0x50] sm:$0xff]
        %v2371 = vld [vmem:[%s2359 + $0x58] sm:$0xff]
        %v2372 = vld [vmem:[%s2359 + $0x60] sm:$0xff]
        %v2373 = vld [vmem:[%s2359 + $0x68] sm:$0xff]
        %v2374 = vld [vmem:[%s2359 + $0x70] sm:$0xff]
        %v2375 = vld [vmem:[%s2359 + $0x78] sm:$0xff]
        %v2376 = vld [vmem:[%s2359 + $0x80] sm:$0xff]
        %v2377 = vld [vmem:[%s2359 + $0x88] sm:$0xff]
        %v2378 = vld [vmem:[%s2359 + $0x90] sm:$0xff]
        %v2379 = vld [vmem:[%s2359 + $0x98] sm:$0xff]
        %v2380 = vld [vmem:[%s2359 + $0xa0] sm:$0xff]
        %v2381 = vld [vmem:[%s2359 + $0xa8] sm:$0xff]
        %v2382 = vld [vmem:[%s2359 + $0xb0] sm:$0xff]
        %v2383 = vld [vmem:[%s2359 + $0xb8] sm:$0xff]
        %v2384 = vld [vmem:[%s2359 + $0xc0] sm:$0xff]
        %v2385 = vld [vmem:[%s2359 + $0xc8] sm:$0xff]
        %v2386 = vld [vmem:[%s2359 + $0xd0] sm:$0xff]
        %v2387 = vld [vmem:[%s2359 + $0xd8] sm:$0xff]
        %v2388 = vld [vmem:[%s2359 + $0xe0] sm:$0xff]
        %v2389 = vld [vmem:[%s2359 + $0xe8] sm:$0xff]
        %v2390 = vld [vmem:[%s2359 + $0xf0] sm:$0xff]
        %v2391 = vld [vmem:[%s2359 + $0xf8] sm:$0xff]
        %v2392 = vld [vmem:[%s2359 + $0x100] sm:$0xff]
        %v2393 = vld [vmem:[%s2359 + $0x108] sm:$0xff]
        %v2394 = vld [vmem:[%s2359 + $0x110] sm:$0xff]
        %v2395 = vld [vmem:[%s2359 + $0x118] sm:$0xff]
        %v2396 = vld [vmem:[%s2359 + $0x120] sm:$0xff]
        %v2397 = vld [vmem:[%s2359 + $0x128] sm:$0xff]
        %v2398 = vld [vmem:[%s2359 + $0x130] sm:$0xff]
        %v2399 = vld [vmem:[%s2359 + $0x138] sm:$0xff]
        %v2400 = vld [vmem:[%s2359 + $0x140] sm:$0xff]
        %v2401 = vld [vmem:[%s2359 + $0x148] sm:$0xff]
        %v2402 = vld [vmem:[%s2359 + $0x150] sm:$0xff]
        %v2403 = vld [vmem:[%s2359 + $0x158] sm:$0xff]
        %v2404 = vld [vmem:[%s2359 + $0x160] sm:$0xff]
        %v2405 = vld [vmem:[%s2359 + $0x168] sm:$0xff]
        %v2406 = vld [vmem:[%s2359 + $0x170] sm:$0xff]
        %v2407 = vld [vmem:[%s2359 + $0x178] sm:$0xff]
        %v2408 = vld [vmem:[%s2359 + $0x180] sm:$0xff]
        %v2409 = vld [vmem:[%s2359 + $0x188] sm:$0xff]
        %v2410 = vld [vmem:[%s2359 + $0x190] sm:$0xff]
        %v2411 = vld [vmem:[%s2359 + $0x198] sm:$0xff]
        %v2412 = vld [vmem:[%s2359 + $0x1a0] sm:$0xff]
        %v2413 = vld [vmem:[%s2359 + $0x1a8] sm:$0xff]
        %v2414 = vld [vmem:[%s2359 + $0x1b0] sm:$0xff]
        %v2415 = vld [vmem:[%s2359 + $0x1b8] sm:$0xff]
        %v2416 = vld [vmem:[%s2359 + $0x1c0] sm:$0xff]
        %v2417 = vld [vmem:[%s2359 + $0x1c8] sm:$0xff]
        %v2418 = vld [vmem:[%s2359 + $0x1d0] sm:$0xff]
        %v2419 = vld [vmem:[%s2359 + $0x1d8] sm:$0xff]
        %v2420 = vld [vmem:[%s2359 + $0x1e0] sm:$0xff]
        %v2421 = vld [vmem:[%s2359 + $0x1e8] sm:$0xff]
        %v2422 = vld [vmem:[%s2359 + $0x1f0] sm:$0xff]
        %v2423 = vld [vmem:[%s2359 + $0x1f8] sm:$0xff]
        %v2488 = vunpack.c.l.b16 %v2360
        %v2489 = vunpack.c.h.b16 %v2360
        %v2490 = vunpack.c.l.b16 %v2361
        %v2491 = vunpack.c.h.b16 %v2361
        %v2492 = vunpack.c.l.b16 %v2362
        %v2493 = vunpack.c.h.b16 %v2362
        %v2494 = vunpack.c.l.b16 %v2363
        %v2495 = vunpack.c.h.b16 %v2363
        %v2496 = vunpack.c.l.b16 %v2364
        %v2497 = vunpack.c.h.b16 %v2364
        %v2498 = vunpack.c.l.b16 %v2365
        %v2499 = vunpack.c.h.b16 %v2365
        %v2500 = vunpack.c.l.b16 %v2366
        %v2501 = vunpack.c.h.b16 %v2366
        %v2502 = vunpack.c.l.b16 %v2367
        %v2503 = vunpack.c.h.b16 %v2367
        %v2504 = vunpack.c.l.b16 %v2368
        %v2505 = vunpack.c.h.b16 %v2368
        %v2506 = vunpack.c.l.b16 %v2369
        %v2507 = vunpack.c.h.b16 %v2369
        %v2508 = vunpack.c.l.b16 %v2370
        %v2509 = vunpack.c.h.b16 %v2370
        %v2510 = vunpack.c.l.b16 %v2371
        %v2511 = vunpack.c.h.b16 %v2371
        %v2512 = vunpack.c.l.b16 %v2372
        %v2513 = vunpack.c.h.b16 %v2372
        %v2514 = vunpack.c.l.b16 %v2373
        %v2515 = vunpack.c.h.b16 %v2373
        %v2516 = vunpack.c.l.b16 %v2374
        %v2517 = vunpack.c.h.b16 %v2374
        %v2518 = vunpack.c.l.b16 %v2375
        %v2519 = vunpack.c.h.b16 %v2375
        %v2520 = vunpack.c.l.b16 %v2376
        %v2521 = vunpack.c.h.b16 %v2376
        %v2522 = vunpack.c.l.b16 %v2377
        %v2523 = vunpack.c.h.b16 %v2377
        %v2524 = vunpack.c.l.b16 %v2378
        %v2525 = vunpack.c.h.b16 %v2378
        %v2526 = vunpack.c.l.b16 %v2379
        %v2527 = vunpack.c.h.b16 %v2379
        %v2528 = vunpack.c.l.b16 %v2380
        %v2529 = vunpack.c.h.b16 %v2380
        %v2530 = vunpack.c.l.b16 %v2381
        %v2531 = vunpack.c.h.b16 %v2381
        %v2532 = vunpack.c.l.b16 %v2382
        %v2533 = vunpack.c.h.b16 %v2382
        %v2534 = vunpack.c.l.b16 %v2383
        %v2535 = vunpack.c.h.b16 %v2383
        %v2536 = vunpack.c.l.b16 %v2384
        %v2537 = vunpack.c.h.b16 %v2384
        %v2538 = vunpack.c.l.b16 %v2385
        %v2539 = vunpack.c.h.b16 %v2385
        %v2540 = vunpack.c.l.b16 %v2386
        %v2541 = vunpack.c.h.b16 %v2386
        %v2542 = vunpack.c.l.b16 %v2387
        %v2543 = vunpack.c.h.b16 %v2387
        %v2544 = vunpack.c.l.b16 %v2388
        %v2545 = vunpack.c.h.b16 %v2388
        %v2546 = vunpack.c.l.b16 %v2389
        %v2547 = vunpack.c.h.b16 %v2389
        %v2548 = vunpack.c.l.b16 %v2390
        %v2549 = vunpack.c.h.b16 %v2390
        %v2550 = vunpack.c.l.b16 %v2391
        %v2551 = vunpack.c.h.b16 %v2391
        %v2552 = vunpack.c.l.b16 %v2392
        %v2553 = vunpack.c.h.b16 %v2392
        %v2554 = vunpack.c.l.b16 %v2393
        %v2555 = vunpack.c.h.b16 %v2393
        %v2556 = vunpack.c.l.b16 %v2394
        %v2557 = vunpack.c.h.b16 %v2394
        %v2558 = vunpack.c.l.b16 %v2395
        %v2559 = vunpack.c.h.b16 %v2395
        %v2560 = vunpack.c.l.b16 %v2396
        %v2561 = vunpack.c.h.b16 %v2396
        %v2562 = vunpack.c.l.b16 %v2397
        %v2563 = vunpack.c.h.b16 %v2397
        %v2564 = vunpack.c.l.b16 %v2398
        %v2565 = vunpack.c.h.b16 %v2398
        %v2566 = vunpack.c.l.b16 %v2399
        %v2567 = vunpack.c.h.b16 %v2399
        %v2568 = vunpack.c.l.b16 %v2400
        %v2569 = vunpack.c.h.b16 %v2400
        %v2570 = vunpack.c.l.b16 %v2401
        %v2571 = vunpack.c.h.b16 %v2401
        %v2572 = vunpack.c.l.b16 %v2402
        %v2573 = vunpack.c.h.b16 %v2402
        %v2574 = vunpack.c.l.b16 %v2403
        %v2575 = vunpack.c.h.b16 %v2403
        %v2576 = vunpack.c.l.b16 %v2404
        %v2577 = vunpack.c.h.b16 %v2404
        %v2578 = vunpack.c.l.b16 %v2405
        %v2579 = vunpack.c.h.b16 %v2405
        %v2580 = vunpack.c.l.b16 %v2406
        %v2581 = vunpack.c.h.b16 %v2406
        %v2582 = vunpack.c.l.b16 %v2407
        %v2583 = vunpack.c.h.b16 %v2407
        %v2584 = vunpack.c.l.b16 %v2408
        %v2585 = vunpack.c.h.b16 %v2408
        %v2586 = vunpack.c.l.b16 %v2409
        %v2587 = vunpack.c.h.b16 %v2409
        %v2588 = vunpack.c.l.b16 %v2410
        %v2589 = vunpack.c.h.b16 %v2410
        %v2590 = vunpack.c.l.b16 %v2411
        %v2591 = vunpack.c.h.b16 %v2411
        %v2592 = vunpack.c.l.b16 %v2412
        %v2593 = vunpack.c.h.b16 %v2412
        %v2594 = vunpack.c.l.b16 %v2413
        %v2595 = vunpack.c.h.b16 %v2413
        %v2596 = vunpack.c.l.b16 %v2414
        %v2597 = vunpack.c.h.b16 %v2414
        %v2598 = vunpack.c.l.b16 %v2415
        %v2599 = vunpack.c.h.b16 %v2415
        %v2600 = vunpack.c.l.b16 %v2416
        %v2601 = vunpack.c.h.b16 %v2416
        %v2602 = vunpack.c.l.b16 %v2417
        %v2603 = vunpack.c.h.b16 %v2417
        %v2604 = vunpack.c.l.b16 %v2418
        %v2605 = vunpack.c.h.b16 %v2418
        %v2606 = vunpack.c.l.b16 %v2419
        %v2607 = vunpack.c.h.b16 %v2419
        %v2608 = vunpack.c.l.b16 %v2420
        %v2609 = vunpack.c.h.b16 %v2420
        %v2610 = vunpack.c.l.b16 %v2421
        %v2611 = vunpack.c.h.b16 %v2421
        %v2612 = vunpack.c.l.b16 %v2422
        %v2613 = vunpack.c.h.b16 %v2422
        %v2614 = vunpack.c.l.b16 %v2423
        %v2615 = vunpack.c.h.b16 %v2423
        %v2616 = vpack.c.b16 %v2496, %v2488
        %v2617 = vpack.c.b16 %v2497, %v2489
        %v2618 = vpack.c.b16 %v2498, %v2490
        %v2619 = vpack.c.b16 %v2499, %v2491
        %v2620 = vpack.c.b16 %v2500, %v2492
        %v2621 = vpack.c.b16 %v2501, %v2493
        %v2622 = vpack.c.b16 %v2502, %v2494
        %v2623 = vpack.c.b16 %v2503, %v2495
        %v2624 = vpack.c.b16 %v2512, %v2504
        %v2625 = vpack.c.b16 %v2513, %v2505
        %v2626 = vpack.c.b16 %v2514, %v2506
        %v2627 = vpack.c.b16 %v2515, %v2507
        %v2628 = vpack.c.b16 %v2516, %v2508
        %v2629 = vpack.c.b16 %v2517, %v2509
        %v2630 = vpack.c.b16 %v2518, %v2510
        %v2631 = vpack.c.b16 %v2519, %v2511
        %v2632 = vpack.c.b16 %v2528, %v2520
        %v2633 = vpack.c.b16 %v2529, %v2521
        %v2634 = vpack.c.b16 %v2530, %v2522
        %v2635 = vpack.c.b16 %v2531, %v2523
        %v2636 = vpack.c.b16 %v2532, %v2524
        %v2637 = vpack.c.b16 %v2533, %v2525
        %v2638 = vpack.c.b16 %v2534, %v2526
        %v2639 = vpack.c.b16 %v2535, %v2527
        %v2640 = vpack.c.b16 %v2544, %v2536
        %v2641 = vpack.c.b16 %v2545, %v2537
        %v2642 = vpack.c.b16 %v2546, %v2538
        %v2643 = vpack.c.b16 %v2547, %v2539
        %v2644 = vpack.c.b16 %v2548, %v2540
        %v2645 = vpack.c.b16 %v2549, %v2541
        %v2646 = vpack.c.b16 %v2550, %v2542
        %v2647 = vpack.c.b16 %v2551, %v2543
        %v2648 = vpack.c.b16 %v2560, %v2552
        %v2649 = vpack.c.b16 %v2561, %v2553
        %v2650 = vpack.c.b16 %v2562, %v2554
        %v2651 = vpack.c.b16 %v2563, %v2555
        %v2652 = vpack.c.b16 %v2564, %v2556
        %v2653 = vpack.c.b16 %v2565, %v2557
        %v2654 = vpack.c.b16 %v2566, %v2558
        %v2655 = vpack.c.b16 %v2567, %v2559
        %v2656 = vpack.c.b16 %v2576, %v2568
        %v2657 = vpack.c.b16 %v2577, %v2569
        %v2658 = vpack.c.b16 %v2578, %v2570
        %v2659 = vpack.c.b16 %v2579, %v2571
        %v2660 = vpack.c.b16 %v2580, %v2572
        %v2661 = vpack.c.b16 %v2581, %v2573
        %v2662 = vpack.c.b16 %v2582, %v2574
        %v2663 = vpack.c.b16 %v2583, %v2575
        %v2664 = vpack.c.b16 %v2592, %v2584
        %v2665 = vpack.c.b16 %v2593, %v2585
        %v2666 = vpack.c.b16 %v2594, %v2586
        %v2667 = vpack.c.b16 %v2595, %v2587
        %v2668 = vpack.c.b16 %v2596, %v2588
        %v2669 = vpack.c.b16 %v2597, %v2589
        %v2670 = vpack.c.b16 %v2598, %v2590
        %v2671 = vpack.c.b16 %v2599, %v2591
        %v2672 = vpack.c.b16 %v2608, %v2600
        %v2673 = vpack.c.b16 %v2609, %v2601
        %v2674 = vpack.c.b16 %v2610, %v2602
        %v2675 = vpack.c.b16 %v2611, %v2603
        %v2676 = vpack.c.b16 %v2612, %v2604
        %v2677 = vpack.c.b16 %v2613, %v2605
        %v2678 = vpack.c.b16 %v2614, %v2606
        %v2679 = vpack.c.b16 %v2615, %v2607
        %2744 = vmatpush.bf16.msra.mxu0 %v2672
        %2745 = vmatpush.bf16.msra.mxu0 %v2664
        %2746 = vmatpush.bf16.msra.mxu0 %v2656
        %2747 = vmatpush.bf16.msra.mxu0 %v2648
        %2748 = vmatpush.bf16.msra.mxu0 %v2640
        %2749 = vmatpush.bf16.msra.mxu0 %v2632
        %2750 = vmatpush.bf16.msra.mxu0 %v2624
        %2751 = vmatpush.bf16.msra.mxu0 %v2616
        %2752 = vmatmul.bf16.gmra.mxu0 %v1420
        %v2753 = vpop.f32.mrf.mxu0
        %v2754 = vadd.f32 0.0, %v2753
        %v2755 = vpop.f32.mrf.mxu0
        %v2756 = vadd.f32 0.0, %v2755
        %2757 = vmatmul.bf16.gmra.mxu0 %v1421
        %v2758 = vpop.f32.mrf.mxu0
        %v2759 = vadd.f32 0.0, %v2758
        %v2760 = vpop.f32.mrf.mxu0
        %v2761 = vadd.f32 0.0, %v2760
        %2762 = vdwg.mxu0
        %2763 = vmatpush.bf16.msra.mxu0 %v2673
        %2764 = vmatpush.bf16.msra.mxu0 %v2665
        %2765 = vmatpush.bf16.msra.mxu0 %v2657
        %2766 = vmatpush.bf16.msra.mxu0 %v2649
        %2767 = vmatpush.bf16.msra.mxu0 %v2641
        %2768 = vmatpush.bf16.msra.mxu0 %v2633
        %2769 = vmatpush.bf16.msra.mxu0 %v2625
        %2770 = vmatpush.bf16.msra.mxu0 %v2617
        %2771 = vmatmul.bf16.gmra.mxu0 %v1420
        %v2772 = vpop.f32.mrf.mxu0
        %v2773 = vadd.f32 0.0, %v2772
        %v2774 = vpop.f32.mrf.mxu0
        %v2775 = vadd.f32 0.0, %v2774
        %2776 = vmatmul.bf16.gmra.mxu0 %v1421
        %v2777 = vpop.f32.mrf.mxu0
        %v2778 = vadd.f32 0.0, %v2777
        %v2779 = vpop.f32.mrf.mxu0
        %v2780 = vadd.f32 0.0, %v2779
        %2781 = vdwg.mxu0
        %2782 = vmatpush.bf16.msra.mxu0 %v2674
        %2783 = vmatpush.bf16.msra.mxu0 %v2666
        %2784 = vmatpush.bf16.msra.mxu0 %v2658
        %2785 = vmatpush.bf16.msra.mxu0 %v2650
        %2786 = vmatpush.bf16.msra.mxu0 %v2642
        %2787 = vmatpush.bf16.msra.mxu0 %v2634
        %2788 = vmatpush.bf16.msra.mxu0 %v2626
        %2789 = vmatpush.bf16.msra.mxu0 %v2618
        %2790 = vmatmul.bf16.gmra.mxu0 %v1420
        %v2791 = vpop.f32.mrf.mxu0
        %v2792 = vadd.f32 0.0, %v2791
        %v2793 = vpop.f32.mrf.mxu0
        %v2794 = vadd.f32 0.0, %v2793
        %2795 = vmatmul.bf16.gmra.mxu0 %v1421
        %v2796 = vpop.f32.mrf.mxu0
        %v2797 = vadd.f32 0.0, %v2796
        %v2798 = vpop.f32.mrf.mxu0
        %v2799 = vadd.f32 0.0, %v2798
        %2800 = vdwg.mxu0
        %2801 = vmatpush.bf16.msra.mxu0 %v2675
        %2802 = vmatpush.bf16.msra.mxu0 %v2667
        %2803 = vmatpush.bf16.msra.mxu0 %v2659
        %2804 = vmatpush.bf16.msra.mxu0 %v2651
        %2805 = vmatpush.bf16.msra.mxu0 %v2643
        %2806 = vmatpush.bf16.msra.mxu0 %v2635
        %2807 = vmatpush.bf16.msra.mxu0 %v2627
        %2808 = vmatpush.bf16.msra.mxu0 %v2619
        %2809 = vmatmul.bf16.gmra.mxu0 %v1420
        %v2810 = vpop.f32.mrf.mxu0
        %v2811 = vadd.f32 0.0, %v2810
        %v2812 = vpop.f32.mrf.mxu0
        %v2813 = vadd.f32 0.0, %v2812
        %2814 = vmatmul.bf16.gmra.mxu0 %v1421
        %v2815 = vpop.f32.mrf.mxu0
        %v2816 = vadd.f32 0.0, %v2815
        %v2817 = vpop.f32.mrf.mxu0
        %v2818 = vadd.f32 0.0, %v2817
        %2819 = vdwg.mxu0
        %2820 = vmatpush.bf16.msra.mxu0 %v2676
        %2821 = vmatpush.bf16.msra.mxu0 %v2668
        %2822 = vmatpush.bf16.msra.mxu0 %v2660
        %2823 = vmatpush.bf16.msra.mxu0 %v2652
        %2824 = vmatpush.bf16.msra.mxu0 %v2644
        %2825 = vmatpush.bf16.msra.mxu0 %v2636
        %2826 = vmatpush.bf16.msra.mxu0 %v2628
        %2827 = vmatpush.bf16.msra.mxu0 %v2620
        %2828 = vmatmul.bf16.gmra.mxu0 %v1420
        %v2829 = vpop.f32.mrf.mxu0
        %v2830 = vadd.f32 0.0, %v2829
        %v2831 = vpop.f32.mrf.mxu0
        %v2832 = vadd.f32 0.0, %v2831
        %2833 = vmatmul.bf16.gmra.mxu0 %v1421
        %v2834 = vpop.f32.mrf.mxu0
        %v2835 = vadd.f32 0.0, %v2834
        %v2836 = vpop.f32.mrf.mxu0
        %v2837 = vadd.f32 0.0, %v2836
        %2838 = vdwg.mxu0
        %2839 = vmatpush.bf16.msra.mxu0 %v2677
        %2840 = vmatpush.bf16.msra.mxu0 %v2669
        %2841 = vmatpush.bf16.msra.mxu0 %v2661
        %2842 = vmatpush.bf16.msra.mxu0 %v2653
        %2843 = vmatpush.bf16.msra.mxu0 %v2645
        %2844 = vmatpush.bf16.msra.mxu0 %v2637
        %2845 = vmatpush.bf16.msra.mxu0 %v2629
        %2846 = vmatpush.bf16.msra.mxu0 %v2621
        %2847 = vmatmul.bf16.gmra.mxu0 %v1420
        %v2848 = vpop.f32.mrf.mxu0
        %v2849 = vadd.f32 0.0, %v2848
        %v2850 = vpop.f32.mrf.mxu0
        %v2851 = vadd.f32 0.0, %v2850
        %2852 = vmatmul.bf16.gmra.mxu0 %v1421
        %v2853 = vpop.f32.mrf.mxu0
        %v2854 = vadd.f32 0.0, %v2853
        %v2855 = vpop.f32.mrf.mxu0
        %v2856 = vadd.f32 0.0, %v2855
        %2857 = vdwg.mxu0
        %2858 = vmatpush.bf16.msra.mxu0 %v2678
        %2859 = vmatpush.bf16.msra.mxu0 %v2670
        %2860 = vmatpush.bf16.msra.mxu0 %v2662
        %2861 = vmatpush.bf16.msra.mxu0 %v2654
        %2862 = vmatpush.bf16.msra.mxu0 %v2646
        %2863 = vmatpush.bf16.msra.mxu0 %v2638
        %2864 = vmatpush.bf16.msra.mxu0 %v2630
        %2865 = vmatpush.bf16.msra.mxu0 %v2622
        %2866 = vmatmul.bf16.gmra.mxu0 %v1420
        %v2867 = vpop.f32.mrf.mxu0
        %v2868 = vadd.f32 0.0, %v2867
        %v2869 = vpop.f32.mrf.mxu0
        %v2870 = vadd.f32 0.0, %v2869
        %2871 = vmatmul.bf16.gmra.mxu0 %v1421
        %v2872 = vpop.f32.mrf.mxu0
        %v2873 = vadd.f32 0.0, %v2872
        %v2874 = vpop.f32.mrf.mxu0
        %v2875 = vadd.f32 0.0, %v2874
        %2876 = vdwg.mxu0
        %2877 = vmatpush.bf16.msra.mxu0 %v2679
        %2878 = vmatpush.bf16.msra.mxu0 %v2671
        %2879 = vmatpush.bf16.msra.mxu0 %v2663
        %2880 = vmatpush.bf16.msra.mxu0 %v2655
        %2881 = vmatpush.bf16.msra.mxu0 %v2647
        %2882 = vmatpush.bf16.msra.mxu0 %v2639
        %2883 = vmatpush.bf16.msra.mxu0 %v2631
        %2884 = vmatpush.bf16.msra.mxu0 %v2623
        %2885 = vmatmul.bf16.gmra.mxu0 %v1420
        %v2886 = vpop.f32.mrf.mxu0
        %v2887 = vadd.f32 0.0, %v2886
        %v2888 = vpop.f32.mrf.mxu0
        %v2889 = vadd.f32 0.0, %v2888
        %2890 = vmatmul.bf16.gmra.mxu0 %v1421
        %v2891 = vpop.f32.mrf.mxu0
        %v2892 = vadd.f32 0.0, %v2891
        %v2893 = vpop.f32.mrf.mxu0
        %v2894 = vadd.f32 0.0, %v2893
        %2895 = vdwg.mxu0
        %v2896 = vadd.f32 %v1270, %v2754
        %v2897 = vadd.f32 %v1289, %v2773
        %v2898 = vadd.f32 %v1308, %v2792
        %v2899 = vadd.f32 %v1327, %v2811
        %v2900 = vadd.f32 %v1346, %v2830
        %v2901 = vadd.f32 %v1365, %v2849
        %v2902 = vadd.f32 %v1384, %v2868
        %v2903 = vadd.f32 %v1403, %v2887
        %v2904 = vadd.f32 %v1272, %v2756
        %v2905 = vadd.f32 %v1291, %v2775
        %v2906 = vadd.f32 %v1310, %v2794
        %v2907 = vadd.f32 %v1329, %v2813
        %v2908 = vadd.f32 %v1348, %v2832
        %v2909 = vadd.f32 %v1367, %v2851
        %v2910 = vadd.f32 %v1386, %v2870
        %v2911 = vadd.f32 %v1405, %v2889
        %v2912 = vadd.f32 %v1275, %v2759
        %v2913 = vadd.f32 %v1294, %v2778
        %v2914 = vadd.f32 %v1313, %v2797
        %v2915 = vadd.f32 %v1332, %v2816
        %v2916 = vadd.f32 %v1351, %v2835
        %v2917 = vadd.f32 %v1370, %v2854
        %v2918 = vadd.f32 %v1389, %v2873
        %v2919 = vadd.f32 %v1408, %v2892
        %v2920 = vadd.f32 %v1277, %v2761
        %v2921 = vadd.f32 %v1296, %v2780
        %v2922 = vadd.f32 %v1315, %v2799
        %v2923 = vadd.f32 %v1334, %v2818
        %v2924 = vadd.f32 %v1353, %v2837
        %v2925 = vadd.f32 %v1372, %v2856
        %v2926 = vadd.f32 %v1391, %v2875
        %v2927 = vadd.f32 %v1410, %v2894
        %2928 = vmatpush.bf16.msra.mxu0 %v2672
        %2929 = vmatpush.bf16.msra.mxu0 %v2664
        %2930 = vmatpush.bf16.msra.mxu0 %v2656
        %2931 = vmatpush.bf16.msra.mxu0 %v2648
        %2932 = vmatpush.bf16.msra.mxu0 %v2640
        %2933 = vmatpush.bf16.msra.mxu0 %v2632
        %2934 = vmatpush.bf16.msra.mxu0 %v2624
        %2935 = vmatpush.bf16.msra.mxu0 %v2616
        %2936 = vmatmul.bf16.gmra.mxu0 %v1736
        %v2937 = vpop.f32.mrf.mxu0
        %v2938 = vadd.f32 0.0, %v2937
        %v2939 = vpop.f32.mrf.mxu0
        %v2940 = vadd.f32 0.0, %v2939
        %2941 = vmatmul.bf16.gmra.mxu0 %v1737
        %v2942 = vpop.f32.mrf.mxu0
        %v2943 = vadd.f32 0.0, %v2942
        %v2944 = vpop.f32.mrf.mxu0
        %v2945 = vadd.f32 0.0, %v2944
        %2946 = vdwg.mxu0
        %2947 = vmatpush.bf16.msra.mxu0 %v2673
        %2948 = vmatpush.bf16.msra.mxu0 %v2665
        %2949 = vmatpush.bf16.msra.mxu0 %v2657
        %2950 = vmatpush.bf16.msra.mxu0 %v2649
        %2951 = vmatpush.bf16.msra.mxu0 %v2641
        %2952 = vmatpush.bf16.msra.mxu0 %v2633
        %2953 = vmatpush.bf16.msra.mxu0 %v2625
        %2954 = vmatpush.bf16.msra.mxu0 %v2617
        %2955 = vmatmul.bf16.gmra.mxu0 %v1736
        %v2956 = vpop.f32.mrf.mxu0
        %v2957 = vadd.f32 0.0, %v2956
        %v2958 = vpop.f32.mrf.mxu0
        %v2959 = vadd.f32 0.0, %v2958
        %2960 = vmatmul.bf16.gmra.mxu0 %v1737
        %v2961 = vpop.f32.mrf.mxu0
        %v2962 = vadd.f32 0.0, %v2961
        %v2963 = vpop.f32.mrf.mxu0
        %v2964 = vadd.f32 0.0, %v2963
        %2965 = vdwg.mxu0
        %2966 = vmatpush.bf16.msra.mxu0 %v2674
        %2967 = vmatpush.bf16.msra.mxu0 %v2666
        %2968 = vmatpush.bf16.msra.mxu0 %v2658
        %2969 = vmatpush.bf16.msra.mxu0 %v2650
        %2970 = vmatpush.bf16.msra.mxu0 %v2642
        %2971 = vmatpush.bf16.msra.mxu0 %v2634
        %2972 = vmatpush.bf16.msra.mxu0 %v2626
        %2973 = vmatpush.bf16.msra.mxu0 %v2618
        %2974 = vmatmul.bf16.gmra.mxu0 %v1736
        %v2975 = vpop.f32.mrf.mxu0
        %v2976 = vadd.f32 0.0, %v2975
        %v2977 = vpop.f32.mrf.mxu0
        %v2978 = vadd.f32 0.0, %v2977
        %2979 = vmatmul.bf16.gmra.mxu0 %v1737
        %v2980 = vpop.f32.mrf.mxu0
        %v2981 = vadd.f32 0.0, %v2980
        %v2982 = vpop.f32.mrf.mxu0
        %v2983 = vadd.f32 0.0, %v2982
        %2984 = vdwg.mxu0
        %2985 = vmatpush.bf16.msra.mxu0 %v2675
        %2986 = vmatpush.bf16.msra.mxu0 %v2667
        %2987 = vmatpush.bf16.msra.mxu0 %v2659
        %2988 = vmatpush.bf16.msra.mxu0 %v2651
        %2989 = vmatpush.bf16.msra.mxu0 %v2643
        %2990 = vmatpush.bf16.msra.mxu0 %v2635
        %2991 = vmatpush.bf16.msra.mxu0 %v2627
        %2992 = vmatpush.bf16.msra.mxu0 %v2619
        %2993 = vmatmul.bf16.gmra.mxu0 %v1736
        %v2994 = vpop.f32.mrf.mxu0
        %v2995 = vadd.f32 0.0, %v2994
        %v2996 = vpop.f32.mrf.mxu0
        %v2997 = vadd.f32 0.0, %v2996
        %2998 = vmatmul.bf16.gmra.mxu0 %v1737
        %v2999 = vpop.f32.mrf.mxu0
        %v3000 = vadd.f32 0.0, %v2999
        %v3001 = vpop.f32.mrf.mxu0
        %v3002 = vadd.f32 0.0, %v3001
        %3003 = vdwg.mxu0
        %3004 = vmatpush.bf16.msra.mxu0 %v2676
        %3005 = vmatpush.bf16.msra.mxu0 %v2668
        %3006 = vmatpush.bf16.msra.mxu0 %v2660
        %3007 = vmatpush.bf16.msra.mxu0 %v2652
        %3008 = vmatpush.bf16.msra.mxu0 %v2644
        %3009 = vmatpush.bf16.msra.mxu0 %v2636
        %3010 = vmatpush.bf16.msra.mxu0 %v2628
        %3011 = vmatpush.bf16.msra.mxu0 %v2620
        %3012 = vmatmul.bf16.gmra.mxu0 %v1736
        %v3013 = vpop.f32.mrf.mxu0
        %v3014 = vadd.f32 0.0, %v3013
        %v3015 = vpop.f32.mrf.mxu0
        %v3016 = vadd.f32 0.0, %v3015
        %3017 = vmatmul.bf16.gmra.mxu0 %v1737
        %v3018 = vpop.f32.mrf.mxu0
        %v3019 = vadd.f32 0.0, %v3018
        %v3020 = vpop.f32.mrf.mxu0
        %v3021 = vadd.f32 0.0, %v3020
        %3022 = vdwg.mxu0
        %3023 = vmatpush.bf16.msra.mxu0 %v2677
        %3024 = vmatpush.bf16.msra.mxu0 %v2669
        %3025 = vmatpush.bf16.msra.mxu0 %v2661
        %3026 = vmatpush.bf16.msra.mxu0 %v2653
        %3027 = vmatpush.bf16.msra.mxu0 %v2645
        %3028 = vmatpush.bf16.msra.mxu0 %v2637
        %3029 = vmatpush.bf16.msra.mxu0 %v2629
        %3030 = vmatpush.bf16.msra.mxu0 %v2621
        %3031 = vmatmul.bf16.gmra.mxu0 %v1736
        %v3032 = vpop.f32.mrf.mxu0
        %v3033 = vadd.f32 0.0, %v3032
        %v3034 = vpop.f32.mrf.mxu0
        %v3035 = vadd.f32 0.0, %v3034
        %3036 = vmatmul.bf16.gmra.mxu0 %v1737
        %v3037 = vpop.f32.mrf.mxu0
        %v3038 = vadd.f32 0.0, %v3037
        %v3039 = vpop.f32.mrf.mxu0
        %v3040 = vadd.f32 0.0, %v3039
        %3041 = vdwg.mxu0
        %3042 = vmatpush.bf16.msra.mxu0 %v2678
        %3043 = vmatpush.bf16.msra.mxu0 %v2670
        %3044 = vmatpush.bf16.msra.mxu0 %v2662
        %3045 = vmatpush.bf16.msra.mxu0 %v2654
        %3046 = vmatpush.bf16.msra.mxu0 %v2646
        %3047 = vmatpush.bf16.msra.mxu0 %v2638
        %3048 = vmatpush.bf16.msra.mxu0 %v2630
        %3049 = vmatpush.bf16.msra.mxu0 %v2622
        %3050 = vmatmul.bf16.gmra.mxu0 %v1736
        %v3051 = vpop.f32.mrf.mxu0
        %v3052 = vadd.f32 0.0, %v3051
        %v3053 = vpop.f32.mrf.mxu0
        %v3054 = vadd.f32 0.0, %v3053
        %3055 = vmatmul.bf16.gmra.mxu0 %v1737
        %v3056 = vpop.f32.mrf.mxu0
        %v3057 = vadd.f32 0.0, %v3056
        %v3058 = vpop.f32.mrf.mxu0
        %v3059 = vadd.f32 0.0, %v3058
        %3060 = vdwg.mxu0
        %3061 = vmatpush.bf16.msra.mxu0 %v2679
        %3062 = vmatpush.bf16.msra.mxu0 %v2671
        %3063 = vmatpush.bf16.msra.mxu0 %v2663
        %3064 = vmatpush.bf16.msra.mxu0 %v2655
        %3065 = vmatpush.bf16.msra.mxu0 %v2647
        %3066 = vmatpush.bf16.msra.mxu0 %v2639
        %3067 = vmatpush.bf16.msra.mxu0 %v2631
        %3068 = vmatpush.bf16.msra.mxu0 %v2623
        %3069 = vmatmul.bf16.gmra.mxu0 %v1736
        %v3070 = vpop.f32.mrf.mxu0
        %v3071 = vadd.f32 0.0, %v3070
        %v3072 = vpop.f32.mrf.mxu0
        %v3073 = vadd.f32 0.0, %v3072
        %3074 = vmatmul.bf16.gmra.mxu0 %v1737
        %v3075 = vpop.f32.mrf.mxu0
        %v3076 = vadd.f32 0.0, %v3075
        %v3077 = vpop.f32.mrf.mxu0
        %v3078 = vadd.f32 0.0, %v3077
        %3079 = vdwg.mxu0
        %v3080 = vadd.f32 %v1586, %v2938
        %v3081 = vadd.f32 %v1605, %v2957
        %v3082 = vadd.f32 %v1624, %v2976
        %v3083 = vadd.f32 %v1643, %v2995
        %v3084 = vadd.f32 %v1662, %v3014
        %v3085 = vadd.f32 %v1681, %v3033
        %v3086 = vadd.f32 %v1700, %v3052
        %v3087 = vadd.f32 %v1719, %v3071
        %v3088 = vadd.f32 %v1588, %v2940
        %v3089 = vadd.f32 %v1607, %v2959
        %v3090 = vadd.f32 %v1626, %v2978
        %v3091 = vadd.f32 %v1645, %v2997
        %v3092 = vadd.f32 %v1664, %v3016
        %v3093 = vadd.f32 %v1683, %v3035
        %v3094 = vadd.f32 %v1702, %v3054
        %v3095 = vadd.f32 %v1721, %v3073
        %v3096 = vadd.f32 %v1591, %v2943
        %v3097 = vadd.f32 %v1610, %v2962
        %v3098 = vadd.f32 %v1629, %v2981
        %v3099 = vadd.f32 %v1648, %v3000
        %v3100 = vadd.f32 %v1667, %v3019
        %v3101 = vadd.f32 %v1686, %v3038
        %v3102 = vadd.f32 %v1705, %v3057
        %v3103 = vadd.f32 %v1724, %v3076
        %v3104 = vadd.f32 %v1593, %v2945
        %v3105 = vadd.f32 %v1612, %v2964
        %v3106 = vadd.f32 %v1631, %v2983
        %v3107 = vadd.f32 %v1650, %v3002
        %v3108 = vadd.f32 %v1669, %v3021
        %v3109 = vadd.f32 %v1688, %v3040
        %v3110 = vadd.f32 %v1707, %v3059
        %v3111 = vadd.f32 %v1726, %v3078
        %3112 = vmatpush.bf16.msra.mxu0 %v2672
        %3113 = vmatpush.bf16.msra.mxu0 %v2664
        %3114 = vmatpush.bf16.msra.mxu0 %v2656
        %3115 = vmatpush.bf16.msra.mxu0 %v2648
        %3116 = vmatpush.bf16.msra.mxu0 %v2640
        %3117 = vmatpush.bf16.msra.mxu0 %v2632
        %3118 = vmatpush.bf16.msra.mxu0 %v2624
        %3119 = vmatpush.bf16.msra.mxu0 %v2616
        %3120 = vmatmul.bf16.gmra.mxu0 %v2050
        %v3121 = vpop.f32.mrf.mxu0
        %v3122 = vadd.f32 0.0, %v3121
        %v3123 = vpop.f32.mrf.mxu0
        %v3124 = vadd.f32 0.0, %v3123
        %3125 = vmatmul.bf16.gmra.mxu0 %v2052
        %v3126 = vpop.f32.mrf.mxu0
        %v3127 = vadd.f32 0.0, %v3126
        %v3128 = vpop.f32.mrf.mxu0
        %v3129 = vadd.f32 0.0, %v3128
        %3130 = vdwg.mxu0
        %3131 = vmatpush.bf16.msra.mxu0 %v2673
        %3132 = vmatpush.bf16.msra.mxu0 %v2665
        %3133 = vmatpush.bf16.msra.mxu0 %v2657
        %3134 = vmatpush.bf16.msra.mxu0 %v2649
        %3135 = vmatpush.bf16.msra.mxu0 %v2641
        %3136 = vmatpush.bf16.msra.mxu0 %v2633
        %3137 = vmatpush.bf16.msra.mxu0 %v2625
        %3138 = vmatpush.bf16.msra.mxu0 %v2617
        %3139 = vmatmul.bf16.gmra.mxu0 %v2050
        %v3140 = vpop.f32.mrf.mxu0
        %v3141 = vadd.f32 0.0, %v3140
        %v3142 = vpop.f32.mrf.mxu0
        %v3143 = vadd.f32 0.0, %v3142
        %3144 = vmatmul.bf16.gmra.mxu0 %v2052
        %v3145 = vpop.f32.mrf.mxu0
        %v3146 = vadd.f32 0.0, %v3145
        %v3147 = vpop.f32.mrf.mxu0
        %v3148 = vadd.f32 0.0, %v3147
        %3149 = vdwg.mxu0
        %3150 = vmatpush.bf16.msra.mxu0 %v2674
        %3151 = vmatpush.bf16.msra.mxu0 %v2666
        %3152 = vmatpush.bf16.msra.mxu0 %v2658
        %3153 = vmatpush.bf16.msra.mxu0 %v2650
        %3154 = vmatpush.bf16.msra.mxu0 %v2642
        %3155 = vmatpush.bf16.msra.mxu0 %v2634
        %3156 = vmatpush.bf16.msra.mxu0 %v2626
        %3157 = vmatpush.bf16.msra.mxu0 %v2618
        %3158 = vmatmul.bf16.gmra.mxu0 %v2050
        %v3159 = vpop.f32.mrf.mxu0
        %v3160 = vadd.f32 0.0, %v3159
        %v3161 = vpop.f32.mrf.mxu0
        %v3162 = vadd.f32 0.0, %v3161
        %3163 = vmatmul.bf16.gmra.mxu0 %v2052
        %v3164 = vpop.f32.mrf.mxu0
        %v3165 = vadd.f32 0.0, %v3164
        %v3166 = vpop.f32.mrf.mxu0
        %v3167 = vadd.f32 0.0, %v3166
        %3168 = vdwg.mxu0
        %3169 = vmatpush.bf16.msra.mxu0 %v2675
        %3170 = vmatpush.bf16.msra.mxu0 %v2667
        %3171 = vmatpush.bf16.msra.mxu0 %v2659
        %3172 = vmatpush.bf16.msra.mxu0 %v2651
        %3173 = vmatpush.bf16.msra.mxu0 %v2643
        %3174 = vmatpush.bf16.msra.mxu0 %v2635
        %3175 = vmatpush.bf16.msra.mxu0 %v2627
        %3176 = vmatpush.bf16.msra.mxu0 %v2619
        %3177 = vmatmul.bf16.gmra.mxu0 %v2050
        %v3178 = vpop.f32.mrf.mxu0
        %v3179 = vadd.f32 0.0, %v3178
        %v3180 = vpop.f32.mrf.mxu0
        %v3181 = vadd.f32 0.0, %v3180
        %3182 = vmatmul.bf16.gmra.mxu0 %v2052
        %v3183 = vpop.f32.mrf.mxu0
        %v3184 = vadd.f32 0.0, %v3183
        %v3185 = vpop.f32.mrf.mxu0
        %v3186 = vadd.f32 0.0, %v3185
        %3187 = vdwg.mxu0
        %3188 = vmatpush.bf16.msra.mxu0 %v2676
        %3189 = vmatpush.bf16.msra.mxu0 %v2668
        %3190 = vmatpush.bf16.msra.mxu0 %v2660
        %3191 = vmatpush.bf16.msra.mxu0 %v2652
        %3192 = vmatpush.bf16.msra.mxu0 %v2644
        %3193 = vmatpush.bf16.msra.mxu0 %v2636
        %3194 = vmatpush.bf16.msra.mxu0 %v2628
        %3195 = vmatpush.bf16.msra.mxu0 %v2620
        %3196 = vmatmul.bf16.gmra.mxu0 %v2050
        %v3197 = vpop.f32.mrf.mxu0
        %v3198 = vadd.f32 0.0, %v3197
        %v3199 = vpop.f32.mrf.mxu0
        %v3200 = vadd.f32 0.0, %v3199
        %3201 = vmatmul.bf16.gmra.mxu0 %v2052
        %v3202 = vpop.f32.mrf.mxu0
        %v3203 = vadd.f32 0.0, %v3202
        %v3204 = vpop.f32.mrf.mxu0
        %v3205 = vadd.f32 0.0, %v3204
        %3206 = vdwg.mxu0
        %3207 = vmatpush.bf16.msra.mxu0 %v2677
        %3208 = vmatpush.bf16.msra.mxu0 %v2669
        %3209 = vmatpush.bf16.msra.mxu0 %v2661
        %3210 = vmatpush.bf16.msra.mxu0 %v2653
        %3211 = vmatpush.bf16.msra.mxu0 %v2645
        %3212 = vmatpush.bf16.msra.mxu0 %v2637
        %3213 = vmatpush.bf16.msra.mxu0 %v2629
        %3214 = vmatpush.bf16.msra.mxu0 %v2621
        %3215 = vmatmul.bf16.gmra.mxu0 %v2050
        %v3216 = vpop.f32.mrf.mxu0
        %v3217 = vadd.f32 0.0, %v3216
        %v3218 = vpop.f32.mrf.mxu0
        %v3219 = vadd.f32 0.0, %v3218
        %3220 = vmatmul.bf16.gmra.mxu0 %v2052
        %v3221 = vpop.f32.mrf.mxu0
        %v3222 = vadd.f32 0.0, %v3221
        %v3223 = vpop.f32.mrf.mxu0
        %v3224 = vadd.f32 0.0, %v3223
        %3225 = vdwg.mxu0
        %3226 = vmatpush.bf16.msra.mxu0 %v2678
        %3227 = vmatpush.bf16.msra.mxu0 %v2670
        %3228 = vmatpush.bf16.msra.mxu0 %v2662
        %3229 = vmatpush.bf16.msra.mxu0 %v2654
        %3230 = vmatpush.bf16.msra.mxu0 %v2646
        %3231 = vmatpush.bf16.msra.mxu0 %v2638
        %3232 = vmatpush.bf16.msra.mxu0 %v2630
        %3233 = vmatpush.bf16.msra.mxu0 %v2622
        %3234 = vmatmul.bf16.gmra.mxu0 %v2050
        %v3235 = vpop.f32.mrf.mxu0
        %v3236 = vadd.f32 0.0, %v3235
        %v3237 = vpop.f32.mrf.mxu0
        %v3238 = vadd.f32 0.0, %v3237
        %3239 = vmatmul.bf16.gmra.mxu0 %v2052
        %v3240 = vpop.f32.mrf.mxu0
        %v3241 = vadd.f32 0.0, %v3240
        %v3242 = vpop.f32.mrf.mxu0
        %v3243 = vadd.f32 0.0, %v3242
        %3244 = vdwg.mxu0
        %3245 = vmatpush.bf16.msra.mxu0 %v2679
        %3246 = vmatpush.bf16.msra.mxu0 %v2671
        %3247 = vmatpush.bf16.msra.mxu0 %v2663
        %3248 = vmatpush.bf16.msra.mxu0 %v2655
        %3249 = vmatpush.bf16.msra.mxu0 %v2647
        %3250 = vmatpush.bf16.msra.mxu0 %v2639
        %3251 = vmatpush.bf16.msra.mxu0 %v2631
        %3252 = vmatpush.bf16.msra.mxu0 %v2623
        %3253 = vmatmul.bf16.gmra.mxu0 %v2050
        %v3254 = vpop.f32.mrf.mxu0
        %v3255 = vadd.f32 0.0, %v3254
        %v3256 = vpop.f32.mrf.mxu0
        %v3257 = vadd.f32 0.0, %v3256
        %3258 = vmatmul.bf16.gmra.mxu0 %v2052
        %v3259 = vpop.f32.mrf.mxu0
        %v3260 = vadd.f32 0.0, %v3259
        %v3261 = vpop.f32.mrf.mxu0
        %v3262 = vadd.f32 0.0, %v3261
        %3263 = vdwg.mxu0
        %v3264 = vadd.f32 %v1902, %v3122
        %v3265 = vadd.f32 %v1921, %v3141
        %v3266 = vadd.f32 %v1940, %v3160
        %v3267 = vadd.f32 %v1959, %v3179
        %v3268 = vadd.f32 %v1978, %v3198
        %v3269 = vadd.f32 %v1997, %v3217
        %v3270 = vadd.f32 %v2016, %v3236
        %v3271 = vadd.f32 %v2035, %v3255
        %v3272 = vadd.f32 %v1904, %v3124
        %v3273 = vadd.f32 %v1923, %v3143
        %v3274 = vadd.f32 %v1942, %v3162
        %v3275 = vadd.f32 %v1961, %v3181
        %v3276 = vadd.f32 %v1980, %v3200
        %v3277 = vadd.f32 %v1999, %v3219
        %v3278 = vadd.f32 %v2018, %v3238
        %v3279 = vadd.f32 %v2037, %v3257
        %v3280 = vadd.f32 %v1907, %v3127
        %v3281 = vadd.f32 %v1926, %v3146
        %v3282 = vadd.f32 %v1945, %v3165
        %v3283 = vadd.f32 %v1964, %v3184
        %v3284 = vadd.f32 %v1983, %v3203
        %v3285 = vadd.f32 %v2002, %v3222
        %v3286 = vadd.f32 %v2021, %v3241
        %v3287 = vadd.f32 %v2040, %v3260
        %v3288 = vadd.f32 %v1909, %v3129
        %v3289 = vadd.f32 %v1928, %v3148
        %v3290 = vadd.f32 %v1947, %v3167
        %v3291 = vadd.f32 %v1966, %v3186
        %v3292 = vadd.f32 %v1985, %v3205
        %v3293 = vadd.f32 %v2004, %v3224
        %v3294 = vadd.f32 %v2023, %v3243
        %v3295 = vadd.f32 %v2042, %v3262
        %v3297 = vunpack.c.l.b16 %v304
        %v3298 = vpack.c.b16 %v3297, %v3297
        %v3299 = vrot.slane %v452, 2
        %v3300 = vrot.slane %v453, 2
        %v3301 = vsel %vm2047, %v3299, %v3300
        %v3302 = vrot.slane %v3298, 2
        %v3303 = vsel %vm2047, %v3300, %v3302
        %3306 = vmatpush.bf16.msra.mxu0 %v2672
        %3307 = vmatpush.bf16.msra.mxu0 %v2664
        %3308 = vmatpush.bf16.msra.mxu0 %v2656
        %3309 = vmatpush.bf16.msra.mxu0 %v2648
        %3310 = vmatpush.bf16.msra.mxu0 %v2640
        %3311 = vmatpush.bf16.msra.mxu0 %v2632
        %3312 = vmatpush.bf16.msra.mxu0 %v2624
        %3313 = vmatpush.bf16.msra.mxu0 %v2616
        %3314 = vmatmul.bf16.gmra.mxu0 %v3301
        %v3315 = vpop.f32.mrf.mxu0
        %v3316 = vadd.f32 0.0, %v3315
        %v3317 = vpop.f32.mrf.mxu0
        %v3318 = vadd.f32 0.0, %v3317
        %3319 = vmatmul.bf16.gmra.mxu0 %v3303
        %v3320 = vpop.f32.mrf.mxu0
        %v3321 = vadd.f32 0.0, %v3320
        %v3322 = vpop.f32.mrf.mxu0
        %v3323 = vadd.f32 0.0, %v3322
        %3324 = vdwg.mxu0
        %3325 = vmatpush.bf16.msra.mxu0 %v2673
        %3326 = vmatpush.bf16.msra.mxu0 %v2665
        %3327 = vmatpush.bf16.msra.mxu0 %v2657
        %3328 = vmatpush.bf16.msra.mxu0 %v2649
        %3329 = vmatpush.bf16.msra.mxu0 %v2641
        %3330 = vmatpush.bf16.msra.mxu0 %v2633
        %3331 = vmatpush.bf16.msra.mxu0 %v2625
        %3332 = vmatpush.bf16.msra.mxu0 %v2617
        %3333 = vmatmul.bf16.gmra.mxu0 %v3301
        %v3334 = vpop.f32.mrf.mxu0
        %v3335 = vadd.f32 0.0, %v3334
        %v3336 = vpop.f32.mrf.mxu0
        %v3337 = vadd.f32 0.0, %v3336
        %3338 = vmatmul.bf16.gmra.mxu0 %v3303
        %v3339 = vpop.f32.mrf.mxu0
        %v3340 = vadd.f32 0.0, %v3339
        %v3341 = vpop.f32.mrf.mxu0
        %v3342 = vadd.f32 0.0, %v3341
        %3343 = vdwg.mxu0
        %3344 = vmatpush.bf16.msra.mxu0 %v2674
        %3345 = vmatpush.bf16.msra.mxu0 %v2666
        %3346 = vmatpush.bf16.msra.mxu0 %v2658
        %3347 = vmatpush.bf16.msra.mxu0 %v2650
        %3348 = vmatpush.bf16.msra.mxu0 %v2642
        %3349 = vmatpush.bf16.msra.mxu0 %v2634
        %3350 = vmatpush.bf16.msra.mxu0 %v2626
        %3351 = vmatpush.bf16.msra.mxu0 %v2618
        %3352 = vmatmul.bf16.gmra.mxu0 %v3301
        %v3353 = vpop.f32.mrf.mxu0
        %v3354 = vadd.f32 0.0, %v3353
        %v3355 = vpop.f32.mrf.mxu0
        %v3356 = vadd.f32 0.0, %v3355
        %3357 = vmatmul.bf16.gmra.mxu0 %v3303
        %v3358 = vpop.f32.mrf.mxu0
        %v3359 = vadd.f32 0.0, %v3358
        %v3360 = vpop.f32.mrf.mxu0
        %v3361 = vadd.f32 0.0, %v3360
        %3362 = vdwg.mxu0
        %3363 = vmatpush.bf16.msra.mxu0 %v2675
        %3364 = vmatpush.bf16.msra.mxu0 %v2667
        %3365 = vmatpush.bf16.msra.mxu0 %v2659
        %3366 = vmatpush.bf16.msra.mxu0 %v2651
        %3367 = vmatpush.bf16.msra.mxu0 %v2643
        %3368 = vmatpush.bf16.msra.mxu0 %v2635
        %3369 = vmatpush.bf16.msra.mxu0 %v2627
        %3370 = vmatpush.bf16.msra.mxu0 %v2619
        %3371 = vmatmul.bf16.gmra.mxu0 %v3301
        %v3372 = vpop.f32.mrf.mxu0
        %v3373 = vadd.f32 0.0, %v3372
        %v3374 = vpop.f32.mrf.mxu0
        %v3375 = vadd.f32 0.0, %v3374
        %3376 = vmatmul.bf16.gmra.mxu0 %v3303
        %v3377 = vpop.f32.mrf.mxu0
        %v3378 = vadd.f32 0.0, %v3377
        %v3379 = vpop.f32.mrf.mxu0
        %v3380 = vadd.f32 0.0, %v3379
        %3381 = vdwg.mxu0
        %3382 = vmatpush.bf16.msra.mxu0 %v2676
        %3383 = vmatpush.bf16.msra.mxu0 %v2668
        %3384 = vmatpush.bf16.msra.mxu0 %v2660
        %3385 = vmatpush.bf16.msra.mxu0 %v2652
        %3386 = vmatpush.bf16.msra.mxu0 %v2644
        %3387 = vmatpush.bf16.msra.mxu0 %v2636
        %3388 = vmatpush.bf16.msra.mxu0 %v2628
        %3389 = vmatpush.bf16.msra.mxu0 %v2620
        %3390 = vmatmul.bf16.gmra.mxu0 %v3301
        %v3391 = vpop.f32.mrf.mxu0
        %v3392 = vadd.f32 0.0, %v3391
        %v3393 = vpop.f32.mrf.mxu0
        %v3394 = vadd.f32 0.0, %v3393
        %3395 = vmatmul.bf16.gmra.mxu0 %v3303
        %v3396 = vpop.f32.mrf.mxu0
        %v3397 = vadd.f32 0.0, %v3396
        %v3398 = vpop.f32.mrf.mxu0
        %v3399 = vadd.f32 0.0, %v3398
        %3400 = vdwg.mxu0
        %3401 = vmatpush.bf16.msra.mxu0 %v2677
        %3402 = vmatpush.bf16.msra.mxu0 %v2669
        %3403 = vmatpush.bf16.msra.mxu0 %v2661
        %3404 = vmatpush.bf16.msra.mxu0 %v2653
        %3405 = vmatpush.bf16.msra.mxu0 %v2645
        %3406 = vmatpush.bf16.msra.mxu0 %v2637
        %3407 = vmatpush.bf16.msra.mxu0 %v2629
        %3408 = vmatpush.bf16.msra.mxu0 %v2621
        %3409 = vmatmul.bf16.gmra.mxu0 %v3301
        %v3410 = vpop.f32.mrf.mxu0
        %v3411 = vadd.f32 0.0, %v3410
        %v3412 = vpop.f32.mrf.mxu0
        %v3413 = vadd.f32 0.0, %v3412
        %3414 = vmatmul.bf16.gmra.mxu0 %v3303
        %v3415 = vpop.f32.mrf.mxu0
        %v3416 = vadd.f32 0.0, %v3415
        %v3417 = vpop.f32.mrf.mxu0
        %v3418 = vadd.f32 0.0, %v3417
        %3419 = vdwg.mxu0
        %3420 = vmatpush.bf16.msra.mxu0 %v2678
        %3421 = vmatpush.bf16.msra.mxu0 %v2670
        %3422 = vmatpush.bf16.msra.mxu0 %v2662
        %3423 = vmatpush.bf16.msra.mxu0 %v2654
        %3424 = vmatpush.bf16.msra.mxu0 %v2646
        %3425 = vmatpush.bf16.msra.mxu0 %v2638
        %3426 = vmatpush.bf16.msra.mxu0 %v2630
        %3427 = vmatpush.bf16.msra.mxu0 %v2622
        %3428 = vmatmul.bf16.gmra.mxu0 %v3301
        %v3429 = vpop.f32.mrf.mxu0
        %v3430 = vadd.f32 0.0, %v3429
        %v3431 = vpop.f32.mrf.mxu0
        %v3432 = vadd.f32 0.0, %v3431
        %3433 = vmatmul.bf16.gmra.mxu0 %v3303
        %v3434 = vpop.f32.mrf.mxu0
        %v3435 = vadd.f32 0.0, %v3434
        %v3436 = vpop.f32.mrf.mxu0
        %v3437 = vadd.f32 0.0, %v3436
        %3438 = vdwg.mxu0
        %3439 = vmatpush.bf16.msra.mxu0 %v2679
        %3440 = vmatpush.bf16.msra.mxu0 %v2671
        %3441 = vmatpush.bf16.msra.mxu0 %v2663
        %3442 = vmatpush.bf16.msra.mxu0 %v2655
        %3443 = vmatpush.bf16.msra.mxu0 %v2647
        %3444 = vmatpush.bf16.msra.mxu0 %v2639
        %3445 = vmatpush.bf16.msra.mxu0 %v2631
        %3446 = vmatpush.bf16.msra.mxu0 %v2623
        %3447 = vmatmul.bf16.gmra.mxu0 %v3301
        %v3448 = vpop.f32.mrf.mxu0
        %v3449 = vadd.f32 0.0, %v3448
        %v3450 = vpop.f32.mrf.mxu0
        %v3451 = vadd.f32 0.0, %v3450
        %3452 = vmatmul.bf16.gmra.mxu0 %v3303
        %v3453 = vpop.f32.mrf.mxu0
        %v3454 = vadd.f32 0.0, %v3453
        %v3455 = vpop.f32.mrf.mxu0
        %v3456 = vadd.f32 0.0, %v3455
        %3457 = vdwg.mxu0
        %v3458 = vadd.f32 %v2217, %v3316
        %v3459 = vadd.f32 %v2236, %v3335
        %v3460 = vadd.f32 %v2255, %v3354
        %v3461 = vadd.f32 %v2274, %v3373
        %v3462 = vadd.f32 %v2293, %v3392
        %v3463 = vadd.f32 %v2312, %v3411
        %v3464 = vadd.f32 %v2331, %v3430
        %v3465 = vadd.f32 %v2350, %v3449
        %v3466 = vadd.f32 %v2219, %v3318
        %v3467 = vadd.f32 %v2238, %v3337
        %v3468 = vadd.f32 %v2257, %v3356
        %v3469 = vadd.f32 %v2276, %v3375
        %v3470 = vadd.f32 %v2295, %v3394
        %v3471 = vadd.f32 %v2314, %v3413
        %v3472 = vadd.f32 %v2333, %v3432
        %v3473 = vadd.f32 %v2352, %v3451
        %v3474 = vadd.f32 %v2222, %v3321
        %v3475 = vadd.f32 %v2241, %v3340
        %v3476 = vadd.f32 %v2260, %v3359
        %v3477 = vadd.f32 %v2279, %v3378
        %v3478 = vadd.f32 %v2298, %v3397
        %v3479 = vadd.f32 %v2317, %v3416
        %v3480 = vadd.f32 %v2336, %v3435
        %v3481 = vadd.f32 %v2355, %v3454
        %v3482 = vadd.f32 %v2224, %v3323
        %v3483 = vadd.f32 %v2243, %v3342
        %v3484 = vadd.f32 %v2262, %v3361
        %v3485 = vadd.f32 %v2281, %v3380
        %v3486 = vadd.f32 %v2300, %v3399
        %v3487 = vadd.f32 %v2319, %v3418
        %v3488 = vadd.f32 %v2338, %v3437
        %v3489 = vadd.f32 %v2357, %v3456
        %s3490 = scalar_lea.vmem %s1, 1536
        %v3491 = vld [vmem:[%s3490] sm:$0xff]
        %v3492 = vld [vmem:[%s3490 + $0x8] sm:$0xff]
        %v3493 = vld [vmem:[%s3490 + $0x10] sm:$0xff]
        %v3494 = vld [vmem:[%s3490 + $0x18] sm:$0xff]
        %v3495 = vld [vmem:[%s3490 + $0x20] sm:$0xff]
        %v3496 = vld [vmem:[%s3490 + $0x28] sm:$0xff]
        %v3497 = vld [vmem:[%s3490 + $0x30] sm:$0xff]
        %v3498 = vld [vmem:[%s3490 + $0x38] sm:$0xff]
        %v3499 = vld [vmem:[%s3490 + $0x40] sm:$0xff]
        %v3500 = vld [vmem:[%s3490 + $0x48] sm:$0xff]
        %v3501 = vld [vmem:[%s3490 + $0x50] sm:$0xff]
        %v3502 = vld [vmem:[%s3490 + $0x58] sm:$0xff]
        %v3503 = vld [vmem:[%s3490 + $0x60] sm:$0xff]
        %v3504 = vld [vmem:[%s3490 + $0x68] sm:$0xff]
        %v3505 = vld [vmem:[%s3490 + $0x70] sm:$0xff]
        %v3506 = vld [vmem:[%s3490 + $0x78] sm:$0xff]
        %v3507 = vld [vmem:[%s3490 + $0x80] sm:$0xff]
        %v3508 = vld [vmem:[%s3490 + $0x88] sm:$0xff]
        %v3509 = vld [vmem:[%s3490 + $0x90] sm:$0xff]
        %v3510 = vld [vmem:[%s3490 + $0x98] sm:$0xff]
        %v3511 = vld [vmem:[%s3490 + $0xa0] sm:$0xff]
        %v3512 = vld [vmem:[%s3490 + $0xa8] sm:$0xff]
        %v3513 = vld [vmem:[%s3490 + $0xb0] sm:$0xff]
        %v3514 = vld [vmem:[%s3490 + $0xb8] sm:$0xff]
        %v3515 = vld [vmem:[%s3490 + $0xc0] sm:$0xff]
        %v3516 = vld [vmem:[%s3490 + $0xc8] sm:$0xff]
        %v3517 = vld [vmem:[%s3490 + $0xd0] sm:$0xff]
        %v3518 = vld [vmem:[%s3490 + $0xd8] sm:$0xff]
        %v3519 = vld [vmem:[%s3490 + $0xe0] sm:$0xff]
        %v3520 = vld [vmem:[%s3490 + $0xe8] sm:$0xff]
        %v3521 = vld [vmem:[%s3490 + $0xf0] sm:$0xff]
        %v3522 = vld [vmem:[%s3490 + $0xf8] sm:$0xff]
        %v3523 = vld [vmem:[%s3490 + $0x100] sm:$0xff]
        %v3524 = vld [vmem:[%s3490 + $0x108] sm:$0xff]
        %v3525 = vld [vmem:[%s3490 + $0x110] sm:$0xff]
        %v3526 = vld [vmem:[%s3490 + $0x118] sm:$0xff]
        %v3527 = vld [vmem:[%s3490 + $0x120] sm:$0xff]
        %v3528 = vld [vmem:[%s3490 + $0x128] sm:$0xff]
        %v3529 = vld [vmem:[%s3490 + $0x130] sm:$0xff]
        %v3530 = vld [vmem:[%s3490 + $0x138] sm:$0xff]
        %v3531 = vld [vmem:[%s3490 + $0x140] sm:$0xff]
        %v3532 = vld [vmem:[%s3490 + $0x148] sm:$0xff]
        %v3533 = vld [vmem:[%s3490 + $0x150] sm:$0xff]
        %v3534 = vld [vmem:[%s3490 + $0x158] sm:$0xff]
        %v3535 = vld [vmem:[%s3490 + $0x160] sm:$0xff]
        %v3536 = vld [vmem:[%s3490 + $0x168] sm:$0xff]
        %v3537 = vld [vmem:[%s3490 + $0x170] sm:$0xff]
        %v3538 = vld [vmem:[%s3490 + $0x178] sm:$0xff]
        %v3539 = vld [vmem:[%s3490 + $0x180] sm:$0xff]
        %v3540 = vld [vmem:[%s3490 + $0x188] sm:$0xff]
        %v3541 = vld [vmem:[%s3490 + $0x190] sm:$0xff]
        %v3542 = vld [vmem:[%s3490 + $0x198] sm:$0xff]
        %v3543 = vld [vmem:[%s3490 + $0x1a0] sm:$0xff]
        %v3544 = vld [vmem:[%s3490 + $0x1a8] sm:$0xff]
        %v3545 = vld [vmem:[%s3490 + $0x1b0] sm:$0xff]
        %v3546 = vld [vmem:[%s3490 + $0x1b8] sm:$0xff]
        %v3547 = vld [vmem:[%s3490 + $0x1c0] sm:$0xff]
        %v3548 = vld [vmem:[%s3490 + $0x1c8] sm:$0xff]
        %v3549 = vld [vmem:[%s3490 + $0x1d0] sm:$0xff]
        %v3550 = vld [vmem:[%s3490 + $0x1d8] sm:$0xff]
        %v3551 = vld [vmem:[%s3490 + $0x1e0] sm:$0xff]
        %v3552 = vld [vmem:[%s3490 + $0x1e8] sm:$0xff]
        %v3553 = vld [vmem:[%s3490 + $0x1f0] sm:$0xff]
        %v3554 = vld [vmem:[%s3490 + $0x1f8] sm:$0xff]
        %v3619 = vunpack.c.l.b16 %v3491
        %v3620 = vunpack.c.h.b16 %v3491
        %v3621 = vunpack.c.l.b16 %v3492
        %v3622 = vunpack.c.h.b16 %v3492
        %v3623 = vunpack.c.l.b16 %v3493
        %v3624 = vunpack.c.h.b16 %v3493
        %v3625 = vunpack.c.l.b16 %v3494
        %v3626 = vunpack.c.h.b16 %v3494
        %v3627 = vunpack.c.l.b16 %v3495
        %v3628 = vunpack.c.h.b16 %v3495
        %v3629 = vunpack.c.l.b16 %v3496
        %v3630 = vunpack.c.h.b16 %v3496
        %v3631 = vunpack.c.l.b16 %v3497
        %v3632 = vunpack.c.h.b16 %v3497
        %v3633 = vunpack.c.l.b16 %v3498
        %v3634 = vunpack.c.h.b16 %v3498
        %v3635 = vunpack.c.l.b16 %v3499
        %v3636 = vunpack.c.h.b16 %v3499
        %v3637 = vunpack.c.l.b16 %v3500
        %v3638 = vunpack.c.h.b16 %v3500
        %v3639 = vunpack.c.l.b16 %v3501
        %v3640 = vunpack.c.h.b16 %v3501
        %v3641 = vunpack.c.l.b16 %v3502
        %v3642 = vunpack.c.h.b16 %v3502
        %v3643 = vunpack.c.l.b16 %v3503
        %v3644 = vunpack.c.h.b16 %v3503
        %v3645 = vunpack.c.l.b16 %v3504
        %v3646 = vunpack.c.h.b16 %v3504
        %v3647 = vunpack.c.l.b16 %v3505
        %v3648 = vunpack.c.h.b16 %v3505
        %v3649 = vunpack.c.l.b16 %v3506
        %v3650 = vunpack.c.h.b16 %v3506
        %v3651 = vunpack.c.l.b16 %v3507
        %v3652 = vunpack.c.h.b16 %v3507
        %v3653 = vunpack.c.l.b16 %v3508
        %v3654 = vunpack.c.h.b16 %v3508
        %v3655 = vunpack.c.l.b16 %v3509
        %v3656 = vunpack.c.h.b16 %v3509
        %v3657 = vunpack.c.l.b16 %v3510
        %v3658 = vunpack.c.h.b16 %v3510
        %v3659 = vunpack.c.l.b16 %v3511
        %v3660 = vunpack.c.h.b16 %v3511
        %v3661 = vunpack.c.l.b16 %v3512
        %v3662 = vunpack.c.h.b16 %v3512
        %v3663 = vunpack.c.l.b16 %v3513
        %v3664 = vunpack.c.h.b16 %v3513
        %v3665 = vunpack.c.l.b16 %v3514
        %v3666 = vunpack.c.h.b16 %v3514
        %v3667 = vunpack.c.l.b16 %v3515
        %v3668 = vunpack.c.h.b16 %v3515
        %v3669 = vunpack.c.l.b16 %v3516
        %v3670 = vunpack.c.h.b16 %v3516
        %v3671 = vunpack.c.l.b16 %v3517
        %v3672 = vunpack.c.h.b16 %v3517
        %v3673 = vunpack.c.l.b16 %v3518
        %v3674 = vunpack.c.h.b16 %v3518
        %v3675 = vunpack.c.l.b16 %v3519
        %v3676 = vunpack.c.h.b16 %v3519
        %v3677 = vunpack.c.l.b16 %v3520
        %v3678 = vunpack.c.h.b16 %v3520
        %v3679 = vunpack.c.l.b16 %v3521
        %v3680 = vunpack.c.h.b16 %v3521
        %v3681 = vunpack.c.l.b16 %v3522
        %v3682 = vunpack.c.h.b16 %v3522
        %v3683 = vunpack.c.l.b16 %v3523
        %v3684 = vunpack.c.h.b16 %v3523
        %v3685 = vunpack.c.l.b16 %v3524
        %v3686 = vunpack.c.h.b16 %v3524
        %v3687 = vunpack.c.l.b16 %v3525
        %v3688 = vunpack.c.h.b16 %v3525
        %v3689 = vunpack.c.l.b16 %v3526
        %v3690 = vunpack.c.h.b16 %v3526
        %v3691 = vunpack.c.l.b16 %v3527
        %v3692 = vunpack.c.h.b16 %v3527
        %v3693 = vunpack.c.l.b16 %v3528
        %v3694 = vunpack.c.h.b16 %v3528
        %v3695 = vunpack.c.l.b16 %v3529
        %v3696 = vunpack.c.h.b16 %v3529
        %v3697 = vunpack.c.l.b16 %v3530
        %v3698 = vunpack.c.h.b16 %v3530
        %v3699 = vunpack.c.l.b16 %v3531
        %v3700 = vunpack.c.h.b16 %v3531
        %v3701 = vunpack.c.l.b16 %v3532
        %v3702 = vunpack.c.h.b16 %v3532
        %v3703 = vunpack.c.l.b16 %v3533
        %v3704 = vunpack.c.h.b16 %v3533
        %v3705 = vunpack.c.l.b16 %v3534
        %v3706 = vunpack.c.h.b16 %v3534
        %v3707 = vunpack.c.l.b16 %v3535
        %v3708 = vunpack.c.h.b16 %v3535
        %v3709 = vunpack.c.l.b16 %v3536
        %v3710 = vunpack.c.h.b16 %v3536
        %v3711 = vunpack.c.l.b16 %v3537
        %v3712 = vunpack.c.h.b16 %v3537
        %v3713 = vunpack.c.l.b16 %v3538
        %v3714 = vunpack.c.h.b16 %v3538
        %v3715 = vunpack.c.l.b16 %v3539
        %v3716 = vunpack.c.h.b16 %v3539
        %v3717 = vunpack.c.l.b16 %v3540
        %v3718 = vunpack.c.h.b16 %v3540
        %v3719 = vunpack.c.l.b16 %v3541
        %v3720 = vunpack.c.h.b16 %v3541
        %v3721 = vunpack.c.l.b16 %v3542
        %v3722 = vunpack.c.h.b16 %v3542
        %v3723 = vunpack.c.l.b16 %v3543
        %v3724 = vunpack.c.h.b16 %v3543
        %v3725 = vunpack.c.l.b16 %v3544
        %v3726 = vunpack.c.h.b16 %v3544
        %v3727 = vunpack.c.l.b16 %v3545
        %v3728 = vunpack.c.h.b16 %v3545
        %v3729 = vunpack.c.l.b16 %v3546
        %v3730 = vunpack.c.h.b16 %v3546
        %v3731 = vunpack.c.l.b16 %v3547
        %v3732 = vunpack.c.h.b16 %v3547
        %v3733 = vunpack.c.l.b16 %v3548
        %v3734 = vunpack.c.h.b16 %v3548
        %v3735 = vunpack.c.l.b16 %v3549
        %v3736 = vunpack.c.h.b16 %v3549
        %v3737 = vunpack.c.l.b16 %v3550
        %v3738 = vunpack.c.h.b16 %v3550
        %v3739 = vunpack.c.l.b16 %v3551
        %v3740 = vunpack.c.h.b16 %v3551
        %v3741 = vunpack.c.l.b16 %v3552
        %v3742 = vunpack.c.h.b16 %v3552
        %v3743 = vunpack.c.l.b16 %v3553
        %v3744 = vunpack.c.h.b16 %v3553
        %v3745 = vunpack.c.l.b16 %v3554
        %v3746 = vunpack.c.h.b16 %v3554
        %v3747 = vpack.c.b16 %v3627, %v3619
        %v3748 = vpack.c.b16 %v3628, %v3620
        %v3749 = vpack.c.b16 %v3629, %v3621
        %v3750 = vpack.c.b16 %v3630, %v3622
        %v3751 = vpack.c.b16 %v3631, %v3623
        %v3752 = vpack.c.b16 %v3632, %v3624
        %v3753 = vpack.c.b16 %v3633, %v3625
        %v3754 = vpack.c.b16 %v3634, %v3626
        %v3755 = vpack.c.b16 %v3643, %v3635
        %v3756 = vpack.c.b16 %v3644, %v3636
        %v3757 = vpack.c.b16 %v3645, %v3637
        %v3758 = vpack.c.b16 %v3646, %v3638
        %v3759 = vpack.c.b16 %v3647, %v3639
        %v3760 = vpack.c.b16 %v3648, %v3640
        %v3761 = vpack.c.b16 %v3649, %v3641
        %v3762 = vpack.c.b16 %v3650, %v3642
        %v3763 = vpack.c.b16 %v3659, %v3651
        %v3764 = vpack.c.b16 %v3660, %v3652
        %v3765 = vpack.c.b16 %v3661, %v3653
        %v3766 = vpack.c.b16 %v3662, %v3654
        %v3767 = vpack.c.b16 %v3663, %v3655
        %v3768 = vpack.c.b16 %v3664, %v3656
        %v3769 = vpack.c.b16 %v3665, %v3657
        %v3770 = vpack.c.b16 %v3666, %v3658
        %v3771 = vpack.c.b16 %v3675, %v3667
        %v3772 = vpack.c.b16 %v3676, %v3668
        %v3773 = vpack.c.b16 %v3677, %v3669
        %v3774 = vpack.c.b16 %v3678, %v3670
        %v3775 = vpack.c.b16 %v3679, %v3671
        %v3776 = vpack.c.b16 %v3680, %v3672
        %v3777 = vpack.c.b16 %v3681, %v3673
        %v3778 = vpack.c.b16 %v3682, %v3674
        %v3779 = vpack.c.b16 %v3691, %v3683
        %v3780 = vpack.c.b16 %v3692, %v3684
        %v3781 = vpack.c.b16 %v3693, %v3685
        %v3782 = vpack.c.b16 %v3694, %v3686
        %v3783 = vpack.c.b16 %v3695, %v3687
        %v3784 = vpack.c.b16 %v3696, %v3688
        %v3785 = vpack.c.b16 %v3697, %v3689
        %v3786 = vpack.c.b16 %v3698, %v3690
        %v3787 = vpack.c.b16 %v3707, %v3699
        %v3788 = vpack.c.b16 %v3708, %v3700
        %v3789 = vpack.c.b16 %v3709, %v3701
        %v3790 = vpack.c.b16 %v3710, %v3702
        %v3791 = vpack.c.b16 %v3711, %v3703
        %v3792 = vpack.c.b16 %v3712, %v3704
        %v3793 = vpack.c.b16 %v3713, %v3705
        %v3794 = vpack.c.b16 %v3714, %v3706
        %v3795 = vpack.c.b16 %v3723, %v3715
        %v3796 = vpack.c.b16 %v3724, %v3716
        %v3797 = vpack.c.b16 %v3725, %v3717
        %v3798 = vpack.c.b16 %v3726, %v3718
        %v3799 = vpack.c.b16 %v3727, %v3719
        %v3800 = vpack.c.b16 %v3728, %v3720
        %v3801 = vpack.c.b16 %v3729, %v3721
        %v3802 = vpack.c.b16 %v3730, %v3722
        %v3803 = vpack.c.b16 %v3739, %v3731
        %v3804 = vpack.c.b16 %v3740, %v3732
        %v3805 = vpack.c.b16 %v3741, %v3733
        %v3806 = vpack.c.b16 %v3742, %v3734
        %v3807 = vpack.c.b16 %v3743, %v3735
        %v3808 = vpack.c.b16 %v3744, %v3736
        %v3809 = vpack.c.b16 %v3745, %v3737
        %v3810 = vpack.c.b16 %v3746, %v3738
        %3875 = vmatpush.bf16.msra.mxu0 %v3803
        %3876 = vmatpush.bf16.msra.mxu0 %v3795
        %3877 = vmatpush.bf16.msra.mxu0 %v3787
        %3878 = vmatpush.bf16.msra.mxu0 %v3779
        %3879 = vmatpush.bf16.msra.mxu0 %v3771
        %3880 = vmatpush.bf16.msra.mxu0 %v3763
        %3881 = vmatpush.bf16.msra.mxu0 %v3755
        %3882 = vmatpush.bf16.msra.mxu0 %v3747
        %3883 = vmatmul.bf16.gmra.mxu0 %v1736
        %v3884 = vpop.f32.mrf.mxu0
        %v3885 = vadd.f32 0.0, %v3884
        %v3886 = vpop.f32.mrf.mxu0
        %v3887 = vadd.f32 0.0, %v3886
        %3888 = vmatmul.bf16.gmra.mxu0 %v1737
        %v3889 = vpop.f32.mrf.mxu0
        %v3890 = vadd.f32 0.0, %v3889
        %v3891 = vpop.f32.mrf.mxu0
        %v3892 = vadd.f32 0.0, %v3891
        %3893 = vdwg.mxu0
        %3894 = vmatpush.bf16.msra.mxu0 %v3804
        %3895 = vmatpush.bf16.msra.mxu0 %v3796
        %3896 = vmatpush.bf16.msra.mxu0 %v3788
        %3897 = vmatpush.bf16.msra.mxu0 %v3780
        %3898 = vmatpush.bf16.msra.mxu0 %v3772
        %3899 = vmatpush.bf16.msra.mxu0 %v3764
        %3900 = vmatpush.bf16.msra.mxu0 %v3756
        %3901 = vmatpush.bf16.msra.mxu0 %v3748
        %3902 = vmatmul.bf16.gmra.mxu0 %v1736
        %v3903 = vpop.f32.mrf.mxu0
        %v3904 = vadd.f32 0.0, %v3903
        %v3905 = vpop.f32.mrf.mxu0
        %v3906 = vadd.f32 0.0, %v3905
        %3907 = vmatmul.bf16.gmra.mxu0 %v1737
        %v3908 = vpop.f32.mrf.mxu0
        %v3909 = vadd.f32 0.0, %v3908
        %v3910 = vpop.f32.mrf.mxu0
        %v3911 = vadd.f32 0.0, %v3910
        %3912 = vdwg.mxu0
        %3913 = vmatpush.bf16.msra.mxu0 %v3805
        %3914 = vmatpush.bf16.msra.mxu0 %v3797
        %3915 = vmatpush.bf16.msra.mxu0 %v3789
        %3916 = vmatpush.bf16.msra.mxu0 %v3781
        %3917 = vmatpush.bf16.msra.mxu0 %v3773
        %3918 = vmatpush.bf16.msra.mxu0 %v3765
        %3919 = vmatpush.bf16.msra.mxu0 %v3757
        %3920 = vmatpush.bf16.msra.mxu0 %v3749
        %3921 = vmatmul.bf16.gmra.mxu0 %v1736
        %v3922 = vpop.f32.mrf.mxu0
        %v3923 = vadd.f32 0.0, %v3922
        %v3924 = vpop.f32.mrf.mxu0
        %v3925 = vadd.f32 0.0, %v3924
        %3926 = vmatmul.bf16.gmra.mxu0 %v1737
        %v3927 = vpop.f32.mrf.mxu0
        %v3928 = vadd.f32 0.0, %v3927
        %v3929 = vpop.f32.mrf.mxu0
        %v3930 = vadd.f32 0.0, %v3929
        %3931 = vdwg.mxu0
        %3932 = vmatpush.bf16.msra.mxu0 %v3806
        %3933 = vmatpush.bf16.msra.mxu0 %v3798
        %3934 = vmatpush.bf16.msra.mxu0 %v3790
        %3935 = vmatpush.bf16.msra.mxu0 %v3782
        %3936 = vmatpush.bf16.msra.mxu0 %v3774
        %3937 = vmatpush.bf16.msra.mxu0 %v3766
        %3938 = vmatpush.bf16.msra.mxu0 %v3758
        %3939 = vmatpush.bf16.msra.mxu0 %v3750
        %3940 = vmatmul.bf16.gmra.mxu0 %v1736
        %v3941 = vpop.f32.mrf.mxu0
        %v3942 = vadd.f32 0.0, %v3941
        %v3943 = vpop.f32.mrf.mxu0
        %v3944 = vadd.f32 0.0, %v3943
        %3945 = vmatmul.bf16.gmra.mxu0 %v1737
        %v3946 = vpop.f32.mrf.mxu0
        %v3947 = vadd.f32 0.0, %v3946
        %v3948 = vpop.f32.mrf.mxu0
        %v3949 = vadd.f32 0.0, %v3948
        %3950 = vdwg.mxu0
        %3951 = vmatpush.bf16.msra.mxu0 %v3807
        %3952 = vmatpush.bf16.msra.mxu0 %v3799
        %3953 = vmatpush.bf16.msra.mxu0 %v3791
        %3954 = vmatpush.bf16.msra.mxu0 %v3783
        %3955 = vmatpush.bf16.msra.mxu0 %v3775
        %3956 = vmatpush.bf16.msra.mxu0 %v3767
        %3957 = vmatpush.bf16.msra.mxu0 %v3759
        %3958 = vmatpush.bf16.msra.mxu0 %v3751
        %3959 = vmatmul.bf16.gmra.mxu0 %v1736
        %v3960 = vpop.f32.mrf.mxu0
        %v3961 = vadd.f32 0.0, %v3960
        %v3962 = vpop.f32.mrf.mxu0
        %v3963 = vadd.f32 0.0, %v3962
        %3964 = vmatmul.bf16.gmra.mxu0 %v1737
        %v3965 = vpop.f32.mrf.mxu0
        %v3966 = vadd.f32 0.0, %v3965
        %v3967 = vpop.f32.mrf.mxu0
        %v3968 = vadd.f32 0.0, %v3967
        %3969 = vdwg.mxu0
        %3970 = vmatpush.bf16.msra.mxu0 %v3808
        %3971 = vmatpush.bf16.msra.mxu0 %v3800
        %3972 = vmatpush.bf16.msra.mxu0 %v3792
        %3973 = vmatpush.bf16.msra.mxu0 %v3784
        %3974 = vmatpush.bf16.msra.mxu0 %v3776
        %3975 = vmatpush.bf16.msra.mxu0 %v3768
        %3976 = vmatpush.bf16.msra.mxu0 %v3760
        %3977 = vmatpush.bf16.msra.mxu0 %v3752
        %3978 = vmatmul.bf16.gmra.mxu0 %v1736
        %v3979 = vpop.f32.mrf.mxu0
        %v3980 = vadd.f32 0.0, %v3979
        %v3981 = vpop.f32.mrf.mxu0
        %v3982 = vadd.f32 0.0, %v3981
        %3983 = vmatmul.bf16.gmra.mxu0 %v1737
        %v3984 = vpop.f32.mrf.mxu0
        %v3985 = vadd.f32 0.0, %v3984
        %v3986 = vpop.f32.mrf.mxu0
        %v3987 = vadd.f32 0.0, %v3986
        %3988 = vdwg.mxu0
        %3989 = vmatpush.bf16.msra.mxu0 %v3809
        %3990 = vmatpush.bf16.msra.mxu0 %v3801
        %3991 = vmatpush.bf16.msra.mxu0 %v3793
        %3992 = vmatpush.bf16.msra.mxu0 %v3785
        %3993 = vmatpush.bf16.msra.mxu0 %v3777
        %3994 = vmatpush.bf16.msra.mxu0 %v3769
        %3995 = vmatpush.bf16.msra.mxu0 %v3761
        %3996 = vmatpush.bf16.msra.mxu0 %v3753
        %3997 = vmatmul.bf16.gmra.mxu0 %v1736
        %v3998 = vpop.f32.mrf.mxu0
        %v3999 = vadd.f32 0.0, %v3998
        %v4000 = vpop.f32.mrf.mxu0
        %v4001 = vadd.f32 0.0, %v4000
        %4002 = vmatmul.bf16.gmra.mxu0 %v1737
        %v4003 = vpop.f32.mrf.mxu0
        %v4004 = vadd.f32 0.0, %v4003
        %v4005 = vpop.f32.mrf.mxu0
        %v4006 = vadd.f32 0.0, %v4005
        %4007 = vdwg.mxu0
        %4008 = vmatpush.bf16.msra.mxu0 %v3810
        %4009 = vmatpush.bf16.msra.mxu0 %v3802
        %4010 = vmatpush.bf16.msra.mxu0 %v3794
        %4011 = vmatpush.bf16.msra.mxu0 %v3786
        %4012 = vmatpush.bf16.msra.mxu0 %v3778
        %4013 = vmatpush.bf16.msra.mxu0 %v3770
        %4014 = vmatpush.bf16.msra.mxu0 %v3762
        %4015 = vmatpush.bf16.msra.mxu0 %v3754
        %4016 = vmatmul.bf16.gmra.mxu0 %v1736
        %v4017 = vpop.f32.mrf.mxu0
        %v4018 = vadd.f32 0.0, %v4017
        %v4019 = vpop.f32.mrf.mxu0
        %v4020 = vadd.f32 0.0, %v4019
        %4021 = vmatmul.bf16.gmra.mxu0 %v1737
        %v4022 = vpop.f32.mrf.mxu0
        %v4023 = vadd.f32 0.0, %v4022
        %v4024 = vpop.f32.mrf.mxu0
        %v4025 = vadd.f32 0.0, %v4024
        %4026 = vdwg.mxu0
        %v4027 = vadd.f32 %v2896, %v3885
        %v4028 = vadd.f32 %v2897, %v3904
        %v4029 = vadd.f32 %v2898, %v3923
        %v4030 = vadd.f32 %v2899, %v3942
        %v4031 = vadd.f32 %v2900, %v3961
        %v4032 = vadd.f32 %v2901, %v3980
        %v4033 = vadd.f32 %v2902, %v3999
        %v4034 = vadd.f32 %v2903, %v4018
        %v4035 = vadd.f32 %v2904, %v3887
        %v4036 = vadd.f32 %v2905, %v3906
        %v4037 = vadd.f32 %v2906, %v3925
        %v4038 = vadd.f32 %v2907, %v3944
        %v4039 = vadd.f32 %v2908, %v3963
        %v4040 = vadd.f32 %v2909, %v3982
        %v4041 = vadd.f32 %v2910, %v4001
        %v4042 = vadd.f32 %v2911, %v4020
        %v4043 = vadd.f32 %v2912, %v3890
        %v4044 = vadd.f32 %v2913, %v3909
        %v4045 = vadd.f32 %v2914, %v3928
        %v4046 = vadd.f32 %v2915, %v3947
        %v4047 = vadd.f32 %v2916, %v3966
        %v4048 = vadd.f32 %v2917, %v3985
        %v4049 = vadd.f32 %v2918, %v4004
        %v4050 = vadd.f32 %v2919, %v4023
        %v4051 = vadd.f32 %v2920, %v3892
        %v4052 = vadd.f32 %v2921, %v3911
        %v4053 = vadd.f32 %v2922, %v3930
        %v4054 = vadd.f32 %v2923, %v3949
        %v4055 = vadd.f32 %v2924, %v3968
        %v4056 = vadd.f32 %v2925, %v3987
        %v4057 = vadd.f32 %v2926, %v4006
        %v4058 = vadd.f32 %v2927, %v4025
        %4059 = vmatpush.bf16.msra.mxu0 %v3803
        %4060 = vmatpush.bf16.msra.mxu0 %v3795
        %4061 = vmatpush.bf16.msra.mxu0 %v3787
        %4062 = vmatpush.bf16.msra.mxu0 %v3779
        %4063 = vmatpush.bf16.msra.mxu0 %v3771
        %4064 = vmatpush.bf16.msra.mxu0 %v3763
        %4065 = vmatpush.bf16.msra.mxu0 %v3755
        %4066 = vmatpush.bf16.msra.mxu0 %v3747
        %4067 = vmatmul.bf16.gmra.mxu0 %v2050
        %v4068 = vpop.f32.mrf.mxu0
        %v4069 = vadd.f32 0.0, %v4068
        %v4070 = vpop.f32.mrf.mxu0
        %v4071 = vadd.f32 0.0, %v4070
        %4072 = vmatmul.bf16.gmra.mxu0 %v2052
        %v4073 = vpop.f32.mrf.mxu0
        %v4074 = vadd.f32 0.0, %v4073
        %v4075 = vpop.f32.mrf.mxu0
        %v4076 = vadd.f32 0.0, %v4075
        %4077 = vdwg.mxu0
        %4078 = vmatpush.bf16.msra.mxu0 %v3804
        %4079 = vmatpush.bf16.msra.mxu0 %v3796
        %4080 = vmatpush.bf16.msra.mxu0 %v3788
        %4081 = vmatpush.bf16.msra.mxu0 %v3780
        %4082 = vmatpush.bf16.msra.mxu0 %v3772
        %4083 = vmatpush.bf16.msra.mxu0 %v3764
        %4084 = vmatpush.bf16.msra.mxu0 %v3756
        %4085 = vmatpush.bf16.msra.mxu0 %v3748
        %4086 = vmatmul.bf16.gmra.mxu0 %v2050
        %v4087 = vpop.f32.mrf.mxu0
        %v4088 = vadd.f32 0.0, %v4087
        %v4089 = vpop.f32.mrf.mxu0
        %v4090 = vadd.f32 0.0, %v4089
        %4091 = vmatmul.bf16.gmra.mxu0 %v2052
        %v4092 = vpop.f32.mrf.mxu0
        %v4093 = vadd.f32 0.0, %v4092
        %v4094 = vpop.f32.mrf.mxu0
        %v4095 = vadd.f32 0.0, %v4094
        %4096 = vdwg.mxu0
        %4097 = vmatpush.bf16.msra.mxu0 %v3805
        %4098 = vmatpush.bf16.msra.mxu0 %v3797
        %4099 = vmatpush.bf16.msra.mxu0 %v3789
        %4100 = vmatpush.bf16.msra.mxu0 %v3781
        %4101 = vmatpush.bf16.msra.mxu0 %v3773
        %4102 = vmatpush.bf16.msra.mxu0 %v3765
        %4103 = vmatpush.bf16.msra.mxu0 %v3757
        %4104 = vmatpush.bf16.msra.mxu0 %v3749
        %4105 = vmatmul.bf16.gmra.mxu0 %v2050
        %v4106 = vpop.f32.mrf.mxu0
        %v4107 = vadd.f32 0.0, %v4106
        %v4108 = vpop.f32.mrf.mxu0
        %v4109 = vadd.f32 0.0, %v4108
        %4110 = vmatmul.bf16.gmra.mxu0 %v2052
        %v4111 = vpop.f32.mrf.mxu0
        %v4112 = vadd.f32 0.0, %v4111
        %v4113 = vpop.f32.mrf.mxu0
        %v4114 = vadd.f32 0.0, %v4113
        %4115 = vdwg.mxu0
        %4116 = vmatpush.bf16.msra.mxu0 %v3806
        %4117 = vmatpush.bf16.msra.mxu0 %v3798
        %4118 = vmatpush.bf16.msra.mxu0 %v3790
        %4119 = vmatpush.bf16.msra.mxu0 %v3782
        %4120 = vmatpush.bf16.msra.mxu0 %v3774
        %4121 = vmatpush.bf16.msra.mxu0 %v3766
        %4122 = vmatpush.bf16.msra.mxu0 %v3758
        %4123 = vmatpush.bf16.msra.mxu0 %v3750
        %4124 = vmatmul.bf16.gmra.mxu0 %v2050
        %v4125 = vpop.f32.mrf.mxu0
        %v4126 = vadd.f32 0.0, %v4125
        %v4127 = vpop.f32.mrf.mxu0
        %v4128 = vadd.f32 0.0, %v4127
        %4129 = vmatmul.bf16.gmra.mxu0 %v2052
        %v4130 = vpop.f32.mrf.mxu0
        %v4131 = vadd.f32 0.0, %v4130
        %v4132 = vpop.f32.mrf.mxu0
        %v4133 = vadd.f32 0.0, %v4132
        %4134 = vdwg.mxu0
        %4135 = vmatpush.bf16.msra.mxu0 %v3807
        %4136 = vmatpush.bf16.msra.mxu0 %v3799
        %4137 = vmatpush.bf16.msra.mxu0 %v3791
        %4138 = vmatpush.bf16.msra.mxu0 %v3783
        %4139 = vmatpush.bf16.msra.mxu0 %v3775
        %4140 = vmatpush.bf16.msra.mxu0 %v3767
        %4141 = vmatpush.bf16.msra.mxu0 %v3759
        %4142 = vmatpush.bf16.msra.mxu0 %v3751
        %4143 = vmatmul.bf16.gmra.mxu0 %v2050
        %v4144 = vpop.f32.mrf.mxu0
        %v4145 = vadd.f32 0.0, %v4144
        %v4146 = vpop.f32.mrf.mxu0
        %v4147 = vadd.f32 0.0, %v4146
        %4148 = vmatmul.bf16.gmra.mxu0 %v2052
        %v4149 = vpop.f32.mrf.mxu0
        %v4150 = vadd.f32 0.0, %v4149
        %v4151 = vpop.f32.mrf.mxu0
        %v4152 = vadd.f32 0.0, %v4151
        %4153 = vdwg.mxu0
        %4154 = vmatpush.bf16.msra.mxu0 %v3808
        %4155 = vmatpush.bf16.msra.mxu0 %v3800
        %4156 = vmatpush.bf16.msra.mxu0 %v3792
        %4157 = vmatpush.bf16.msra.mxu0 %v3784
        %4158 = vmatpush.bf16.msra.mxu0 %v3776
        %4159 = vmatpush.bf16.msra.mxu0 %v3768
        %4160 = vmatpush.bf16.msra.mxu0 %v3760
        %4161 = vmatpush.bf16.msra.mxu0 %v3752
        %4162 = vmatmul.bf16.gmra.mxu0 %v2050
        %v4163 = vpop.f32.mrf.mxu0
        %v4164 = vadd.f32 0.0, %v4163
        %v4165 = vpop.f32.mrf.mxu0
        %v4166 = vadd.f32 0.0, %v4165
        %4167 = vmatmul.bf16.gmra.mxu0 %v2052
        %v4168 = vpop.f32.mrf.mxu0
        %v4169 = vadd.f32 0.0, %v4168
        %v4170 = vpop.f32.mrf.mxu0
        %v4171 = vadd.f32 0.0, %v4170
        %4172 = vdwg.mxu0
        %4173 = vmatpush.bf16.msra.mxu0 %v3809
        %4174 = vmatpush.bf16.msra.mxu0 %v3801
        %4175 = vmatpush.bf16.msra.mxu0 %v3793
        %4176 = vmatpush.bf16.msra.mxu0 %v3785
        %4177 = vmatpush.bf16.msra.mxu0 %v3777
        %4178 = vmatpush.bf16.msra.mxu0 %v3769
        %4179 = vmatpush.bf16.msra.mxu0 %v3761
        %4180 = vmatpush.bf16.msra.mxu0 %v3753
        %4181 = vmatmul.bf16.gmra.mxu0 %v2050
        %v4182 = vpop.f32.mrf.mxu0
        %v4183 = vadd.f32 0.0, %v4182
        %v4184 = vpop.f32.mrf.mxu0
        %v4185 = vadd.f32 0.0, %v4184
        %4186 = vmatmul.bf16.gmra.mxu0 %v2052
        %v4187 = vpop.f32.mrf.mxu0
        %v4188 = vadd.f32 0.0, %v4187
        %v4189 = vpop.f32.mrf.mxu0
        %v4190 = vadd.f32 0.0, %v4189
        %4191 = vdwg.mxu0
        %4192 = vmatpush.bf16.msra.mxu0 %v3810
        %4193 = vmatpush.bf16.msra.mxu0 %v3802
        %4194 = vmatpush.bf16.msra.mxu0 %v3794
        %4195 = vmatpush.bf16.msra.mxu0 %v3786
        %4196 = vmatpush.bf16.msra.mxu0 %v3778
        %4197 = vmatpush.bf16.msra.mxu0 %v3770
        %4198 = vmatpush.bf16.msra.mxu0 %v3762
        %4199 = vmatpush.bf16.msra.mxu0 %v3754
        %4200 = vmatmul.bf16.gmra.mxu0 %v2050
        %v4201 = vpop.f32.mrf.mxu0
        %v4202 = vadd.f32 0.0, %v4201
        %v4203 = vpop.f32.mrf.mxu0
        %v4204 = vadd.f32 0.0, %v4203
        %4205 = vmatmul.bf16.gmra.mxu0 %v2052
        %v4206 = vpop.f32.mrf.mxu0
        %v4207 = vadd.f32 0.0, %v4206
        %v4208 = vpop.f32.mrf.mxu0
        %v4209 = vadd.f32 0.0, %v4208
        %4210 = vdwg.mxu0
        %v4211 = vadd.f32 %v3080, %v4069
        %v4212 = vadd.f32 %v3081, %v4088
        %v4213 = vadd.f32 %v3082, %v4107
        %v4214 = vadd.f32 %v3083, %v4126
        %v4215 = vadd.f32 %v3084, %v4145
        %v4216 = vadd.f32 %v3085, %v4164
        %v4217 = vadd.f32 %v3086, %v4183
        %v4218 = vadd.f32 %v3087, %v4202
        %v4219 = vadd.f32 %v3088, %v4071
        %v4220 = vadd.f32 %v3089, %v4090
        %v4221 = vadd.f32 %v3090, %v4109
        %v4222 = vadd.f32 %v3091, %v4128
        %v4223 = vadd.f32 %v3092, %v4147
        %v4224 = vadd.f32 %v3093, %v4166
        %v4225 = vadd.f32 %v3094, %v4185
        %v4226 = vadd.f32 %v3095, %v4204
        %v4227 = vadd.f32 %v3096, %v4074
        %v4228 = vadd.f32 %v3097, %v4093
        %v4229 = vadd.f32 %v3098, %v4112
        %v4230 = vadd.f32 %v3099, %v4131
        %v4231 = vadd.f32 %v3100, %v4150
        %v4232 = vadd.f32 %v3101, %v4169
        %v4233 = vadd.f32 %v3102, %v4188
        %v4234 = vadd.f32 %v3103, %v4207
        %v4235 = vadd.f32 %v3104, %v4076
        %v4236 = vadd.f32 %v3105, %v4095
        %v4237 = vadd.f32 %v3106, %v4114
        %v4238 = vadd.f32 %v3107, %v4133
        %v4239 = vadd.f32 %v3108, %v4152
        %v4240 = vadd.f32 %v3109, %v4171
        %v4241 = vadd.f32 %v3110, %v4190
        %v4242 = vadd.f32 %v3111, %v4209
        %4243 = vmatpush.bf16.msra.mxu0 %v3803
        %4244 = vmatpush.bf16.msra.mxu0 %v3795
        %4245 = vmatpush.bf16.msra.mxu0 %v3787
        %4246 = vmatpush.bf16.msra.mxu0 %v3779
        %4247 = vmatpush.bf16.msra.mxu0 %v3771
        %4248 = vmatpush.bf16.msra.mxu0 %v3763
        %4249 = vmatpush.bf16.msra.mxu0 %v3755
        %4250 = vmatpush.bf16.msra.mxu0 %v3747
        %4251 = vmatmul.bf16.gmra.mxu0 %v3301
        %v4252 = vpop.f32.mrf.mxu0
        %v4253 = vadd.f32 0.0, %v4252
        %v4254 = vpop.f32.mrf.mxu0
        %v4255 = vadd.f32 0.0, %v4254
        %4256 = vmatmul.bf16.gmra.mxu0 %v3303
        %v4257 = vpop.f32.mrf.mxu0
        %v4258 = vadd.f32 0.0, %v4257
        %v4259 = vpop.f32.mrf.mxu0
        %v4260 = vadd.f32 0.0, %v4259
        %4261 = vdwg.mxu0
        %4262 = vmatpush.bf16.msra.mxu0 %v3804
        %4263 = vmatpush.bf16.msra.mxu0 %v3796
        %4264 = vmatpush.bf16.msra.mxu0 %v3788
        %4265 = vmatpush.bf16.msra.mxu0 %v3780
        %4266 = vmatpush.bf16.msra.mxu0 %v3772
        %4267 = vmatpush.bf16.msra.mxu0 %v3764
        %4268 = vmatpush.bf16.msra.mxu0 %v3756
        %4269 = vmatpush.bf16.msra.mxu0 %v3748
        %4270 = vmatmul.bf16.gmra.mxu0 %v3301
        %v4271 = vpop.f32.mrf.mxu0
        %v4272 = vadd.f32 0.0, %v4271
        %v4273 = vpop.f32.mrf.mxu0
        %v4274 = vadd.f32 0.0, %v4273
        %4275 = vmatmul.bf16.gmra.mxu0 %v3303
        %v4276 = vpop.f32.mrf.mxu0
        %v4277 = vadd.f32 0.0, %v4276
        %v4278 = vpop.f32.mrf.mxu0
        %v4279 = vadd.f32 0.0, %v4278
        %4280 = vdwg.mxu0
        %4281 = vmatpush.bf16.msra.mxu0 %v3805
        %4282 = vmatpush.bf16.msra.mxu0 %v3797
        %4283 = vmatpush.bf16.msra.mxu0 %v3789
        %4284 = vmatpush.bf16.msra.mxu0 %v3781
        %4285 = vmatpush.bf16.msra.mxu0 %v3773
        %4286 = vmatpush.bf16.msra.mxu0 %v3765
        %4287 = vmatpush.bf16.msra.mxu0 %v3757
        %4288 = vmatpush.bf16.msra.mxu0 %v3749
        %4289 = vmatmul.bf16.gmra.mxu0 %v3301
        %v4290 = vpop.f32.mrf.mxu0
        %v4291 = vadd.f32 0.0, %v4290
        %v4292 = vpop.f32.mrf.mxu0
        %v4293 = vadd.f32 0.0, %v4292
        %4294 = vmatmul.bf16.gmra.mxu0 %v3303
        %v4295 = vpop.f32.mrf.mxu0
        %v4296 = vadd.f32 0.0, %v4295
        %v4297 = vpop.f32.mrf.mxu0
        %v4298 = vadd.f32 0.0, %v4297
        %4299 = vdwg.mxu0
        %4300 = vmatpush.bf16.msra.mxu0 %v3806
        %4301 = vmatpush.bf16.msra.mxu0 %v3798
        %4302 = vmatpush.bf16.msra.mxu0 %v3790
        %4303 = vmatpush.bf16.msra.mxu0 %v3782
        %4304 = vmatpush.bf16.msra.mxu0 %v3774
        %4305 = vmatpush.bf16.msra.mxu0 %v3766
        %4306 = vmatpush.bf16.msra.mxu0 %v3758
        %4307 = vmatpush.bf16.msra.mxu0 %v3750
        %4308 = vmatmul.bf16.gmra.mxu0 %v3301
        %v4309 = vpop.f32.mrf.mxu0
        %v4310 = vadd.f32 0.0, %v4309
        %v4311 = vpop.f32.mrf.mxu0
        %v4312 = vadd.f32 0.0, %v4311
        %4313 = vmatmul.bf16.gmra.mxu0 %v3303
        %v4314 = vpop.f32.mrf.mxu0
        %v4315 = vadd.f32 0.0, %v4314
        %v4316 = vpop.f32.mrf.mxu0
        %v4317 = vadd.f32 0.0, %v4316
        %4318 = vdwg.mxu0
        %4319 = vmatpush.bf16.msra.mxu0 %v3807
        %4320 = vmatpush.bf16.msra.mxu0 %v3799
        %4321 = vmatpush.bf16.msra.mxu0 %v3791
        %4322 = vmatpush.bf16.msra.mxu0 %v3783
        %4323 = vmatpush.bf16.msra.mxu0 %v3775
        %4324 = vmatpush.bf16.msra.mxu0 %v3767
        %4325 = vmatpush.bf16.msra.mxu0 %v3759
        %4326 = vmatpush.bf16.msra.mxu0 %v3751
        %4327 = vmatmul.bf16.gmra.mxu0 %v3301
        %v4328 = vpop.f32.mrf.mxu0
        %v4329 = vadd.f32 0.0, %v4328
        %v4330 = vpop.f32.mrf.mxu0
        %v4331 = vadd.f32 0.0, %v4330
        %4332 = vmatmul.bf16.gmra.mxu0 %v3303
        %v4333 = vpop.f32.mrf.mxu0
        %v4334 = vadd.f32 0.0, %v4333
        %v4335 = vpop.f32.mrf.mxu0
        %v4336 = vadd.f32 0.0, %v4335
        %4337 = vdwg.mxu0
        %4338 = vmatpush.bf16.msra.mxu0 %v3808
        %4339 = vmatpush.bf16.msra.mxu0 %v3800
        %4340 = vmatpush.bf16.msra.mxu0 %v3792
        %4341 = vmatpush.bf16.msra.mxu0 %v3784
        %4342 = vmatpush.bf16.msra.mxu0 %v3776
        %4343 = vmatpush.bf16.msra.mxu0 %v3768
        %4344 = vmatpush.bf16.msra.mxu0 %v3760
        %4345 = vmatpush.bf16.msra.mxu0 %v3752
        %4346 = vmatmul.bf16.gmra.mxu0 %v3301
        %v4347 = vpop.f32.mrf.mxu0
        %v4348 = vadd.f32 0.0, %v4347
        %v4349 = vpop.f32.mrf.mxu0
        %v4350 = vadd.f32 0.0, %v4349
        %4351 = vmatmul.bf16.gmra.mxu0 %v3303
        %v4352 = vpop.f32.mrf.mxu0
        %v4353 = vadd.f32 0.0, %v4352
        %v4354 = vpop.f32.mrf.mxu0
        %v4355 = vadd.f32 0.0, %v4354
        %4356 = vdwg.mxu0
        %4357 = vmatpush.bf16.msra.mxu0 %v3809
        %4358 = vmatpush.bf16.msra.mxu0 %v3801
        %4359 = vmatpush.bf16.msra.mxu0 %v3793
        %4360 = vmatpush.bf16.msra.mxu0 %v3785
        %4361 = vmatpush.bf16.msra.mxu0 %v3777
        %4362 = vmatpush.bf16.msra.mxu0 %v3769
        %4363 = vmatpush.bf16.msra.mxu0 %v3761
        %4364 = vmatpush.bf16.msra.mxu0 %v3753
        %4365 = vmatmul.bf16.gmra.mxu0 %v3301
        %v4366 = vpop.f32.mrf.mxu0
        %v4367 = vadd.f32 0.0, %v4366
        %v4368 = vpop.f32.mrf.mxu0
        %v4369 = vadd.f32 0.0, %v4368
        %4370 = vmatmul.bf16.gmra.mxu0 %v3303
        %v4371 = vpop.f32.mrf.mxu0
        %v4372 = vadd.f32 0.0, %v4371
        %v4373 = vpop.f32.mrf.mxu0
        %v4374 = vadd.f32 0.0, %v4373
        %4375 = vdwg.mxu0
        %4376 = vmatpush.bf16.msra.mxu0 %v3810
        %4377 = vmatpush.bf16.msra.mxu0 %v3802
        %4378 = vmatpush.bf16.msra.mxu0 %v3794
        %4379 = vmatpush.bf16.msra.mxu0 %v3786
        %4380 = vmatpush.bf16.msra.mxu0 %v3778
        %4381 = vmatpush.bf16.msra.mxu0 %v3770
        %4382 = vmatpush.bf16.msra.mxu0 %v3762
        %4383 = vmatpush.bf16.msra.mxu0 %v3754
        %4384 = vmatmul.bf16.gmra.mxu0 %v3301
        %v4385 = vpop.f32.mrf.mxu0
        %v4386 = vadd.f32 0.0, %v4385
        %v4387 = vpop.f32.mrf.mxu0
        %v4388 = vadd.f32 0.0, %v4387
        %4389 = vmatmul.bf16.gmra.mxu0 %v3303
        %v4390 = vpop.f32.mrf.mxu0
        %v4391 = vadd.f32 0.0, %v4390
        %v4392 = vpop.f32.mrf.mxu0
        %v4393 = vadd.f32 0.0, %v4392
        %4394 = vdwg.mxu0
        %v4395 = vadd.f32 %v3264, %v4253
        %v4396 = vadd.f32 %v3265, %v4272
        %v4397 = vadd.f32 %v3266, %v4291
        %v4398 = vadd.f32 %v3267, %v4310
        %v4399 = vadd.f32 %v3268, %v4329
        %v4400 = vadd.f32 %v3269, %v4348
        %v4401 = vadd.f32 %v3270, %v4367
        %v4402 = vadd.f32 %v3271, %v4386
        %v4403 = vadd.f32 %v3272, %v4255
        %v4404 = vadd.f32 %v3273, %v4274
        %v4405 = vadd.f32 %v3274, %v4293
        %v4406 = vadd.f32 %v3275, %v4312
        %v4407 = vadd.f32 %v3276, %v4331
        %v4408 = vadd.f32 %v3277, %v4350
        %v4409 = vadd.f32 %v3278, %v4369
        %v4410 = vadd.f32 %v3279, %v4388
        %v4411 = vadd.f32 %v3280, %v4258
        %v4412 = vadd.f32 %v3281, %v4277
        %v4413 = vadd.f32 %v3282, %v4296
        %v4414 = vadd.f32 %v3283, %v4315
        %v4415 = vadd.f32 %v3284, %v4334
        %v4416 = vadd.f32 %v3285, %v4353
        %v4417 = vadd.f32 %v3286, %v4372
        %v4418 = vadd.f32 %v3287, %v4391
        %v4419 = vadd.f32 %v3288, %v4260
        %v4420 = vadd.f32 %v3289, %v4279
        %v4421 = vadd.f32 %v3290, %v4298
        %v4422 = vadd.f32 %v3291, %v4317
        %v4423 = vadd.f32 %v3292, %v4336
        %v4424 = vadd.f32 %v3293, %v4355
        %v4425 = vadd.f32 %v3294, %v4374
        %v4426 = vadd.f32 %v3295, %v4393
        %v4428 = vunpack.c.l.b16 %v309
        %v4429 = vpack.c.b16 %v4428, %v4428
        %v4430 = vrot.slane %v1420, 2
        %v4431 = vrot.slane %v1421, 2
        %v4432 = vsel %vm2047, %v4430, %v4431
        %v4433 = vrot.slane %v4429, 2
        %v4434 = vsel %vm2047, %v4431, %v4433
        %4437 = vmatpush.bf16.msra.mxu0 %v3803
        %4438 = vmatpush.bf16.msra.mxu0 %v3795
        %4439 = vmatpush.bf16.msra.mxu0 %v3787
        %4440 = vmatpush.bf16.msra.mxu0 %v3779
        %4441 = vmatpush.bf16.msra.mxu0 %v3771
        %4442 = vmatpush.bf16.msra.mxu0 %v3763
        %4443 = vmatpush.bf16.msra.mxu0 %v3755
        %4444 = vmatpush.bf16.msra.mxu0 %v3747
        %4445 = vmatmul.bf16.gmra.mxu0 %v4432
        %v4446 = vpop.f32.mrf.mxu0
        %v4447 = vadd.f32 0.0, %v4446
        %v4448 = vpop.f32.mrf.mxu0
        %v4449 = vadd.f32 0.0, %v4448
        %4450 = vmatmul.bf16.gmra.mxu0 %v4434
        %v4451 = vpop.f32.mrf.mxu0
        %v4452 = vadd.f32 0.0, %v4451
        %v4453 = vpop.f32.mrf.mxu0
        %v4454 = vadd.f32 0.0, %v4453
        %4455 = vdwg.mxu0
        %4456 = vmatpush.bf16.msra.mxu0 %v3804
        %4457 = vmatpush.bf16.msra.mxu0 %v3796
        %4458 = vmatpush.bf16.msra.mxu0 %v3788
        %4459 = vmatpush.bf16.msra.mxu0 %v3780
        %4460 = vmatpush.bf16.msra.mxu0 %v3772
        %4461 = vmatpush.bf16.msra.mxu0 %v3764
        %4462 = vmatpush.bf16.msra.mxu0 %v3756
        %4463 = vmatpush.bf16.msra.mxu0 %v3748
        %4464 = vmatmul.bf16.gmra.mxu0 %v4432
        %v4465 = vpop.f32.mrf.mxu0
        %v4466 = vadd.f32 0.0, %v4465
        %v4467 = vpop.f32.mrf.mxu0
        %v4468 = vadd.f32 0.0, %v4467
        %4469 = vmatmul.bf16.gmra.mxu0 %v4434
        %v4470 = vpop.f32.mrf.mxu0
        %v4471 = vadd.f32 0.0, %v4470
        %v4472 = vpop.f32.mrf.mxu0
        %v4473 = vadd.f32 0.0, %v4472
        %4474 = vdwg.mxu0
        %4475 = vmatpush.bf16.msra.mxu0 %v3805
        %4476 = vmatpush.bf16.msra.mxu0 %v3797
        %4477 = vmatpush.bf16.msra.mxu0 %v3789
        %4478 = vmatpush.bf16.msra.mxu0 %v3781
        %4479 = vmatpush.bf16.msra.mxu0 %v3773
        %4480 = vmatpush.bf16.msra.mxu0 %v3765
        %4481 = vmatpush.bf16.msra.mxu0 %v3757
        %4482 = vmatpush.bf16.msra.mxu0 %v3749
        %4483 = vmatmul.bf16.gmra.mxu0 %v4432
        %v4484 = vpop.f32.mrf.mxu0
        %v4485 = vadd.f32 0.0, %v4484
        %v4486 = vpop.f32.mrf.mxu0
        %v4487 = vadd.f32 0.0, %v4486
        %4488 = vmatmul.bf16.gmra.mxu0 %v4434
        %v4489 = vpop.f32.mrf.mxu0
        %v4490 = vadd.f32 0.0, %v4489
        %v4491 = vpop.f32.mrf.mxu0
        %v4492 = vadd.f32 0.0, %v4491
        %4493 = vdwg.mxu0
        %4494 = vmatpush.bf16.msra.mxu0 %v3806
        %4495 = vmatpush.bf16.msra.mxu0 %v3798
        %4496 = vmatpush.bf16.msra.mxu0 %v3790
        %4497 = vmatpush.bf16.msra.mxu0 %v3782
        %4498 = vmatpush.bf16.msra.mxu0 %v3774
        %4499 = vmatpush.bf16.msra.mxu0 %v3766
        %4500 = vmatpush.bf16.msra.mxu0 %v3758
        %4501 = vmatpush.bf16.msra.mxu0 %v3750
        %4502 = vmatmul.bf16.gmra.mxu0 %v4432
        %v4503 = vpop.f32.mrf.mxu0
        %v4504 = vadd.f32 0.0, %v4503
        %v4505 = vpop.f32.mrf.mxu0
        %v4506 = vadd.f32 0.0, %v4505
        %4507 = vmatmul.bf16.gmra.mxu0 %v4434
        %v4508 = vpop.f32.mrf.mxu0
        %v4509 = vadd.f32 0.0, %v4508
        %v4510 = vpop.f32.mrf.mxu0
        %v4511 = vadd.f32 0.0, %v4510
        %4512 = vdwg.mxu0
        %4513 = vmatpush.bf16.msra.mxu0 %v3807
        %4514 = vmatpush.bf16.msra.mxu0 %v3799
        %4515 = vmatpush.bf16.msra.mxu0 %v3791
        %4516 = vmatpush.bf16.msra.mxu0 %v3783
        %4517 = vmatpush.bf16.msra.mxu0 %v3775
        %4518 = vmatpush.bf16.msra.mxu0 %v3767
        %4519 = vmatpush.bf16.msra.mxu0 %v3759
        %4520 = vmatpush.bf16.msra.mxu0 %v3751
        %4521 = vmatmul.bf16.gmra.mxu0 %v4432
        %v4522 = vpop.f32.mrf.mxu0
        %v4523 = vadd.f32 0.0, %v4522
        %v4524 = vpop.f32.mrf.mxu0
        %v4525 = vadd.f32 0.0, %v4524
        %4526 = vmatmul.bf16.gmra.mxu0 %v4434
        %v4527 = vpop.f32.mrf.mxu0
        %v4528 = vadd.f32 0.0, %v4527
        %v4529 = vpop.f32.mrf.mxu0
        %v4530 = vadd.f32 0.0, %v4529
        %4531 = vdwg.mxu0
        %4532 = vmatpush.bf16.msra.mxu0 %v3808
        %4533 = vmatpush.bf16.msra.mxu0 %v3800
        %4534 = vmatpush.bf16.msra.mxu0 %v3792
        %4535 = vmatpush.bf16.msra.mxu0 %v3784
        %4536 = vmatpush.bf16.msra.mxu0 %v3776
        %4537 = vmatpush.bf16.msra.mxu0 %v3768
        %4538 = vmatpush.bf16.msra.mxu0 %v3760
        %4539 = vmatpush.bf16.msra.mxu0 %v3752
        %4540 = vmatmul.bf16.gmra.mxu0 %v4432
        %v4541 = vpop.f32.mrf.mxu0
        %v4542 = vadd.f32 0.0, %v4541
        %v4543 = vpop.f32.mrf.mxu0
        %v4544 = vadd.f32 0.0, %v4543
        %4545 = vmatmul.bf16.gmra.mxu0 %v4434
        %v4546 = vpop.f32.mrf.mxu0
        %v4547 = vadd.f32 0.0, %v4546
        %v4548 = vpop.f32.mrf.mxu0
        %v4549 = vadd.f32 0.0, %v4548
        %4550 = vdwg.mxu0
        %4551 = vmatpush.bf16.msra.mxu0 %v3809
        %4552 = vmatpush.bf16.msra.mxu0 %v3801
        %4553 = vmatpush.bf16.msra.mxu0 %v3793
        %4554 = vmatpush.bf16.msra.mxu0 %v3785
        %4555 = vmatpush.bf16.msra.mxu0 %v3777
        %4556 = vmatpush.bf16.msra.mxu0 %v3769
        %4557 = vmatpush.bf16.msra.mxu0 %v3761
        %4558 = vmatpush.bf16.msra.mxu0 %v3753
        %4559 = vmatmul.bf16.gmra.mxu0 %v4432
        %v4560 = vpop.f32.mrf.mxu0
        %v4561 = vadd.f32 0.0, %v4560
        %v4562 = vpop.f32.mrf.mxu0
        %v4563 = vadd.f32 0.0, %v4562
        %4564 = vmatmul.bf16.gmra.mxu0 %v4434
        %v4565 = vpop.f32.mrf.mxu0
        %v4566 = vadd.f32 0.0, %v4565
        %v4567 = vpop.f32.mrf.mxu0
        %v4568 = vadd.f32 0.0, %v4567
        %4569 = vdwg.mxu0
        %4570 = vmatpush.bf16.msra.mxu0 %v3810
        %4571 = vmatpush.bf16.msra.mxu0 %v3802
        %4572 = vmatpush.bf16.msra.mxu0 %v3794
        %4573 = vmatpush.bf16.msra.mxu0 %v3786
        %4574 = vmatpush.bf16.msra.mxu0 %v3778
        %4575 = vmatpush.bf16.msra.mxu0 %v3770
        %4576 = vmatpush.bf16.msra.mxu0 %v3762
        %4577 = vmatpush.bf16.msra.mxu0 %v3754
        %4578 = vmatmul.bf16.gmra.mxu0 %v4432
        %v4579 = vpop.f32.mrf.mxu0
        %v4580 = vadd.f32 0.0, %v4579
        %v4581 = vpop.f32.mrf.mxu0
        %v4582 = vadd.f32 0.0, %v4581
        %4583 = vmatmul.bf16.gmra.mxu0 %v4434
        %v4584 = vpop.f32.mrf.mxu0
        %v4585 = vadd.f32 0.0, %v4584
        %v4586 = vpop.f32.mrf.mxu0
        %v4587 = vadd.f32 0.0, %v4586
        %4588 = vdwg.mxu0
        %v4589 = vadd.f32 %v3458, %v4447
        %v4590 = vadd.f32 %v3459, %v4466
        %v4591 = vadd.f32 %v3460, %v4485
        %v4592 = vadd.f32 %v3461, %v4504
        %v4593 = vadd.f32 %v3462, %v4523
        %v4594 = vadd.f32 %v3463, %v4542
        %v4595 = vadd.f32 %v3464, %v4561
        %v4596 = vadd.f32 %v3465, %v4580
        %v4597 = vadd.f32 %v3466, %v4449
        %v4598 = vadd.f32 %v3467, %v4468
        %v4599 = vadd.f32 %v3468, %v4487
        %v4600 = vadd.f32 %v3469, %v4506
        %v4601 = vadd.f32 %v3470, %v4525
        %v4602 = vadd.f32 %v3471, %v4544
        %v4603 = vadd.f32 %v3472, %v4563
        %v4604 = vadd.f32 %v3473, %v4582
        %v4605 = vadd.f32 %v3474, %v4452
        %v4606 = vadd.f32 %v3475, %v4471
        %v4607 = vadd.f32 %v3476, %v4490
        %v4608 = vadd.f32 %v3477, %v4509
        %v4609 = vadd.f32 %v3478, %v4528
        %v4610 = vadd.f32 %v3479, %v4547
        %v4611 = vadd.f32 %v3480, %v4566
        %v4612 = vadd.f32 %v3481, %v4585
        %v4613 = vadd.f32 %v3482, %v4454
        %v4614 = vadd.f32 %v3483, %v4473
        %v4615 = vadd.f32 %v3484, %v4492
        %v4616 = vadd.f32 %v3485, %v4511
        %v4617 = vadd.f32 %v3486, %v4530
        %v4618 = vadd.f32 %v3487, %v4549
        %v4619 = vadd.f32 %v3488, %v4568
        %v4620 = vadd.f32 %v3489, %v4587
        %s4621 = scalar_lea.vmem %s1, 2048
        %v4622 = vld [vmem:[%s4621] sm:$0xff]
        %v4623 = vld [vmem:[%s4621 + $0x8] sm:$0xff]
        %v4624 = vld [vmem:[%s4621 + $0x10] sm:$0xff]
        %v4625 = vld [vmem:[%s4621 + $0x18] sm:$0xff]
        %v4626 = vld [vmem:[%s4621 + $0x20] sm:$0xff]
        %v4627 = vld [vmem:[%s4621 + $0x28] sm:$0xff]
        %v4628 = vld [vmem:[%s4621 + $0x30] sm:$0xff]
        %v4629 = vld [vmem:[%s4621 + $0x38] sm:$0xff]
        %v4630 = vld [vmem:[%s4621 + $0x40] sm:$0xff]
        %v4631 = vld [vmem:[%s4621 + $0x48] sm:$0xff]
        %v4632 = vld [vmem:[%s4621 + $0x50] sm:$0xff]
        %v4633 = vld [vmem:[%s4621 + $0x58] sm:$0xff]
        %v4634 = vld [vmem:[%s4621 + $0x60] sm:$0xff]
        %v4635 = vld [vmem:[%s4621 + $0x68] sm:$0xff]
        %v4636 = vld [vmem:[%s4621 + $0x70] sm:$0xff]
        %v4637 = vld [vmem:[%s4621 + $0x78] sm:$0xff]
        %v4638 = vld [vmem:[%s4621 + $0x80] sm:$0xff]
        %v4639 = vld [vmem:[%s4621 + $0x88] sm:$0xff]
        %v4640 = vld [vmem:[%s4621 + $0x90] sm:$0xff]
        %v4641 = vld [vmem:[%s4621 + $0x98] sm:$0xff]
        %v4642 = vld [vmem:[%s4621 + $0xa0] sm:$0xff]
        %v4643 = vld [vmem:[%s4621 + $0xa8] sm:$0xff]
        %v4644 = vld [vmem:[%s4621 + $0xb0] sm:$0xff]
        %v4645 = vld [vmem:[%s4621 + $0xb8] sm:$0xff]
        %v4646 = vld [vmem:[%s4621 + $0xc0] sm:$0xff]
        %v4647 = vld [vmem:[%s4621 + $0xc8] sm:$0xff]
        %v4648 = vld [vmem:[%s4621 + $0xd0] sm:$0xff]
        %v4649 = vld [vmem:[%s4621 + $0xd8] sm:$0xff]
        %v4650 = vld [vmem:[%s4621 + $0xe0] sm:$0xff]
        %v4651 = vld [vmem:[%s4621 + $0xe8] sm:$0xff]
        %v4652 = vld [vmem:[%s4621 + $0xf0] sm:$0xff]
        %v4653 = vld [vmem:[%s4621 + $0xf8] sm:$0xff]
        %v4654 = vld [vmem:[%s4621 + $0x100] sm:$0xff]
        %v4655 = vld [vmem:[%s4621 + $0x108] sm:$0xff]
        %v4656 = vld [vmem:[%s4621 + $0x110] sm:$0xff]
        %v4657 = vld [vmem:[%s4621 + $0x118] sm:$0xff]
        %v4658 = vld [vmem:[%s4621 + $0x120] sm:$0xff]
        %v4659 = vld [vmem:[%s4621 + $0x128] sm:$0xff]
        %v4660 = vld [vmem:[%s4621 + $0x130] sm:$0xff]
        %v4661 = vld [vmem:[%s4621 + $0x138] sm:$0xff]
        %v4662 = vld [vmem:[%s4621 + $0x140] sm:$0xff]
        %v4663 = vld [vmem:[%s4621 + $0x148] sm:$0xff]
        %v4664 = vld [vmem:[%s4621 + $0x150] sm:$0xff]
        %v4665 = vld [vmem:[%s4621 + $0x158] sm:$0xff]
        %v4666 = vld [vmem:[%s4621 + $0x160] sm:$0xff]
        %v4667 = vld [vmem:[%s4621 + $0x168] sm:$0xff]
        %v4668 = vld [vmem:[%s4621 + $0x170] sm:$0xff]
        %v4669 = vld [vmem:[%s4621 + $0x178] sm:$0xff]
        %v4670 = vld [vmem:[%s4621 + $0x180] sm:$0xff]
        %v4671 = vld [vmem:[%s4621 + $0x188] sm:$0xff]
        %v4672 = vld [vmem:[%s4621 + $0x190] sm:$0xff]
        %v4673 = vld [vmem:[%s4621 + $0x198] sm:$0xff]
        %v4674 = vld [vmem:[%s4621 + $0x1a0] sm:$0xff]
        %v4675 = vld [vmem:[%s4621 + $0x1a8] sm:$0xff]
        %v4676 = vld [vmem:[%s4621 + $0x1b0] sm:$0xff]
        %v4677 = vld [vmem:[%s4621 + $0x1b8] sm:$0xff]
        %v4678 = vld [vmem:[%s4621 + $0x1c0] sm:$0xff]
        %v4679 = vld [vmem:[%s4621 + $0x1c8] sm:$0xff]
        %v4680 = vld [vmem:[%s4621 + $0x1d0] sm:$0xff]
        %v4681 = vld [vmem:[%s4621 + $0x1d8] sm:$0xff]
        %v4682 = vld [vmem:[%s4621 + $0x1e0] sm:$0xff]
        %v4683 = vld [vmem:[%s4621 + $0x1e8] sm:$0xff]
        %v4684 = vld [vmem:[%s4621 + $0x1f0] sm:$0xff]
        %v4685 = vld [vmem:[%s4621 + $0x1f8] sm:$0xff]
        %v4750 = vunpack.c.l.b16 %v4622
        %v4751 = vunpack.c.h.b16 %v4622
        %v4752 = vunpack.c.l.b16 %v4623
        %v4753 = vunpack.c.h.b16 %v4623
        %v4754 = vunpack.c.l.b16 %v4624
        %v4755 = vunpack.c.h.b16 %v4624
        %v4756 = vunpack.c.l.b16 %v4625
        %v4757 = vunpack.c.h.b16 %v4625
        %v4758 = vunpack.c.l.b16 %v4626
        %v4759 = vunpack.c.h.b16 %v4626
        %v4760 = vunpack.c.l.b16 %v4627
        %v4761 = vunpack.c.h.b16 %v4627
        %v4762 = vunpack.c.l.b16 %v4628
        %v4763 = vunpack.c.h.b16 %v4628
        %v4764 = vunpack.c.l.b16 %v4629
        %v4765 = vunpack.c.h.b16 %v4629
        %v4766 = vunpack.c.l.b16 %v4630
        %v4767 = vunpack.c.h.b16 %v4630
        %v4768 = vunpack.c.l.b16 %v4631
        %v4769 = vunpack.c.h.b16 %v4631
        %v4770 = vunpack.c.l.b16 %v4632
        %v4771 = vunpack.c.h.b16 %v4632
        %v4772 = vunpack.c.l.b16 %v4633
        %v4773 = vunpack.c.h.b16 %v4633
        %v4774 = vunpack.c.l.b16 %v4634
        %v4775 = vunpack.c.h.b16 %v4634
        %v4776 = vunpack.c.l.b16 %v4635
        %v4777 = vunpack.c.h.b16 %v4635
        %v4778 = vunpack.c.l.b16 %v4636
        %v4779 = vunpack.c.h.b16 %v4636
        %v4780 = vunpack.c.l.b16 %v4637
        %v4781 = vunpack.c.h.b16 %v4637
        %v4782 = vunpack.c.l.b16 %v4638
        %v4783 = vunpack.c.h.b16 %v4638
        %v4784 = vunpack.c.l.b16 %v4639
        %v4785 = vunpack.c.h.b16 %v4639
        %v4786 = vunpack.c.l.b16 %v4640
        %v4787 = vunpack.c.h.b16 %v4640
        %v4788 = vunpack.c.l.b16 %v4641
        %v4789 = vunpack.c.h.b16 %v4641
        %v4790 = vunpack.c.l.b16 %v4642
        %v4791 = vunpack.c.h.b16 %v4642
        %v4792 = vunpack.c.l.b16 %v4643
        %v4793 = vunpack.c.h.b16 %v4643
        %v4794 = vunpack.c.l.b16 %v4644
        %v4795 = vunpack.c.h.b16 %v4644
        %v4796 = vunpack.c.l.b16 %v4645
        %v4797 = vunpack.c.h.b16 %v4645
        %v4798 = vunpack.c.l.b16 %v4646
        %v4799 = vunpack.c.h.b16 %v4646
        %v4800 = vunpack.c.l.b16 %v4647
        %v4801 = vunpack.c.h.b16 %v4647
        %v4802 = vunpack.c.l.b16 %v4648
        %v4803 = vunpack.c.h.b16 %v4648
        %v4804 = vunpack.c.l.b16 %v4649
        %v4805 = vunpack.c.h.b16 %v4649
        %v4806 = vunpack.c.l.b16 %v4650
        %v4807 = vunpack.c.h.b16 %v4650
        %v4808 = vunpack.c.l.b16 %v4651
        %v4809 = vunpack.c.h.b16 %v4651
        %v4810 = vunpack.c.l.b16 %v4652
        %v4811 = vunpack.c.h.b16 %v4652
        %v4812 = vunpack.c.l.b16 %v4653
        %v4813 = vunpack.c.h.b16 %v4653
        %v4814 = vunpack.c.l.b16 %v4654
        %v4815 = vunpack.c.h.b16 %v4654
        %v4816 = vunpack.c.l.b16 %v4655
        %v4817 = vunpack.c.h.b16 %v4655
        %v4818 = vunpack.c.l.b16 %v4656
        %v4819 = vunpack.c.h.b16 %v4656
        %v4820 = vunpack.c.l.b16 %v4657
        %v4821 = vunpack.c.h.b16 %v4657
        %v4822 = vunpack.c.l.b16 %v4658
        %v4823 = vunpack.c.h.b16 %v4658
        %v4824 = vunpack.c.l.b16 %v4659
        %v4825 = vunpack.c.h.b16 %v4659
        %v4826 = vunpack.c.l.b16 %v4660
        %v4827 = vunpack.c.h.b16 %v4660
        %v4828 = vunpack.c.l.b16 %v4661
        %v4829 = vunpack.c.h.b16 %v4661
        %v4830 = vunpack.c.l.b16 %v4662
        %v4831 = vunpack.c.h.b16 %v4662
        %v4832 = vunpack.c.l.b16 %v4663
        %v4833 = vunpack.c.h.b16 %v4663
        %v4834 = vunpack.c.l.b16 %v4664
        %v4835 = vunpack.c.h.b16 %v4664
        %v4836 = vunpack.c.l.b16 %v4665
        %v4837 = vunpack.c.h.b16 %v4665
        %v4838 = vunpack.c.l.b16 %v4666
        %v4839 = vunpack.c.h.b16 %v4666
        %v4840 = vunpack.c.l.b16 %v4667
        %v4841 = vunpack.c.h.b16 %v4667
        %v4842 = vunpack.c.l.b16 %v4668
        %v4843 = vunpack.c.h.b16 %v4668
        %v4844 = vunpack.c.l.b16 %v4669
        %v4845 = vunpack.c.h.b16 %v4669
        %v4846 = vunpack.c.l.b16 %v4670
        %v4847 = vunpack.c.h.b16 %v4670
        %v4848 = vunpack.c.l.b16 %v4671
        %v4849 = vunpack.c.h.b16 %v4671
        %v4850 = vunpack.c.l.b16 %v4672
        %v4851 = vunpack.c.h.b16 %v4672
        %v4852 = vunpack.c.l.b16 %v4673
        %v4853 = vunpack.c.h.b16 %v4673
        %v4854 = vunpack.c.l.b16 %v4674
        %v4855 = vunpack.c.h.b16 %v4674
        %v4856 = vunpack.c.l.b16 %v4675
        %v4857 = vunpack.c.h.b16 %v4675
        %v4858 = vunpack.c.l.b16 %v4676
        %v4859 = vunpack.c.h.b16 %v4676
        %v4860 = vunpack.c.l.b16 %v4677
        %v4861 = vunpack.c.h.b16 %v4677
        %v4862 = vunpack.c.l.b16 %v4678
        %v4863 = vunpack.c.h.b16 %v4678
        %v4864 = vunpack.c.l.b16 %v4679
        %v4865 = vunpack.c.h.b16 %v4679
        %v4866 = vunpack.c.l.b16 %v4680
        %v4867 = vunpack.c.h.b16 %v4680
        %v4868 = vunpack.c.l.b16 %v4681
        %v4869 = vunpack.c.h.b16 %v4681
        %v4870 = vunpack.c.l.b16 %v4682
        %v4871 = vunpack.c.h.b16 %v4682
        %v4872 = vunpack.c.l.b16 %v4683
        %v4873 = vunpack.c.h.b16 %v4683
        %v4874 = vunpack.c.l.b16 %v4684
        %v4875 = vunpack.c.h.b16 %v4684
        %v4876 = vunpack.c.l.b16 %v4685
        %v4877 = vunpack.c.h.b16 %v4685
        %v4878 = vpack.c.b16 %v4758, %v4750
        %v4879 = vpack.c.b16 %v4759, %v4751
        %v4880 = vpack.c.b16 %v4760, %v4752
        %v4881 = vpack.c.b16 %v4761, %v4753
        %v4882 = vpack.c.b16 %v4762, %v4754
        %v4883 = vpack.c.b16 %v4763, %v4755
        %v4884 = vpack.c.b16 %v4764, %v4756
        %v4885 = vpack.c.b16 %v4765, %v4757
        %v4886 = vpack.c.b16 %v4774, %v4766
        %v4887 = vpack.c.b16 %v4775, %v4767
        %v4888 = vpack.c.b16 %v4776, %v4768
        %v4889 = vpack.c.b16 %v4777, %v4769
        %v4890 = vpack.c.b16 %v4778, %v4770
        %v4891 = vpack.c.b16 %v4779, %v4771
        %v4892 = vpack.c.b16 %v4780, %v4772
        %v4893 = vpack.c.b16 %v4781, %v4773
        %v4894 = vpack.c.b16 %v4790, %v4782
        %v4895 = vpack.c.b16 %v4791, %v4783
        %v4896 = vpack.c.b16 %v4792, %v4784
        %v4897 = vpack.c.b16 %v4793, %v4785
        %v4898 = vpack.c.b16 %v4794, %v4786
        %v4899 = vpack.c.b16 %v4795, %v4787
        %v4900 = vpack.c.b16 %v4796, %v4788
        %v4901 = vpack.c.b16 %v4797, %v4789
        %v4902 = vpack.c.b16 %v4806, %v4798
        %v4903 = vpack.c.b16 %v4807, %v4799
        %v4904 = vpack.c.b16 %v4808, %v4800
        %v4905 = vpack.c.b16 %v4809, %v4801
        %v4906 = vpack.c.b16 %v4810, %v4802
        %v4907 = vpack.c.b16 %v4811, %v4803
        %v4908 = vpack.c.b16 %v4812, %v4804
        %v4909 = vpack.c.b16 %v4813, %v4805
        %v4910 = vpack.c.b16 %v4822, %v4814
        %v4911 = vpack.c.b16 %v4823, %v4815
        %v4912 = vpack.c.b16 %v4824, %v4816
        %v4913 = vpack.c.b16 %v4825, %v4817
        %v4914 = vpack.c.b16 %v4826, %v4818
        %v4915 = vpack.c.b16 %v4827, %v4819
        %v4916 = vpack.c.b16 %v4828, %v4820
        %v4917 = vpack.c.b16 %v4829, %v4821
        %v4918 = vpack.c.b16 %v4838, %v4830
        %v4919 = vpack.c.b16 %v4839, %v4831
        %v4920 = vpack.c.b16 %v4840, %v4832
        %v4921 = vpack.c.b16 %v4841, %v4833
        %v4922 = vpack.c.b16 %v4842, %v4834
        %v4923 = vpack.c.b16 %v4843, %v4835
        %v4924 = vpack.c.b16 %v4844, %v4836
        %v4925 = vpack.c.b16 %v4845, %v4837
        %v4926 = vpack.c.b16 %v4854, %v4846
        %v4927 = vpack.c.b16 %v4855, %v4847
        %v4928 = vpack.c.b16 %v4856, %v4848
        %v4929 = vpack.c.b16 %v4857, %v4849
        %v4930 = vpack.c.b16 %v4858, %v4850
        %v4931 = vpack.c.b16 %v4859, %v4851
        %v4932 = vpack.c.b16 %v4860, %v4852
        %v4933 = vpack.c.b16 %v4861, %v4853
        %v4934 = vpack.c.b16 %v4870, %v4862
        %v4935 = vpack.c.b16 %v4871, %v4863
        %v4936 = vpack.c.b16 %v4872, %v4864
        %v4937 = vpack.c.b16 %v4873, %v4865
        %v4938 = vpack.c.b16 %v4874, %v4866
        %v4939 = vpack.c.b16 %v4875, %v4867
        %v4940 = vpack.c.b16 %v4876, %v4868
        %v4941 = vpack.c.b16 %v4877, %v4869
        %5006 = vmatpush.bf16.msra.mxu0 %v4934
        %5007 = vmatpush.bf16.msra.mxu0 %v4926
        %5008 = vmatpush.bf16.msra.mxu0 %v4918
        %5009 = vmatpush.bf16.msra.mxu0 %v4910
        %5010 = vmatpush.bf16.msra.mxu0 %v4902
        %5011 = vmatpush.bf16.msra.mxu0 %v4894
        %5012 = vmatpush.bf16.msra.mxu0 %v4886
        %5013 = vmatpush.bf16.msra.mxu0 %v4878
        %5014 = vmatmul.bf16.gmra.mxu0 %v2050
        %v5015 = vpop.f32.mrf.mxu0
        %v5016 = vadd.f32 0.0, %v5015
        %v5017 = vpop.f32.mrf.mxu0
        %v5018 = vadd.f32 0.0, %v5017
        %5019 = vmatmul.bf16.gmra.mxu0 %v2052
        %v5020 = vpop.f32.mrf.mxu0
        %v5021 = vadd.f32 0.0, %v5020
        %v5022 = vpop.f32.mrf.mxu0
        %v5023 = vadd.f32 0.0, %v5022
        %5024 = vdwg.mxu0
        %5025 = vmatpush.bf16.msra.mxu0 %v4935
        %5026 = vmatpush.bf16.msra.mxu0 %v4927
        %5027 = vmatpush.bf16.msra.mxu0 %v4919
        %5028 = vmatpush.bf16.msra.mxu0 %v4911
        %5029 = vmatpush.bf16.msra.mxu0 %v4903
        %5030 = vmatpush.bf16.msra.mxu0 %v4895
        %5031 = vmatpush.bf16.msra.mxu0 %v4887
        %5032 = vmatpush.bf16.msra.mxu0 %v4879
        %5033 = vmatmul.bf16.gmra.mxu0 %v2050
        %v5034 = vpop.f32.mrf.mxu0
        %v5035 = vadd.f32 0.0, %v5034
        %v5036 = vpop.f32.mrf.mxu0
        %v5037 = vadd.f32 0.0, %v5036
        %5038 = vmatmul.bf16.gmra.mxu0 %v2052
        %v5039 = vpop.f32.mrf.mxu0
        %v5040 = vadd.f32 0.0, %v5039
        %v5041 = vpop.f32.mrf.mxu0
        %v5042 = vadd.f32 0.0, %v5041
        %5043 = vdwg.mxu0
        %5044 = vmatpush.bf16.msra.mxu0 %v4936
        %5045 = vmatpush.bf16.msra.mxu0 %v4928
        %5046 = vmatpush.bf16.msra.mxu0 %v4920
        %5047 = vmatpush.bf16.msra.mxu0 %v4912
        %5048 = vmatpush.bf16.msra.mxu0 %v4904
        %5049 = vmatpush.bf16.msra.mxu0 %v4896
        %5050 = vmatpush.bf16.msra.mxu0 %v4888
        %5051 = vmatpush.bf16.msra.mxu0 %v4880
        %5052 = vmatmul.bf16.gmra.mxu0 %v2050
        %v5053 = vpop.f32.mrf.mxu0
        %v5054 = vadd.f32 0.0, %v5053
        %v5055 = vpop.f32.mrf.mxu0
        %v5056 = vadd.f32 0.0, %v5055
        %5057 = vmatmul.bf16.gmra.mxu0 %v2052
        %v5058 = vpop.f32.mrf.mxu0
        %v5059 = vadd.f32 0.0, %v5058
        %v5060 = vpop.f32.mrf.mxu0
        %v5061 = vadd.f32 0.0, %v5060
        %5062 = vdwg.mxu0
        %5063 = vmatpush.bf16.msra.mxu0 %v4937
        %5064 = vmatpush.bf16.msra.mxu0 %v4929
        %5065 = vmatpush.bf16.msra.mxu0 %v4921
        %5066 = vmatpush.bf16.msra.mxu0 %v4913
        %5067 = vmatpush.bf16.msra.mxu0 %v4905
        %5068 = vmatpush.bf16.msra.mxu0 %v4897
        %5069 = vmatpush.bf16.msra.mxu0 %v4889
        %5070 = vmatpush.bf16.msra.mxu0 %v4881
        %5071 = vmatmul.bf16.gmra.mxu0 %v2050
        %v5072 = vpop.f32.mrf.mxu0
        %v5073 = vadd.f32 0.0, %v5072
        %v5074 = vpop.f32.mrf.mxu0
        %v5075 = vadd.f32 0.0, %v5074
        %5076 = vmatmul.bf16.gmra.mxu0 %v2052
        %v5077 = vpop.f32.mrf.mxu0
        %v5078 = vadd.f32 0.0, %v5077
        %v5079 = vpop.f32.mrf.mxu0
        %v5080 = vadd.f32 0.0, %v5079
        %5081 = vdwg.mxu0
        %5082 = vmatpush.bf16.msra.mxu0 %v4938
        %5083 = vmatpush.bf16.msra.mxu0 %v4930
        %5084 = vmatpush.bf16.msra.mxu0 %v4922
        %5085 = vmatpush.bf16.msra.mxu0 %v4914
        %5086 = vmatpush.bf16.msra.mxu0 %v4906
        %5087 = vmatpush.bf16.msra.mxu0 %v4898
        %5088 = vmatpush.bf16.msra.mxu0 %v4890
        %5089 = vmatpush.bf16.msra.mxu0 %v4882
        %5090 = vmatmul.bf16.gmra.mxu0 %v2050
        %v5091 = vpop.f32.mrf.mxu0
        %v5092 = vadd.f32 0.0, %v5091
        %v5093 = vpop.f32.mrf.mxu0
        %v5094 = vadd.f32 0.0, %v5093
        %5095 = vmatmul.bf16.gmra.mxu0 %v2052
        %v5096 = vpop.f32.mrf.mxu0
        %v5097 = vadd.f32 0.0, %v5096
        %v5098 = vpop.f32.mrf.mxu0
        %v5099 = vadd.f32 0.0, %v5098
        %5100 = vdwg.mxu0
        %5101 = vmatpush.bf16.msra.mxu0 %v4939
        %5102 = vmatpush.bf16.msra.mxu0 %v4931
        %5103 = vmatpush.bf16.msra.mxu0 %v4923
        %5104 = vmatpush.bf16.msra.mxu0 %v4915
        %5105 = vmatpush.bf16.msra.mxu0 %v4907
        %5106 = vmatpush.bf16.msra.mxu0 %v4899
        %5107 = vmatpush.bf16.msra.mxu0 %v4891
        %5108 = vmatpush.bf16.msra.mxu0 %v4883
        %5109 = vmatmul.bf16.gmra.mxu0 %v2050
        %v5110 = vpop.f32.mrf.mxu0
        %v5111 = vadd.f32 0.0, %v5110
        %v5112 = vpop.f32.mrf.mxu0
        %v5113 = vadd.f32 0.0, %v5112
        %5114 = vmatmul.bf16.gmra.mxu0 %v2052
        %v5115 = vpop.f32.mrf.mxu0
        %v5116 = vadd.f32 0.0, %v5115
        %v5117 = vpop.f32.mrf.mxu0
        %v5118 = vadd.f32 0.0, %v5117
        %5119 = vdwg.mxu0
        %5120 = vmatpush.bf16.msra.mxu0 %v4940
        %5121 = vmatpush.bf16.msra.mxu0 %v4932
        %5122 = vmatpush.bf16.msra.mxu0 %v4924
        %5123 = vmatpush.bf16.msra.mxu0 %v4916
        %5124 = vmatpush.bf16.msra.mxu0 %v4908
        %5125 = vmatpush.bf16.msra.mxu0 %v4900
        %5126 = vmatpush.bf16.msra.mxu0 %v4892
        %5127 = vmatpush.bf16.msra.mxu0 %v4884
        %5128 = vmatmul.bf16.gmra.mxu0 %v2050
        %v5129 = vpop.f32.mrf.mxu0
        %v5130 = vadd.f32 0.0, %v5129
        %v5131 = vpop.f32.mrf.mxu0
        %v5132 = vadd.f32 0.0, %v5131
        %5133 = vmatmul.bf16.gmra.mxu0 %v2052
        %v5134 = vpop.f32.mrf.mxu0
        %v5135 = vadd.f32 0.0, %v5134
        %v5136 = vpop.f32.mrf.mxu0
        %v5137 = vadd.f32 0.0, %v5136
        %5138 = vdwg.mxu0
        %5139 = vmatpush.bf16.msra.mxu0 %v4941
        %5140 = vmatpush.bf16.msra.mxu0 %v4933
        %5141 = vmatpush.bf16.msra.mxu0 %v4925
        %5142 = vmatpush.bf16.msra.mxu0 %v4917
        %5143 = vmatpush.bf16.msra.mxu0 %v4909
        %5144 = vmatpush.bf16.msra.mxu0 %v4901
        %5145 = vmatpush.bf16.msra.mxu0 %v4893
        %5146 = vmatpush.bf16.msra.mxu0 %v4885
        %5147 = vmatmul.bf16.gmra.mxu0 %v2050
        %v5148 = vpop.f32.mrf.mxu0
        %v5149 = vadd.f32 0.0, %v5148
        %v5150 = vpop.f32.mrf.mxu0
        %v5151 = vadd.f32 0.0, %v5150
        %5152 = vmatmul.bf16.gmra.mxu0 %v2052
        %v5153 = vpop.f32.mrf.mxu0
        %v5154 = vadd.f32 0.0, %v5153
        %v5155 = vpop.f32.mrf.mxu0
        %v5156 = vadd.f32 0.0, %v5155
        %5157 = vdwg.mxu0
        %v5158 = vadd.f32 %v4027, %v5016
        %v5159 = vadd.f32 %v4028, %v5035
        %v5160 = vadd.f32 %v4029, %v5054
        %v5161 = vadd.f32 %v4030, %v5073
        %v5162 = vadd.f32 %v4031, %v5092
        %v5163 = vadd.f32 %v4032, %v5111
        %v5164 = vadd.f32 %v4033, %v5130
        %v5165 = vadd.f32 %v4034, %v5149
        %v5166 = vadd.f32 %v4035, %v5018
        %v5167 = vadd.f32 %v4036, %v5037
        %v5168 = vadd.f32 %v4037, %v5056
        %v5169 = vadd.f32 %v4038, %v5075
        %v5170 = vadd.f32 %v4039, %v5094
        %v5171 = vadd.f32 %v4040, %v5113
        %v5172 = vadd.f32 %v4041, %v5132
        %v5173 = vadd.f32 %v4042, %v5151
        %v5174 = vadd.f32 %v4043, %v5021
        %v5175 = vadd.f32 %v4044, %v5040
        %v5176 = vadd.f32 %v4045, %v5059
        %v5177 = vadd.f32 %v4046, %v5078
        %v5178 = vadd.f32 %v4047, %v5097
        %v5179 = vadd.f32 %v4048, %v5116
        %v5180 = vadd.f32 %v4049, %v5135
        %v5181 = vadd.f32 %v4050, %v5154
        %v5182 = vadd.f32 %v4051, %v5023
        %v5183 = vadd.f32 %v4052, %v5042
        %v5184 = vadd.f32 %v4053, %v5061
        %v5185 = vadd.f32 %v4054, %v5080
        %v5186 = vadd.f32 %v4055, %v5099
        %v5187 = vadd.f32 %v4056, %v5118
        %v5188 = vadd.f32 %v4057, %v5137
        %v5189 = vadd.f32 %v4058, %v5156
        %5190 = vmatpush.bf16.msra.mxu0 %v4934
        %5191 = vmatpush.bf16.msra.mxu0 %v4926
        %5192 = vmatpush.bf16.msra.mxu0 %v4918
        %5193 = vmatpush.bf16.msra.mxu0 %v4910
        %5194 = vmatpush.bf16.msra.mxu0 %v4902
        %5195 = vmatpush.bf16.msra.mxu0 %v4894
        %5196 = vmatpush.bf16.msra.mxu0 %v4886
        %5197 = vmatpush.bf16.msra.mxu0 %v4878
        %5198 = vmatmul.bf16.gmra.mxu0 %v3301
        %v5199 = vpop.f32.mrf.mxu0
        %v5200 = vadd.f32 0.0, %v5199
        %v5201 = vpop.f32.mrf.mxu0
        %v5202 = vadd.f32 0.0, %v5201
        %5203 = vmatmul.bf16.gmra.mxu0 %v3303
        %v5204 = vpop.f32.mrf.mxu0
        %v5205 = vadd.f32 0.0, %v5204
        %v5206 = vpop.f32.mrf.mxu0
        %v5207 = vadd.f32 0.0, %v5206
        %5208 = vdwg.mxu0
        %5209 = vmatpush.bf16.msra.mxu0 %v4935
        %5210 = vmatpush.bf16.msra.mxu0 %v4927
        %5211 = vmatpush.bf16.msra.mxu0 %v4919
        %5212 = vmatpush.bf16.msra.mxu0 %v4911
        %5213 = vmatpush.bf16.msra.mxu0 %v4903
        %5214 = vmatpush.bf16.msra.mxu0 %v4895
        %5215 = vmatpush.bf16.msra.mxu0 %v4887
        %5216 = vmatpush.bf16.msra.mxu0 %v4879
        %5217 = vmatmul.bf16.gmra.mxu0 %v3301
        %v5218 = vpop.f32.mrf.mxu0
        %v5219 = vadd.f32 0.0, %v5218
        %v5220 = vpop.f32.mrf.mxu0
        %v5221 = vadd.f32 0.0, %v5220
        %5222 = vmatmul.bf16.gmra.mxu0 %v3303
        %v5223 = vpop.f32.mrf.mxu0
        %v5224 = vadd.f32 0.0, %v5223
        %v5225 = vpop.f32.mrf.mxu0
        %v5226 = vadd.f32 0.0, %v5225
        %5227 = vdwg.mxu0
        %5228 = vmatpush.bf16.msra.mxu0 %v4936
        %5229 = vmatpush.bf16.msra.mxu0 %v4928
        %5230 = vmatpush.bf16.msra.mxu0 %v4920
        %5231 = vmatpush.bf16.msra.mxu0 %v4912
        %5232 = vmatpush.bf16.msra.mxu0 %v4904
        %5233 = vmatpush.bf16.msra.mxu0 %v4896
        %5234 = vmatpush.bf16.msra.mxu0 %v4888
        %5235 = vmatpush.bf16.msra.mxu0 %v4880
        %5236 = vmatmul.bf16.gmra.mxu0 %v3301
        %v5237 = vpop.f32.mrf.mxu0
        %v5238 = vadd.f32 0.0, %v5237
        %v5239 = vpop.f32.mrf.mxu0
        %v5240 = vadd.f32 0.0, %v5239
        %5241 = vmatmul.bf16.gmra.mxu0 %v3303
        %v5242 = vpop.f32.mrf.mxu0
        %v5243 = vadd.f32 0.0, %v5242
        %v5244 = vpop.f32.mrf.mxu0
        %v5245 = vadd.f32 0.0, %v5244
        %5246 = vdwg.mxu0
        %5247 = vmatpush.bf16.msra.mxu0 %v4937
        %5248 = vmatpush.bf16.msra.mxu0 %v4929
        %5249 = vmatpush.bf16.msra.mxu0 %v4921
        %5250 = vmatpush.bf16.msra.mxu0 %v4913
        %5251 = vmatpush.bf16.msra.mxu0 %v4905
        %5252 = vmatpush.bf16.msra.mxu0 %v4897
        %5253 = vmatpush.bf16.msra.mxu0 %v4889
        %5254 = vmatpush.bf16.msra.mxu0 %v4881
        %5255 = vmatmul.bf16.gmra.mxu0 %v3301
        %v5256 = vpop.f32.mrf.mxu0
        %v5257 = vadd.f32 0.0, %v5256
        %v5258 = vpop.f32.mrf.mxu0
        %v5259 = vadd.f32 0.0, %v5258
        %5260 = vmatmul.bf16.gmra.mxu0 %v3303
        %v5261 = vpop.f32.mrf.mxu0
        %v5262 = vadd.f32 0.0, %v5261
        %v5263 = vpop.f32.mrf.mxu0
        %v5264 = vadd.f32 0.0, %v5263
        %5265 = vdwg.mxu0
        %5266 = vmatpush.bf16.msra.mxu0 %v4938
        %5267 = vmatpush.bf16.msra.mxu0 %v4930
        %5268 = vmatpush.bf16.msra.mxu0 %v4922
        %5269 = vmatpush.bf16.msra.mxu0 %v4914
        %5270 = vmatpush.bf16.msra.mxu0 %v4906
        %5271 = vmatpush.bf16.msra.mxu0 %v4898
        %5272 = vmatpush.bf16.msra.mxu0 %v4890
        %5273 = vmatpush.bf16.msra.mxu0 %v4882
        %5274 = vmatmul.bf16.gmra.mxu0 %v3301
        %v5275 = vpop.f32.mrf.mxu0
        %v5276 = vadd.f32 0.0, %v5275
        %v5277 = vpop.f32.mrf.mxu0
        %v5278 = vadd.f32 0.0, %v5277
        %5279 = vmatmul.bf16.gmra.mxu0 %v3303
        %v5280 = vpop.f32.mrf.mxu0
        %v5281 = vadd.f32 0.0, %v5280
        %v5282 = vpop.f32.mrf.mxu0
        %v5283 = vadd.f32 0.0, %v5282
        %5284 = vdwg.mxu0
        %5285 = vmatpush.bf16.msra.mxu0 %v4939
        %5286 = vmatpush.bf16.msra.mxu0 %v4931
        %5287 = vmatpush.bf16.msra.mxu0 %v4923
        %5288 = vmatpush.bf16.msra.mxu0 %v4915
        %5289 = vmatpush.bf16.msra.mxu0 %v4907
        %5290 = vmatpush.bf16.msra.mxu0 %v4899
        %5291 = vmatpush.bf16.msra.mxu0 %v4891
        %5292 = vmatpush.bf16.msra.mxu0 %v4883
        %5293 = vmatmul.bf16.gmra.mxu0 %v3301
        %v5294 = vpop.f32.mrf.mxu0
        %v5295 = vadd.f32 0.0, %v5294
        %v5296 = vpop.f32.mrf.mxu0
        %v5297 = vadd.f32 0.0, %v5296
        %5298 = vmatmul.bf16.gmra.mxu0 %v3303
        %v5299 = vpop.f32.mrf.mxu0
        %v5300 = vadd.f32 0.0, %v5299
        %v5301 = vpop.f32.mrf.mxu0
        %v5302 = vadd.f32 0.0, %v5301
        %5303 = vdwg.mxu0
        %5304 = vmatpush.bf16.msra.mxu0 %v4940
        %5305 = vmatpush.bf16.msra.mxu0 %v4932
        %5306 = vmatpush.bf16.msra.mxu0 %v4924
        %5307 = vmatpush.bf16.msra.mxu0 %v4916
        %5308 = vmatpush.bf16.msra.mxu0 %v4908
        %5309 = vmatpush.bf16.msra.mxu0 %v4900
        %5310 = vmatpush.bf16.msra.mxu0 %v4892
        %5311 = vmatpush.bf16.msra.mxu0 %v4884
        %5312 = vmatmul.bf16.gmra.mxu0 %v3301
        %v5313 = vpop.f32.mrf.mxu0
        %v5314 = vadd.f32 0.0, %v5313
        %v5315 = vpop.f32.mrf.mxu0
        %v5316 = vadd.f32 0.0, %v5315
        %5317 = vmatmul.bf16.gmra.mxu0 %v3303
        %v5318 = vpop.f32.mrf.mxu0
        %v5319 = vadd.f32 0.0, %v5318
        %v5320 = vpop.f32.mrf.mxu0
        %v5321 = vadd.f32 0.0, %v5320
        %5322 = vdwg.mxu0
        %5323 = vmatpush.bf16.msra.mxu0 %v4941
        %5324 = vmatpush.bf16.msra.mxu0 %v4933
        %5325 = vmatpush.bf16.msra.mxu0 %v4925
        %5326 = vmatpush.bf16.msra.mxu0 %v4917
        %5327 = vmatpush.bf16.msra.mxu0 %v4909
        %5328 = vmatpush.bf16.msra.mxu0 %v4901
        %5329 = vmatpush.bf16.msra.mxu0 %v4893
        %5330 = vmatpush.bf16.msra.mxu0 %v4885
        %5331 = vmatmul.bf16.gmra.mxu0 %v3301
        %v5332 = vpop.f32.mrf.mxu0
        %v5333 = vadd.f32 0.0, %v5332
        %v5334 = vpop.f32.mrf.mxu0
        %v5335 = vadd.f32 0.0, %v5334
        %5336 = vmatmul.bf16.gmra.mxu0 %v3303
        %v5337 = vpop.f32.mrf.mxu0
        %v5338 = vadd.f32 0.0, %v5337
        %v5339 = vpop.f32.mrf.mxu0
        %v5340 = vadd.f32 0.0, %v5339
        %5341 = vdwg.mxu0
        %v5342 = vadd.f32 %v4211, %v5200
        %v5343 = vadd.f32 %v4212, %v5219
        %v5344 = vadd.f32 %v4213, %v5238
        %v5345 = vadd.f32 %v4214, %v5257
        %v5346 = vadd.f32 %v4215, %v5276
        %v5347 = vadd.f32 %v4216, %v5295
        %v5348 = vadd.f32 %v4217, %v5314
        %v5349 = vadd.f32 %v4218, %v5333
        %v5350 = vadd.f32 %v4219, %v5202
        %v5351 = vadd.f32 %v4220, %v5221
        %v5352 = vadd.f32 %v4221, %v5240
        %v5353 = vadd.f32 %v4222, %v5259
        %v5354 = vadd.f32 %v4223, %v5278
        %v5355 = vadd.f32 %v4224, %v5297
        %v5356 = vadd.f32 %v4225, %v5316
        %v5357 = vadd.f32 %v4226, %v5335
        %v5358 = vadd.f32 %v4227, %v5205
        %v5359 = vadd.f32 %v4228, %v5224
        %v5360 = vadd.f32 %v4229, %v5243
        %v5361 = vadd.f32 %v4230, %v5262
        %v5362 = vadd.f32 %v4231, %v5281
        %v5363 = vadd.f32 %v4232, %v5300
        %v5364 = vadd.f32 %v4233, %v5319
        %v5365 = vadd.f32 %v4234, %v5338
        %v5366 = vadd.f32 %v4235, %v5207
        %v5367 = vadd.f32 %v4236, %v5226
        %v5368 = vadd.f32 %v4237, %v5245
        %v5369 = vadd.f32 %v4238, %v5264
        %v5370 = vadd.f32 %v4239, %v5283
        %v5371 = vadd.f32 %v4240, %v5302
        %v5372 = vadd.f32 %v4241, %v5321
        %v5373 = vadd.f32 %v4242, %v5340
        %5374 = vmatpush.bf16.msra.mxu0 %v4934
        %5375 = vmatpush.bf16.msra.mxu0 %v4926
        %5376 = vmatpush.bf16.msra.mxu0 %v4918
        %5377 = vmatpush.bf16.msra.mxu0 %v4910
        %5378 = vmatpush.bf16.msra.mxu0 %v4902
        %5379 = vmatpush.bf16.msra.mxu0 %v4894
        %5380 = vmatpush.bf16.msra.mxu0 %v4886
        %5381 = vmatpush.bf16.msra.mxu0 %v4878
        %5382 = vmatmul.bf16.gmra.mxu0 %v4432
        %v5383 = vpop.f32.mrf.mxu0
        %v5384 = vadd.f32 0.0, %v5383
        %v5385 = vpop.f32.mrf.mxu0
        %v5386 = vadd.f32 0.0, %v5385
        %5387 = vmatmul.bf16.gmra.mxu0 %v4434
        %v5388 = vpop.f32.mrf.mxu0
        %v5389 = vadd.f32 0.0, %v5388
        %v5390 = vpop.f32.mrf.mxu0
        %v5391 = vadd.f32 0.0, %v5390
        %5392 = vdwg.mxu0
        %5393 = vmatpush.bf16.msra.mxu0 %v4935
        %5394 = vmatpush.bf16.msra.mxu0 %v4927
        %5395 = vmatpush.bf16.msra.mxu0 %v4919
        %5396 = vmatpush.bf16.msra.mxu0 %v4911
        %5397 = vmatpush.bf16.msra.mxu0 %v4903
        %5398 = vmatpush.bf16.msra.mxu0 %v4895
        %5399 = vmatpush.bf16.msra.mxu0 %v4887
        %5400 = vmatpush.bf16.msra.mxu0 %v4879
        %5401 = vmatmul.bf16.gmra.mxu0 %v4432
        %v5402 = vpop.f32.mrf.mxu0
        %v5403 = vadd.f32 0.0, %v5402
        %v5404 = vpop.f32.mrf.mxu0
        %v5405 = vadd.f32 0.0, %v5404
        %5406 = vmatmul.bf16.gmra.mxu0 %v4434
        %v5407 = vpop.f32.mrf.mxu0
        %v5408 = vadd.f32 0.0, %v5407
        %v5409 = vpop.f32.mrf.mxu0
        %v5410 = vadd.f32 0.0, %v5409
        %5411 = vdwg.mxu0
        %5412 = vmatpush.bf16.msra.mxu0 %v4936
        %5413 = vmatpush.bf16.msra.mxu0 %v4928
        %5414 = vmatpush.bf16.msra.mxu0 %v4920
        %5415 = vmatpush.bf16.msra.mxu0 %v4912
        %5416 = vmatpush.bf16.msra.mxu0 %v4904
        %5417 = vmatpush.bf16.msra.mxu0 %v4896
        %5418 = vmatpush.bf16.msra.mxu0 %v4888
        %5419 = vmatpush.bf16.msra.mxu0 %v4880
        %5420 = vmatmul.bf16.gmra.mxu0 %v4432
        %v5421 = vpop.f32.mrf.mxu0
        %v5422 = vadd.f32 0.0, %v5421
        %v5423 = vpop.f32.mrf.mxu0
        %v5424 = vadd.f32 0.0, %v5423
        %5425 = vmatmul.bf16.gmra.mxu0 %v4434
        %v5426 = vpop.f32.mrf.mxu0
        %v5427 = vadd.f32 0.0, %v5426
        %v5428 = vpop.f32.mrf.mxu0
        %v5429 = vadd.f32 0.0, %v5428
        %5430 = vdwg.mxu0
        %5431 = vmatpush.bf16.msra.mxu0 %v4937
        %5432 = vmatpush.bf16.msra.mxu0 %v4929
        %5433 = vmatpush.bf16.msra.mxu0 %v4921
        %5434 = vmatpush.bf16.msra.mxu0 %v4913
        %5435 = vmatpush.bf16.msra.mxu0 %v4905
        %5436 = vmatpush.bf16.msra.mxu0 %v4897
        %5437 = vmatpush.bf16.msra.mxu0 %v4889
        %5438 = vmatpush.bf16.msra.mxu0 %v4881
        %5439 = vmatmul.bf16.gmra.mxu0 %v4432
        %v5440 = vpop.f32.mrf.mxu0
        %v5441 = vadd.f32 0.0, %v5440
        %v5442 = vpop.f32.mrf.mxu0
        %v5443 = vadd.f32 0.0, %v5442
        %5444 = vmatmul.bf16.gmra.mxu0 %v4434
        %v5445 = vpop.f32.mrf.mxu0
        %v5446 = vadd.f32 0.0, %v5445
        %v5447 = vpop.f32.mrf.mxu0
        %v5448 = vadd.f32 0.0, %v5447
        %5449 = vdwg.mxu0
        %5450 = vmatpush.bf16.msra.mxu0 %v4938
        %5451 = vmatpush.bf16.msra.mxu0 %v4930
        %5452 = vmatpush.bf16.msra.mxu0 %v4922
        %5453 = vmatpush.bf16.msra.mxu0 %v4914
        %5454 = vmatpush.bf16.msra.mxu0 %v4906
        %5455 = vmatpush.bf16.msra.mxu0 %v4898
        %5456 = vmatpush.bf16.msra.mxu0 %v4890
        %5457 = vmatpush.bf16.msra.mxu0 %v4882
        %5458 = vmatmul.bf16.gmra.mxu0 %v4432
        %v5459 = vpop.f32.mrf.mxu0
        %v5460 = vadd.f32 0.0, %v5459
        %v5461 = vpop.f32.mrf.mxu0
        %v5462 = vadd.f32 0.0, %v5461
        %5463 = vmatmul.bf16.gmra.mxu0 %v4434
        %v5464 = vpop.f32.mrf.mxu0
        %v5465 = vadd.f32 0.0, %v5464
        %v5466 = vpop.f32.mrf.mxu0
        %v5467 = vadd.f32 0.0, %v5466
        %5468 = vdwg.mxu0
        %5469 = vmatpush.bf16.msra.mxu0 %v4939
        %5470 = vmatpush.bf16.msra.mxu0 %v4931
        %5471 = vmatpush.bf16.msra.mxu0 %v4923
        %5472 = vmatpush.bf16.msra.mxu0 %v4915
        %5473 = vmatpush.bf16.msra.mxu0 %v4907
        %5474 = vmatpush.bf16.msra.mxu0 %v4899
        %5475 = vmatpush.bf16.msra.mxu0 %v4891
        %5476 = vmatpush.bf16.msra.mxu0 %v4883
        %5477 = vmatmul.bf16.gmra.mxu0 %v4432
        %v5478 = vpop.f32.mrf.mxu0
        %v5479 = vadd.f32 0.0, %v5478
        %v5480 = vpop.f32.mrf.mxu0
        %v5481 = vadd.f32 0.0, %v5480
        %5482 = vmatmul.bf16.gmra.mxu0 %v4434
        %v5483 = vpop.f32.mrf.mxu0
        %v5484 = vadd.f32 0.0, %v5483
        %v5485 = vpop.f32.mrf.mxu0
        %v5486 = vadd.f32 0.0, %v5485
        %5487 = vdwg.mxu0
        %5488 = vmatpush.bf16.msra.mxu0 %v4940
        %5489 = vmatpush.bf16.msra.mxu0 %v4932
        %5490 = vmatpush.bf16.msra.mxu0 %v4924
        %5491 = vmatpush.bf16.msra.mxu0 %v4916
        %5492 = vmatpush.bf16.msra.mxu0 %v4908
        %5493 = vmatpush.bf16.msra.mxu0 %v4900
        %5494 = vmatpush.bf16.msra.mxu0 %v4892
        %5495 = vmatpush.bf16.msra.mxu0 %v4884
        %5496 = vmatmul.bf16.gmra.mxu0 %v4432
        %v5497 = vpop.f32.mrf.mxu0
        %v5498 = vadd.f32 0.0, %v5497
        %v5499 = vpop.f32.mrf.mxu0
        %v5500 = vadd.f32 0.0, %v5499
        %5501 = vmatmul.bf16.gmra.mxu0 %v4434
        %v5502 = vpop.f32.mrf.mxu0
        %v5503 = vadd.f32 0.0, %v5502
        %v5504 = vpop.f32.mrf.mxu0
        %v5505 = vadd.f32 0.0, %v5504
        %5506 = vdwg.mxu0
        %5507 = vmatpush.bf16.msra.mxu0 %v4941
        %5508 = vmatpush.bf16.msra.mxu0 %v4933
        %5509 = vmatpush.bf16.msra.mxu0 %v4925
        %5510 = vmatpush.bf16.msra.mxu0 %v4917
        %5511 = vmatpush.bf16.msra.mxu0 %v4909
        %5512 = vmatpush.bf16.msra.mxu0 %v4901
        %5513 = vmatpush.bf16.msra.mxu0 %v4893
        %5514 = vmatpush.bf16.msra.mxu0 %v4885
        %5515 = vmatmul.bf16.gmra.mxu0 %v4432
        %v5516 = vpop.f32.mrf.mxu0
        %v5517 = vadd.f32 0.0, %v5516
        %v5518 = vpop.f32.mrf.mxu0
        %v5519 = vadd.f32 0.0, %v5518
        %5520 = vmatmul.bf16.gmra.mxu0 %v4434
        %v5521 = vpop.f32.mrf.mxu0
        %v5522 = vadd.f32 0.0, %v5521
        %v5523 = vpop.f32.mrf.mxu0
        %v5524 = vadd.f32 0.0, %v5523
        %5525 = vdwg.mxu0
        %v5526 = vadd.f32 %v4395, %v5384
        %v5527 = vadd.f32 %v4396, %v5403
        %v5528 = vadd.f32 %v4397, %v5422
        %v5529 = vadd.f32 %v4398, %v5441
        %v5530 = vadd.f32 %v4399, %v5460
        %v5531 = vadd.f32 %v4400, %v5479
        %v5532 = vadd.f32 %v4401, %v5498
        %v5533 = vadd.f32 %v4402, %v5517
        %v5534 = vadd.f32 %v4403, %v5386
        %v5535 = vadd.f32 %v4404, %v5405
        %v5536 = vadd.f32 %v4405, %v5424
        %v5537 = vadd.f32 %v4406, %v5443
        %v5538 = vadd.f32 %v4407, %v5462
        %v5539 = vadd.f32 %v4408, %v5481
        %v5540 = vadd.f32 %v4409, %v5500
        %v5541 = vadd.f32 %v4410, %v5519
        %v5542 = vadd.f32 %v4411, %v5389
        %v5543 = vadd.f32 %v4412, %v5408
        %v5544 = vadd.f32 %v4413, %v5427
        %v5545 = vadd.f32 %v4414, %v5446
        %v5546 = vadd.f32 %v4415, %v5465
        %v5547 = vadd.f32 %v4416, %v5484
        %v5548 = vadd.f32 %v4417, %v5503
        %v5549 = vadd.f32 %v4418, %v5522
        %v5550 = vadd.f32 %v4419, %v5391
        %v5551 = vadd.f32 %v4420, %v5410
        %v5552 = vadd.f32 %v4421, %v5429
        %v5553 = vadd.f32 %v4422, %v5448
        %v5554 = vadd.f32 %v4423, %v5467
        %v5555 = vadd.f32 %v4424, %v5486
        %v5556 = vadd.f32 %v4425, %v5505
        %v5557 = vadd.f32 %v4426, %v5524
        %v5559 = vunpack.c.l.b16 %v314
        %v5560 = vpack.c.b16 %v5559, %v5559
        %v5561 = vrot.slane %v1736, 2
        %v5562 = vrot.slane %v1737, 2
        %v5563 = vsel %vm2047, %v5561, %v5562
        %v5564 = vrot.slane %v5560, 2
        %v5565 = vsel %vm2047, %v5562, %v5564
        %5568 = vmatpush.bf16.msra.mxu0 %v4934
        %5569 = vmatpush.bf16.msra.mxu0 %v4926
        %5570 = vmatpush.bf16.msra.mxu0 %v4918
        %5571 = vmatpush.bf16.msra.mxu0 %v4910
        %5572 = vmatpush.bf16.msra.mxu0 %v4902
        %5573 = vmatpush.bf16.msra.mxu0 %v4894
        %5574 = vmatpush.bf16.msra.mxu0 %v4886
        %5575 = vmatpush.bf16.msra.mxu0 %v4878
        %5576 = vmatmul.bf16.gmra.mxu0 %v5563
        %v5577 = vpop.f32.mrf.mxu0
        %v5578 = vadd.f32 0.0, %v5577
        %v5579 = vpop.f32.mrf.mxu0
        %v5580 = vadd.f32 0.0, %v5579
        %5581 = vmatmul.bf16.gmra.mxu0 %v5565
        %v5582 = vpop.f32.mrf.mxu0
        %v5583 = vadd.f32 0.0, %v5582
        %v5584 = vpop.f32.mrf.mxu0
        %v5585 = vadd.f32 0.0, %v5584
        %5586 = vdwg.mxu0
        %5587 = vmatpush.bf16.msra.mxu0 %v4935
        %5588 = vmatpush.bf16.msra.mxu0 %v4927
        %5589 = vmatpush.bf16.msra.mxu0 %v4919
        %5590 = vmatpush.bf16.msra.mxu0 %v4911
        %5591 = vmatpush.bf16.msra.mxu0 %v4903
        %5592 = vmatpush.bf16.msra.mxu0 %v4895
        %5593 = vmatpush.bf16.msra.mxu0 %v4887
        %5594 = vmatpush.bf16.msra.mxu0 %v4879
        %5595 = vmatmul.bf16.gmra.mxu0 %v5563
        %v5596 = vpop.f32.mrf.mxu0
        %v5597 = vadd.f32 0.0, %v5596
        %v5598 = vpop.f32.mrf.mxu0
        %v5599 = vadd.f32 0.0, %v5598
        %5600 = vmatmul.bf16.gmra.mxu0 %v5565
        %v5601 = vpop.f32.mrf.mxu0
        %v5602 = vadd.f32 0.0, %v5601
        %v5603 = vpop.f32.mrf.mxu0
        %v5604 = vadd.f32 0.0, %v5603
        %5605 = vdwg.mxu0
        %5606 = vmatpush.bf16.msra.mxu0 %v4936
        %5607 = vmatpush.bf16.msra.mxu0 %v4928
        %5608 = vmatpush.bf16.msra.mxu0 %v4920
        %5609 = vmatpush.bf16.msra.mxu0 %v4912
        %5610 = vmatpush.bf16.msra.mxu0 %v4904
        %5611 = vmatpush.bf16.msra.mxu0 %v4896
        %5612 = vmatpush.bf16.msra.mxu0 %v4888
        %5613 = vmatpush.bf16.msra.mxu0 %v4880
        %5614 = vmatmul.bf16.gmra.mxu0 %v5563
        %v5615 = vpop.f32.mrf.mxu0
        %v5616 = vadd.f32 0.0, %v5615
        %v5617 = vpop.f32.mrf.mxu0
        %v5618 = vadd.f32 0.0, %v5617
        %5619 = vmatmul.bf16.gmra.mxu0 %v5565
        %v5620 = vpop.f32.mrf.mxu0
        %v5621 = vadd.f32 0.0, %v5620
        %v5622 = vpop.f32.mrf.mxu0
        %v5623 = vadd.f32 0.0, %v5622
        %5624 = vdwg.mxu0
        %5625 = vmatpush.bf16.msra.mxu0 %v4937
        %5626 = vmatpush.bf16.msra.mxu0 %v4929
        %5627 = vmatpush.bf16.msra.mxu0 %v4921
        %5628 = vmatpush.bf16.msra.mxu0 %v4913
        %5629 = vmatpush.bf16.msra.mxu0 %v4905
        %5630 = vmatpush.bf16.msra.mxu0 %v4897
        %5631 = vmatpush.bf16.msra.mxu0 %v4889
        %5632 = vmatpush.bf16.msra.mxu0 %v4881
        %5633 = vmatmul.bf16.gmra.mxu0 %v5563
        %v5634 = vpop.f32.mrf.mxu0
        %v5635 = vadd.f32 0.0, %v5634
        %v5636 = vpop.f32.mrf.mxu0
        %v5637 = vadd.f32 0.0, %v5636
        %5638 = vmatmul.bf16.gmra.mxu0 %v5565
        %v5639 = vpop.f32.mrf.mxu0
        %v5640 = vadd.f32 0.0, %v5639
        %v5641 = vpop.f32.mrf.mxu0
        %v5642 = vadd.f32 0.0, %v5641
        %5643 = vdwg.mxu0
        %5644 = vmatpush.bf16.msra.mxu0 %v4938
        %5645 = vmatpush.bf16.msra.mxu0 %v4930
        %5646 = vmatpush.bf16.msra.mxu0 %v4922
        %5647 = vmatpush.bf16.msra.mxu0 %v4914
        %5648 = vmatpush.bf16.msra.mxu0 %v4906
        %5649 = vmatpush.bf16.msra.mxu0 %v4898
        %5650 = vmatpush.bf16.msra.mxu0 %v4890
        %5651 = vmatpush.bf16.msra.mxu0 %v4882
        %5652 = vmatmul.bf16.gmra.mxu0 %v5563
        %v5653 = vpop.f32.mrf.mxu0
        %v5654 = vadd.f32 0.0, %v5653
        %v5655 = vpop.f32.mrf.mxu0
        %v5656 = vadd.f32 0.0, %v5655
        %5657 = vmatmul.bf16.gmra.mxu0 %v5565
        %v5658 = vpop.f32.mrf.mxu0
        %v5659 = vadd.f32 0.0, %v5658
        %v5660 = vpop.f32.mrf.mxu0
        %v5661 = vadd.f32 0.0, %v5660
        %5662 = vdwg.mxu0
        %5663 = vmatpush.bf16.msra.mxu0 %v4939
        %5664 = vmatpush.bf16.msra.mxu0 %v4931
        %5665 = vmatpush.bf16.msra.mxu0 %v4923
        %5666 = vmatpush.bf16.msra.mxu0 %v4915
        %5667 = vmatpush.bf16.msra.mxu0 %v4907
        %5668 = vmatpush.bf16.msra.mxu0 %v4899
        %5669 = vmatpush.bf16.msra.mxu0 %v4891
        %5670 = vmatpush.bf16.msra.mxu0 %v4883
        %5671 = vmatmul.bf16.gmra.mxu0 %v5563
        %v5672 = vpop.f32.mrf.mxu0
        %v5673 = vadd.f32 0.0, %v5672
        %v5674 = vpop.f32.mrf.mxu0
        %v5675 = vadd.f32 0.0, %v5674
        %5676 = vmatmul.bf16.gmra.mxu0 %v5565
        %v5677 = vpop.f32.mrf.mxu0
        %v5678 = vadd.f32 0.0, %v5677
        %v5679 = vpop.f32.mrf.mxu0
        %v5680 = vadd.f32 0.0, %v5679
        %5681 = vdwg.mxu0
        %5682 = vmatpush.bf16.msra.mxu0 %v4940
        %5683 = vmatpush.bf16.msra.mxu0 %v4932
        %5684 = vmatpush.bf16.msra.mxu0 %v4924
        %5685 = vmatpush.bf16.msra.mxu0 %v4916
        %5686 = vmatpush.bf16.msra.mxu0 %v4908
        %5687 = vmatpush.bf16.msra.mxu0 %v4900
        %5688 = vmatpush.bf16.msra.mxu0 %v4892
        %5689 = vmatpush.bf16.msra.mxu0 %v4884
        %5690 = vmatmul.bf16.gmra.mxu0 %v5563
        %v5691 = vpop.f32.mrf.mxu0
        %v5692 = vadd.f32 0.0, %v5691
        %v5693 = vpop.f32.mrf.mxu0
        %v5694 = vadd.f32 0.0, %v5693
        %5695 = vmatmul.bf16.gmra.mxu0 %v5565
        %v5696 = vpop.f32.mrf.mxu0
        %v5697 = vadd.f32 0.0, %v5696
        %v5698 = vpop.f32.mrf.mxu0
        %v5699 = vadd.f32 0.0, %v5698
        %5700 = vdwg.mxu0
        %5701 = vmatpush.bf16.msra.mxu0 %v4941
        %5702 = vmatpush.bf16.msra.mxu0 %v4933
        %5703 = vmatpush.bf16.msra.mxu0 %v4925
        %5704 = vmatpush.bf16.msra.mxu0 %v4917
        %5705 = vmatpush.bf16.msra.mxu0 %v4909
        %5706 = vmatpush.bf16.msra.mxu0 %v4901
        %5707 = vmatpush.bf16.msra.mxu0 %v4893
        %5708 = vmatpush.bf16.msra.mxu0 %v4885
        %5709 = vmatmul.bf16.gmra.mxu0 %v5563
        %v5710 = vpop.f32.mrf.mxu0
        %v5711 = vadd.f32 0.0, %v5710
        %v5712 = vpop.f32.mrf.mxu0
        %v5713 = vadd.f32 0.0, %v5712
        %5714 = vmatmul.bf16.gmra.mxu0 %v5565
        %v5715 = vpop.f32.mrf.mxu0
        %v5716 = vadd.f32 0.0, %v5715
        %v5717 = vpop.f32.mrf.mxu0
        %v5718 = vadd.f32 0.0, %v5717
        %5719 = vdwg.mxu0
        %v5720 = vadd.f32 %v4589, %v5578
        %v5721 = vadd.f32 %v4590, %v5597
        %v5722 = vadd.f32 %v4591, %v5616
        %v5723 = vadd.f32 %v4592, %v5635
        %v5724 = vadd.f32 %v4593, %v5654
        %v5725 = vadd.f32 %v4594, %v5673
        %v5726 = vadd.f32 %v4595, %v5692
        %v5727 = vadd.f32 %v4596, %v5711
        %v5728 = vadd.f32 %v4597, %v5580
        %v5729 = vadd.f32 %v4598, %v5599
        %v5730 = vadd.f32 %v4599, %v5618
        %v5731 = vadd.f32 %v4600, %v5637
        %v5732 = vadd.f32 %v4601, %v5656
        %v5733 = vadd.f32 %v4602, %v5675
        %v5734 = vadd.f32 %v4603, %v5694
        %v5735 = vadd.f32 %v4604, %v5713
        %v5736 = vadd.f32 %v4605, %v5583
        %v5737 = vadd.f32 %v4606, %v5602
        %v5738 = vadd.f32 %v4607, %v5621
        %v5739 = vadd.f32 %v4608, %v5640
        %v5740 = vadd.f32 %v4609, %v5659
        %v5741 = vadd.f32 %v4610, %v5678
        %v5742 = vadd.f32 %v4611, %v5697
        %v5743 = vadd.f32 %v4612, %v5716
        %v5744 = vadd.f32 %v4613, %v5585
        %v5745 = vadd.f32 %v4614, %v5604
        %v5746 = vadd.f32 %v4615, %v5623
        %v5747 = vadd.f32 %v4616, %v5642
        %v5748 = vadd.f32 %v4617, %v5661
        %v5749 = vadd.f32 %v4618, %v5680
        %v5750 = vadd.f32 %v4619, %v5699
        %v5751 = vadd.f32 %v4620, %v5718
        %v5752 = vmax.f32 %v5158, %v5342
        %v5753 = vmax.f32 %v5159, %v5343
        %v5754 = vmax.f32 %v5160, %v5344
        %v5755 = vmax.f32 %v5161, %v5345
        %v5756 = vmax.f32 %v5162, %v5346
        %v5757 = vmax.f32 %v5163, %v5347
        %v5758 = vmax.f32 %v5164, %v5348
        %v5759 = vmax.f32 %v5165, %v5349
        %v5760 = vmax.f32 %v5166, %v5350
        %v5761 = vmax.f32 %v5167, %v5351
        %v5762 = vmax.f32 %v5168, %v5352
        %v5763 = vmax.f32 %v5169, %v5353
        %v5764 = vmax.f32 %v5170, %v5354
        %v5765 = vmax.f32 %v5171, %v5355
        %v5766 = vmax.f32 %v5172, %v5356
        %v5767 = vmax.f32 %v5173, %v5357
        %v5768 = vmax.f32 %v5174, %v5358
        %v5769 = vmax.f32 %v5175, %v5359
        %v5770 = vmax.f32 %v5176, %v5360
        %v5771 = vmax.f32 %v5177, %v5361
        %v5772 = vmax.f32 %v5178, %v5362
        %v5773 = vmax.f32 %v5179, %v5363
        %v5774 = vmax.f32 %v5180, %v5364
        %v5775 = vmax.f32 %v5181, %v5365
        %v5776 = vmax.f32 %v5182, %v5366
        %v5777 = vmax.f32 %v5183, %v5367
        %v5778 = vmax.f32 %v5184, %v5368
        %v5779 = vmax.f32 %v5185, %v5369
        %v5780 = vmax.f32 %v5186, %v5370
        %v5781 = vmax.f32 %v5187, %v5371
        %v5782 = vmax.f32 %v5188, %v5372
        %v5783 = vmax.f32 %v5189, %v5373
        %v5784 = vmax.f32 %v5526, %v5720
        %v5785 = vmax.f32 %v5527, %v5721
        %v5786 = vmax.f32 %v5528, %v5722
        %v5787 = vmax.f32 %v5529, %v5723
        %v5788 = vmax.f32 %v5530, %v5724
        %v5789 = vmax.f32 %v5531, %v5725
        %v5790 = vmax.f32 %v5532, %v5726
        %v5791 = vmax.f32 %v5533, %v5727
        %v5792 = vmax.f32 %v5534, %v5728
        %v5793 = vmax.f32 %v5535, %v5729
        %v5794 = vmax.f32 %v5536, %v5730
        %v5795 = vmax.f32 %v5537, %v5731
        %v5796 = vmax.f32 %v5538, %v5732
        %v5797 = vmax.f32 %v5539, %v5733
        %v5798 = vmax.f32 %v5540, %v5734
        %v5799 = vmax.f32 %v5541, %v5735
        %v5800 = vmax.f32 %v5542, %v5736
        %v5801 = vmax.f32 %v5543, %v5737
        %v5802 = vmax.f32 %v5544, %v5738
        %v5803 = vmax.f32 %v5545, %v5739
        %v5804 = vmax.f32 %v5546, %v5740
        %v5805 = vmax.f32 %v5547, %v5741
        %v5806 = vmax.f32 %v5548, %v5742
        %v5807 = vmax.f32 %v5549, %v5743
        %v5808 = vmax.f32 %v5550, %v5744
        %v5809 = vmax.f32 %v5551, %v5745
        %v5810 = vmax.f32 %v5552, %v5746
        %v5811 = vmax.f32 %v5553, %v5747
        %v5812 = vmax.f32 %v5554, %v5748
        %v5813 = vmax.f32 %v5555, %v5749
        %v5814 = vmax.f32 %v5556, %v5750
        %v5815 = vmax.f32 %v5557, %v5751
        %v5816 = vmax.f32 %v5752, %v5756
        %v5817 = vmax.f32 %v5753, %v5757
        %v5818 = vmax.f32 %v5754, %v5758
        %v5819 = vmax.f32 %v5755, %v5759
        %v5820 = vmax.f32 %v5760, %v5764
        %v5821 = vmax.f32 %v5761, %v5765
        %v5822 = vmax.f32 %v5762, %v5766
        %v5823 = vmax.f32 %v5763, %v5767
        %v5824 = vmax.f32 %v5768, %v5772
        %v5825 = vmax.f32 %v5769, %v5773
        %v5826 = vmax.f32 %v5770, %v5774
        %v5827 = vmax.f32 %v5771, %v5775
        %v5828 = vmax.f32 %v5776, %v5780
        %v5829 = vmax.f32 %v5777, %v5781
        %v5830 = vmax.f32 %v5778, %v5782
        %v5831 = vmax.f32 %v5779, %v5783
        %v5832 = vmax.f32 %v5784, %v5788
        %v5833 = vmax.f32 %v5785, %v5789
        %v5834 = vmax.f32 %v5786, %v5790
        %v5835 = vmax.f32 %v5787, %v5791
        %v5836 = vmax.f32 %v5792, %v5796
        %v5837 = vmax.f32 %v5793, %v5797
        %v5838 = vmax.f32 %v5794, %v5798
        %v5839 = vmax.f32 %v5795, %v5799
        %v5840 = vmax.f32 %v5800, %v5804
        %v5841 = vmax.f32 %v5801, %v5805
        %v5842 = vmax.f32 %v5802, %v5806
        %v5843 = vmax.f32 %v5803, %v5807
        %v5844 = vmax.f32 %v5808, %v5812
        %v5845 = vmax.f32 %v5809, %v5813
        %v5846 = vmax.f32 %v5810, %v5814
        %v5847 = vmax.f32 %v5811, %v5815
        %v5848 = vld [vmem:[%s4] sm:$0xf]
        %v5850 = vperm.slane %v5848, 0
        %v5851 = vperm.slane %v5848, 1
        %v5852 = vperm.slane %v5848, 2
        %v5853 = vperm.slane %v5848, 3
        %v5858 = vadd.f32 %v5816, %v5850
        %v5859 = vadd.f32 %v5817, %v5851
        %v5860 = vadd.f32 %v5818, %v5852
        %v5861 = vadd.f32 %v5819, %v5853
        %v5862 = vadd.f32 %v5820, %v5850
        %v5863 = vadd.f32 %v5821, %v5851
        %v5864 = vadd.f32 %v5822, %v5852
        %v5865 = vadd.f32 %v5823, %v5853
        %v5866 = vadd.f32 %v5824, %v5850
        %v5867 = vadd.f32 %v5825, %v5851
        %v5868 = vadd.f32 %v5826, %v5852
        %v5869 = vadd.f32 %v5827, %v5853
        %v5870 = vadd.f32 %v5828, %v5850
        %v5871 = vadd.f32 %v5829, %v5851
        %v5872 = vadd.f32 %v5830, %v5852
        %v5873 = vadd.f32 %v5831, %v5853
        %v5874 = vmax.f32 %v5858, 0.0
        %v5875 = vmax.f32 %v5859, 0.0
        %v5876 = vmax.f32 %v5860, 0.0
        %v5877 = vmax.f32 %v5861, 0.0
        %v5878 = vmax.f32 %v5862, 0.0
        %v5879 = vmax.f32 %v5863, 0.0
        %v5880 = vmax.f32 %v5864, 0.0
        %v5881 = vmax.f32 %v5865, 0.0
        %v5882 = vmax.f32 %v5866, 0.0
        %v5883 = vmax.f32 %v5867, 0.0
        %v5884 = vmax.f32 %v5868, 0.0
        %v5885 = vmax.f32 %v5869, 0.0
        %v5886 = vmax.f32 %v5870, 0.0
        %v5887 = vmax.f32 %v5871, 0.0
        %v5888 = vmax.f32 %v5872, 0.0
        %v5889 = vmax.f32 %v5873, 0.0
        %v5890 = vadd.f32 %v5832, %v5850
        %v5891 = vadd.f32 %v5833, %v5851
        %v5892 = vadd.f32 %v5834, %v5852
        %v5893 = vadd.f32 %v5835, %v5853
        %v5894 = vadd.f32 %v5836, %v5850
        %v5895 = vadd.f32 %v5837, %v5851
        %v5896 = vadd.f32 %v5838, %v5852
        %v5897 = vadd.f32 %v5839, %v5853
        %v5898 = vadd.f32 %v5840, %v5850
        %v5899 = vadd.f32 %v5841, %v5851
        %v5900 = vadd.f32 %v5842, %v5852
        %v5901 = vadd.f32 %v5843, %v5853
        %v5902 = vadd.f32 %v5844, %v5850
        %v5903 = vadd.f32 %v5845, %v5851
        %v5904 = vadd.f32 %v5846, %v5852
        %v5905 = vadd.f32 %v5847, %v5853
        %v5906 = vmax.f32 %v5890, 0.0
        %v5907 = vmax.f32 %v5891, 0.0
        %v5908 = vmax.f32 %v5892, 0.0
        %v5909 = vmax.f32 %v5893, 0.0
        %v5910 = vmax.f32 %v5894, 0.0
        %v5911 = vmax.f32 %v5895, 0.0
        %v5912 = vmax.f32 %v5896, 0.0
        %v5913 = vmax.f32 %v5897, 0.0
        %v5914 = vmax.f32 %v5898, 0.0
        %v5915 = vmax.f32 %v5899, 0.0
        %v5916 = vmax.f32 %v5900, 0.0
        %v5917 = vmax.f32 %v5901, 0.0
        %v5918 = vmax.f32 %v5902, 0.0
        %v5919 = vmax.f32 %v5903, 0.0
        %v5920 = vmax.f32 %v5904, 0.0
        %v5921 = vmax.f32 %v5905, 0.0
        %v5922 = vpack.c.bf16 %v5875, %v5874
        %v5923 = vpack.c.bf16 %v5877, %v5876
        %v5924 = vpack.c.bf16 %v5879, %v5878
        %v5925 = vpack.c.bf16 %v5881, %v5880
        %v5926 = vpack.c.bf16 %v5883, %v5882
        %v5927 = vpack.c.bf16 %v5885, %v5884
        %v5928 = vpack.c.bf16 %v5887, %v5886
        %v5929 = vpack.c.bf16 %v5889, %v5888
        %v5930 = vpack.c.bf16 %v5907, %v5906
        %v5931 = vpack.c.bf16 %v5909, %v5908
        %v5932 = vpack.c.bf16 %v5911, %v5910
        %v5933 = vpack.c.bf16 %v5913, %v5912
        %v5934 = vpack.c.bf16 %v5915, %v5914
        %v5935 = vpack.c.bf16 %v5917, %v5916
        %v5936 = vpack.c.bf16 %v5919, %v5918
        %v5937 = vpack.c.bf16 %v5921, %v5920
        %5938 = vst [vmem:[#allocation2] sm:$0x33] 0
        %5939 = vst [vmem:[#allocation2 + $0x8] sm:$0x33] 0
        %vm5948 = vcmask 1041408
        %vm5949 = vcmask 1045508
        %vm5950 = vmor %vm5948, %vm5949
        %v5951 = vrot.slane %v5930, 6
        %v5952 = vrot.slane %v5931, 6
        %v5953 = vrot.slane %v5951, 4
        %v5954 = vrot.slane %v5932, 6
        %v5955 = vsel %vm5950, %v5953, %v5954
        %v5956 = vrot.slane %v5952, 4
        %v5957 = vrot.slane %v5933, 6
        %v5958 = vsel %vm5950, %v5956, %v5957
        %v5959 = vrot.slane %v5954, 4
        %v5960 = vrot.slane %v5934, 6
        %v5961 = vsel %vm5950, %v5959, %v5960
        %v5962 = vrot.slane %v5957, 4
        %v5963 = vrot.slane %v5935, 6
        %v5964 = vsel %vm5950, %v5962, %v5963
        %v5965 = vrot.slane %v5960, 4
        %v5966 = vrot.slane %v5936, 6
        %v5967 = vsel %vm5950, %v5965, %v5966
        %v5968 = vrot.slane %v5963, 4
        %v5969 = vrot.slane %v5937, 6
        %v5970 = vsel %vm5950, %v5968, %v5969
        %v5971 = vrot.slane %v5966, 4
        %v5972 = vrot.slane %v5969, 4
        %5983 = vst [vmem:[#allocation2] sm:$0xcc] %v5951
        %5984 = vst [vmem:[#allocation2 + $0x8] sm:$0xcc] %v5952
        %5985 = vst [vmem:[#allocation2 + $0x10] sm:$0xff] %v5955
        %5986 = vst [vmem:[#allocation2 + $0x18] sm:$0xff] %v5958
        %5987 = vst [vmem:[#allocation2 + $0x20] sm:$0xff] %v5961
        %5988 = vst [vmem:[#allocation2 + $0x28] sm:$0xff] %v5964
        %5989 = vst [vmem:[#allocation2 + $0x30] sm:$0xff] %v5967
        %5990 = vst [vmem:[#allocation2 + $0x38] sm:$0xff] %v5970
        %5991 = vst [vmem:[#allocation2 + $0x40] sm:$0x33] %v5971
        %5992 = vst [vmem:[#allocation2 + $0x48] sm:$0x33] %v5972
        %5993 = vst [vmem:[#allocation3] sm:$0xff] %v5922
        %5994 = vst [vmem:[#allocation3 + $0x8] sm:$0xff] %v5923
        %5995 = vst [vmem:[#allocation3 + $0x10] sm:$0xff] %v5924
        %5996 = vst [vmem:[#allocation3 + $0x18] sm:$0xff] %v5925
        %5997 = vst [vmem:[#allocation3 + $0x20] sm:$0xff] %v5926
        %5998 = vst [vmem:[#allocation3 + $0x28] sm:$0xff] %v5927
        %5999 = vst [vmem:[#allocation3 + $0x30] sm:$0xff] %v5928
        %6000 = vst [vmem:[#allocation3 + $0x38] sm:$0xff] %v5929
        %6001 = vst [vmem:[#allocation3 + $0x40] sm:$0x33] 0
        %6002 = vst [vmem:[#allocation3 + $0x48] sm:$0x33] 0
        %v6003 = vld [vmem:[#allocation2] sm:$0xff]
        %v6004 = vld [vmem:[#allocation2 + $0x8] sm:$0xff]
        %v6005 = vld [vmem:[#allocation2 + $0x10] sm:$0xff]
        %v6006 = vld [vmem:[#allocation2 + $0x18] sm:$0xff]
        %v6007 = vld [vmem:[#allocation2 + $0x20] sm:$0xff]
        %v6008 = vld [vmem:[#allocation2 + $0x28] sm:$0xff]
        %v6009 = vld [vmem:[#allocation2 + $0x30] sm:$0xff]
        %v6010 = vld [vmem:[#allocation2 + $0x38] sm:$0xff]
        %v6011 = vld [vmem:[#allocation3] sm:$0xcc]
        %v6012 = vld [vmem:[#allocation3 + $0x8] sm:$0xcc]
        %v6013 = vld [vmem:[#allocation3 + $0x10] sm:$0xff]
        %v6014 = vld [vmem:[#allocation3 + $0x18] sm:$0xff]
        %v6015 = vld [vmem:[#allocation3 + $0x20] sm:$0xff]
        %v6016 = vld [vmem:[#allocation3 + $0x28] sm:$0xff]
        %v6017 = vld [vmem:[#allocation3 + $0x30] sm:$0xff]
        %v6018 = vld [vmem:[#allocation3 + $0x38] sm:$0xff]
        %v6019 = vld [vmem:[#allocation3 + $0x40] sm:$0x33]
        %v6020 = vld [vmem:[#allocation3 + $0x48] sm:$0x33]
        %v6021 = vld [vmem:[#allocation4] sm:$0xff]
        %v6022 = vld [vmem:[#allocation4 + $0x8] sm:$0xff]
        %v6023 = vld [vmem:[#allocation4 + $0x10] sm:$0xff]
        %v6024 = vld [vmem:[#allocation4 + $0x18] sm:$0xff]
        %v6025 = vld [vmem:[#allocation4 + $0x20] sm:$0xff]
        %v6026 = vld [vmem:[#allocation4 + $0x28] sm:$0xff]
        %v6027 = vld [vmem:[#allocation4 + $0x30] sm:$0xff]
        %v6028 = vld [vmem:[#allocation4 + $0x38] sm:$0xff]
        %v6029 = vld [vmem:[#allocation4 + $0x40] sm:$0xff]
        %v6030 = vld [vmem:[#allocation4 + $0x48] sm:$0xff]
        %v6031 = vld [vmem:[#allocation4 + $0x50] sm:$0xff]
        %v6032 = vld [vmem:[#allocation4 + $0x58] sm:$0xff]
        %v6033 = vld [vmem:[#allocation4 + $0x60] sm:$0xff]
        %v6034 = vld [vmem:[#allocation4 + $0x68] sm:$0xff]
        %v6035 = vld [vmem:[#allocation4 + $0x70] sm:$0xff]
        %v6036 = vld [vmem:[#allocation4 + $0x78] sm:$0xff]
        %v6037 = vld [vmem:[#allocation4 + $0x80] sm:$0xff]
        %v6038 = vld [vmem:[#allocation4 + $0x88] sm:$0xff]
        %v6039 = vld [vmem:[#allocation4 + $0x90] sm:$0xff]
        %v6040 = vld [vmem:[#allocation4 + $0x98] sm:$0xff]
        %v6041 = vld [vmem:[#allocation4 + $0xa0] sm:$0xff]
        %v6042 = vld [vmem:[#allocation4 + $0xa8] sm:$0xff]
        %v6043 = vld [vmem:[#allocation4 + $0xb0] sm:$0xff]
        %v6044 = vld [vmem:[#allocation4 + $0xb8] sm:$0xff]
        %v6045 = vld [vmem:[#allocation4 + $0xc0] sm:$0xff]
        %v6046 = vld [vmem:[#allocation4 + $0xc8] sm:$0xff]
        %v6047 = vld [vmem:[#allocation4 + $0xd0] sm:$0xff]
        %v6048 = vld [vmem:[#allocation4 + $0xd8] sm:$0xff]
        %v6049 = vld [vmem:[#allocation4 + $0xe0] sm:$0xff]
        %v6050 = vld [vmem:[#allocation4 + $0xe8] sm:$0xff]
        %v6051 = vld [vmem:[#allocation4 + $0xf0] sm:$0xff]
        %v6052 = vld [vmem:[#allocation4 + $0xf8] sm:$0xff]
        %v6053 = vld [vmem:[#allocation4 + $0x100] sm:$0xff]
        %v6054 = vld [vmem:[#allocation4 + $0x108] sm:$0xff]
        %v6055 = vld [vmem:[#allocation4 + $0x110] sm:$0xff]
        %v6056 = vld [vmem:[#allocation4 + $0x118] sm:$0xff]
        %v6057 = vld [vmem:[#allocation4 + $0x120] sm:$0xff]
        %v6058 = vld [vmem:[#allocation4 + $0x128] sm:$0xff]
        %v6059 = vld [vmem:[#allocation4 + $0x130] sm:$0xff]
        %v6060 = vld [vmem:[#allocation4 + $0x138] sm:$0xff]
        %v6061 = vld [vmem:[#allocation4 + $0x140] sm:$0xff]
        %v6062 = vld [vmem:[#allocation4 + $0x148] sm:$0xff]
        %v6063 = vld [vmem:[#allocation4 + $0x150] sm:$0xff]
        %v6064 = vld [vmem:[#allocation4 + $0x158] sm:$0xff]
        %v6065 = vld [vmem:[#allocation4 + $0x160] sm:$0xff]
        %v6066 = vld [vmem:[#allocation4 + $0x168] sm:$0xff]
        %v6067 = vld [vmem:[#allocation4 + $0x170] sm:$0xff]
        %v6068 = vld [vmem:[#allocation4 + $0x178] sm:$0xff]
        %v6069 = vld [vmem:[#allocation4 + $0x180] sm:$0xff]
        %v6070 = vld [vmem:[#allocation4 + $0x188] sm:$0xff]
        %v6071 = vld [vmem:[#allocation4 + $0x190] sm:$0xff]
        %v6072 = vld [vmem:[#allocation4 + $0x198] sm:$0xff]
        %v6073 = vld [vmem:[#allocation4 + $0x1a0] sm:$0xff]
        %v6074 = vld [vmem:[#allocation4 + $0x1a8] sm:$0xff]
        %v6075 = vld [vmem:[#allocation4 + $0x1b0] sm:$0xff]
        %v6076 = vld [vmem:[#allocation4 + $0x1b8] sm:$0xff]
        %v6077 = vld [vmem:[#allocation4 + $0x1c0] sm:$0xff]
        %v6078 = vld [vmem:[#allocation4 + $0x1c8] sm:$0xff]
        %v6079 = vld [vmem:[#allocation4 + $0x1d0] sm:$0xff]
        %v6080 = vld [vmem:[#allocation4 + $0x1d8] sm:$0xff]
        %v6081 = vld [vmem:[#allocation4 + $0x1e0] sm:$0xff]
        %v6082 = vld [vmem:[#allocation4 + $0x1e8] sm:$0xff]
        %v6083 = vld [vmem:[#allocation4 + $0x1f0] sm:$0xff]
        %v6084 = vld [vmem:[#allocation4 + $0x1f8] sm:$0xff]
        %s6085 = scalar_lea.vmem [#allocation4], 512
        %v6086 = vld [vmem:[%s6085] sm:$0xff]
        %v6087 = vld [vmem:[%s6085 + $0x8] sm:$0xff]
        %v6088 = vld [vmem:[%s6085 + $0x10] sm:$0xff]
        %v6089 = vld [vmem:[%s6085 + $0x18] sm:$0xff]
        %v6090 = vld [vmem:[%s6085 + $0x20] sm:$0xff]
        %v6091 = vld [vmem:[%s6085 + $0x28] sm:$0xff]
        %v6092 = vld [vmem:[%s6085 + $0x30] sm:$0xff]
        %v6093 = vld [vmem:[%s6085 + $0x38] sm:$0xff]
        %v6094 = vld [vmem:[%s6085 + $0x40] sm:$0xff]
        %v6095 = vld [vmem:[%s6085 + $0x48] sm:$0xff]
        %v6096 = vld [vmem:[%s6085 + $0x50] sm:$0xff]
        %v6097 = vld [vmem:[%s6085 + $0x58] sm:$0xff]
        %v6098 = vld [vmem:[%s6085 + $0x60] sm:$0xff]
        %v6099 = vld [vmem:[%s6085 + $0x68] sm:$0xff]
        %v6100 = vld [vmem:[%s6085 + $0x70] sm:$0xff]
        %v6101 = vld [vmem:[%s6085 + $0x78] sm:$0xff]
        %v6102 = vld [vmem:[%s6085 + $0x80] sm:$0xff]
        %v6103 = vld [vmem:[%s6085 + $0x88] sm:$0xff]
        %v6104 = vld [vmem:[%s6085 + $0x90] sm:$0xff]
        %v6105 = vld [vmem:[%s6085 + $0x98] sm:$0xff]
        %v6106 = vld [vmem:[%s6085 + $0xa0] sm:$0xff]
        %v6107 = vld [vmem:[%s6085 + $0xa8] sm:$0xff]
        %v6108 = vld [vmem:[%s6085 + $0xb0] sm:$0xff]
        %v6109 = vld [vmem:[%s6085 + $0xb8] sm:$0xff]
        %v6110 = vld [vmem:[%s6085 + $0xc0] sm:$0xff]
        %v6111 = vld [vmem:[%s6085 + $0xc8] sm:$0xff]
        %v6112 = vld [vmem:[%s6085 + $0xd0] sm:$0xff]
        %v6113 = vld [vmem:[%s6085 + $0xd8] sm:$0xff]
        %v6114 = vld [vmem:[%s6085 + $0xe0] sm:$0xff]
        %v6115 = vld [vmem:[%s6085 + $0xe8] sm:$0xff]
        %v6116 = vld [vmem:[%s6085 + $0xf0] sm:$0xff]
        %v6117 = vld [vmem:[%s6085 + $0xf8] sm:$0xff]
        %v6118 = vld [vmem:[%s6085 + $0x100] sm:$0xff]
        %v6119 = vld [vmem:[%s6085 + $0x108] sm:$0xff]
        %v6120 = vld [vmem:[%s6085 + $0x110] sm:$0xff]
        %v6121 = vld [vmem:[%s6085 + $0x118] sm:$0xff]
        %v6122 = vld [vmem:[%s6085 + $0x120] sm:$0xff]
        %v6123 = vld [vmem:[%s6085 + $0x128] sm:$0xff]
        %v6124 = vld [vmem:[%s6085 + $0x130] sm:$0xff]
        %v6125 = vld [vmem:[%s6085 + $0x138] sm:$0xff]
        %v6126 = vld [vmem:[%s6085 + $0x140] sm:$0xff]
        %v6127 = vld [vmem:[%s6085 + $0x148] sm:$0xff]
        %v6128 = vld [vmem:[%s6085 + $0x150] sm:$0xff]
        %v6129 = vld [vmem:[%s6085 + $0x158] sm:$0xff]
        %v6130 = vld [vmem:[%s6085 + $0x160] sm:$0xff]
        %v6131 = vld [vmem:[%s6085 + $0x168] sm:$0xff]
        %v6132 = vld [vmem:[%s6085 + $0x170] sm:$0xff]
        %v6133 = vld [vmem:[%s6085 + $0x178] sm:$0xff]
        %v6134 = vld [vmem:[%s6085 + $0x180] sm:$0xff]
        %v6135 = vld [vmem:[%s6085 + $0x188] sm:$0xff]
        %v6136 = vld [vmem:[%s6085 + $0x190] sm:$0xff]
        %v6137 = vld [vmem:[%s6085 + $0x198] sm:$0xff]
        %v6138 = vld [vmem:[%s6085 + $0x1a0] sm:$0xff]
        %v6139 = vld [vmem:[%s6085 + $0x1a8] sm:$0xff]
        %v6140 = vld [vmem:[%s6085 + $0x1b0] sm:$0xff]
        %v6141 = vld [vmem:[%s6085 + $0x1b8] sm:$0xff]
        %v6142 = vld [vmem:[%s6085 + $0x1c0] sm:$0xff]
        %v6143 = vld [vmem:[%s6085 + $0x1c8] sm:$0xff]
        %v6144 = vld [vmem:[%s6085 + $0x1d0] sm:$0xff]
        %v6145 = vld [vmem:[%s6085 + $0x1d8] sm:$0xff]
        %v6146 = vld [vmem:[%s6085 + $0x1e0] sm:$0xff]
        %v6147 = vld [vmem:[%s6085 + $0x1e8] sm:$0xff]
        %v6148 = vld [vmem:[%s6085 + $0x1f0] sm:$0xff]
        %v6149 = vld [vmem:[%s6085 + $0x1f8] sm:$0xff]
        %v6158 = vunpack.c.l.b16 %v5922
        %v6159 = vunpack.c.h.b16 %v5922
        %v6160 = vunpack.c.l.b16 %v5923
        %v6161 = vunpack.c.h.b16 %v5923
        %v6162 = vunpack.c.l.b16 %v5924
        %v6163 = vunpack.c.h.b16 %v5924
        %v6164 = vunpack.c.l.b16 %v5925
        %v6165 = vunpack.c.h.b16 %v5925
        %v6166 = vunpack.c.l.b16 %v5926
        %v6167 = vunpack.c.h.b16 %v5926
        %v6168 = vunpack.c.l.b16 %v5927
        %v6169 = vunpack.c.h.b16 %v5927
        %v6170 = vunpack.c.l.b16 %v5928
        %v6171 = vunpack.c.h.b16 %v5928
        %v6172 = vunpack.c.l.b16 %v5929
        %v6173 = vunpack.c.h.b16 %v5929
        %v6174 = vpack.c.b16 %v6162, %v6158
        %v6175 = vpack.c.b16 %v6163, %v6159
        %v6176 = vpack.c.b16 %v6164, %v6160
        %v6177 = vpack.c.b16 %v6165, %v6161
        %v6178 = vpack.c.b16 %v6170, %v6166
        %v6179 = vpack.c.b16 %v6171, %v6167
        %v6180 = vpack.c.b16 %v6172, %v6168
        %v6181 = vpack.c.b16 %v6173, %v6169
        %v6254 = vunpack.c.l.b16 %v6086
        %v6255 = vunpack.c.h.b16 %v6086
        %v6256 = vunpack.c.l.b16 %v6087
        %v6257 = vunpack.c.h.b16 %v6087
        %v6258 = vunpack.c.l.b16 %v6088
        %v6259 = vunpack.c.h.b16 %v6088
        %v6260 = vunpack.c.l.b16 %v6089
        %v6261 = vunpack.c.h.b16 %v6089
        %v6262 = vunpack.c.l.b16 %v6090
        %v6263 = vunpack.c.h.b16 %v6090
        %v6264 = vunpack.c.l.b16 %v6091
        %v6265 = vunpack.c.h.b16 %v6091
        %v6266 = vunpack.c.l.b16 %v6092
        %v6267 = vunpack.c.h.b16 %v6092
        %v6268 = vunpack.c.l.b16 %v6093
        %v6269 = vunpack.c.h.b16 %v6093
        %v6270 = vunpack.c.l.b16 %v6094
        %v6271 = vunpack.c.h.b16 %v6094
        %v6272 = vunpack.c.l.b16 %v6095
        %v6273 = vunpack.c.h.b16 %v6095
        %v6274 = vunpack.c.l.b16 %v6096
        %v6275 = vunpack.c.h.b16 %v6096
        %v6276 = vunpack.c.l.b16 %v6097
        %v6277 = vunpack.c.h.b16 %v6097
        %v6278 = vunpack.c.l.b16 %v6098
        %v6279 = vunpack.c.h.b16 %v6098
        %v6280 = vunpack.c.l.b16 %v6099
        %v6281 = vunpack.c.h.b16 %v6099
        %v6282 = vunpack.c.l.b16 %v6100
        %v6283 = vunpack.c.h.b16 %v6100
        %v6284 = vunpack.c.l.b16 %v6101
        %v6285 = vunpack.c.h.b16 %v6101
        %v6286 = vunpack.c.l.b16 %v6102
        %v6287 = vunpack.c.h.b16 %v6102
        %v6288 = vunpack.c.l.b16 %v6103
        %v6289 = vunpack.c.h.b16 %v6103
        %v6290 = vunpack.c.l.b16 %v6104
        %v6291 = vunpack.c.h.b16 %v6104
        %v6292 = vunpack.c.l.b16 %v6105
        %v6293 = vunpack.c.h.b16 %v6105
        %v6294 = vunpack.c.l.b16 %v6106
        %v6295 = vunpack.c.h.b16 %v6106
        %v6296 = vunpack.c.l.b16 %v6107
        %v6297 = vunpack.c.h.b16 %v6107
        %v6298 = vunpack.c.l.b16 %v6108
        %v6299 = vunpack.c.h.b16 %v6108
        %v6300 = vunpack.c.l.b16 %v6109
        %v6301 = vunpack.c.h.b16 %v6109
        %v6302 = vunpack.c.l.b16 %v6110
        %v6303 = vunpack.c.h.b16 %v6110
        %v6304 = vunpack.c.l.b16 %v6111
        %v6305 = vunpack.c.h.b16 %v6111
        %v6306 = vunpack.c.l.b16 %v6112
        %v6307 = vunpack.c.h.b16 %v6112
        %v6308 = vunpack.c.l.b16 %v6113
        %v6309 = vunpack.c.h.b16 %v6113
        %v6310 = vunpack.c.l.b16 %v6114
        %v6311 = vunpack.c.h.b16 %v6114
        %v6312 = vunpack.c.l.b16 %v6115
        %v6313 = vunpack.c.h.b16 %v6115
        %v6314 = vunpack.c.l.b16 %v6116
        %v6315 = vunpack.c.h.b16 %v6116
        %v6316 = vunpack.c.l.b16 %v6117
        %v6317 = vunpack.c.h.b16 %v6117
        %v6318 = vunpack.c.l.b16 %v6118
        %v6319 = vunpack.c.h.b16 %v6118
        %v6320 = vunpack.c.l.b16 %v6119
        %v6321 = vunpack.c.h.b16 %v6119
        %v6322 = vunpack.c.l.b16 %v6120
        %v6323 = vunpack.c.h.b16 %v6120
        %v6324 = vunpack.c.l.b16 %v6121
        %v6325 = vunpack.c.h.b16 %v6121
        %v6326 = vunpack.c.l.b16 %v6122
        %v6327 = vunpack.c.h.b16 %v6122
        %v6328 = vunpack.c.l.b16 %v6123
        %v6329 = vunpack.c.h.b16 %v6123
        %v6330 = vunpack.c.l.b16 %v6124
        %v6331 = vunpack.c.h.b16 %v6124
        %v6332 = vunpack.c.l.b16 %v6125
        %v6333 = vunpack.c.h.b16 %v6125
        %v6334 = vunpack.c.l.b16 %v6126
        %v6335 = vunpack.c.h.b16 %v6126
        %v6336 = vunpack.c.l.b16 %v6127
        %v6337 = vunpack.c.h.b16 %v6127
        %v6338 = vunpack.c.l.b16 %v6128
        %v6339 = vunpack.c.h.b16 %v6128
        %v6340 = vunpack.c.l.b16 %v6129
        %v6341 = vunpack.c.h.b16 %v6129
        %v6342 = vunpack.c.l.b16 %v6130
        %v6343 = vunpack.c.h.b16 %v6130
        %v6344 = vunpack.c.l.b16 %v6131
        %v6345 = vunpack.c.h.b16 %v6131
        %v6346 = vunpack.c.l.b16 %v6132
        %v6347 = vunpack.c.h.b16 %v6132
        %v6348 = vunpack.c.l.b16 %v6133
        %v6349 = vunpack.c.h.b16 %v6133
        %v6350 = vunpack.c.l.b16 %v6134
        %v6351 = vunpack.c.h.b16 %v6134
        %v6352 = vunpack.c.l.b16 %v6135
        %v6353 = vunpack.c.h.b16 %v6135
        %v6354 = vunpack.c.l.b16 %v6136
        %v6355 = vunpack.c.h.b16 %v6136
        %v6356 = vunpack.c.l.b16 %v6137
        %v6357 = vunpack.c.h.b16 %v6137
        %v6358 = vunpack.c.l.b16 %v6138
        %v6359 = vunpack.c.h.b16 %v6138
        %v6360 = vunpack.c.l.b16 %v6139
        %v6361 = vunpack.c.h.b16 %v6139
        %v6362 = vunpack.c.l.b16 %v6140
        %v6363 = vunpack.c.h.b16 %v6140
        %v6364 = vunpack.c.l.b16 %v6141
        %v6365 = vunpack.c.h.b16 %v6141
        %v6366 = vunpack.c.l.b16 %v6142
        %v6367 = vunpack.c.h.b16 %v6142
        %v6368 = vunpack.c.l.b16 %v6143
        %v6369 = vunpack.c.h.b16 %v6143
        %v6370 = vunpack.c.l.b16 %v6144
        %v6371 = vunpack.c.h.b16 %v6144
        %v6372 = vunpack.c.l.b16 %v6145
        %v6373 = vunpack.c.h.b16 %v6145
        %v6374 = vunpack.c.l.b16 %v6146
        %v6375 = vunpack.c.h.b16 %v6146
        %v6376 = vunpack.c.l.b16 %v6147
        %v6377 = vunpack.c.h.b16 %v6147
        %v6378 = vunpack.c.l.b16 %v6148
        %v6379 = vunpack.c.h.b16 %v6148
        %v6380 = vunpack.c.l.b16 %v6149
        %v6381 = vunpack.c.h.b16 %v6149
        %v6382 = vpack.c.b16 %v6256, %v6254
        %v6383 = vpack.c.b16 %v6257, %v6255
        %v6384 = vpack.c.b16 %v6260, %v6258
        %v6385 = vpack.c.b16 %v6261, %v6259
        %v6386 = vpack.c.b16 %v6264, %v6262
        %v6387 = vpack.c.b16 %v6265, %v6263
        %v6388 = vpack.c.b16 %v6268, %v6266
        %v6389 = vpack.c.b16 %v6269, %v6267
        %v6390 = vpack.c.b16 %v6272, %v6270
        %v6391 = vpack.c.b16 %v6273, %v6271
        %v6392 = vpack.c.b16 %v6276, %v6274
        %v6393 = vpack.c.b16 %v6277, %v6275
        %v6394 = vpack.c.b16 %v6280, %v6278
        %v6395 = vpack.c.b16 %v6281, %v6279
        %v6396 = vpack.c.b16 %v6284, %v6282
        %v6397 = vpack.c.b16 %v6285, %v6283
        %v6398 = vpack.c.b16 %v6288, %v6286
        %v6399 = vpack.c.b16 %v6289, %v6287
        %v6400 = vpack.c.b16 %v6292, %v6290
        %v6401 = vpack.c.b16 %v6293, %v6291
        %v6402 = vpack.c.b16 %v6296, %v6294
        %v6403 = vpack.c.b16 %v6297, %v6295
        %v6404 = vpack.c.b16 %v6300, %v6298
        %v6405 = vpack.c.b16 %v6301, %v6299
        %v6406 = vpack.c.b16 %v6304, %v6302
        %v6407 = vpack.c.b16 %v6305, %v6303
        %v6408 = vpack.c.b16 %v6308, %v6306
        %v6409 = vpack.c.b16 %v6309, %v6307
        %v6410 = vpack.c.b16 %v6312, %v6310
        %v6411 = vpack.c.b16 %v6313, %v6311
        %v6412 = vpack.c.b16 %v6316, %v6314
        %v6413 = vpack.c.b16 %v6317, %v6315
        %v6414 = vpack.c.b16 %v6320, %v6318
        %v6415 = vpack.c.b16 %v6321, %v6319
        %v6416 = vpack.c.b16 %v6324, %v6322
        %v6417 = vpack.c.b16 %v6325, %v6323
        %v6418 = vpack.c.b16 %v6328, %v6326
        %v6419 = vpack.c.b16 %v6329, %v6327
        %v6420 = vpack.c.b16 %v6332, %v6330
        %v6421 = vpack.c.b16 %v6333, %v6331
        %v6422 = vpack.c.b16 %v6336, %v6334
        %v6423 = vpack.c.b16 %v6337, %v6335
        %v6424 = vpack.c.b16 %v6340, %v6338
        %v6425 = vpack.c.b16 %v6341, %v6339
        %v6426 = vpack.c.b16 %v6344, %v6342
        %v6427 = vpack.c.b16 %v6345, %v6343
        %v6428 = vpack.c.b16 %v6348, %v6346
        %v6429 = vpack.c.b16 %v6349, %v6347
        %v6430 = vpack.c.b16 %v6352, %v6350
        %v6431 = vpack.c.b16 %v6353, %v6351
        %v6432 = vpack.c.b16 %v6356, %v6354
        %v6433 = vpack.c.b16 %v6357, %v6355
        %v6434 = vpack.c.b16 %v6360, %v6358
        %v6435 = vpack.c.b16 %v6361, %v6359
        %v6436 = vpack.c.b16 %v6364, %v6362
        %v6437 = vpack.c.b16 %v6365, %v6363
        %v6438 = vpack.c.b16 %v6368, %v6366
        %v6439 = vpack.c.b16 %v6369, %v6367
        %v6440 = vpack.c.b16 %v6372, %v6370
        %v6441 = vpack.c.b16 %v6373, %v6371
        %v6442 = vpack.c.b16 %v6376, %v6374
        %v6443 = vpack.c.b16 %v6377, %v6375
        %v6444 = vpack.c.b16 %v6380, %v6378
        %v6445 = vpack.c.b16 %v6381, %v6379
        %6510 = vmatpush.bf16.msra.mxu0 %v6396
        %6511 = vmatpush.bf16.msra.mxu0 %v6394
        %6512 = vmatpush.bf16.msra.mxu0 %v6392
        %6513 = vmatpush.bf16.msra.mxu0 %v6390
        %6514 = vmatpush.bf16.msra.mxu0 %v6388
        %6515 = vmatpush.bf16.msra.mxu0 %v6386
        %6516 = vmatpush.bf16.msra.mxu0 %v6384
        %6517 = vmatpush.bf16.msra.mxu0 %v6382
        %6518 = vmatmul.bf16.gmra.mxu0 %v6174
        %v6519 = vpop.f32.mrf.mxu0
        %v6520 = vadd.f32 0.0, %v6519
        %v6521 = vpop.f32.mrf.mxu0
        %v6522 = vadd.f32 0.0, %v6521
        %6523 = vmatmul.bf16.gmra.mxu0 %v6178
        %v6524 = vpop.f32.mrf.mxu0
        %v6525 = vadd.f32 0.0, %v6524
        %v6526 = vpop.f32.mrf.mxu0
        %v6527 = vadd.f32 0.0, %v6526
        %6528 = vdwg.mxu0
        %6529 = vmatpush.bf16.msra.mxu0 %v6412
        %6530 = vmatpush.bf16.msra.mxu0 %v6410
        %6531 = vmatpush.bf16.msra.mxu0 %v6408
        %6532 = vmatpush.bf16.msra.mxu0 %v6406
        %6533 = vmatpush.bf16.msra.mxu0 %v6404
        %6534 = vmatpush.bf16.msra.mxu0 %v6402
        %6535 = vmatpush.bf16.msra.mxu0 %v6400
        %6536 = vmatpush.bf16.msra.mxu0 %v6398
        %6537 = vmatmul.bf16.gmra.mxu0 %v6175
        %v6538 = vpop.f32.mrf.mxu0
        %v6539 = vadd.f32 %v6520, %v6538
        %v6540 = vpop.f32.mrf.mxu0
        %v6541 = vadd.f32 %v6522, %v6540
        %6542 = vmatmul.bf16.gmra.mxu0 %v6179
        %v6543 = vpop.f32.mrf.mxu0
        %v6544 = vadd.f32 %v6525, %v6543
        %v6545 = vpop.f32.mrf.mxu0
        %v6546 = vadd.f32 %v6527, %v6545
        %6547 = vdwg.mxu0
        %6548 = vmatpush.bf16.msra.mxu0 %v6428
        %6549 = vmatpush.bf16.msra.mxu0 %v6426
        %6550 = vmatpush.bf16.msra.mxu0 %v6424
        %6551 = vmatpush.bf16.msra.mxu0 %v6422
        %6552 = vmatpush.bf16.msra.mxu0 %v6420
        %6553 = vmatpush.bf16.msra.mxu0 %v6418
        %6554 = vmatpush.bf16.msra.mxu0 %v6416
        %6555 = vmatpush.bf16.msra.mxu0 %v6414
        %6556 = vmatmul.bf16.gmra.mxu0 %v6176
        %v6557 = vpop.f32.mrf.mxu0
        %v6558 = vadd.f32 %v6539, %v6557
        %v6559 = vpop.f32.mrf.mxu0
        %v6560 = vadd.f32 %v6541, %v6559
        %6561 = vmatmul.bf16.gmra.mxu0 %v6180
        %v6562 = vpop.f32.mrf.mxu0
        %v6563 = vadd.f32 %v6544, %v6562
        %v6564 = vpop.f32.mrf.mxu0
        %v6565 = vadd.f32 %v6546, %v6564
        %6566 = vdwg.mxu0
        %6567 = vmatpush.bf16.msra.mxu0 %v6444
        %6568 = vmatpush.bf16.msra.mxu0 %v6442
        %6569 = vmatpush.bf16.msra.mxu0 %v6440
        %6570 = vmatpush.bf16.msra.mxu0 %v6438
        %6571 = vmatpush.bf16.msra.mxu0 %v6436
        %6572 = vmatpush.bf16.msra.mxu0 %v6434
        %6573 = vmatpush.bf16.msra.mxu0 %v6432
        %6574 = vmatpush.bf16.msra.mxu0 %v6430
        %6575 = vmatmul.bf16.gmra.mxu0 %v6177
        %v6576 = vpop.f32.mrf.mxu0
        %v6577 = vadd.f32 %v6558, %v6576
        %v6578 = vpop.f32.mrf.mxu0
        %v6579 = vadd.f32 %v6560, %v6578
        %6580 = vmatmul.bf16.gmra.mxu0 %v6181
        %v6581 = vpop.f32.mrf.mxu0
        %v6582 = vadd.f32 %v6563, %v6581
        %v6583 = vpop.f32.mrf.mxu0
        %v6584 = vadd.f32 %v6565, %v6583
        %6585 = vdwg.mxu0
        %6586 = vmatpush.bf16.msra.mxu0 %v6397
        %6587 = vmatpush.bf16.msra.mxu0 %v6395
        %6588 = vmatpush.bf16.msra.mxu0 %v6393
        %6589 = vmatpush.bf16.msra.mxu0 %v6391
        %6590 = vmatpush.bf16.msra.mxu0 %v6389
        %6591 = vmatpush.bf16.msra.mxu0 %v6387
        %6592 = vmatpush.bf16.msra.mxu0 %v6385
        %6593 = vmatpush.bf16.msra.mxu0 %v6383
        %6594 = vmatmul.bf16.gmra.mxu0 %v6174
        %v6595 = vpop.f32.mrf.mxu0
        %v6596 = vadd.f32 0.0, %v6595
        %v6597 = vpop.f32.mrf.mxu0
        %v6598 = vadd.f32 0.0, %v6597
        %6599 = vmatmul.bf16.gmra.mxu0 %v6178
        %v6600 = vpop.f32.mrf.mxu0
        %v6601 = vadd.f32 0.0, %v6600
        %v6602 = vpop.f32.mrf.mxu0
        %v6603 = vadd.f32 0.0, %v6602
        %6604 = vdwg.mxu0
        %6605 = vmatpush.bf16.msra.mxu0 %v6413
        %6606 = vmatpush.bf16.msra.mxu0 %v6411
        %6607 = vmatpush.bf16.msra.mxu0 %v6409
        %6608 = vmatpush.bf16.msra.mxu0 %v6407
        %6609 = vmatpush.bf16.msra.mxu0 %v6405
        %6610 = vmatpush.bf16.msra.mxu0 %v6403
        %6611 = vmatpush.bf16.msra.mxu0 %v6401
        %6612 = vmatpush.bf16.msra.mxu0 %v6399
        %6613 = vmatmul.bf16.gmra.mxu0 %v6175
        %v6614 = vpop.f32.mrf.mxu0
        %v6615 = vadd.f32 %v6596, %v6614
        %v6616 = vpop.f32.mrf.mxu0
        %v6617 = vadd.f32 %v6598, %v6616
        %6618 = vmatmul.bf16.gmra.mxu0 %v6179
        %v6619 = vpop.f32.mrf.mxu0
        %v6620 = vadd.f32 %v6601, %v6619
        %v6621 = vpop.f32.mrf.mxu0
        %v6622 = vadd.f32 %v6603, %v6621
        %6623 = vdwg.mxu0
        %6624 = vmatpush.bf16.msra.mxu0 %v6429
        %6625 = vmatpush.bf16.msra.mxu0 %v6427
        %6626 = vmatpush.bf16.msra.mxu0 %v6425
        %6627 = vmatpush.bf16.msra.mxu0 %v6423
        %6628 = vmatpush.bf16.msra.mxu0 %v6421
        %6629 = vmatpush.bf16.msra.mxu0 %v6419
        %6630 = vmatpush.bf16.msra.mxu0 %v6417
        %6631 = vmatpush.bf16.msra.mxu0 %v6415
        %6632 = vmatmul.bf16.gmra.mxu0 %v6176
        %v6633 = vpop.f32.mrf.mxu0
        %v6634 = vadd.f32 %v6615, %v6633
        %v6635 = vpop.f32.mrf.mxu0
        %v6636 = vadd.f32 %v6617, %v6635
        %6637 = vmatmul.bf16.gmra.mxu0 %v6180
        %v6638 = vpop.f32.mrf.mxu0
        %v6639 = vadd.f32 %v6620, %v6638
        %v6640 = vpop.f32.mrf.mxu0
        %v6641 = vadd.f32 %v6622, %v6640
        %6642 = vdwg.mxu0
        %6643 = vmatpush.bf16.msra.mxu0 %v6445
        %6644 = vmatpush.bf16.msra.mxu0 %v6443
        %6645 = vmatpush.bf16.msra.mxu0 %v6441
        %6646 = vmatpush.bf16.msra.mxu0 %v6439
        %6647 = vmatpush.bf16.msra.mxu0 %v6437
        %6648 = vmatpush.bf16.msra.mxu0 %v6435
        %6649 = vmatpush.bf16.msra.mxu0 %v6433
        %6650 = vmatpush.bf16.msra.mxu0 %v6431
        %6651 = vmatmul.bf16.gmra.mxu0 %v6177
        %v6652 = vpop.f32.mrf.mxu0
        %v6653 = vadd.f32 %v6634, %v6652
        %v6654 = vpop.f32.mrf.mxu0
        %v6655 = vadd.f32 %v6636, %v6654
        %6656 = vmatmul.bf16.gmra.mxu0 %v6181
        %v6657 = vpop.f32.mrf.mxu0
        %v6658 = vadd.f32 %v6639, %v6657
        %v6659 = vpop.f32.mrf.mxu0
        %v6660 = vadd.f32 %v6641, %v6659
        %6661 = vdwg.mxu0
        %v6670 = vunpack.c.l.b16 %v6003
        %v6671 = vunpack.c.h.b16 %v6003
        %v6672 = vunpack.c.l.b16 %v6004
        %v6673 = vunpack.c.h.b16 %v6004
        %v6674 = vunpack.c.l.b16 %v6005
        %v6675 = vunpack.c.h.b16 %v6005
        %v6676 = vunpack.c.l.b16 %v6006
        %v6677 = vunpack.c.h.b16 %v6006
        %v6678 = vunpack.c.l.b16 %v6007
        %v6679 = vunpack.c.h.b16 %v6007
        %v6680 = vunpack.c.l.b16 %v6008
        %v6681 = vunpack.c.h.b16 %v6008
        %v6682 = vunpack.c.l.b16 %v6009
        %v6683 = vunpack.c.h.b16 %v6009
        %v6684 = vunpack.c.l.b16 %v6010
        %v6685 = vunpack.c.h.b16 %v6010
        %v6686 = vpack.c.b16 %v6674, %v6670
        %v6687 = vpack.c.b16 %v6675, %v6671
        %v6688 = vpack.c.b16 %v6676, %v6672
        %v6689 = vpack.c.b16 %v6677, %v6673
        %v6690 = vpack.c.b16 %v6682, %v6678
        %v6691 = vpack.c.b16 %v6683, %v6679
        %v6692 = vpack.c.b16 %v6684, %v6680
        %v6693 = vpack.c.b16 %v6685, %v6681
        %v6766 = vunpack.c.l.b16 %v6021
        %v6767 = vunpack.c.h.b16 %v6021
        %v6768 = vunpack.c.l.b16 %v6022
        %v6769 = vunpack.c.h.b16 %v6022
        %v6770 = vunpack.c.l.b16 %v6023
        %v6771 = vunpack.c.h.b16 %v6023
        %v6772 = vunpack.c.l.b16 %v6024
        %v6773 = vunpack.c.h.b16 %v6024
        %v6774 = vunpack.c.l.b16 %v6025
        %v6775 = vunpack.c.h.b16 %v6025
        %v6776 = vunpack.c.l.b16 %v6026
        %v6777 = vunpack.c.h.b16 %v6026
        %v6778 = vunpack.c.l.b16 %v6027
        %v6779 = vunpack.c.h.b16 %v6027
        %v6780 = vunpack.c.l.b16 %v6028
        %v6781 = vunpack.c.h.b16 %v6028
        %v6782 = vunpack.c.l.b16 %v6029
        %v6783 = vunpack.c.h.b16 %v6029
        %v6784 = vunpack.c.l.b16 %v6030
        %v6785 = vunpack.c.h.b16 %v6030
        %v6786 = vunpack.c.l.b16 %v6031
        %v6787 = vunpack.c.h.b16 %v6031
        %v6788 = vunpack.c.l.b16 %v6032
        %v6789 = vunpack.c.h.b16 %v6032
        %v6790 = vunpack.c.l.b16 %v6033
        %v6791 = vunpack.c.h.b16 %v6033
        %v6792 = vunpack.c.l.b16 %v6034
        %v6793 = vunpack.c.h.b16 %v6034
        %v6794 = vunpack.c.l.b16 %v6035
        %v6795 = vunpack.c.h.b16 %v6035
        %v6796 = vunpack.c.l.b16 %v6036
        %v6797 = vunpack.c.h.b16 %v6036
        %v6798 = vunpack.c.l.b16 %v6037
        %v6799 = vunpack.c.h.b16 %v6037
        %v6800 = vunpack.c.l.b16 %v6038
        %v6801 = vunpack.c.h.b16 %v6038
        %v6802 = vunpack.c.l.b16 %v6039
        %v6803 = vunpack.c.h.b16 %v6039
        %v6804 = vunpack.c.l.b16 %v6040
        %v6805 = vunpack.c.h.b16 %v6040
        %v6806 = vunpack.c.l.b16 %v6041
        %v6807 = vunpack.c.h.b16 %v6041
        %v6808 = vunpack.c.l.b16 %v6042
        %v6809 = vunpack.c.h.b16 %v6042
        %v6810 = vunpack.c.l.b16 %v6043
        %v6811 = vunpack.c.h.b16 %v6043
        %v6812 = vunpack.c.l.b16 %v6044
        %v6813 = vunpack.c.h.b16 %v6044
        %v6814 = vunpack.c.l.b16 %v6045
        %v6815 = vunpack.c.h.b16 %v6045
        %v6816 = vunpack.c.l.b16 %v6046
        %v6817 = vunpack.c.h.b16 %v6046
        %v6818 = vunpack.c.l.b16 %v6047
        %v6819 = vunpack.c.h.b16 %v6047
        %v6820 = vunpack.c.l.b16 %v6048
        %v6821 = vunpack.c.h.b16 %v6048
        %v6822 = vunpack.c.l.b16 %v6049
        %v6823 = vunpack.c.h.b16 %v6049
        %v6824 = vunpack.c.l.b16 %v6050
        %v6825 = vunpack.c.h.b16 %v6050
        %v6826 = vunpack.c.l.b16 %v6051
        %v6827 = vunpack.c.h.b16 %v6051
        %v6828 = vunpack.c.l.b16 %v6052
        %v6829 = vunpack.c.h.b16 %v6052
        %v6830 = vunpack.c.l.b16 %v6053
        %v6831 = vunpack.c.h.b16 %v6053
        %v6832 = vunpack.c.l.b16 %v6054
        %v6833 = vunpack.c.h.b16 %v6054
        %v6834 = vunpack.c.l.b16 %v6055
        %v6835 = vunpack.c.h.b16 %v6055
        %v6836 = vunpack.c.l.b16 %v6056
        %v6837 = vunpack.c.h.b16 %v6056
        %v6838 = vunpack.c.l.b16 %v6057
        %v6839 = vunpack.c.h.b16 %v6057
        %v6840 = vunpack.c.l.b16 %v6058
        %v6841 = vunpack.c.h.b16 %v6058
        %v6842 = vunpack.c.l.b16 %v6059
        %v6843 = vunpack.c.h.b16 %v6059
        %v6844 = vunpack.c.l.b16 %v6060
        %v6845 = vunpack.c.h.b16 %v6060
        %v6846 = vunpack.c.l.b16 %v6061
        %v6847 = vunpack.c.h.b16 %v6061
        %v6848 = vunpack.c.l.b16 %v6062
        %v6849 = vunpack.c.h.b16 %v6062
        %v6850 = vunpack.c.l.b16 %v6063
        %v6851 = vunpack.c.h.b16 %v6063
        %v6852 = vunpack.c.l.b16 %v6064
        %v6853 = vunpack.c.h.b16 %v6064
        %v6854 = vunpack.c.l.b16 %v6065
        %v6855 = vunpack.c.h.b16 %v6065
        %v6856 = vunpack.c.l.b16 %v6066
        %v6857 = vunpack.c.h.b16 %v6066
        %v6858 = vunpack.c.l.b16 %v6067
        %v6859 = vunpack.c.h.b16 %v6067
        %v6860 = vunpack.c.l.b16 %v6068
        %v6861 = vunpack.c.h.b16 %v6068
        %v6862 = vunpack.c.l.b16 %v6069
        %v6863 = vunpack.c.h.b16 %v6069
        %v6864 = vunpack.c.l.b16 %v6070
        %v6865 = vunpack.c.h.b16 %v6070
        %v6866 = vunpack.c.l.b16 %v6071
        %v6867 = vunpack.c.h.b16 %v6071
        %v6868 = vunpack.c.l.b16 %v6072
        %v6869 = vunpack.c.h.b16 %v6072
        %v6870 = vunpack.c.l.b16 %v6073
        %v6871 = vunpack.c.h.b16 %v6073
        %v6872 = vunpack.c.l.b16 %v6074
        %v6873 = vunpack.c.h.b16 %v6074
        %v6874 = vunpack.c.l.b16 %v6075
        %v6875 = vunpack.c.h.b16 %v6075
        %v6876 = vunpack.c.l.b16 %v6076
        %v6877 = vunpack.c.h.b16 %v6076
        %v6878 = vunpack.c.l.b16 %v6077
        %v6879 = vunpack.c.h.b16 %v6077
        %v6880 = vunpack.c.l.b16 %v6078
        %v6881 = vunpack.c.h.b16 %v6078
        %v6882 = vunpack.c.l.b16 %v6079
        %v6883 = vunpack.c.h.b16 %v6079
        %v6884 = vunpack.c.l.b16 %v6080
        %v6885 = vunpack.c.h.b16 %v6080
        %v6886 = vunpack.c.l.b16 %v6081
        %v6887 = vunpack.c.h.b16 %v6081
        %v6888 = vunpack.c.l.b16 %v6082
        %v6889 = vunpack.c.h.b16 %v6082
        %v6890 = vunpack.c.l.b16 %v6083
        %v6891 = vunpack.c.h.b16 %v6083
        %v6892 = vunpack.c.l.b16 %v6084
        %v6893 = vunpack.c.h.b16 %v6084
        %v6894 = vpack.c.b16 %v6768, %v6766
        %v6895 = vpack.c.b16 %v6769, %v6767
        %v6896 = vpack.c.b16 %v6772, %v6770
        %v6897 = vpack.c.b16 %v6773, %v6771
        %v6898 = vpack.c.b16 %v6776, %v6774
        %v6899 = vpack.c.b16 %v6777, %v6775
        %v6900 = vpack.c.b16 %v6780, %v6778
        %v6901 = vpack.c.b16 %v6781, %v6779
        %v6902 = vpack.c.b16 %v6784, %v6782
        %v6903 = vpack.c.b16 %v6785, %v6783
        %v6904 = vpack.c.b16 %v6788, %v6786
        %v6905 = vpack.c.b16 %v6789, %v6787
        %v6906 = vpack.c.b16 %v6792, %v6790
        %v6907 = vpack.c.b16 %v6793, %v6791
        %v6908 = vpack.c.b16 %v6796, %v6794
        %v6909 = vpack.c.b16 %v6797, %v6795
        %v6910 = vpack.c.b16 %v6800, %v6798
        %v6911 = vpack.c.b16 %v6801, %v6799
        %v6912 = vpack.c.b16 %v6804, %v6802
        %v6913 = vpack.c.b16 %v6805, %v6803
        %v6914 = vpack.c.b16 %v6808, %v6806
        %v6915 = vpack.c.b16 %v6809, %v6807
        %v6916 = vpack.c.b16 %v6812, %v6810
        %v6917 = vpack.c.b16 %v6813, %v6811
        %v6918 = vpack.c.b16 %v6816, %v6814
        %v6919 = vpack.c.b16 %v6817, %v6815
        %v6920 = vpack.c.b16 %v6820, %v6818
        %v6921 = vpack.c.b16 %v6821, %v6819
        %v6922 = vpack.c.b16 %v6824, %v6822
        %v6923 = vpack.c.b16 %v6825, %v6823
        %v6924 = vpack.c.b16 %v6828, %v6826
        %v6925 = vpack.c.b16 %v6829, %v6827
        %v6926 = vpack.c.b16 %v6832, %v6830
        %v6927 = vpack.c.b16 %v6833, %v6831
        %v6928 = vpack.c.b16 %v6836, %v6834
        %v6929 = vpack.c.b16 %v6837, %v6835
        %v6930 = vpack.c.b16 %v6840, %v6838
        %v6931 = vpack.c.b16 %v6841, %v6839
        %v6932 = vpack.c.b16 %v6844, %v6842
        %v6933 = vpack.c.b16 %v6845, %v6843
        %v6934 = vpack.c.b16 %v6848, %v6846
        %v6935 = vpack.c.b16 %v6849, %v6847
        %v6936 = vpack.c.b16 %v6852, %v6850
        %v6937 = vpack.c.b16 %v6853, %v6851
        %v6938 = vpack.c.b16 %v6856, %v6854
        %v6939 = vpack.c.b16 %v6857, %v6855
        %v6940 = vpack.c.b16 %v6860, %v6858
        %v6941 = vpack.c.b16 %v6861, %v6859
        %v6942 = vpack.c.b16 %v6864, %v6862
        %v6943 = vpack.c.b16 %v6865, %v6863
        %v6944 = vpack.c.b16 %v6868, %v6866
        %v6945 = vpack.c.b16 %v6869, %v6867
        %v6946 = vpack.c.b16 %v6872, %v6870
        %v6947 = vpack.c.b16 %v6873, %v6871
        %v6948 = vpack.c.b16 %v6876, %v6874
        %v6949 = vpack.c.b16 %v6877, %v6875
        %v6950 = vpack.c.b16 %v6880, %v6878
        %v6951 = vpack.c.b16 %v6881, %v6879
        %v6952 = vpack.c.b16 %v6884, %v6882
        %v6953 = vpack.c.b16 %v6885, %v6883
        %v6954 = vpack.c.b16 %v6888, %v6886
        %v6955 = vpack.c.b16 %v6889, %v6887
        %v6956 = vpack.c.b16 %v6892, %v6890
        %v6957 = vpack.c.b16 %v6893, %v6891
        %7022 = vmatpush.bf16.msra.mxu0 %v6908
        %7023 = vmatpush.bf16.msra.mxu0 %v6906
        %7024 = vmatpush.bf16.msra.mxu0 %v6904
        %7025 = vmatpush.bf16.msra.mxu0 %v6902
        %7026 = vmatpush.bf16.msra.mxu0 %v6900
        %7027 = vmatpush.bf16.msra.mxu0 %v6898
        %7028 = vmatpush.bf16.msra.mxu0 %v6896
        %7029 = vmatpush.bf16.msra.mxu0 %v6894
        %7030 = vmatmul.bf16.gmra.mxu0 %v6686
        %v7031 = vpop.f32.mrf.mxu0
        %v7032 = vadd.f32 %v6577, %v7031
        %v7033 = vpop.f32.mrf.mxu0
        %v7034 = vadd.f32 %v6579, %v7033
        %7035 = vmatmul.bf16.gmra.mxu0 %v6690
        %v7036 = vpop.f32.mrf.mxu0
        %v7037 = vadd.f32 %v6582, %v7036
        %v7038 = vpop.f32.mrf.mxu0
        %v7039 = vadd.f32 %v6584, %v7038
        %7040 = vdwg.mxu0
        %7041 = vmatpush.bf16.msra.mxu0 %v6924
        %7042 = vmatpush.bf16.msra.mxu0 %v6922
        %7043 = vmatpush.bf16.msra.mxu0 %v6920
        %7044 = vmatpush.bf16.msra.mxu0 %v6918
        %7045 = vmatpush.bf16.msra.mxu0 %v6916
        %7046 = vmatpush.bf16.msra.mxu0 %v6914
        %7047 = vmatpush.bf16.msra.mxu0 %v6912
        %7048 = vmatpush.bf16.msra.mxu0 %v6910
        %7049 = vmatmul.bf16.gmra.mxu0 %v6687
        %v7050 = vpop.f32.mrf.mxu0
        %v7051 = vadd.f32 %v7032, %v7050
        %v7052 = vpop.f32.mrf.mxu0
        %v7053 = vadd.f32 %v7034, %v7052
        %7054 = vmatmul.bf16.gmra.mxu0 %v6691
        %v7055 = vpop.f32.mrf.mxu0
        %v7056 = vadd.f32 %v7037, %v7055
        %v7057 = vpop.f32.mrf.mxu0
        %v7058 = vadd.f32 %v7039, %v7057
        %7059 = vdwg.mxu0
        %7060 = vmatpush.bf16.msra.mxu0 %v6940
        %7061 = vmatpush.bf16.msra.mxu0 %v6938
        %7062 = vmatpush.bf16.msra.mxu0 %v6936
        %7063 = vmatpush.bf16.msra.mxu0 %v6934
        %7064 = vmatpush.bf16.msra.mxu0 %v6932
        %7065 = vmatpush.bf16.msra.mxu0 %v6930
        %7066 = vmatpush.bf16.msra.mxu0 %v6928
        %7067 = vmatpush.bf16.msra.mxu0 %v6926
        %7068 = vmatmul.bf16.gmra.mxu0 %v6688
        %v7069 = vpop.f32.mrf.mxu0
        %v7070 = vadd.f32 %v7051, %v7069
        %v7071 = vpop.f32.mrf.mxu0
        %v7072 = vadd.f32 %v7053, %v7071
        %7073 = vmatmul.bf16.gmra.mxu0 %v6692
        %v7074 = vpop.f32.mrf.mxu0
        %v7075 = vadd.f32 %v7056, %v7074
        %v7076 = vpop.f32.mrf.mxu0
        %v7077 = vadd.f32 %v7058, %v7076
        %7078 = vdwg.mxu0
        %7079 = vmatpush.bf16.msra.mxu0 %v6956
        %7080 = vmatpush.bf16.msra.mxu0 %v6954
        %7081 = vmatpush.bf16.msra.mxu0 %v6952
        %7082 = vmatpush.bf16.msra.mxu0 %v6950
        %7083 = vmatpush.bf16.msra.mxu0 %v6948
        %7084 = vmatpush.bf16.msra.mxu0 %v6946
        %7085 = vmatpush.bf16.msra.mxu0 %v6944
        %7086 = vmatpush.bf16.msra.mxu0 %v6942
        %7087 = vmatmul.bf16.gmra.mxu0 %v6689
        %v7088 = vpop.f32.mrf.mxu0
        %v7089 = vadd.f32 %v7070, %v7088
        %v7090 = vpop.f32.mrf.mxu0
        %v7091 = vadd.f32 %v7072, %v7090
        %7092 = vmatmul.bf16.gmra.mxu0 %v6693
        %v7093 = vpop.f32.mrf.mxu0
        %v7094 = vadd.f32 %v7075, %v7093
        %v7095 = vpop.f32.mrf.mxu0
        %v7096 = vadd.f32 %v7077, %v7095
        %7097 = vdwg.mxu0
        %7098 = vmatpush.bf16.msra.mxu0 %v6909
        %7099 = vmatpush.bf16.msra.mxu0 %v6907
        %7100 = vmatpush.bf16.msra.mxu0 %v6905
        %7101 = vmatpush.bf16.msra.mxu0 %v6903
        %7102 = vmatpush.bf16.msra.mxu0 %v6901
        %7103 = vmatpush.bf16.msra.mxu0 %v6899
        %7104 = vmatpush.bf16.msra.mxu0 %v6897
        %7105 = vmatpush.bf16.msra.mxu0 %v6895
        %7106 = vmatmul.bf16.gmra.mxu0 %v6686
        %v7107 = vpop.f32.mrf.mxu0
        %v7108 = vadd.f32 %v6653, %v7107
        %v7109 = vpop.f32.mrf.mxu0
        %v7110 = vadd.f32 %v6655, %v7109
        %7111 = vmatmul.bf16.gmra.mxu0 %v6690
        %v7112 = vpop.f32.mrf.mxu0
        %v7113 = vadd.f32 %v6658, %v7112
        %v7114 = vpop.f32.mrf.mxu0
        %v7115 = vadd.f32 %v6660, %v7114
        %7116 = vdwg.mxu0
        %7117 = vmatpush.bf16.msra.mxu0 %v6925
        %7118 = vmatpush.bf16.msra.mxu0 %v6923
        %7119 = vmatpush.bf16.msra.mxu0 %v6921
        %7120 = vmatpush.bf16.msra.mxu0 %v6919
        %7121 = vmatpush.bf16.msra.mxu0 %v6917
        %7122 = vmatpush.bf16.msra.mxu0 %v6915
        %7123 = vmatpush.bf16.msra.mxu0 %v6913
        %7124 = vmatpush.bf16.msra.mxu0 %v6911
        %7125 = vmatmul.bf16.gmra.mxu0 %v6687
        %v7126 = vpop.f32.mrf.mxu0
        %v7127 = vadd.f32 %v7108, %v7126
        %v7128 = vpop.f32.mrf.mxu0
        %v7129 = vadd.f32 %v7110, %v7128
        %7130 = vmatmul.bf16.gmra.mxu0 %v6691
        %v7131 = vpop.f32.mrf.mxu0
        %v7132 = vadd.f32 %v7113, %v7131
        %v7133 = vpop.f32.mrf.mxu0
        %v7134 = vadd.f32 %v7115, %v7133
        %7135 = vdwg.mxu0
        %7136 = vmatpush.bf16.msra.mxu0 %v6941
        %7137 = vmatpush.bf16.msra.mxu0 %v6939
        %7138 = vmatpush.bf16.msra.mxu0 %v6937
        %7139 = vmatpush.bf16.msra.mxu0 %v6935
        %7140 = vmatpush.bf16.msra.mxu0 %v6933
        %7141 = vmatpush.bf16.msra.mxu0 %v6931
        %7142 = vmatpush.bf16.msra.mxu0 %v6929
        %7143 = vmatpush.bf16.msra.mxu0 %v6927
        %7144 = vmatmul.bf16.gmra.mxu0 %v6688
        %v7145 = vpop.f32.mrf.mxu0
        %v7146 = vadd.f32 %v7127, %v7145
        %v7147 = vpop.f32.mrf.mxu0
        %v7148 = vadd.f32 %v7129, %v7147
        %7149 = vmatmul.bf16.gmra.mxu0 %v6692
        %v7150 = vpop.f32.mrf.mxu0
        %v7151 = vadd.f32 %v7132, %v7150
        %v7152 = vpop.f32.mrf.mxu0
        %v7153 = vadd.f32 %v7134, %v7152
        %7154 = vdwg.mxu0
        %7155 = vmatpush.bf16.msra.mxu0 %v6957
        %7156 = vmatpush.bf16.msra.mxu0 %v6955
        %7157 = vmatpush.bf16.msra.mxu0 %v6953
        %7158 = vmatpush.bf16.msra.mxu0 %v6951
        %7159 = vmatpush.bf16.msra.mxu0 %v6949
        %7160 = vmatpush.bf16.msra.mxu0 %v6947
        %7161 = vmatpush.bf16.msra.mxu0 %v6945
        %7162 = vmatpush.bf16.msra.mxu0 %v6943
        %7163 = vmatmul.bf16.gmra.mxu0 %v6689
        %v7164 = vpop.f32.mrf.mxu0
        %v7165 = vadd.f32 %v7146, %v7164
        %v7166 = vpop.f32.mrf.mxu0
        %v7167 = vadd.f32 %v7148, %v7166
        %7168 = vmatmul.bf16.gmra.mxu0 %v6693
        %v7169 = vpop.f32.mrf.mxu0
        %v7170 = vadd.f32 %v7151, %v7169
        %v7171 = vpop.f32.mrf.mxu0
        %v7172 = vadd.f32 %v7153, %v7171
        %7173 = vdwg.mxu0
        %v7174 = vunpack.c.l.b16 %v5930
        %v7175 = vunpack.c.h.b16 %v5930
        %v7176 = vunpack.c.l.b16 %v5931
        %v7177 = vunpack.c.h.b16 %v5931
        %v7178 = vunpack.c.l.b16 %v5932
        %v7179 = vunpack.c.h.b16 %v5932
        %v7180 = vunpack.c.l.b16 %v5933
        %v7181 = vunpack.c.h.b16 %v5933
        %v7182 = vunpack.c.l.b16 %v5934
        %v7183 = vunpack.c.h.b16 %v5934
        %v7184 = vunpack.c.l.b16 %v5935
        %v7185 = vunpack.c.h.b16 %v5935
        %v7186 = vunpack.c.l.b16 %v5936
        %v7187 = vunpack.c.h.b16 %v5936
        %v7188 = vunpack.c.l.b16 %v5937
        %v7189 = vunpack.c.h.b16 %v5937
        %v7190 = vpack.c.b16 %v7178, %v7174
        %v7191 = vpack.c.b16 %v7179, %v7175
        %v7192 = vpack.c.b16 %v7180, %v7176
        %v7193 = vpack.c.b16 %v7181, %v7177
        %v7194 = vpack.c.b16 %v7186, %v7182
        %v7195 = vpack.c.b16 %v7187, %v7183
        %v7196 = vpack.c.b16 %v7188, %v7184
        %v7197 = vpack.c.b16 %v7189, %v7185
        %7206 = vmatpush.bf16.msra.mxu0 %v6396
        %7207 = vmatpush.bf16.msra.mxu0 %v6394
        %7208 = vmatpush.bf16.msra.mxu0 %v6392
        %7209 = vmatpush.bf16.msra.mxu0 %v6390
        %7210 = vmatpush.bf16.msra.mxu0 %v6388
        %7211 = vmatpush.bf16.msra.mxu0 %v6386
        %7212 = vmatpush.bf16.msra.mxu0 %v6384
        %7213 = vmatpush.bf16.msra.mxu0 %v6382
        %7214 = vmatmul.bf16.gmra.mxu0 %v7190
        %v7215 = vpop.f32.mrf.mxu0
        %v7216 = vadd.f32 0.0, %v7215
        %v7217 = vpop.f32.mrf.mxu0
        %v7218 = vadd.f32 0.0, %v7217
        %7219 = vmatmul.bf16.gmra.mxu0 %v7194
        %v7220 = vpop.f32.mrf.mxu0
        %v7221 = vadd.f32 0.0, %v7220
        %v7222 = vpop.f32.mrf.mxu0
        %v7223 = vadd.f32 0.0, %v7222
        %7224 = vdwg.mxu0
        %7225 = vmatpush.bf16.msra.mxu0 %v6412
        %7226 = vmatpush.bf16.msra.mxu0 %v6410
        %7227 = vmatpush.bf16.msra.mxu0 %v6408
        %7228 = vmatpush.bf16.msra.mxu0 %v6406
        %7229 = vmatpush.bf16.msra.mxu0 %v6404
        %7230 = vmatpush.bf16.msra.mxu0 %v6402
        %7231 = vmatpush.bf16.msra.mxu0 %v6400
        %7232 = vmatpush.bf16.msra.mxu0 %v6398
        %7233 = vmatmul.bf16.gmra.mxu0 %v7191
        %v7234 = vpop.f32.mrf.mxu0
        %v7235 = vadd.f32 %v7216, %v7234
        %v7236 = vpop.f32.mrf.mxu0
        %v7237 = vadd.f32 %v7218, %v7236
        %7238 = vmatmul.bf16.gmra.mxu0 %v7195
        %v7239 = vpop.f32.mrf.mxu0
        %v7240 = vadd.f32 %v7221, %v7239
        %v7241 = vpop.f32.mrf.mxu0
        %v7242 = vadd.f32 %v7223, %v7241
        %7243 = vdwg.mxu0
        %7244 = vmatpush.bf16.msra.mxu0 %v6428
        %7245 = vmatpush.bf16.msra.mxu0 %v6426
        %7246 = vmatpush.bf16.msra.mxu0 %v6424
        %7247 = vmatpush.bf16.msra.mxu0 %v6422
        %7248 = vmatpush.bf16.msra.mxu0 %v6420
        %7249 = vmatpush.bf16.msra.mxu0 %v6418
        %7250 = vmatpush.bf16.msra.mxu0 %v6416
        %7251 = vmatpush.bf16.msra.mxu0 %v6414
        %7252 = vmatmul.bf16.gmra.mxu0 %v7192
        %v7253 = vpop.f32.mrf.mxu0
        %v7254 = vadd.f32 %v7235, %v7253
        %v7255 = vpop.f32.mrf.mxu0
        %v7256 = vadd.f32 %v7237, %v7255
        %7257 = vmatmul.bf16.gmra.mxu0 %v7196
        %v7258 = vpop.f32.mrf.mxu0
        %v7259 = vadd.f32 %v7240, %v7258
        %v7260 = vpop.f32.mrf.mxu0
        %v7261 = vadd.f32 %v7242, %v7260
        %7262 = vdwg.mxu0
        %7263 = vmatpush.bf16.msra.mxu0 %v6444
        %7264 = vmatpush.bf16.msra.mxu0 %v6442
        %7265 = vmatpush.bf16.msra.mxu0 %v6440
        %7266 = vmatpush.bf16.msra.mxu0 %v6438
        %7267 = vmatpush.bf16.msra.mxu0 %v6436
        %7268 = vmatpush.bf16.msra.mxu0 %v6434
        %7269 = vmatpush.bf16.msra.mxu0 %v6432
        %7270 = vmatpush.bf16.msra.mxu0 %v6430
        %7271 = vmatmul.bf16.gmra.mxu0 %v7193
        %v7272 = vpop.f32.mrf.mxu0
        %v7273 = vadd.f32 %v7254, %v7272
        %v7274 = vpop.f32.mrf.mxu0
        %v7275 = vadd.f32 %v7256, %v7274
        %7276 = vmatmul.bf16.gmra.mxu0 %v7197
        %v7277 = vpop.f32.mrf.mxu0
        %v7278 = vadd.f32 %v7259, %v7277
        %v7279 = vpop.f32.mrf.mxu0
        %v7280 = vadd.f32 %v7261, %v7279
        %7281 = vdwg.mxu0
        %7282 = vmatpush.bf16.msra.mxu0 %v6397
        %7283 = vmatpush.bf16.msra.mxu0 %v6395
        %7284 = vmatpush.bf16.msra.mxu0 %v6393
        %7285 = vmatpush.bf16.msra.mxu0 %v6391
        %7286 = vmatpush.bf16.msra.mxu0 %v6389
        %7287 = vmatpush.bf16.msra.mxu0 %v6387
        %7288 = vmatpush.bf16.msra.mxu0 %v6385
        %7289 = vmatpush.bf16.msra.mxu0 %v6383
        %7290 = vmatmul.bf16.gmra.mxu0 %v7190
        %v7291 = vpop.f32.mrf.mxu0
        %v7292 = vadd.f32 0.0, %v7291
        %v7293 = vpop.f32.mrf.mxu0
        %v7294 = vadd.f32 0.0, %v7293
        %7295 = vmatmul.bf16.gmra.mxu0 %v7194
        %v7296 = vpop.f32.mrf.mxu0
        %v7297 = vadd.f32 0.0, %v7296
        %v7298 = vpop.f32.mrf.mxu0
        %v7299 = vadd.f32 0.0, %v7298
        %7300 = vdwg.mxu0
        %7301 = vmatpush.bf16.msra.mxu0 %v6413
        %7302 = vmatpush.bf16.msra.mxu0 %v6411
        %7303 = vmatpush.bf16.msra.mxu0 %v6409
        %7304 = vmatpush.bf16.msra.mxu0 %v6407
        %7305 = vmatpush.bf16.msra.mxu0 %v6405
        %7306 = vmatpush.bf16.msra.mxu0 %v6403
        %7307 = vmatpush.bf16.msra.mxu0 %v6401
        %7308 = vmatpush.bf16.msra.mxu0 %v6399
        %7309 = vmatmul.bf16.gmra.mxu0 %v7191
        %v7310 = vpop.f32.mrf.mxu0
        %v7311 = vadd.f32 %v7292, %v7310
        %v7312 = vpop.f32.mrf.mxu0
        %v7313 = vadd.f32 %v7294, %v7312
        %7314 = vmatmul.bf16.gmra.mxu0 %v7195
        %v7315 = vpop.f32.mrf.mxu0
        %v7316 = vadd.f32 %v7297, %v7315
        %v7317 = vpop.f32.mrf.mxu0
        %v7318 = vadd.f32 %v7299, %v7317
        %7319 = vdwg.mxu0
        %7320 = vmatpush.bf16.msra.mxu0 %v6429
        %7321 = vmatpush.bf16.msra.mxu0 %v6427
        %7322 = vmatpush.bf16.msra.mxu0 %v6425
        %7323 = vmatpush.bf16.msra.mxu0 %v6423
        %7324 = vmatpush.bf16.msra.mxu0 %v6421
        %7325 = vmatpush.bf16.msra.mxu0 %v6419
        %7326 = vmatpush.bf16.msra.mxu0 %v6417
        %7327 = vmatpush.bf16.msra.mxu0 %v6415
        %7328 = vmatmul.bf16.gmra.mxu0 %v7192
        %v7329 = vpop.f32.mrf.mxu0
        %v7330 = vadd.f32 %v7311, %v7329
        %v7331 = vpop.f32.mrf.mxu0
        %v7332 = vadd.f32 %v7313, %v7331
        %7333 = vmatmul.bf16.gmra.mxu0 %v7196
        %v7334 = vpop.f32.mrf.mxu0
        %v7335 = vadd.f32 %v7316, %v7334
        %v7336 = vpop.f32.mrf.mxu0
        %v7337 = vadd.f32 %v7318, %v7336
        %7338 = vdwg.mxu0
        %7339 = vmatpush.bf16.msra.mxu0 %v6445
        %7340 = vmatpush.bf16.msra.mxu0 %v6443
        %7341 = vmatpush.bf16.msra.mxu0 %v6441
        %7342 = vmatpush.bf16.msra.mxu0 %v6439
        %7343 = vmatpush.bf16.msra.mxu0 %v6437
        %7344 = vmatpush.bf16.msra.mxu0 %v6435
        %7345 = vmatpush.bf16.msra.mxu0 %v6433
        %7346 = vmatpush.bf16.msra.mxu0 %v6431
        %7347 = vmatmul.bf16.gmra.mxu0 %v7193
        %v7348 = vpop.f32.mrf.mxu0
        %v7349 = vadd.f32 %v7330, %v7348
        %v7350 = vpop.f32.mrf.mxu0
        %v7351 = vadd.f32 %v7332, %v7350
        %7352 = vmatmul.bf16.gmra.mxu0 %v7197
        %v7353 = vpop.f32.mrf.mxu0
        %v7354 = vadd.f32 %v7335, %v7353
        %v7355 = vpop.f32.mrf.mxu0
        %v7356 = vadd.f32 %v7337, %v7355
        %7357 = vdwg.mxu0
        %7358 = vmatpush.bf16.msra.mxu0 %v6908
        %7359 = vmatpush.bf16.msra.mxu0 %v6906
        %7360 = vmatpush.bf16.msra.mxu0 %v6904
        %7361 = vmatpush.bf16.msra.mxu0 %v6902
        %7362 = vmatpush.bf16.msra.mxu0 %v6900
        %7363 = vmatpush.bf16.msra.mxu0 %v6898
        %7364 = vmatpush.bf16.msra.mxu0 %v6896
        %7365 = vmatpush.bf16.msra.mxu0 %v6894
        %7366 = vmatmul.bf16.gmra.mxu0 %v6174
        %v7367 = vpop.f32.mrf.mxu0
        %v7368 = vadd.f32 %v7273, %v7367
        %v7369 = vpop.f32.mrf.mxu0
        %v7370 = vadd.f32 %v7275, %v7369
        %7371 = vmatmul.bf16.gmra.mxu0 %v6178
        %v7372 = vpop.f32.mrf.mxu0
        %v7373 = vadd.f32 %v7278, %v7372
        %v7374 = vpop.f32.mrf.mxu0
        %v7375 = vadd.f32 %v7280, %v7374
        %7376 = vdwg.mxu0
        %7377 = vmatpush.bf16.msra.mxu0 %v6924
        %7378 = vmatpush.bf16.msra.mxu0 %v6922
        %7379 = vmatpush.bf16.msra.mxu0 %v6920
        %7380 = vmatpush.bf16.msra.mxu0 %v6918
        %7381 = vmatpush.bf16.msra.mxu0 %v6916
        %7382 = vmatpush.bf16.msra.mxu0 %v6914
        %7383 = vmatpush.bf16.msra.mxu0 %v6912
        %7384 = vmatpush.bf16.msra.mxu0 %v6910
        %7385 = vmatmul.bf16.gmra.mxu0 %v6175
        %v7386 = vpop.f32.mrf.mxu0
        %v7387 = vadd.f32 %v7368, %v7386
        %v7388 = vpop.f32.mrf.mxu0
        %v7389 = vadd.f32 %v7370, %v7388
        %7390 = vmatmul.bf16.gmra.mxu0 %v6179
        %v7391 = vpop.f32.mrf.mxu0
        %v7392 = vadd.f32 %v7373, %v7391
        %v7393 = vpop.f32.mrf.mxu0
        %v7394 = vadd.f32 %v7375, %v7393
        %7395 = vdwg.mxu0
        %7396 = vmatpush.bf16.msra.mxu0 %v6940
        %7397 = vmatpush.bf16.msra.mxu0 %v6938
        %7398 = vmatpush.bf16.msra.mxu0 %v6936
        %7399 = vmatpush.bf16.msra.mxu0 %v6934
        %7400 = vmatpush.bf16.msra.mxu0 %v6932
        %7401 = vmatpush.bf16.msra.mxu0 %v6930
        %7402 = vmatpush.bf16.msra.mxu0 %v6928
        %7403 = vmatpush.bf16.msra.mxu0 %v6926
        %7404 = vmatmul.bf16.gmra.mxu0 %v6176
        %v7405 = vpop.f32.mrf.mxu0
        %v7406 = vadd.f32 %v7387, %v7405
        %v7407 = vpop.f32.mrf.mxu0
        %v7408 = vadd.f32 %v7389, %v7407
        %7409 = vmatmul.bf16.gmra.mxu0 %v6180
        %v7410 = vpop.f32.mrf.mxu0
        %v7411 = vadd.f32 %v7392, %v7410
        %v7412 = vpop.f32.mrf.mxu0
        %v7413 = vadd.f32 %v7394, %v7412
        %7414 = vdwg.mxu0
        %7415 = vmatpush.bf16.msra.mxu0 %v6956
        %7416 = vmatpush.bf16.msra.mxu0 %v6954
        %7417 = vmatpush.bf16.msra.mxu0 %v6952
        %7418 = vmatpush.bf16.msra.mxu0 %v6950
        %7419 = vmatpush.bf16.msra.mxu0 %v6948
        %7420 = vmatpush.bf16.msra.mxu0 %v6946
        %7421 = vmatpush.bf16.msra.mxu0 %v6944
        %7422 = vmatpush.bf16.msra.mxu0 %v6942
        %7423 = vmatmul.bf16.gmra.mxu0 %v6177
        %v7424 = vpop.f32.mrf.mxu0
        %v7425 = vadd.f32 %v7406, %v7424
        %v7426 = vpop.f32.mrf.mxu0
        %v7427 = vadd.f32 %v7408, %v7426
        %7428 = vmatmul.bf16.gmra.mxu0 %v6181
        %v7429 = vpop.f32.mrf.mxu0
        %v7430 = vadd.f32 %v7411, %v7429
        %v7431 = vpop.f32.mrf.mxu0
        %v7432 = vadd.f32 %v7413, %v7431
        %7433 = vdwg.mxu0
        %7434 = vmatpush.bf16.msra.mxu0 %v6909
        %7435 = vmatpush.bf16.msra.mxu0 %v6907
        %7436 = vmatpush.bf16.msra.mxu0 %v6905
        %7437 = vmatpush.bf16.msra.mxu0 %v6903
        %7438 = vmatpush.bf16.msra.mxu0 %v6901
        %7439 = vmatpush.bf16.msra.mxu0 %v6899
        %7440 = vmatpush.bf16.msra.mxu0 %v6897
        %7441 = vmatpush.bf16.msra.mxu0 %v6895
        %7442 = vmatmul.bf16.gmra.mxu0 %v6174
        %v7443 = vpop.f32.mrf.mxu0
        %v7444 = vadd.f32 %v7349, %v7443
        %v7445 = vpop.f32.mrf.mxu0
        %v7446 = vadd.f32 %v7351, %v7445
        %7447 = vmatmul.bf16.gmra.mxu0 %v6178
        %v7448 = vpop.f32.mrf.mxu0
        %v7449 = vadd.f32 %v7354, %v7448
        %v7450 = vpop.f32.mrf.mxu0
        %v7451 = vadd.f32 %v7356, %v7450
        %7452 = vdwg.mxu0
        %7453 = vmatpush.bf16.msra.mxu0 %v6925
        %7454 = vmatpush.bf16.msra.mxu0 %v6923
        %7455 = vmatpush.bf16.msra.mxu0 %v6921
        %7456 = vmatpush.bf16.msra.mxu0 %v6919
        %7457 = vmatpush.bf16.msra.mxu0 %v6917
        %7458 = vmatpush.bf16.msra.mxu0 %v6915
        %7459 = vmatpush.bf16.msra.mxu0 %v6913
        %7460 = vmatpush.bf16.msra.mxu0 %v6911
        %7461 = vmatmul.bf16.gmra.mxu0 %v6175
        %v7462 = vpop.f32.mrf.mxu0
        %v7463 = vadd.f32 %v7444, %v7462
        %v7464 = vpop.f32.mrf.mxu0
        %v7465 = vadd.f32 %v7446, %v7464
        %7466 = vmatmul.bf16.gmra.mxu0 %v6179
        %v7467 = vpop.f32.mrf.mxu0
        %v7468 = vadd.f32 %v7449, %v7467
        %v7469 = vpop.f32.mrf.mxu0
        %v7470 = vadd.f32 %v7451, %v7469
        %7471 = vdwg.mxu0
        %7472 = vmatpush.bf16.msra.mxu0 %v6941
        %7473 = vmatpush.bf16.msra.mxu0 %v6939
        %7474 = vmatpush.bf16.msra.mxu0 %v6937
        %7475 = vmatpush.bf16.msra.mxu0 %v6935
        %7476 = vmatpush.bf16.msra.mxu0 %v6933
        %7477 = vmatpush.bf16.msra.mxu0 %v6931
        %7478 = vmatpush.bf16.msra.mxu0 %v6929
        %7479 = vmatpush.bf16.msra.mxu0 %v6927
        %7480 = vmatmul.bf16.gmra.mxu0 %v6176
        %v7481 = vpop.f32.mrf.mxu0
        %v7482 = vadd.f32 %v7463, %v7481
        %v7483 = vpop.f32.mrf.mxu0
        %v7484 = vadd.f32 %v7465, %v7483
        %7485 = vmatmul.bf16.gmra.mxu0 %v6180
        %v7486 = vpop.f32.mrf.mxu0
        %v7487 = vadd.f32 %v7468, %v7486
        %v7488 = vpop.f32.mrf.mxu0
        %v7489 = vadd.f32 %v7470, %v7488
        %7490 = vdwg.mxu0
        %7491 = vmatpush.bf16.msra.mxu0 %v6957
        %7492 = vmatpush.bf16.msra.mxu0 %v6955
        %7493 = vmatpush.bf16.msra.mxu0 %v6953
        %7494 = vmatpush.bf16.msra.mxu0 %v6951
        %7495 = vmatpush.bf16.msra.mxu0 %v6949
        %7496 = vmatpush.bf16.msra.mxu0 %v6947
        %7497 = vmatpush.bf16.msra.mxu0 %v6945
        %7498 = vmatpush.bf16.msra.mxu0 %v6943
        %7499 = vmatmul.bf16.gmra.mxu0 %v6177
        %v7500 = vpop.f32.mrf.mxu0
        %v7501 = vadd.f32 %v7482, %v7500
        %v7502 = vpop.f32.mrf.mxu0
        %v7503 = vadd.f32 %v7484, %v7502
        %7504 = vmatmul.bf16.gmra.mxu0 %v6181
        %v7505 = vpop.f32.mrf.mxu0
        %v7506 = vadd.f32 %v7487, %v7505
        %v7507 = vpop.f32.mrf.mxu0
        %v7508 = vadd.f32 %v7489, %v7507
        %7509 = vdwg.mxu0
        %s7510 = scalar_lea.vmem [#allocation4], 1024
        %v7511 = vld [vmem:[%s7510] sm:$0xff]
        %v7512 = vld [vmem:[%s7510 + $0x8] sm:$0xff]
        %v7513 = vld [vmem:[%s7510 + $0x10] sm:$0xff]
        %v7514 = vld [vmem:[%s7510 + $0x18] sm:$0xff]
        %v7515 = vld [vmem:[%s7510 + $0x20] sm:$0xff]
        %v7516 = vld [vmem:[%s7510 + $0x28] sm:$0xff]
        %v7517 = vld [vmem:[%s7510 + $0x30] sm:$0xff]
        %v7518 = vld [vmem:[%s7510 + $0x38] sm:$0xff]
        %v7519 = vld [vmem:[%s7510 + $0x40] sm:$0xff]
        %v7520 = vld [vmem:[%s7510 + $0x48] sm:$0xff]
        %v7521 = vld [vmem:[%s7510 + $0x50] sm:$0xff]
        %v7522 = vld [vmem:[%s7510 + $0x58] sm:$0xff]
        %v7523 = vld [vmem:[%s7510 + $0x60] sm:$0xff]
        %v7524 = vld [vmem:[%s7510 + $0x68] sm:$0xff]
        %v7525 = vld [vmem:[%s7510 + $0x70] sm:$0xff]
        %v7526 = vld [vmem:[%s7510 + $0x78] sm:$0xff]
        %v7527 = vld [vmem:[%s7510 + $0x80] sm:$0xff]
        %v7528 = vld [vmem:[%s7510 + $0x88] sm:$0xff]
        %v7529 = vld [vmem:[%s7510 + $0x90] sm:$0xff]
        %v7530 = vld [vmem:[%s7510 + $0x98] sm:$0xff]
        %v7531 = vld [vmem:[%s7510 + $0xa0] sm:$0xff]
        %v7532 = vld [vmem:[%s7510 + $0xa8] sm:$0xff]
        %v7533 = vld [vmem:[%s7510 + $0xb0] sm:$0xff]
        %v7534 = vld [vmem:[%s7510 + $0xb8] sm:$0xff]
        %v7535 = vld [vmem:[%s7510 + $0xc0] sm:$0xff]
        %v7536 = vld [vmem:[%s7510 + $0xc8] sm:$0xff]
        %v7537 = vld [vmem:[%s7510 + $0xd0] sm:$0xff]
        %v7538 = vld [vmem:[%s7510 + $0xd8] sm:$0xff]
        %v7539 = vld [vmem:[%s7510 + $0xe0] sm:$0xff]
        %v7540 = vld [vmem:[%s7510 + $0xe8] sm:$0xff]
        %v7541 = vld [vmem:[%s7510 + $0xf0] sm:$0xff]
        %v7542 = vld [vmem:[%s7510 + $0xf8] sm:$0xff]
        %v7543 = vld [vmem:[%s7510 + $0x100] sm:$0xff]
        %v7544 = vld [vmem:[%s7510 + $0x108] sm:$0xff]
        %v7545 = vld [vmem:[%s7510 + $0x110] sm:$0xff]
        %v7546 = vld [vmem:[%s7510 + $0x118] sm:$0xff]
        %v7547 = vld [vmem:[%s7510 + $0x120] sm:$0xff]
        %v7548 = vld [vmem:[%s7510 + $0x128] sm:$0xff]
        %v7549 = vld [vmem:[%s7510 + $0x130] sm:$0xff]
        %v7550 = vld [vmem:[%s7510 + $0x138] sm:$0xff]
        %v7551 = vld [vmem:[%s7510 + $0x140] sm:$0xff]
        %v7552 = vld [vmem:[%s7510 + $0x148] sm:$0xff]
        %v7553 = vld [vmem:[%s7510 + $0x150] sm:$0xff]
        %v7554 = vld [vmem:[%s7510 + $0x158] sm:$0xff]
        %v7555 = vld [vmem:[%s7510 + $0x160] sm:$0xff]
        %v7556 = vld [vmem:[%s7510 + $0x168] sm:$0xff]
        %v7557 = vld [vmem:[%s7510 + $0x170] sm:$0xff]
        %v7558 = vld [vmem:[%s7510 + $0x178] sm:$0xff]
        %v7559 = vld [vmem:[%s7510 + $0x180] sm:$0xff]
        %v7560 = vld [vmem:[%s7510 + $0x188] sm:$0xff]
        %v7561 = vld [vmem:[%s7510 + $0x190] sm:$0xff]
        %v7562 = vld [vmem:[%s7510 + $0x198] sm:$0xff]
        %v7563 = vld [vmem:[%s7510 + $0x1a0] sm:$0xff]
        %v7564 = vld [vmem:[%s7510 + $0x1a8] sm:$0xff]
        %v7565 = vld [vmem:[%s7510 + $0x1b0] sm:$0xff]
        %v7566 = vld [vmem:[%s7510 + $0x1b8] sm:$0xff]
        %v7567 = vld [vmem:[%s7510 + $0x1c0] sm:$0xff]
        %v7568 = vld [vmem:[%s7510 + $0x1c8] sm:$0xff]
        %v7569 = vld [vmem:[%s7510 + $0x1d0] sm:$0xff]
        %v7570 = vld [vmem:[%s7510 + $0x1d8] sm:$0xff]
        %v7571 = vld [vmem:[%s7510 + $0x1e0] sm:$0xff]
        %v7572 = vld [vmem:[%s7510 + $0x1e8] sm:$0xff]
        %v7573 = vld [vmem:[%s7510 + $0x1f0] sm:$0xff]
        %v7574 = vld [vmem:[%s7510 + $0x1f8] sm:$0xff]
        %v7639 = vunpack.c.l.b16 %v7511
        %v7640 = vunpack.c.h.b16 %v7511
        %v7641 = vunpack.c.l.b16 %v7512
        %v7642 = vunpack.c.h.b16 %v7512
        %v7643 = vunpack.c.l.b16 %v7513
        %v7644 = vunpack.c.h.b16 %v7513
        %v7645 = vunpack.c.l.b16 %v7514
        %v7646 = vunpack.c.h.b16 %v7514
        %v7647 = vunpack.c.l.b16 %v7515
        %v7648 = vunpack.c.h.b16 %v7515
        %v7649 = vunpack.c.l.b16 %v7516
        %v7650 = vunpack.c.h.b16 %v7516
        %v7651 = vunpack.c.l.b16 %v7517
        %v7652 = vunpack.c.h.b16 %v7517
        %v7653 = vunpack.c.l.b16 %v7518
        %v7654 = vunpack.c.h.b16 %v7518
        %v7655 = vunpack.c.l.b16 %v7519
        %v7656 = vunpack.c.h.b16 %v7519
        %v7657 = vunpack.c.l.b16 %v7520
        %v7658 = vunpack.c.h.b16 %v7520
        %v7659 = vunpack.c.l.b16 %v7521
        %v7660 = vunpack.c.h.b16 %v7521
        %v7661 = vunpack.c.l.b16 %v7522
        %v7662 = vunpack.c.h.b16 %v7522
        %v7663 = vunpack.c.l.b16 %v7523
        %v7664 = vunpack.c.h.b16 %v7523
        %v7665 = vunpack.c.l.b16 %v7524
        %v7666 = vunpack.c.h.b16 %v7524
        %v7667 = vunpack.c.l.b16 %v7525
        %v7668 = vunpack.c.h.b16 %v7525
        %v7669 = vunpack.c.l.b16 %v7526
        %v7670 = vunpack.c.h.b16 %v7526
        %v7671 = vunpack.c.l.b16 %v7527
        %v7672 = vunpack.c.h.b16 %v7527
        %v7673 = vunpack.c.l.b16 %v7528
        %v7674 = vunpack.c.h.b16 %v7528
        %v7675 = vunpack.c.l.b16 %v7529
        %v7676 = vunpack.c.h.b16 %v7529
        %v7677 = vunpack.c.l.b16 %v7530
        %v7678 = vunpack.c.h.b16 %v7530
        %v7679 = vunpack.c.l.b16 %v7531
        %v7680 = vunpack.c.h.b16 %v7531
        %v7681 = vunpack.c.l.b16 %v7532
        %v7682 = vunpack.c.h.b16 %v7532
        %v7683 = vunpack.c.l.b16 %v7533
        %v7684 = vunpack.c.h.b16 %v7533
        %v7685 = vunpack.c.l.b16 %v7534
        %v7686 = vunpack.c.h.b16 %v7534
        %v7687 = vunpack.c.l.b16 %v7535
        %v7688 = vunpack.c.h.b16 %v7535
        %v7689 = vunpack.c.l.b16 %v7536
        %v7690 = vunpack.c.h.b16 %v7536
        %v7691 = vunpack.c.l.b16 %v7537
        %v7692 = vunpack.c.h.b16 %v7537
        %v7693 = vunpack.c.l.b16 %v7538
        %v7694 = vunpack.c.h.b16 %v7538
        %v7695 = vunpack.c.l.b16 %v7539
        %v7696 = vunpack.c.h.b16 %v7539
        %v7697 = vunpack.c.l.b16 %v7540
        %v7698 = vunpack.c.h.b16 %v7540
        %v7699 = vunpack.c.l.b16 %v7541
        %v7700 = vunpack.c.h.b16 %v7541
        %v7701 = vunpack.c.l.b16 %v7542
        %v7702 = vunpack.c.h.b16 %v7542
        %v7703 = vunpack.c.l.b16 %v7543
        %v7704 = vunpack.c.h.b16 %v7543
        %v7705 = vunpack.c.l.b16 %v7544
        %v7706 = vunpack.c.h.b16 %v7544
        %v7707 = vunpack.c.l.b16 %v7545
        %v7708 = vunpack.c.h.b16 %v7545
        %v7709 = vunpack.c.l.b16 %v7546
        %v7710 = vunpack.c.h.b16 %v7546
        %v7711 = vunpack.c.l.b16 %v7547
        %v7712 = vunpack.c.h.b16 %v7547
        %v7713 = vunpack.c.l.b16 %v7548
        %v7714 = vunpack.c.h.b16 %v7548
        %v7715 = vunpack.c.l.b16 %v7549
        %v7716 = vunpack.c.h.b16 %v7549
        %v7717 = vunpack.c.l.b16 %v7550
        %v7718 = vunpack.c.h.b16 %v7550
        %v7719 = vunpack.c.l.b16 %v7551
        %v7720 = vunpack.c.h.b16 %v7551
        %v7721 = vunpack.c.l.b16 %v7552
        %v7722 = vunpack.c.h.b16 %v7552
        %v7723 = vunpack.c.l.b16 %v7553
        %v7724 = vunpack.c.h.b16 %v7553
        %v7725 = vunpack.c.l.b16 %v7554
        %v7726 = vunpack.c.h.b16 %v7554
        %v7727 = vunpack.c.l.b16 %v7555
        %v7728 = vunpack.c.h.b16 %v7555
        %v7729 = vunpack.c.l.b16 %v7556
        %v7730 = vunpack.c.h.b16 %v7556
        %v7731 = vunpack.c.l.b16 %v7557
        %v7732 = vunpack.c.h.b16 %v7557
        %v7733 = vunpack.c.l.b16 %v7558
        %v7734 = vunpack.c.h.b16 %v7558
        %v7735 = vunpack.c.l.b16 %v7559
        %v7736 = vunpack.c.h.b16 %v7559
        %v7737 = vunpack.c.l.b16 %v7560
        %v7738 = vunpack.c.h.b16 %v7560
        %v7739 = vunpack.c.l.b16 %v7561
        %v7740 = vunpack.c.h.b16 %v7561
        %v7741 = vunpack.c.l.b16 %v7562
        %v7742 = vunpack.c.h.b16 %v7562
        %v7743 = vunpack.c.l.b16 %v7563
        %v7744 = vunpack.c.h.b16 %v7563
        %v7745 = vunpack.c.l.b16 %v7564
        %v7746 = vunpack.c.h.b16 %v7564
        %v7747 = vunpack.c.l.b16 %v7565
        %v7748 = vunpack.c.h.b16 %v7565
        %v7749 = vunpack.c.l.b16 %v7566
        %v7750 = vunpack.c.h.b16 %v7566
        %v7751 = vunpack.c.l.b16 %v7567
        %v7752 = vunpack.c.h.b16 %v7567
        %v7753 = vunpack.c.l.b16 %v7568
        %v7754 = vunpack.c.h.b16 %v7568
        %v7755 = vunpack.c.l.b16 %v7569
        %v7756 = vunpack.c.h.b16 %v7569
        %v7757 = vunpack.c.l.b16 %v7570
        %v7758 = vunpack.c.h.b16 %v7570
        %v7759 = vunpack.c.l.b16 %v7571
        %v7760 = vunpack.c.h.b16 %v7571
        %v7761 = vunpack.c.l.b16 %v7572
        %v7762 = vunpack.c.h.b16 %v7572
        %v7763 = vunpack.c.l.b16 %v7573
        %v7764 = vunpack.c.h.b16 %v7573
        %v7765 = vunpack.c.l.b16 %v7574
        %v7766 = vunpack.c.h.b16 %v7574
        %v7767 = vpack.c.b16 %v7641, %v7639
        %v7768 = vpack.c.b16 %v7642, %v7640
        %v7769 = vpack.c.b16 %v7645, %v7643
        %v7770 = vpack.c.b16 %v7646, %v7644
        %v7771 = vpack.c.b16 %v7649, %v7647
        %v7772 = vpack.c.b16 %v7650, %v7648
        %v7773 = vpack.c.b16 %v7653, %v7651
        %v7774 = vpack.c.b16 %v7654, %v7652
        %v7775 = vpack.c.b16 %v7657, %v7655
        %v7776 = vpack.c.b16 %v7658, %v7656
        %v7777 = vpack.c.b16 %v7661, %v7659
        %v7778 = vpack.c.b16 %v7662, %v7660
        %v7779 = vpack.c.b16 %v7665, %v7663
        %v7780 = vpack.c.b16 %v7666, %v7664
        %v7781 = vpack.c.b16 %v7669, %v7667
        %v7782 = vpack.c.b16 %v7670, %v7668
        %v7783 = vpack.c.b16 %v7673, %v7671
        %v7784 = vpack.c.b16 %v7674, %v7672
        %v7785 = vpack.c.b16 %v7677, %v7675
        %v7786 = vpack.c.b16 %v7678, %v7676
        %v7787 = vpack.c.b16 %v7681, %v7679
        %v7788 = vpack.c.b16 %v7682, %v7680
        %v7789 = vpack.c.b16 %v7685, %v7683
        %v7790 = vpack.c.b16 %v7686, %v7684
        %v7791 = vpack.c.b16 %v7689, %v7687
        %v7792 = vpack.c.b16 %v7690, %v7688
        %v7793 = vpack.c.b16 %v7693, %v7691
        %v7794 = vpack.c.b16 %v7694, %v7692
        %v7795 = vpack.c.b16 %v7697, %v7695
        %v7796 = vpack.c.b16 %v7698, %v7696
        %v7797 = vpack.c.b16 %v7701, %v7699
        %v7798 = vpack.c.b16 %v7702, %v7700
        %v7799 = vpack.c.b16 %v7705, %v7703
        %v7800 = vpack.c.b16 %v7706, %v7704
        %v7801 = vpack.c.b16 %v7709, %v7707
        %v7802 = vpack.c.b16 %v7710, %v7708
        %v7803 = vpack.c.b16 %v7713, %v7711
        %v7804 = vpack.c.b16 %v7714, %v7712
        %v7805 = vpack.c.b16 %v7717, %v7715
        %v7806 = vpack.c.b16 %v7718, %v7716
        %v7807 = vpack.c.b16 %v7721, %v7719
        %v7808 = vpack.c.b16 %v7722, %v7720
        %v7809 = vpack.c.b16 %v7725, %v7723
        %v7810 = vpack.c.b16 %v7726, %v7724
        %v7811 = vpack.c.b16 %v7729, %v7727
        %v7812 = vpack.c.b16 %v7730, %v7728
        %v7813 = vpack.c.b16 %v7733, %v7731
        %v7814 = vpack.c.b16 %v7734, %v7732
        %v7815 = vpack.c.b16 %v7737, %v7735
        %v7816 = vpack.c.b16 %v7738, %v7736
        %v7817 = vpack.c.b16 %v7741, %v7739
        %v7818 = vpack.c.b16 %v7742, %v7740
        %v7819 = vpack.c.b16 %v7745, %v7743
        %v7820 = vpack.c.b16 %v7746, %v7744
        %v7821 = vpack.c.b16 %v7749, %v7747
        %v7822 = vpack.c.b16 %v7750, %v7748
        %v7823 = vpack.c.b16 %v7753, %v7751
        %v7824 = vpack.c.b16 %v7754, %v7752
        %v7825 = vpack.c.b16 %v7757, %v7755
        %v7826 = vpack.c.b16 %v7758, %v7756
        %v7827 = vpack.c.b16 %v7761, %v7759
        %v7828 = vpack.c.b16 %v7762, %v7760
        %v7829 = vpack.c.b16 %v7765, %v7763
        %v7830 = vpack.c.b16 %v7766, %v7764
        %7895 = vmatpush.bf16.msra.mxu0 %v7781
        %7896 = vmatpush.bf16.msra.mxu0 %v7779
        %7897 = vmatpush.bf16.msra.mxu0 %v7777
        %7898 = vmatpush.bf16.msra.mxu0 %v7775
        %7899 = vmatpush.bf16.msra.mxu0 %v7773
        %7900 = vmatpush.bf16.msra.mxu0 %v7771
        %7901 = vmatpush.bf16.msra.mxu0 %v7769
        %7902 = vmatpush.bf16.msra.mxu0 %v7767
        %7903 = vmatmul.bf16.gmra.mxu0 %v7190
        %v7904 = vpop.f32.mrf.mxu0
        %v7905 = vadd.f32 0.0, %v7904
        %v7906 = vpop.f32.mrf.mxu0
        %v7907 = vadd.f32 0.0, %v7906
        %7908 = vmatmul.bf16.gmra.mxu0 %v7194
        %v7909 = vpop.f32.mrf.mxu0
        %v7910 = vadd.f32 0.0, %v7909
        %v7911 = vpop.f32.mrf.mxu0
        %v7912 = vadd.f32 0.0, %v7911
        %7913 = vdwg.mxu0
        %7914 = vmatpush.bf16.msra.mxu0 %v7797
        %7915 = vmatpush.bf16.msra.mxu0 %v7795
        %7916 = vmatpush.bf16.msra.mxu0 %v7793
        %7917 = vmatpush.bf16.msra.mxu0 %v7791
        %7918 = vmatpush.bf16.msra.mxu0 %v7789
        %7919 = vmatpush.bf16.msra.mxu0 %v7787
        %7920 = vmatpush.bf16.msra.mxu0 %v7785
        %7921 = vmatpush.bf16.msra.mxu0 %v7783
        %7922 = vmatmul.bf16.gmra.mxu0 %v7191
        %v7923 = vpop.f32.mrf.mxu0
        %v7924 = vadd.f32 %v7905, %v7923
        %v7925 = vpop.f32.mrf.mxu0
        %v7926 = vadd.f32 %v7907, %v7925
        %7927 = vmatmul.bf16.gmra.mxu0 %v7195
        %v7928 = vpop.f32.mrf.mxu0
        %v7929 = vadd.f32 %v7910, %v7928
        %v7930 = vpop.f32.mrf.mxu0
        %v7931 = vadd.f32 %v7912, %v7930
        %7932 = vdwg.mxu0
        %7933 = vmatpush.bf16.msra.mxu0 %v7813
        %7934 = vmatpush.bf16.msra.mxu0 %v7811
        %7935 = vmatpush.bf16.msra.mxu0 %v7809
        %7936 = vmatpush.bf16.msra.mxu0 %v7807
        %7937 = vmatpush.bf16.msra.mxu0 %v7805
        %7938 = vmatpush.bf16.msra.mxu0 %v7803
        %7939 = vmatpush.bf16.msra.mxu0 %v7801
        %7940 = vmatpush.bf16.msra.mxu0 %v7799
        %7941 = vmatmul.bf16.gmra.mxu0 %v7192
        %v7942 = vpop.f32.mrf.mxu0
        %v7943 = vadd.f32 %v7924, %v7942
        %v7944 = vpop.f32.mrf.mxu0
        %v7945 = vadd.f32 %v7926, %v7944
        %7946 = vmatmul.bf16.gmra.mxu0 %v7196
        %v7947 = vpop.f32.mrf.mxu0
        %v7948 = vadd.f32 %v7929, %v7947
        %v7949 = vpop.f32.mrf.mxu0
        %v7950 = vadd.f32 %v7931, %v7949
        %7951 = vdwg.mxu0
        %7952 = vmatpush.bf16.msra.mxu0 %v7829
        %7953 = vmatpush.bf16.msra.mxu0 %v7827
        %7954 = vmatpush.bf16.msra.mxu0 %v7825
        %7955 = vmatpush.bf16.msra.mxu0 %v7823
        %7956 = vmatpush.bf16.msra.mxu0 %v7821
        %7957 = vmatpush.bf16.msra.mxu0 %v7819
        %7958 = vmatpush.bf16.msra.mxu0 %v7817
        %7959 = vmatpush.bf16.msra.mxu0 %v7815
        %7960 = vmatmul.bf16.gmra.mxu0 %v7193
        %v7961 = vpop.f32.mrf.mxu0
        %v7962 = vadd.f32 %v7943, %v7961
        %v7963 = vpop.f32.mrf.mxu0
        %v7964 = vadd.f32 %v7945, %v7963
        %7965 = vmatmul.bf16.gmra.mxu0 %v7197
        %v7966 = vpop.f32.mrf.mxu0
        %v7967 = vadd.f32 %v7948, %v7966
        %v7968 = vpop.f32.mrf.mxu0
        %v7969 = vadd.f32 %v7950, %v7968
        %7970 = vdwg.mxu0
        %7971 = vmatpush.bf16.msra.mxu0 %v7782
        %7972 = vmatpush.bf16.msra.mxu0 %v7780
        %7973 = vmatpush.bf16.msra.mxu0 %v7778
        %7974 = vmatpush.bf16.msra.mxu0 %v7776
        %7975 = vmatpush.bf16.msra.mxu0 %v7774
        %7976 = vmatpush.bf16.msra.mxu0 %v7772
        %7977 = vmatpush.bf16.msra.mxu0 %v7770
        %7978 = vmatpush.bf16.msra.mxu0 %v7768
        %7979 = vmatmul.bf16.gmra.mxu0 %v7190
        %v7980 = vpop.f32.mrf.mxu0
        %v7981 = vadd.f32 0.0, %v7980
        %v7982 = vpop.f32.mrf.mxu0
        %v7983 = vadd.f32 0.0, %v7982
        %7984 = vmatmul.bf16.gmra.mxu0 %v7194
        %v7985 = vpop.f32.mrf.mxu0
        %v7986 = vadd.f32 0.0, %v7985
        %v7987 = vpop.f32.mrf.mxu0
        %v7988 = vadd.f32 0.0, %v7987
        %7989 = vdwg.mxu0
        %7990 = vmatpush.bf16.msra.mxu0 %v7798
        %7991 = vmatpush.bf16.msra.mxu0 %v7796
        %7992 = vmatpush.bf16.msra.mxu0 %v7794
        %7993 = vmatpush.bf16.msra.mxu0 %v7792
        %7994 = vmatpush.bf16.msra.mxu0 %v7790
        %7995 = vmatpush.bf16.msra.mxu0 %v7788
        %7996 = vmatpush.bf16.msra.mxu0 %v7786
        %7997 = vmatpush.bf16.msra.mxu0 %v7784
        %7998 = vmatmul.bf16.gmra.mxu0 %v7191
        %v7999 = vpop.f32.mrf.mxu0
        %v8000 = vadd.f32 %v7981, %v7999
        %v8001 = vpop.f32.mrf.mxu0
        %v8002 = vadd.f32 %v7983, %v8001
        %8003 = vmatmul.bf16.gmra.mxu0 %v7195
        %v8004 = vpop.f32.mrf.mxu0
        %v8005 = vadd.f32 %v7986, %v8004
        %v8006 = vpop.f32.mrf.mxu0
        %v8007 = vadd.f32 %v7988, %v8006
        %8008 = vdwg.mxu0
        %8009 = vmatpush.bf16.msra.mxu0 %v7814
        %8010 = vmatpush.bf16.msra.mxu0 %v7812
        %8011 = vmatpush.bf16.msra.mxu0 %v7810
        %8012 = vmatpush.bf16.msra.mxu0 %v7808
        %8013 = vmatpush.bf16.msra.mxu0 %v7806
        %8014 = vmatpush.bf16.msra.mxu0 %v7804
        %8015 = vmatpush.bf16.msra.mxu0 %v7802
        %8016 = vmatpush.bf16.msra.mxu0 %v7800
        %8017 = vmatmul.bf16.gmra.mxu0 %v7192
        %v8018 = vpop.f32.mrf.mxu0
        %v8019 = vadd.f32 %v8000, %v8018
        %v8020 = vpop.f32.mrf.mxu0
        %v8021 = vadd.f32 %v8002, %v8020
        %8022 = vmatmul.bf16.gmra.mxu0 %v7196
        %v8023 = vpop.f32.mrf.mxu0
        %v8024 = vadd.f32 %v8005, %v8023
        %v8025 = vpop.f32.mrf.mxu0
        %v8026 = vadd.f32 %v8007, %v8025
        %8027 = vdwg.mxu0
        %8028 = vmatpush.bf16.msra.mxu0 %v7830
        %8029 = vmatpush.bf16.msra.mxu0 %v7828
        %8030 = vmatpush.bf16.msra.mxu0 %v7826
        %8031 = vmatpush.bf16.msra.mxu0 %v7824
        %8032 = vmatpush.bf16.msra.mxu0 %v7822
        %8033 = vmatpush.bf16.msra.mxu0 %v7820
        %8034 = vmatpush.bf16.msra.mxu0 %v7818
        %8035 = vmatpush.bf16.msra.mxu0 %v7816
        %8036 = vmatmul.bf16.gmra.mxu0 %v7193
        %v8037 = vpop.f32.mrf.mxu0
        %v8038 = vadd.f32 %v8019, %v8037
        %v8039 = vpop.f32.mrf.mxu0
        %v8040 = vadd.f32 %v8021, %v8039
        %8041 = vmatmul.bf16.gmra.mxu0 %v7197
        %v8042 = vpop.f32.mrf.mxu0
        %v8043 = vadd.f32 %v8024, %v8042
        %v8044 = vpop.f32.mrf.mxu0
        %v8045 = vadd.f32 %v8026, %v8044
        %8046 = vdwg.mxu0
        %v8047 = vadd.f32 %v7089, %v7962
        %v8048 = vadd.f32 %v7165, %v8038
        %v8049 = vadd.f32 %v7091, %v7964
        %v8050 = vadd.f32 %v7167, %v8040
        %v8051 = vadd.f32 %v7094, %v7967
        %v8052 = vadd.f32 %v7170, %v8043
        %v8053 = vadd.f32 %v7096, %v7969
        %v8054 = vadd.f32 %v7172, %v8045
        %v8065 = vunpack.c.l.b16 %v6011
        %v8066 = vunpack.c.h.b16 %v6011
        %v8067 = vunpack.c.l.b16 %v6012
        %v8068 = vunpack.c.h.b16 %v6012
        %v8069 = vunpack.c.l.b16 %v6013
        %v8070 = vunpack.c.h.b16 %v6013
        %v8071 = vunpack.c.l.b16 %v6014
        %v8072 = vunpack.c.h.b16 %v6014
        %v8073 = vunpack.c.l.b16 %v6015
        %v8074 = vunpack.c.h.b16 %v6015
        %v8075 = vunpack.c.l.b16 %v6016
        %v8076 = vunpack.c.h.b16 %v6016
        %v8077 = vunpack.c.l.b16 %v6017
        %v8078 = vunpack.c.h.b16 %v6017
        %v8079 = vunpack.c.l.b16 %v6018
        %v8080 = vunpack.c.h.b16 %v6018
        %v8081 = vunpack.c.l.b16 %v6019
        %v8082 = vunpack.c.h.b16 %v6019
        %v8083 = vunpack.c.l.b16 %v6020
        %v8084 = vunpack.c.h.b16 %v6020
        %v8085 = vpack.c.b16 %v8069, %v8065
        %v8086 = vpack.c.b16 %v8070, %v8066
        %v8087 = vpack.c.b16 %v8071, %v8067
        %v8088 = vpack.c.b16 %v8072, %v8068
        %v8089 = vpack.c.b16 %v8077, %v8073
        %v8090 = vpack.c.b16 %v8078, %v8074
        %v8091 = vpack.c.b16 %v8079, %v8075
        %v8092 = vpack.c.b16 %v8080, %v8076
        %v8093 = vpack.c.b16 %v8081, %v8081
        %v8094 = vpack.c.b16 %v8082, %v8082
        %v8095 = vpack.c.b16 %v8083, %v8083
        %v8096 = vpack.c.b16 %v8084, %v8084
        %v8097 = vrot.slane %v8085, 2
        %v8098 = vrot.slane %v8089, 2
        %v8099 = vsel %vm2047, %v8097, %v8098
        %v8100 = vrot.slane %v8086, 2
        %v8101 = vrot.slane %v8090, 2
        %v8102 = vsel %vm2047, %v8100, %v8101
        %v8103 = vrot.slane %v8087, 2
        %v8104 = vrot.slane %v8091, 2
        %v8105 = vsel %vm2047, %v8103, %v8104
        %v8106 = vrot.slane %v8088, 2
        %v8107 = vrot.slane %v8092, 2
        %v8108 = vsel %vm2047, %v8106, %v8107
        %v8109 = vrot.slane %v8093, 2
        %v8110 = vsel %vm2047, %v8098, %v8109
        %v8111 = vrot.slane %v8094, 2
        %v8112 = vsel %vm2047, %v8101, %v8111
        %v8113 = vrot.slane %v8095, 2
        %v8114 = vsel %vm2047, %v8104, %v8113
        %v8115 = vrot.slane %v8096, 2
        %v8116 = vsel %vm2047, %v8107, %v8115
        %8125 = vmatpush.bf16.msra.mxu0 %v7781
        %8126 = vmatpush.bf16.msra.mxu0 %v7779
        %8127 = vmatpush.bf16.msra.mxu0 %v7777
        %8128 = vmatpush.bf16.msra.mxu0 %v7775
        %8129 = vmatpush.bf16.msra.mxu0 %v7773
        %8130 = vmatpush.bf16.msra.mxu0 %v7771
        %8131 = vmatpush.bf16.msra.mxu0 %v7769
        %8132 = vmatpush.bf16.msra.mxu0 %v7767
        %8133 = vmatmul.bf16.gmra.mxu0 %v8099
        %v8134 = vpop.f32.mrf.mxu0
        %v8135 = vadd.f32 0.0, %v8134
        %v8136 = vpop.f32.mrf.mxu0
        %v8137 = vadd.f32 0.0, %v8136
        %8138 = vmatmul.bf16.gmra.mxu0 %v8110
        %v8139 = vpop.f32.mrf.mxu0
        %v8140 = vadd.f32 0.0, %v8139
        %v8141 = vpop.f32.mrf.mxu0
        %v8142 = vadd.f32 0.0, %v8141
        %8143 = vdwg.mxu0
        %8144 = vmatpush.bf16.msra.mxu0 %v7797
        %8145 = vmatpush.bf16.msra.mxu0 %v7795
        %8146 = vmatpush.bf16.msra.mxu0 %v7793
        %8147 = vmatpush.bf16.msra.mxu0 %v7791
        %8148 = vmatpush.bf16.msra.mxu0 %v7789
        %8149 = vmatpush.bf16.msra.mxu0 %v7787
        %8150 = vmatpush.bf16.msra.mxu0 %v7785
        %8151 = vmatpush.bf16.msra.mxu0 %v7783
        %8152 = vmatmul.bf16.gmra.mxu0 %v8102
        %v8153 = vpop.f32.mrf.mxu0
        %v8154 = vadd.f32 %v8135, %v8153
        %v8155 = vpop.f32.mrf.mxu0
        %v8156 = vadd.f32 %v8137, %v8155
        %8157 = vmatmul.bf16.gmra.mxu0 %v8112
        %v8158 = vpop.f32.mrf.mxu0
        %v8159 = vadd.f32 %v8140, %v8158
        %v8160 = vpop.f32.mrf.mxu0
        %v8161 = vadd.f32 %v8142, %v8160
        %8162 = vdwg.mxu0
        %8163 = vmatpush.bf16.msra.mxu0 %v7813
        %8164 = vmatpush.bf16.msra.mxu0 %v7811
        %8165 = vmatpush.bf16.msra.mxu0 %v7809
        %8166 = vmatpush.bf16.msra.mxu0 %v7807
        %8167 = vmatpush.bf16.msra.mxu0 %v7805
        %8168 = vmatpush.bf16.msra.mxu0 %v7803
        %8169 = vmatpush.bf16.msra.mxu0 %v7801
        %8170 = vmatpush.bf16.msra.mxu0 %v7799
        %8171 = vmatmul.bf16.gmra.mxu0 %v8105
        %v8172 = vpop.f32.mrf.mxu0
        %v8173 = vadd.f32 %v8154, %v8172
        %v8174 = vpop.f32.mrf.mxu0
        %v8175 = vadd.f32 %v8156, %v8174
        %8176 = vmatmul.bf16.gmra.mxu0 %v8114
        %v8177 = vpop.f32.mrf.mxu0
        %v8178 = vadd.f32 %v8159, %v8177
        %v8179 = vpop.f32.mrf.mxu0
        %v8180 = vadd.f32 %v8161, %v8179
        %8181 = vdwg.mxu0
        %8182 = vmatpush.bf16.msra.mxu0 %v7829
        %8183 = vmatpush.bf16.msra.mxu0 %v7827
        %8184 = vmatpush.bf16.msra.mxu0 %v7825
        %8185 = vmatpush.bf16.msra.mxu0 %v7823
        %8186 = vmatpush.bf16.msra.mxu0 %v7821
        %8187 = vmatpush.bf16.msra.mxu0 %v7819
        %8188 = vmatpush.bf16.msra.mxu0 %v7817
        %8189 = vmatpush.bf16.msra.mxu0 %v7815
        %8190 = vmatmul.bf16.gmra.mxu0 %v8108
        %v8191 = vpop.f32.mrf.mxu0
        %v8192 = vadd.f32 %v8173, %v8191
        %v8193 = vpop.f32.mrf.mxu0
        %v8194 = vadd.f32 %v8175, %v8193
        %8195 = vmatmul.bf16.gmra.mxu0 %v8116
        %v8196 = vpop.f32.mrf.mxu0
        %v8197 = vadd.f32 %v8178, %v8196
        %v8198 = vpop.f32.mrf.mxu0
        %v8199 = vadd.f32 %v8180, %v8198
        %8200 = vdwg.mxu0
        %8201 = vmatpush.bf16.msra.mxu0 %v7782
        %8202 = vmatpush.bf16.msra.mxu0 %v7780
        %8203 = vmatpush.bf16.msra.mxu0 %v7778
        %8204 = vmatpush.bf16.msra.mxu0 %v7776
        %8205 = vmatpush.bf16.msra.mxu0 %v7774
        %8206 = vmatpush.bf16.msra.mxu0 %v7772
        %8207 = vmatpush.bf16.msra.mxu0 %v7770
        %8208 = vmatpush.bf16.msra.mxu0 %v7768
        %8209 = vmatmul.bf16.gmra.mxu0 %v8099
        %v8210 = vpop.f32.mrf.mxu0
        %v8211 = vadd.f32 0.0, %v8210
        %v8212 = vpop.f32.mrf.mxu0
        %v8213 = vadd.f32 0.0, %v8212
        %8214 = vmatmul.bf16.gmra.mxu0 %v8110
        %v8215 = vpop.f32.mrf.mxu0
        %v8216 = vadd.f32 0.0, %v8215
        %v8217 = vpop.f32.mrf.mxu0
        %v8218 = vadd.f32 0.0, %v8217
        %8219 = vdwg.mxu0
        %8220 = vmatpush.bf16.msra.mxu0 %v7798
        %8221 = vmatpush.bf16.msra.mxu0 %v7796
        %8222 = vmatpush.bf16.msra.mxu0 %v7794
        %8223 = vmatpush.bf16.msra.mxu0 %v7792
        %8224 = vmatpush.bf16.msra.mxu0 %v7790
        %8225 = vmatpush.bf16.msra.mxu0 %v7788
        %8226 = vmatpush.bf16.msra.mxu0 %v7786
        %8227 = vmatpush.bf16.msra.mxu0 %v7784
        %8228 = vmatmul.bf16.gmra.mxu0 %v8102
        %v8229 = vpop.f32.mrf.mxu0
        %v8230 = vadd.f32 %v8211, %v8229
        %v8231 = vpop.f32.mrf.mxu0
        %v8232 = vadd.f32 %v8213, %v8231
        %8233 = vmatmul.bf16.gmra.mxu0 %v8112
        %v8234 = vpop.f32.mrf.mxu0
        %v8235 = vadd.f32 %v8216, %v8234
        %v8236 = vpop.f32.mrf.mxu0
        %v8237 = vadd.f32 %v8218, %v8236
        %8238 = vdwg.mxu0
        %8239 = vmatpush.bf16.msra.mxu0 %v7814
        %8240 = vmatpush.bf16.msra.mxu0 %v7812
        %8241 = vmatpush.bf16.msra.mxu0 %v7810
        %8242 = vmatpush.bf16.msra.mxu0 %v7808
        %8243 = vmatpush.bf16.msra.mxu0 %v7806
        %8244 = vmatpush.bf16.msra.mxu0 %v7804
        %8245 = vmatpush.bf16.msra.mxu0 %v7802
        %8246 = vmatpush.bf16.msra.mxu0 %v7800
        %8247 = vmatmul.bf16.gmra.mxu0 %v8105
        %v8248 = vpop.f32.mrf.mxu0
        %v8249 = vadd.f32 %v8230, %v8248
        %v8250 = vpop.f32.mrf.mxu0
        %v8251 = vadd.f32 %v8232, %v8250
        %8252 = vmatmul.bf16.gmra.mxu0 %v8114
        %v8253 = vpop.f32.mrf.mxu0
        %v8254 = vadd.f32 %v8235, %v8253
        %v8255 = vpop.f32.mrf.mxu0
        %v8256 = vadd.f32 %v8237, %v8255
        %8257 = vdwg.mxu0
        %8258 = vmatpush.bf16.msra.mxu0 %v7830
        %8259 = vmatpush.bf16.msra.mxu0 %v7828
        %8260 = vmatpush.bf16.msra.mxu0 %v7826
        %8261 = vmatpush.bf16.msra.mxu0 %v7824
        %8262 = vmatpush.bf16.msra.mxu0 %v7822
        %8263 = vmatpush.bf16.msra.mxu0 %v7820
        %8264 = vmatpush.bf16.msra.mxu0 %v7818
        %8265 = vmatpush.bf16.msra.mxu0 %v7816
        %8266 = vmatmul.bf16.gmra.mxu0 %v8108
        %v8267 = vpop.f32.mrf.mxu0
        %v8268 = vadd.f32 %v8249, %v8267
        %v8269 = vpop.f32.mrf.mxu0
        %v8270 = vadd.f32 %v8251, %v8269
        %8271 = vmatmul.bf16.gmra.mxu0 %v8116
        %v8272 = vpop.f32.mrf.mxu0
        %v8273 = vadd.f32 %v8254, %v8272
        %v8274 = vpop.f32.mrf.mxu0
        %v8275 = vadd.f32 %v8256, %v8274
        %8276 = vdwg.mxu0
        %v8277 = vadd.f32 %v7425, %v8192
        %v8278 = vadd.f32 %v7501, %v8268
        %v8279 = vadd.f32 %v7427, %v8194
        %v8280 = vadd.f32 %v7503, %v8270
        %v8281 = vadd.f32 %v7430, %v8197
        %v8282 = vadd.f32 %v7506, %v8273
        %v8283 = vadd.f32 %v7432, %v8199
        %v8284 = vadd.f32 %v7508, %v8275
        %v8285 = vmax.f32 %v8047, %v8277
        %v8286 = vmax.f32 %v8048, %v8278
        %v8287 = vmax.f32 %v8049, %v8279
        %v8288 = vmax.f32 %v8050, %v8280
        %v8289 = vmax.f32 %v8051, %v8281
        %v8290 = vmax.f32 %v8052, %v8282
        %v8291 = vmax.f32 %v8053, %v8283
        %v8292 = vmax.f32 %v8054, %v8284
        %v8293 = vmax.f32 %v8285, %v8286
        %v8294 = vmax.f32 %v8287, %v8288
        %v8295 = vmax.f32 %v8289, %v8290
        %v8296 = vmax.f32 %v8291, %v8292
        %v8297 = vld [vmem:[%s5] sm:$0x1]
        %v8299 = vperm.slane %v8297, 0
        %v8301 = vadd.f32 %v8293, %v8299
        %v8302 = vadd.f32 %v8294, %v8299
        %v8303 = vadd.f32 %v8295, %v8299
        %v8304 = vadd.f32 %v8296, %v8299
        %v8305 = vmax.f32 %v8301, 0.0
        %v8306 = vmax.f32 %v8302, 0.0
        %v8307 = vmax.f32 %v8303, 0.0
        %v8308 = vmax.f32 %v8304, 0.0
        %v8309 = vpack.c.bf16 %v8305, %v8305
        %v8310 = vpack.c.bf16 %v8306, %v8306
        %v8311 = vpack.c.bf16 %v8307, %v8307
        %v8312 = vpack.c.bf16 %v8308, %v8308
        %v8313 = vld [vmem:[%s3] sm:$0xf]
        %v8314 = vld [vmem:[%s3 + $0x4] sm:$0xf]
        %v8315 = vld [vmem:[%s3 + $0x8] sm:$0xf]
        %v8316 = vld [vmem:[%s3 + $0xc] sm:$0xf]
        %v8317 = vld [vmem:[%s3 + $0x10] sm:$0xf]
        %v8318 = vld [vmem:[%s3 + $0x14] sm:$0xf]
        %v8319 = vld [vmem:[%s3 + $0x18] sm:$0xf]
        %v8320 = vld [vmem:[%s3 + $0x1c] sm:$0xf]
        %v8321 = vld [vmem:[%s3 + $0x20] sm:$0xf]
        %v8322 = vld [vmem:[%s3 + $0x24] sm:$0xf]
        %v8323 = vld [vmem:[%s3 + $0x28] sm:$0xf]
        %v8324 = vld [vmem:[%s3 + $0x2c] sm:$0xf]
        %v8325 = vld [vmem:[%s3 + $0x30] sm:$0xf]
        %v8326 = vld [vmem:[%s3 + $0x34] sm:$0xf]
        %v8327 = vld [vmem:[%s3 + $0x38] sm:$0xf]
        %v8328 = vld [vmem:[%s3 + $0x3c] sm:$0xf]
        %s8329 = scalar_lea.vmem %s3, 64
        %v8330 = vld [vmem:[%s8329] sm:$0xf]
        %v8331 = vld [vmem:[%s8329 + $0x4] sm:$0xf]
        %v8332 = vld [vmem:[%s8329 + $0x8] sm:$0xf]
        %v8333 = vld [vmem:[%s8329 + $0xc] sm:$0xf]
        %v8334 = vld [vmem:[%s8329 + $0x10] sm:$0xf]
        %v8335 = vld [vmem:[%s8329 + $0x14] sm:$0xf]
        %v8336 = vld [vmem:[%s8329 + $0x18] sm:$0xf]
        %v8337 = vld [vmem:[%s8329 + $0x1c] sm:$0xf]
        %v8338 = vld [vmem:[%s8329 + $0x20] sm:$0xf]
        %v8339 = vld [vmem:[%s8329 + $0x24] sm:$0xf]
        %v8340 = vld [vmem:[%s8329 + $0x28] sm:$0xf]
        %v8341 = vld [vmem:[%s8329 + $0x2c] sm:$0xf]
        %v8342 = vld [vmem:[%s8329 + $0x30] sm:$0xf]
        %v8343 = vld [vmem:[%s8329 + $0x34] sm:$0xf]
        %v8344 = vld [vmem:[%s8329 + $0x38] sm:$0xf]
        %v8345 = vld [vmem:[%s8329 + $0x3c] sm:$0xf]
        %v8347 = vunpack.c.l.b16 %v8309
        %v8348 = vpack.c.b16 %v8347, %v8347
        %v8349 = vrot.slane %v8348, 2
        %v8367 = vunpack.c.l.b16 %v8330
        %v8368 = vunpack.c.l.b16 %v8331
        %v8369 = vunpack.c.l.b16 %v8332
        %v8370 = vunpack.c.l.b16 %v8333
        %v8371 = vunpack.c.l.b16 %v8334
        %v8372 = vunpack.c.l.b16 %v8335
        %v8373 = vunpack.c.l.b16 %v8336
        %v8374 = vunpack.c.l.b16 %v8337
        %v8375 = vunpack.c.l.b16 %v8338
        %v8376 = vunpack.c.l.b16 %v8339
        %v8377 = vunpack.c.l.b16 %v8340
        %v8378 = vunpack.c.l.b16 %v8341
        %v8379 = vunpack.c.l.b16 %v8342
        %v8380 = vunpack.c.l.b16 %v8343
        %v8381 = vunpack.c.l.b16 %v8344
        %v8382 = vunpack.c.l.b16 %v8345
        %v8383 = vpack.c.b16 %v8368, %v8367
        %v8384 = vpack.c.b16 %v8370, %v8369
        %v8385 = vpack.c.b16 %v8372, %v8371
        %v8386 = vpack.c.b16 %v8374, %v8373
        %v8387 = vpack.c.b16 %v8376, %v8375
        %v8388 = vpack.c.b16 %v8378, %v8377
        %v8389 = vpack.c.b16 %v8380, %v8379
        %v8390 = vpack.c.b16 %v8382, %v8381
        %8399 = vmatpush.bf16.msra.mxu0 %v8390
        %8400 = vmatpush.bf16.msra.mxu0 %v8389
        %8401 = vmatpush.bf16.msra.mxu0 %v8388
        %8402 = vmatpush.bf16.msra.mxu0 %v8387
        %8403 = vmatpush.bf16.msra.mxu0 %v8386
        %8404 = vmatpush.bf16.msra.mxu0 %v8385
        %8405 = vmatpush.bf16.msra.mxu0 %v8384
        %8406 = vmatpush.bf16.msra.mxu0 %v8383
        %8407 = vmatmul.bf16.gmra.mxu0 %v8349
        %v8408 = vpop.f32.mrf.mxu0
        %v8409 = vadd.f32 0.0, %v8408
        %v8410 = vpop.f32.mrf.mxu0
        %8411 = vdwg.mxu0
        %s8412 = scalar_lea.vmem %s3, 128
        %v8413 = vld [vmem:[%s8412] sm:$0xf]
        %v8414 = vld [vmem:[%s8412 + $0x4] sm:$0xf]
        %v8415 = vld [vmem:[%s8412 + $0x8] sm:$0xf]
        %v8416 = vld [vmem:[%s8412 + $0xc] sm:$0xf]
        %v8417 = vld [vmem:[%s8412 + $0x10] sm:$0xf]
        %v8418 = vld [vmem:[%s8412 + $0x14] sm:$0xf]
        %v8419 = vld [vmem:[%s8412 + $0x18] sm:$0xf]
        %v8420 = vld [vmem:[%s8412 + $0x1c] sm:$0xf]
        %v8421 = vld [vmem:[%s8412 + $0x20] sm:$0xf]
        %v8422 = vld [vmem:[%s8412 + $0x24] sm:$0xf]
        %v8423 = vld [vmem:[%s8412 + $0x28] sm:$0xf]
        %v8424 = vld [vmem:[%s8412 + $0x2c] sm:$0xf]
        %v8425 = vld [vmem:[%s8412 + $0x30] sm:$0xf]
        %v8426 = vld [vmem:[%s8412 + $0x34] sm:$0xf]
        %v8427 = vld [vmem:[%s8412 + $0x38] sm:$0xf]
        %v8428 = vld [vmem:[%s8412 + $0x3c] sm:$0xf]
        %s8429 = scalar_lea.vmem %s3, 192
        %v8430 = vld [vmem:[%s8429] sm:$0xf]
        %v8431 = vld [vmem:[%s8429 + $0x4] sm:$0xf]
        %v8432 = vld [vmem:[%s8429 + $0x8] sm:$0xf]
        %v8433 = vld [vmem:[%s8429 + $0xc] sm:$0xf]
        %v8434 = vld [vmem:[%s8429 + $0x10] sm:$0xf]
        %v8435 = vld [vmem:[%s8429 + $0x14] sm:$0xf]
        %v8436 = vld [vmem:[%s8429 + $0x18] sm:$0xf]
        %v8437 = vld [vmem:[%s8429 + $0x1c] sm:$0xf]
        %v8438 = vld [vmem:[%s8429 + $0x20] sm:$0xf]
        %v8439 = vld [vmem:[%s8429 + $0x24] sm:$0xf]
        %v8440 = vld [vmem:[%s8429 + $0x28] sm:$0xf]
        %v8441 = vld [vmem:[%s8429 + $0x2c] sm:$0xf]
        %v8442 = vld [vmem:[%s8429 + $0x30] sm:$0xf]
        %v8443 = vld [vmem:[%s8429 + $0x34] sm:$0xf]
        %v8444 = vld [vmem:[%s8429 + $0x38] sm:$0xf]
        %v8445 = vld [vmem:[%s8429 + $0x3c] sm:$0xf]
        %v8447 = vunpack.c.l.b16 %v8310
        %v8448 = vpack.c.b16 %v8447, %v8447
        %v8449 = vrot.slane %v8448, 2
        %v8467 = vunpack.c.l.b16 %v8430
        %v8468 = vunpack.c.l.b16 %v8431
        %v8469 = vunpack.c.l.b16 %v8432
        %v8470 = vunpack.c.l.b16 %v8433
        %v8471 = vunpack.c.l.b16 %v8434
        %v8472 = vunpack.c.l.b16 %v8435
        %v8473 = vunpack.c.l.b16 %v8436
        %v8474 = vunpack.c.l.b16 %v8437
        %v8475 = vunpack.c.l.b16 %v8438
        %v8476 = vunpack.c.l.b16 %v8439
        %v8477 = vunpack.c.l.b16 %v8440
        %v8478 = vunpack.c.l.b16 %v8441
        %v8479 = vunpack.c.l.b16 %v8442
        %v8480 = vunpack.c.l.b16 %v8443
        %v8481 = vunpack.c.l.b16 %v8444
        %v8482 = vunpack.c.l.b16 %v8445
        %v8483 = vpack.c.b16 %v8468, %v8467
        %v8484 = vpack.c.b16 %v8470, %v8469
        %v8485 = vpack.c.b16 %v8472, %v8471
        %v8486 = vpack.c.b16 %v8474, %v8473
        %v8487 = vpack.c.b16 %v8476, %v8475
        %v8488 = vpack.c.b16 %v8478, %v8477
        %v8489 = vpack.c.b16 %v8480, %v8479
        %v8490 = vpack.c.b16 %v8482, %v8481
        %8499 = vmatpush.bf16.msra.mxu0 %v8490
        %8500 = vmatpush.bf16.msra.mxu0 %v8489
        %8501 = vmatpush.bf16.msra.mxu0 %v8488
        %8502 = vmatpush.bf16.msra.mxu0 %v8487
        %8503 = vmatpush.bf16.msra.mxu0 %v8486
        %8504 = vmatpush.bf16.msra.mxu0 %v8485
        %8505 = vmatpush.bf16.msra.mxu0 %v8484
        %8506 = vmatpush.bf16.msra.mxu0 %v8483
        %8507 = vmatmul.bf16.gmra.mxu0 %v8449
        %v8508 = vpop.f32.mrf.mxu0
        %v8509 = vadd.f32 0.0, %v8508
        %v8510 = vpop.f32.mrf.mxu0
        %8511 = vdwg.mxu0
        %s8512 = scalar_lea.vmem %s3, 256
        %v8513 = vld [vmem:[%s8512] sm:$0xf]
        %v8514 = vld [vmem:[%s8512 + $0x4] sm:$0xf]
        %v8515 = vld [vmem:[%s8512 + $0x8] sm:$0xf]
        %v8516 = vld [vmem:[%s8512 + $0xc] sm:$0xf]
        %v8517 = vld [vmem:[%s8512 + $0x10] sm:$0xf]
        %v8518 = vld [vmem:[%s8512 + $0x14] sm:$0xf]
        %v8519 = vld [vmem:[%s8512 + $0x18] sm:$0xf]
        %v8520 = vld [vmem:[%s8512 + $0x1c] sm:$0xf]
        %v8521 = vld [vmem:[%s8512 + $0x20] sm:$0xf]
        %v8522 = vld [vmem:[%s8512 + $0x24] sm:$0xf]
        %v8523 = vld [vmem:[%s8512 + $0x28] sm:$0xf]
        %v8524 = vld [vmem:[%s8512 + $0x2c] sm:$0xf]
        %v8525 = vld [vmem:[%s8512 + $0x30] sm:$0xf]
        %v8526 = vld [vmem:[%s8512 + $0x34] sm:$0xf]
        %v8527 = vld [vmem:[%s8512 + $0x38] sm:$0xf]
        %v8528 = vld [vmem:[%s8512 + $0x3c] sm:$0xf]
        %s8529 = scalar_lea.vmem %s3, 320
        %v8530 = vld [vmem:[%s8529] sm:$0xf]
        %v8531 = vld [vmem:[%s8529 + $0x4] sm:$0xf]
        %v8532 = vld [vmem:[%s8529 + $0x8] sm:$0xf]
        %v8533 = vld [vmem:[%s8529 + $0xc] sm:$0xf]
        %v8534 = vld [vmem:[%s8529 + $0x10] sm:$0xf]
        %v8535 = vld [vmem:[%s8529 + $0x14] sm:$0xf]
        %v8536 = vld [vmem:[%s8529 + $0x18] sm:$0xf]
        %v8537 = vld [vmem:[%s8529 + $0x1c] sm:$0xf]
        %v8538 = vld [vmem:[%s8529 + $0x20] sm:$0xf]
        %v8539 = vld [vmem:[%s8529 + $0x24] sm:$0xf]
        %v8540 = vld [vmem:[%s8529 + $0x28] sm:$0xf]
        %v8541 = vld [vmem:[%s8529 + $0x2c] sm:$0xf]
        %v8542 = vld [vmem:[%s8529 + $0x30] sm:$0xf]
        %v8543 = vld [vmem:[%s8529 + $0x34] sm:$0xf]
        %v8544 = vld [vmem:[%s8529 + $0x38] sm:$0xf]
        %v8545 = vld [vmem:[%s8529 + $0x3c] sm:$0xf]
        %v8547 = vunpack.c.l.b16 %v8311
        %v8548 = vpack.c.b16 %v8547, %v8547
        %v8549 = vrot.slane %v8548, 2
        %v8567 = vunpack.c.l.b16 %v8530
        %v8568 = vunpack.c.l.b16 %v8531
        %v8569 = vunpack.c.l.b16 %v8532
        %v8570 = vunpack.c.l.b16 %v8533
        %v8571 = vunpack.c.l.b16 %v8534
        %v8572 = vunpack.c.l.b16 %v8535
        %v8573 = vunpack.c.l.b16 %v8536
        %v8574 = vunpack.c.l.b16 %v8537
        %v8575 = vunpack.c.l.b16 %v8538
        %v8576 = vunpack.c.l.b16 %v8539
        %v8577 = vunpack.c.l.b16 %v8540
        %v8578 = vunpack.c.l.b16 %v8541
        %v8579 = vunpack.c.l.b16 %v8542
        %v8580 = vunpack.c.l.b16 %v8543
        %v8581 = vunpack.c.l.b16 %v8544
        %v8582 = vunpack.c.l.b16 %v8545
        %v8583 = vpack.c.b16 %v8568, %v8567
        %v8584 = vpack.c.b16 %v8570, %v8569
        %v8585 = vpack.c.b16 %v8572, %v8571
        %v8586 = vpack.c.b16 %v8574, %v8573
        %v8587 = vpack.c.b16 %v8576, %v8575
        %v8588 = vpack.c.b16 %v8578, %v8577
        %v8589 = vpack.c.b16 %v8580, %v8579
        %v8590 = vpack.c.b16 %v8582, %v8581
        %8599 = vmatpush.bf16.msra.mxu0 %v8590
        %8600 = vmatpush.bf16.msra.mxu0 %v8589
        %8601 = vmatpush.bf16.msra.mxu0 %v8588
        %8602 = vmatpush.bf16.msra.mxu0 %v8587
        %8603 = vmatpush.bf16.msra.mxu0 %v8586
        %8604 = vmatpush.bf16.msra.mxu0 %v8585
        %8605 = vmatpush.bf16.msra.mxu0 %v8584
        %8606 = vmatpush.bf16.msra.mxu0 %v8583
        %8607 = vmatmul.bf16.gmra.mxu0 %v8549
        %v8608 = vpop.f32.mrf.mxu0
        %v8609 = vadd.f32 0.0, %v8608
        %v8610 = vpop.f32.mrf.mxu0
        %8611 = vdwg.mxu0
        %s8612 = scalar_lea.vmem %s3, 384
        %v8613 = vld [vmem:[%s8612] sm:$0xf]
        %v8614 = vld [vmem:[%s8612 + $0x4] sm:$0xf]
        %v8615 = vld [vmem:[%s8612 + $0x8] sm:$0xf]
        %v8616 = vld [vmem:[%s8612 + $0xc] sm:$0xf]
        %v8617 = vld [vmem:[%s8612 + $0x10] sm:$0xf]
        %v8618 = vld [vmem:[%s8612 + $0x14] sm:$0xf]
        %v8619 = vld [vmem:[%s8612 + $0x18] sm:$0xf]
        %v8620 = vld [vmem:[%s8612 + $0x1c] sm:$0xf]
        %v8621 = vld [vmem:[%s8612 + $0x20] sm:$0xf]
        %v8622 = vld [vmem:[%s8612 + $0x24] sm:$0xf]
        %v8623 = vld [vmem:[%s8612 + $0x28] sm:$0xf]
        %v8624 = vld [vmem:[%s8612 + $0x2c] sm:$0xf]
        %v8625 = vld [vmem:[%s8612 + $0x30] sm:$0xf]
        %v8626 = vld [vmem:[%s8612 + $0x34] sm:$0xf]
        %v8627 = vld [vmem:[%s8612 + $0x38] sm:$0xf]
        %v8628 = vld [vmem:[%s8612 + $0x3c] sm:$0xf]
        %s8629 = scalar_lea.vmem %s3, 448
        %v8630 = vld [vmem:[%s8629] sm:$0xf]
        %v8631 = vld [vmem:[%s8629 + $0x4] sm:$0xf]
        %v8632 = vld [vmem:[%s8629 + $0x8] sm:$0xf]
        %v8633 = vld [vmem:[%s8629 + $0xc] sm:$0xf]
        %v8634 = vld [vmem:[%s8629 + $0x10] sm:$0xf]
        %v8635 = vld [vmem:[%s8629 + $0x14] sm:$0xf]
        %v8636 = vld [vmem:[%s8629 + $0x18] sm:$0xf]
        %v8637 = vld [vmem:[%s8629 + $0x1c] sm:$0xf]
        %v8638 = vld [vmem:[%s8629 + $0x20] sm:$0xf]
        %v8639 = vld [vmem:[%s8629 + $0x24] sm:$0xf]
        %v8640 = vld [vmem:[%s8629 + $0x28] sm:$0xf]
        %v8641 = vld [vmem:[%s8629 + $0x2c] sm:$0xf]
        %v8642 = vld [vmem:[%s8629 + $0x30] sm:$0xf]
        %v8643 = vld [vmem:[%s8629 + $0x34] sm:$0xf]
        %v8644 = vld [vmem:[%s8629 + $0x38] sm:$0xf]
        %v8645 = vld [vmem:[%s8629 + $0x3c] sm:$0xf]
        %v8647 = vunpack.c.l.b16 %v8312
        %v8648 = vpack.c.b16 %v8647, %v8647
        %v8649 = vrot.slane %v8648, 2
        %v8667 = vunpack.c.l.b16 %v8630
        %v8668 = vunpack.c.l.b16 %v8631
        %v8669 = vunpack.c.l.b16 %v8632
        %v8670 = vunpack.c.l.b16 %v8633
        %v8671 = vunpack.c.l.b16 %v8634
        %v8672 = vunpack.c.l.b16 %v8635
        %v8673 = vunpack.c.l.b16 %v8636
        %v8674 = vunpack.c.l.b16 %v8637
        %v8675 = vunpack.c.l.b16 %v8638
        %v8676 = vunpack.c.l.b16 %v8639
        %v8677 = vunpack.c.l.b16 %v8640
        %v8678 = vunpack.c.l.b16 %v8641
        %v8679 = vunpack.c.l.b16 %v8642
        %v8680 = vunpack.c.l.b16 %v8643
        %v8681 = vunpack.c.l.b16 %v8644
        %v8682 = vunpack.c.l.b16 %v8645
        %v8683 = vpack.c.b16 %v8668, %v8667
        %v8684 = vpack.c.b16 %v8670, %v8669
        %v8685 = vpack.c.b16 %v8672, %v8671
        %v8686 = vpack.c.b16 %v8674, %v8673
        %v8687 = vpack.c.b16 %v8676, %v8675
        %v8688 = vpack.c.b16 %v8678, %v8677
        %v8689 = vpack.c.b16 %v8680, %v8679
        %v8690 = vpack.c.b16 %v8682, %v8681
        %8699 = vmatpush.bf16.msra.mxu0 %v8690
        %8700 = vmatpush.bf16.msra.mxu0 %v8689
        %8701 = vmatpush.bf16.msra.mxu0 %v8688
        %8702 = vmatpush.bf16.msra.mxu0 %v8687
        %8703 = vmatpush.bf16.msra.mxu0 %v8686
        %8704 = vmatpush.bf16.msra.mxu0 %v8685
        %8705 = vmatpush.bf16.msra.mxu0 %v8684
        %8706 = vmatpush.bf16.msra.mxu0 %v8683
        %8707 = vmatmul.bf16.gmra.mxu0 %v8649
        %v8708 = vpop.f32.mrf.mxu0
        %v8709 = vadd.f32 0.0, %v8708
        %v8710 = vpop.f32.mrf.mxu0
        %8711 = vdwg.mxu0
        %v8728 = vunpack.c.l.b16 %v8313
        %v8729 = vunpack.c.l.b16 %v8314
        %v8730 = vunpack.c.l.b16 %v8315
        %v8731 = vunpack.c.l.b16 %v8316
        %v8732 = vunpack.c.l.b16 %v8317
        %v8733 = vunpack.c.l.b16 %v8318
        %v8734 = vunpack.c.l.b16 %v8319
        %v8735 = vunpack.c.l.b16 %v8320
        %v8736 = vunpack.c.l.b16 %v8321
        %v8737 = vunpack.c.l.b16 %v8322
        %v8738 = vunpack.c.l.b16 %v8323
        %v8739 = vunpack.c.l.b16 %v8324
        %v8740 = vunpack.c.l.b16 %v8325
        %v8741 = vunpack.c.l.b16 %v8326
        %v8742 = vunpack.c.l.b16 %v8327
        %v8743 = vunpack.c.l.b16 %v8328
        %v8744 = vpack.c.b16 %v8729, %v8728
        %v8745 = vpack.c.b16 %v8731, %v8730
        %v8746 = vpack.c.b16 %v8733, %v8732
        %v8747 = vpack.c.b16 %v8735, %v8734
        %v8748 = vpack.c.b16 %v8737, %v8736
        %v8749 = vpack.c.b16 %v8739, %v8738
        %v8750 = vpack.c.b16 %v8741, %v8740
        %v8751 = vpack.c.b16 %v8743, %v8742
        %8760 = vmatpush.bf16.msra.mxu0 %v8751
        %8761 = vmatpush.bf16.msra.mxu0 %v8750
        %8762 = vmatpush.bf16.msra.mxu0 %v8749
        %8763 = vmatpush.bf16.msra.mxu0 %v8748
        %8764 = vmatpush.bf16.msra.mxu0 %v8747
        %8765 = vmatpush.bf16.msra.mxu0 %v8746
        %8766 = vmatpush.bf16.msra.mxu0 %v8745
        %8767 = vmatpush.bf16.msra.mxu0 %v8744
        %8768 = vmatmul.bf16.gmra.mxu0 %v8309
        %v8769 = vpop.f32.mrf.mxu0
        %v8770 = vadd.f32 %v8409, %v8769
        %v8771 = vpop.f32.mrf.mxu0
        %8772 = vdwg.mxu0
        %v8789 = vunpack.c.l.b16 %v8413
        %v8790 = vunpack.c.l.b16 %v8414
        %v8791 = vunpack.c.l.b16 %v8415
        %v8792 = vunpack.c.l.b16 %v8416
        %v8793 = vunpack.c.l.b16 %v8417
        %v8794 = vunpack.c.l.b16 %v8418
        %v8795 = vunpack.c.l.b16 %v8419
        %v8796 = vunpack.c.l.b16 %v8420
        %v8797 = vunpack.c.l.b16 %v8421
        %v8798 = vunpack.c.l.b16 %v8422
        %v8799 = vunpack.c.l.b16 %v8423
        %v8800 = vunpack.c.l.b16 %v8424
        %v8801 = vunpack.c.l.b16 %v8425
        %v8802 = vunpack.c.l.b16 %v8426
        %v8803 = vunpack.c.l.b16 %v8427
        %v8804 = vunpack.c.l.b16 %v8428
        %v8805 = vpack.c.b16 %v8790, %v8789
        %v8806 = vpack.c.b16 %v8792, %v8791
        %v8807 = vpack.c.b16 %v8794, %v8793
        %v8808 = vpack.c.b16 %v8796, %v8795
        %v8809 = vpack.c.b16 %v8798, %v8797
        %v8810 = vpack.c.b16 %v8800, %v8799
        %v8811 = vpack.c.b16 %v8802, %v8801
        %v8812 = vpack.c.b16 %v8804, %v8803
        %8821 = vmatpush.bf16.msra.mxu0 %v8812
        %8822 = vmatpush.bf16.msra.mxu0 %v8811
        %8823 = vmatpush.bf16.msra.mxu0 %v8810
        %8824 = vmatpush.bf16.msra.mxu0 %v8809
        %8825 = vmatpush.bf16.msra.mxu0 %v8808
        %8826 = vmatpush.bf16.msra.mxu0 %v8807
        %8827 = vmatpush.bf16.msra.mxu0 %v8806
        %8828 = vmatpush.bf16.msra.mxu0 %v8805
        %8829 = vmatmul.bf16.gmra.mxu0 %v8310
        %v8830 = vpop.f32.mrf.mxu0
        %v8831 = vadd.f32 %v8509, %v8830
        %v8832 = vpop.f32.mrf.mxu0
        %8833 = vdwg.mxu0
        %v8850 = vunpack.c.l.b16 %v8513
        %v8851 = vunpack.c.l.b16 %v8514
        %v8852 = vunpack.c.l.b16 %v8515
        %v8853 = vunpack.c.l.b16 %v8516
        %v8854 = vunpack.c.l.b16 %v8517
        %v8855 = vunpack.c.l.b16 %v8518
        %v8856 = vunpack.c.l.b16 %v8519
        %v8857 = vunpack.c.l.b16 %v8520
        %v8858 = vunpack.c.l.b16 %v8521
        %v8859 = vunpack.c.l.b16 %v8522
        %v8860 = vunpack.c.l.b16 %v8523
        %v8861 = vunpack.c.l.b16 %v8524
        %v8862 = vunpack.c.l.b16 %v8525
        %v8863 = vunpack.c.l.b16 %v8526
        %v8864 = vunpack.c.l.b16 %v8527
        %v8865 = vunpack.c.l.b16 %v8528
        %v8866 = vpack.c.b16 %v8851, %v8850
        %v8867 = vpack.c.b16 %v8853, %v8852
        %v8868 = vpack.c.b16 %v8855, %v8854
        %v8869 = vpack.c.b16 %v8857, %v8856
        %v8870 = vpack.c.b16 %v8859, %v8858
        %v8871 = vpack.c.b16 %v8861, %v8860
        %v8872 = vpack.c.b16 %v8863, %v8862
        %v8873 = vpack.c.b16 %v8865, %v8864
        %8882 = vmatpush.bf16.msra.mxu0 %v8873
        %8883 = vmatpush.bf16.msra.mxu0 %v8872
        %8884 = vmatpush.bf16.msra.mxu0 %v8871
        %8885 = vmatpush.bf16.msra.mxu0 %v8870
        %8886 = vmatpush.bf16.msra.mxu0 %v8869
        %8887 = vmatpush.bf16.msra.mxu0 %v8868
        %8888 = vmatpush.bf16.msra.mxu0 %v8867
        %8889 = vmatpush.bf16.msra.mxu0 %v8866
        %8890 = vmatmul.bf16.gmra.mxu0 %v8311
        %v8891 = vpop.f32.mrf.mxu0
        %v8892 = vadd.f32 %v8609, %v8891
        %v8893 = vpop.f32.mrf.mxu0
        %8894 = vdwg.mxu0
        %v8911 = vunpack.c.l.b16 %v8613
        %v8912 = vunpack.c.l.b16 %v8614
        %v8913 = vunpack.c.l.b16 %v8615
        %v8914 = vunpack.c.l.b16 %v8616
        %v8915 = vunpack.c.l.b16 %v8617
        %v8916 = vunpack.c.l.b16 %v8618
        %v8917 = vunpack.c.l.b16 %v8619
        %v8918 = vunpack.c.l.b16 %v8620
        %v8919 = vunpack.c.l.b16 %v8621
        %v8920 = vunpack.c.l.b16 %v8622
        %v8921 = vunpack.c.l.b16 %v8623
        %v8922 = vunpack.c.l.b16 %v8624
        %v8923 = vunpack.c.l.b16 %v8625
        %v8924 = vunpack.c.l.b16 %v8626
        %v8925 = vunpack.c.l.b16 %v8627
        %v8926 = vunpack.c.l.b16 %v8628
        %v8927 = vpack.c.b16 %v8912, %v8911
        %v8928 = vpack.c.b16 %v8914, %v8913
        %v8929 = vpack.c.b16 %v8916, %v8915
        %v8930 = vpack.c.b16 %v8918, %v8917
        %v8931 = vpack.c.b16 %v8920, %v8919
        %v8932 = vpack.c.b16 %v8922, %v8921
        %v8933 = vpack.c.b16 %v8924, %v8923
        %v8934 = vpack.c.b16 %v8926, %v8925
        %8943 = vmatpush.bf16.msra.mxu0 %v8934
        %8944 = vmatpush.bf16.msra.mxu0 %v8933
        %8945 = vmatpush.bf16.msra.mxu0 %v8932
        %8946 = vmatpush.bf16.msra.mxu0 %v8931
        %8947 = vmatpush.bf16.msra.mxu0 %v8930
        %8948 = vmatpush.bf16.msra.mxu0 %v8929
        %8949 = vmatpush.bf16.msra.mxu0 %v8928
        %8950 = vmatpush.bf16.msra.mxu0 %v8927
        %8951 = vmatmul.bf16.gmra.mxu0 %v8312
        %v8952 = vpop.f32.mrf.mxu0
        %v8953 = vadd.f32 %v8709, %v8952
        %v8954 = vpop.f32.mrf.mxu0
        %8955 = vdwg.mxu0
        %v8956 = vadd.f32 %v8770, %v8831
        %v8957 = vadd.f32 %v8892, %v8953
        %v8958 = vadd.f32 %v8956, %v8957
        %v8959 = vld [vmem:[%s6] sm:$0x1]
        %v8961 = vperm.slane %v8959, 0
        %v8963 = vadd.f32 %v8958, %v8961
        %8964 = vst [vmem:[%s288] sm:$0xf] %v8963
        %s8965 = sand.u32 %s182, 1
        %s8966 = scalar_lea.sflag [#allocation6], %s8965
        %s8967 = sand.u32 %s182, 1
        %s8968 = smul.addr %s8967, 4
        %s8969 = scalar_lea.vmem [#allocation7], %s8968
        // Predicated region
        $region53: #{simple_cnn_forward.1} parent=47 // pred_check
          %p8970 = pneg %p192
        $region54: #{simple_cnn_forward.1} parent=47 // pred_check_branch
          %8972 = sbr.rel (%p8970) target = $region56
        $region55: #{simple_cnn_forward.1} parent=47 // pred_region
          %8974 = vsyncadd %s8966, 0
          %s8975 = smul.addr %s22, 4
          %s8976 = scalar_lea.hbm %s7, %s8975
          %s8978 = sshll.u32 %s8969, 4
          %s8979 = int_to_ptr.vmem [resolvable:$true] %s8978
          %s8980 = sshll.u32 %s8976, 4
          %s8981 = int_to_ptr.hbm [resolvable:$true] %s8980
          %8983 = dma.vmem_to_hbm [thread:$0]  %s8979, 64, %s8981, %s8966
        $region56: #{simple_cnn_forward.1} parent=47 // pred_fallthru
          _
      $region48: #{simple_cnn_forward.1} parent=5 // pred_fallthru
        _
      %p8984 = scmp.le.s32.totalorder 2, %s17
      // Predicated region
      $region57: #{simple_cnn_forward.1} parent=5 // pred_check
        %p8985 = pneg %p8984
      $region58: #{simple_cnn_forward.1} parent=5 // pred_check_branch
        %8987 = sbr.rel (%p8985) target = $region60
      $region59: #{simple_cnn_forward.1} parent=5 // pred_region
        %s8988 = ssub.s32 %s17, 2
        // Predicated region
        $region61: #{simple_cnn_forward.1} parent=59 // pred_check
          %p8989 = pneg %p198
        $region62: #{simple_cnn_forward.1} parent=59 // pred_check_branch
          %8991 = sbr.rel (%p8989) target = $region64
        $region63: #{simple_cnn_forward.1} parent=59 // pred_region
          %s8992 = sand.u32 %s183, 1
          %s8993 = scalar_lea.sflag [#allocation6], %s8992
          %s8994 = sand.u32 %s183, 1
          %s8995 = smul.addr %s8994, 4
          %s8996 = scalar_lea.vmem [#allocation7], %s8995
          %8998 = dma.done %s8993, 64
        $region64: #{simple_cnn_forward.1} parent=59 // pred_fallthru
          _
      $region60: #{simple_cnn_forward.1} parent=5 // pred_fallthru
        _
    $region6: #{simple_cnn_forward.1} parent=1 // loop_footer
      %s21 = sadd.s32 1, %s17
    $region7: #{simple_cnn_forward.1} parent=1 // loop_footer_branch
      %16 = sbr.rel target = $region3
    $region8: #{simple_cnn_forward.1} parent=1 // loop_exit
      _
    %8999 = vsyncpa [#allocation5], 1
    %s9000 = scalar_lea.sflag [#allocation5], 1
    %9001 = vsyncpa %s9000, 1
    %9002 = vsyncpa [#allocation6], 1
    %s9003 = scalar_lea.sflag [#allocation6], 1
    %9004 = vsyncpa %s9003, 1

</llo_original>
